<compile_context>
chip_gen: v5e
topology: v5e:2x2
jax: 0.10.0
libtpu: 0.0.40
codegen_flags: <defaults>
</compile_context>

<pallas_src>
import functools

import jax
import jax.numpy as jnp
from jax import lax
from jax.experimental import pallas as pl
from jax.experimental.pallas import tpu as pltpu


# ----------------------------------------------------------------------------
# Synthetic wav2vec2 config
# ----------------------------------------------------------------------------
CONV_DIM = 32
HIDDEN = 32
NUM_HEADS = 4
HEAD_DIM = HIDDEN // NUM_HEADS
FFN_DIM = 64
NUM_LAYERS = 2
POS_GROUPS = 4
POS_KERNEL = 3
LN_EPS = 1e-5

CONV0_K, CONV0_S = 10, 5
CONV1_K, CONV1_S = 3, 2
FRAME = CONV0_S * CONV1_S          # samples per packed input row (= 10)


# ----------------------------------------------------------------------------
# The fused whole-network kernel (one batch element per grid step)
# ----------------------------------------------------------------------------
def _wav2vec2_kernel(
    x_ref,
    c0w_ref, c0b_ref, c1w_ref, c1b_ref,
    fpg_ref, fpb_ref, fpw_ref, fpbias_ref,
    posw_ref, posb_ref, encg_ref, encb_ref,
    wq_ref, wk_ref, wv_ref, bq_ref, woh_ref, bo_ref,
    ln1g_ref, ln1b_ref, w1_ref, b1_ref, w2_ref, b2_ref,
    ln2g_ref, ln2b_ref,
    o_ref,
    *, t_real, nheads, nlayers, scale, eps):
    tp, hdim = o_ref.shape
    bf16, f32 = jnp.bfloat16, jnp.float32

    def ln(y, g, b):
        mu = jnp.mean(y, axis=-1, keepdims=True)
        var = jnp.mean(jnp.square(y - mu), axis=-1, keepdims=True)
        return (y - mu) * lax.rsqrt(var + eps) * g + b

    def mm(a, w):                      # bf16 MXU matmul, f32 accumulation
        return jnp.dot(a.astype(bf16), w, preferred_element_type=f32)

    def shift_up(a):                   # result[t] = a[t + 1]  (wraps at end)
        return pltpu.roll(a, shift=tp - 1, axis=0)

    def shift_down(a):                 # result[t] = a[t - 1]  (wraps at start)
        return pltpu.roll(a, shift=1, axis=0)

    # TODO(synk): HF wav2vec2 uses exact (erf) GELU; tanh approximation here.
    gelu = functools.partial(jax.nn.gelu, approximate=True)

    # ---- feature extractor conv0 (k=10, s=5): even/odd shifted matmuls ----
    x = x_ref[...]                                         # (tp, 10) f32
    xn = shift_up(x)
    c0b = c0b_ref[...]
    h0e = gelu(mm(x, c0w_ref[0]) + c0b)                    # even conv0 frames
    h0o = gelu(mm(x, c0w_ref[1]) + mm(xn, c0w_ref[2]) + c0b)   # odd frames

    # ---- conv1 (k=3, s=2) over (even, odd, next-even) ----
    h1 = gelu(mm(h0e, c1w_ref[0]) + mm(h0o, c1w_ref[1])
              + mm(shift_up(h0e), c1w_ref[2]) + c1b_ref[...])

    # ---- feature projection: LayerNorm + Linear (dropout = eval no-op) ----
    h = mm(ln(h1, fpg_ref[...], fpb_ref[...]), fpw_ref[...]) + fpbias_ref[...]

    # ---- grouped positional conv (block-diag weight) + GELU + resid + LN ----
    ridx = lax.broadcasted_iota(jnp.int32, (tp, hdim), 0)
    hm = jnp.where(ridx < t_real, h, 0.0)                  # zero padded rows
    y = (mm(shift_down(hm), posw_ref[0]) + mm(hm, posw_ref[1])
         + mm(shift_up(hm), posw_ref[2]) + posb_ref[...])
    y = gelu(y) + hm
    h = ln(y, encg_ref[...], encb_ref[...])

    # ---- transformer encoder (static unroll over layers / heads) ----
    kmask = lax.broadcasted_iota(jnp.int32, (tp, tp), 1) < t_real
    for l in range(nlayers):
        hb = h.astype(bf16)
        acc = jnp.zeros((tp, hdim), f32)
        for hd in range(nheads):
            qh = (jnp.dot(hb, wq_ref[l, hd], preferred_element_type=f32)
                  + bq_ref[l, hd])
            kh = jnp.dot(hb, wk_ref[l, hd], preferred_element_type=f32)
            vh = jnp.dot(hb, wv_ref[l, hd], preferred_element_type=f32)
            s = lax.dot_general(qh.astype(bf16), kh.astype(bf16),
                                (((1,), (1,)), ((), ())),
                                preferred_element_type=f32) * scale
            s = jnp.where(kmask, s, -1e30)                 # mask padded keys
            m = jnp.max(s, axis=-1, keepdims=True)
            p = jnp.exp(s - m)
            lsum = jnp.sum(p, axis=-1, keepdims=True)
            oh = mm(p, vh.astype(bf16)) * (1.0 / lsum)
            acc = acc + mm(oh, woh_ref[l, hd])             # folded out-proj
        y = acc + bo_ref[l] + h
        h = ln(y, ln1g_ref[l], ln1b_ref[l])
        u = gelu(mm(h, w1_ref[l]) + b1_ref[l])
        y = mm(u, w2_ref[l]) + b2_ref[l] + h               # FFN stays in VMEM
        h = ln(y, ln2g_ref[l], ln2b_ref[l])

    o_ref[...] = h.astype(o_ref.dtype)


# ----------------------------------------------------------------------------
# pallas_call wrapper
# ----------------------------------------------------------------------------
def _full_spec(arr):
    nd = arr.ndim
    return pl.BlockSpec(arr.shape, lambda i, _nd=nd: (0,) * _nd)


def wav2vec2_forward(params, x):
    """x: (B, 1, L) raw audio -> last_hidden_state (B, T, HIDDEN)."""
    x = jnp.squeeze(x, axis=1)                    # torch .squeeze(1)
    bsz, L = x.shape
    assert CONV0_K == 2 * CONV0_S and L % FRAME == 0
    t_pad = L // FRAME                            # 80 (padded time)
    l0 = (L - CONV0_K) // CONV0_S + 1             # 159 frames after conv0
    t_real = (l0 - CONV1_K) // CONV1_S + 1        # 79 real frames after conv1
    xf = x.reshape(bsz, t_pad, FRAME)

    w_order = ("c0w", "c0b", "c1w", "c1b", "fp_g", "fp_b", "fp_w", "fp_bias",
               "pos_w", "pos_b", "enc_g", "enc_b",
               "wq", "wk", "wv", "bq", "wo_h", "bo",
               "ln1_g", "ln1_b", "w1", "b1", "w2", "b2", "ln2_g", "ln2_b")
    weights = [params[k] for k in w_order]

    kernel = functools.partial(
        _wav2vec2_kernel, t_real=t_real, nheads=NUM_HEADS, nlayers=NUM_LAYERS,
        scale=1.0 / float(HEAD_DIM) ** 0.5, eps=LN_EPS)

    out = pl.pallas_call(
        kernel,
        grid=(bsz,),
        in_specs=[pl.BlockSpec((None, t_pad, FRAME), lambda i: (i, 0, 0))]
                 + [_full_spec(w) for w in weights],
        out_specs=pl.BlockSpec((None, t_pad, HIDDEN), lambda i: (i, 0, 0)),
        out_shape=jax.ShapeDtypeStruct((bsz, t_pad, HIDDEN), jnp.float32),
        compiler_params=pltpu.CompilerParams(
            dimension_semantics=("parallel",)),   # 2-way grid -> both v7x TCs
    )(xf, *weights)

    return out[:, :t_real, :]                     # drop the padded row


# ----------------------------------------------------------------------------
# Synthetic parameters (deterministic), packed for the fused kernel
# ----------------------------------------------------------------------------
def init_params(key):
    std = 0.02
    ks = iter(jax.random.split(key, 32))

    def nrm(shape):
        return std * jax.random.normal(next(ks), shape, dtype=jnp.float32)

    # conv0 (k=10, Cin=1, s=5) repacked for even/odd shifted matmuls over
    # (t_pad, 10) frames: even rows use the full kernel on the current frame,
    # odd rows split the kernel across the current and next frame.
    w0 = nrm((CONV0_K, CONV_DIM))                       # (10, 32)
    z5 = jnp.zeros((CONV0_S, CONV_DIM), jnp.float32)
    c0w = jnp.stack([
        w0,
        jnp.concatenate([z5, w0[:CONV0_S]], axis=0),
        jnp.concatenate([w0[CONV0_S:], z5], axis=0),
    ]).astype(jnp.bfloat16)

    # conv1 (k=3, s=2): taps applied to (even, odd, next-even) conv0 outputs.
    c1w = nrm((CONV1_K, CONV_DIM, CONV_DIM)).astype(jnp.bfloat16)

    # Grouped positional conv packed as block-diagonal (K, H, H).
    cg = HIDDEN // POS_GROUPS
    pos_g = nrm((POS_GROUPS, POS_KERNEL, cg, cg))
    wpos = jnp.zeros((POS_KERNEL, HIDDEN, HIDDEN), jnp.float32)
    for g in range(POS_GROUPS):
        wpos = wpos.at[:, g * cg:(g + 1) * cg, g * cg:(g + 1) * cg].set(pos_g[g])

    def split_heads_in(w):    # (H, H) -> (NH, H, d): per-head q/k/v weights
        return w.reshape(HIDDEN, NUM_HEADS, HEAD_DIM).transpose(1, 0, 2)

    wq_l, wk_l, wv_l, bq_l, woh_l, bo_l = [], [], [], [], [], []
    ln1g_l, ln1b_l, w1_l, b1_l, w2_l, b2_l, ln2g_l, ln2b_l = (
        [] for _ in range(8))
    for _ in range(NUM_LAYERS):
        wq, wk, wv, wo = (nrm((HIDDEN, HIDDEN)) for _ in range(4))
        wq_l.append(split_heads_in(wq))
        wk_l.append(split_heads_in(wk))
        wv_l.append(split_heads_in(wv))
        bq_l.append(jnp.zeros((NUM_HEADS, 1, HEAD_DIM), jnp.float32))
        woh_l.append(wo.reshape(NUM_HEADS, HEAD_DIM, HIDDEN))  # per-head out-proj
        # k-proj bias cancels in softmax; v-proj bias folds into bo (zero here).
        bo_l.append(jnp.zeros((1, HIDDEN), jnp.float32))
        ln1g_l.append(jnp.ones((1, HIDDEN), jnp.float32))
        ln1b_l.append(jnp.zeros((1, HIDDEN), jnp.float32))
        w1_l.append(nrm((HIDDEN, FFN_DIM)))
        b1_l.append(jnp.zeros((1, FFN_DIM), jnp.float32))
        w2_l.append(nrm((FFN_DIM, HIDDEN)))
        b2_l.append(jnp.zeros((1, HIDDEN), jnp.float32))
        ln2g_l.append(jnp.ones((1, HIDDEN), jnp.float32))
        ln2b_l.append(jnp.zeros((1, HIDDEN), jnp.float32))

    return {
        "c0w": c0w, "c0b": jnp.zeros((1, CONV_DIM), jnp.float32),
        "c1w": c1w, "c1b": jnp.zeros((1, CONV_DIM), jnp.float32),
        "fp_g": jnp.ones((1, CONV_DIM), jnp.float32),
        "fp_b": jnp.zeros((1, CONV_DIM), jnp.float32),
        "fp_w": nrm((CONV_DIM, HIDDEN)).astype(jnp.bfloat16),
        "fp_bias": jnp.zeros((1, HIDDEN), jnp.float32),
        "pos_w": wpos.astype(jnp.bfloat16),
        "pos_b": jnp.zeros((1, HIDDEN), jnp.float32),
        "enc_g": jnp.ones((1, HIDDEN), jnp.float32),
        "enc_b": jnp.zeros((1, HIDDEN), jnp.float32),
        "wq": jnp.stack(wq_l).astype(jnp.bfloat16),     # (L, NH, H, d)
        "wk": jnp.stack(wk_l).astype(jnp.bfloat16),
        "wv": jnp.stack(wv_l).astype(jnp.bfloat16),
        "bq": jnp.stack(bq_l),                          # (L, NH, 1, d)
        "wo_h": jnp.stack(woh_l).astype(jnp.bfloat16),  # (L, NH, d, H)
        "bo": jnp.stack(bo_l),                          # (L, 1, H)
        "ln1_g": jnp.stack(ln1g_l), "ln1_b": jnp.stack(ln1b_l),
        "w1": jnp.stack(w1_l).astype(jnp.bfloat16), "b1": jnp.stack(b1_l),
        "w2": jnp.stack(w2_l).astype(jnp.bfloat16), "b2": jnp.stack(b2_l),
        "ln2_g": jnp.stack(ln2g_l), "ln2_b": jnp.stack(ln2b_l),
    }


# ----------------------------------------------------------------------------
# main
# ----------------------------------------------------------------------------
if __name__ == "__main__":
    key = jax.random.PRNGKey(0)
    pk, xk = jax.random.split(key)
    params = init_params(pk)

    B, L = 2, 800
    x = jax.random.normal(xk, (B, 1, L), dtype=jnp.float32)

    fwd = jax.jit(wav2vec2_forward)
    y = jax.block_until_ready(fwd(params, x))

    # (800-10)//5+1 = 159 frames after conv0; (159-3)//2+1 = 79 after conv1.
    assert y.shape == (B, 79, HIDDEN), y.shape
    assert bool(jnp.all(jnp.isfinite(y)))
    print("KERNEL_OK")
</pallas_src>

<mosaic_0001>
module attributes {stable_mosaic.version = 11 : i64} {
  func.func @_wav2vec2_kernel(%arg0: i32, %arg1: memref<1x80x10xf32, #tpu.memory_space<vmem>>, %arg2: memref<3x10x32xbf16, #tpu.memory_space<vmem>>, %arg3: memref<1x32xf32, #tpu.memory_space<vmem>>, %arg4: memref<3x32x32xbf16, #tpu.memory_space<vmem>>, %arg5: memref<1x32xf32, #tpu.memory_space<vmem>>, %arg6: memref<1x32xf32, #tpu.memory_space<vmem>>, %arg7: memref<1x32xf32, #tpu.memory_space<vmem>>, %arg8: memref<32x32xbf16, #tpu.memory_space<vmem>>, %arg9: memref<1x32xf32, #tpu.memory_space<vmem>>, %arg10: memref<3x32x32xbf16, #tpu.memory_space<vmem>>, %arg11: memref<1x32xf32, #tpu.memory_space<vmem>>, %arg12: memref<1x32xf32, #tpu.memory_space<vmem>>, %arg13: memref<1x32xf32, #tpu.memory_space<vmem>>, %arg14: memref<2x4x32x8xbf16, #tpu.memory_space<vmem>>, %arg15: memref<2x4x32x8xbf16, #tpu.memory_space<vmem>>, %arg16: memref<2x4x32x8xbf16, #tpu.memory_space<vmem>>, %arg17: memref<2x4x1x8xf32, #tpu.memory_space<vmem>>, %arg18: memref<2x4x8x32xbf16, #tpu.memory_space<vmem>>, %arg19: memref<2x1x32xf32, #tpu.memory_space<vmem>>, %arg20: memref<2x1x32xf32, #tpu.memory_space<vmem>>, %arg21: memref<2x1x32xf32, #tpu.memory_space<vmem>>, %arg22: memref<2x32x64xbf16, #tpu.memory_space<vmem>>, %arg23: memref<2x1x64xf32, #tpu.memory_space<vmem>>, %arg24: memref<2x64x32xbf16, #tpu.memory_space<vmem>>, %arg25: memref<2x1x32xf32, #tpu.memory_space<vmem>>, %arg26: memref<2x1x32xf32, #tpu.memory_space<vmem>>, %arg27: memref<2x1x32xf32, #tpu.memory_space<vmem>>, %arg28: memref<1x80x32xf32, #tpu.memory_space<vmem>>) attributes {dimension_semantics = [#tpu.dimension_semantics<parallel>], iteration_bounds = array<i64: 2>, scalar_prefetch = 0 : i64, scratch_operands = 0 : i64, tpu.core_type = #tpu.core_type<tc>, window_params = [{transform_indices = @transform_0, window_bounds = array<i64: 1, 80, 10>}, {pipeline_mode = #tpu.pipeline_mode<synchronous>, transform_indices = @transform_1, window_bounds = array<i64: 3, 10, 32>}, {pipeline_mode = #tpu.pipeline_mode<synchronous>, transform_indices = @transform_2, window_bounds = array<i64: 1, 32>}, {pipeline_mode = #tpu.pipeline_mode<synchronous>, transform_indices = @transform_3, window_bounds = array<i64: 3, 32, 32>}, {pipeline_mode = #tpu.pipeline_mode<synchronous>, transform_indices = @transform_4, window_bounds = array<i64: 1, 32>}, {pipeline_mode = #tpu.pipeline_mode<synchronous>, transform_indices = @transform_5, window_bounds = array<i64: 1, 32>}, {pipeline_mode = #tpu.pipeline_mode<synchronous>, transform_indices = @transform_6, window_bounds = array<i64: 1, 32>}, {pipeline_mode = #tpu.pipeline_mode<synchronous>, transform_indices = @transform_7, window_bounds = array<i64: 32, 32>}, {pipeline_mode = #tpu.pipeline_mode<synchronous>, transform_indices = @transform_8, window_bounds = array<i64: 1, 32>}, {pipeline_mode = #tpu.pipeline_mode<synchronous>, transform_indices = @transform_9, window_bounds = array<i64: 3, 32, 32>}, {pipeline_mode = #tpu.pipeline_mode<synchronous>, transform_indices = @transform_10, window_bounds = array<i64: 1, 32>}, {pipeline_mode = #tpu.pipeline_mode<synchronous>, transform_indices = @transform_11, window_bounds = array<i64: 1, 32>}, {pipeline_mode = #tpu.pipeline_mode<synchronous>, transform_indices = @transform_12, window_bounds = array<i64: 1, 32>}, {pipeline_mode = #tpu.pipeline_mode<synchronous>, transform_indices = @transform_13, window_bounds = array<i64: 2, 4, 32, 8>}, {pipeline_mode = #tpu.pipeline_mode<synchronous>, transform_indices = @transform_14, window_bounds = array<i64: 2, 4, 32, 8>}, {pipeline_mode = #tpu.pipeline_mode<synchronous>, transform_indices = @transform_15, window_bounds = array<i64: 2, 4, 32, 8>}, {pipeline_mode = #tpu.pipeline_mode<synchronous>, transform_indices = @transform_16, window_bounds = array<i64: 2, 4, 1, 8>}, {pipeline_mode = #tpu.pipeline_mode<synchronous>, transform_indices = @transform_17, window_bounds = array<i64: 2, 4, 8, 32>}, {pipeline_mode = #tpu.pipeline_mode<synchronous>, transform_indices = @transform_18, window_bounds = array<i64: 2, 1, 32>}, {pipeline_mode = #tpu.pipeline_mode<synchronous>, transform_indices = @transform_19, window_bounds = array<i64: 2, 1, 32>}, {pipeline_mode = #tpu.pipeline_mode<synchronous>, transform_indices = @transform_20, window_bounds = array<i64: 2, 1, 32>}, {pipeline_mode = #tpu.pipeline_mode<synchronous>, transform_indices = @transform_21, window_bounds = array<i64: 2, 32, 64>}, {pipeline_mode = #tpu.pipeline_mode<synchronous>, transform_indices = @transform_22, window_bounds = array<i64: 2, 1, 64>}, {pipeline_mode = #tpu.pipeline_mode<synchronous>, transform_indices = @transform_23, window_bounds = array<i64: 2, 64, 32>}, {pipeline_mode = #tpu.pipeline_mode<synchronous>, transform_indices = @transform_24, window_bounds = array<i64: 2, 1, 32>}, {pipeline_mode = #tpu.pipeline_mode<synchronous>, transform_indices = @transform_25, window_bounds = array<i64: 2, 1, 32>}, {pipeline_mode = #tpu.pipeline_mode<synchronous>, transform_indices = @transform_26, window_bounds = array<i64: 2, 1, 32>}, {transform_indices = @transform_27, window_bounds = array<i64: 1, 80, 32>}]} {
    %c0 = arith.constant 0 : index
    %c0_0 = arith.constant 0 : index
    %c0_1 = arith.constant 0 : index
    %0 = vector.load %arg1[%c0, %c0_0, %c0_1] : memref<1x80x10xf32, #tpu.memory_space<vmem>>, vector<1x80x10xf32>
    %1 = vector.shape_cast %0 : vector<1x80x10xf32> to vector<80x10xf32>
    %c79_i32 = arith.constant 79 : i32
    %2 = tpu.dynamic_rotate %1 by %c79_i32 dim 0 : vector<80x10xf32>, i32 -> vector<80x10xf32>
    %c0_2 = arith.constant 0 : index
    %c0_3 = arith.constant 0 : index
    %3 = vector.load %arg3[%c0_2, %c0_3] : memref<1x32xf32, #tpu.memory_space<vmem>>, vector<1x32xf32>
    %c0_4 = arith.constant 0 : index
    %c0_5 = arith.constant 0 : index
    %c0_6 = arith.constant 0 : index
    %4 = vector.load %arg2[%c0_4, %c0_5, %c0_6] : memref<3x10x32xbf16, #tpu.memory_space<vmem>>, vector<1x10x32xbf16>
    %5 = vector.shape_cast %4 : vector<1x10x32xbf16> to vector<10x32xbf16>
    %6 = arith.truncf %1 : vector<80x10xf32> to vector<80x10xbf16>
    %cst = arith.constant dense<0.000000e+00> : vector<80x32xf32>
    %7 = tpu.matmul %6, %5, %cst {dimension_numbers = #tpu.dot_dimension_numbers<[1], [0], [0], [1], [0, 0, 1, 1], [], []>} : vector<80x10xbf16>, vector<10x32xbf16>, vector<80x32xf32> -> vector<80x32xf32>
    %8 = vector.broadcast %3 : vector<1x32xf32> to vector<80x32xf32>
    %9 = arith.addf %7, %8 : vector<80x32xf32>
    %10 = arith.mulf %9, %9 : vector<80x32xf32>
    %11 = arith.mulf %9, %10 : vector<80x32xf32>
    %cst_7 = arith.constant 4.471500e-02 : f32
    %12 = vector.broadcast %cst_7 : f32 to vector<80x32xf32>
    %13 = arith.mulf %12, %11 : vector<80x32xf32>
    %14 = arith.addf %9, %13 : vector<80x32xf32>
    %cst_8 = arith.constant 0.797884583 : f32
    %15 = vector.broadcast %cst_8 : f32 to vector<80x32xf32>
    %16 = arith.mulf %15, %14 : vector<80x32xf32>
    %17 = math.tanh %16 : vector<80x32xf32>
    %cst_9 = arith.constant 1.000000e+00 : f32
    %18 = vector.broadcast %cst_9 : f32 to vector<80x32xf32>
    %19 = arith.addf %18, %17 : vector<80x32xf32>
    %cst_10 = arith.constant 5.000000e-01 : f32
    %20 = vector.broadcast %cst_10 : f32 to vector<80x32xf32>
    %21 = arith.mulf %20, %19 : vector<80x32xf32>
    %22 = arith.mulf %9, %21 : vector<80x32xf32>
    %c1 = arith.constant 1 : index
    %c0_11 = arith.constant 0 : index
    %c0_12 = arith.constant 0 : index
    %23 = vector.load %arg2[%c1, %c0_11, %c0_12] : memref<3x10x32xbf16, #tpu.memory_space<vmem>>, vector<1x10x32xbf16>
    %24 = vector.shape_cast %23 : vector<1x10x32xbf16> to vector<10x32xbf16>
    %25 = arith.truncf %1 : vector<80x10xf32> to vector<80x10xbf16>
    %cst_13 = arith.constant dense<0.000000e+00> : vector<80x32xf32>
    %26 = tpu.matmul %25, %24, %cst_13 {dimension_numbers = #tpu.dot_dimension_numbers<[1], [0], [0], [1], [0, 0, 1, 1], [], []>} : vector<80x10xbf16>, vector<10x32xbf16>, vector<80x32xf32> -> vector<80x32xf32>
    %c2 = arith.constant 2 : index
    %c0_14 = arith.constant 0 : index
    %c0_15 = arith.constant 0 : index
    %27 = vector.load %arg2[%c2, %c0_14, %c0_15] : memref<3x10x32xbf16, #tpu.memory_space<vmem>>, vector<1x10x32xbf16>
    %28 = vector.shape_cast %27 : vector<1x10x32xbf16> to vector<10x32xbf16>
    %29 = arith.truncf %2 : vector<80x10xf32> to vector<80x10xbf16>
    %cst_16 = arith.constant dense<0.000000e+00> : vector<80x32xf32>
    %30 = tpu.matmul %29, %28, %cst_16 {dimension_numbers = #tpu.dot_dimension_numbers<[1], [0], [0], [1], [0, 0, 1, 1], [], []>} : vector<80x10xbf16>, vector<10x32xbf16>, vector<80x32xf32> -> vector<80x32xf32>
    %31 = arith.addf %26, %30 : vector<80x32xf32>
    %32 = vector.broadcast %3 : vector<1x32xf32> to vector<80x32xf32>
    %33 = arith.addf %31, %32 : vector<80x32xf32>
    %34 = arith.mulf %33, %33 : vector<80x32xf32>
    %35 = arith.mulf %33, %34 : vector<80x32xf32>
    %cst_17 = arith.constant 4.471500e-02 : f32
    %36 = vector.broadcast %cst_17 : f32 to vector<80x32xf32>
    %37 = arith.mulf %36, %35 : vector<80x32xf32>
    %38 = arith.addf %33, %37 : vector<80x32xf32>
    %cst_18 = arith.constant 0.797884583 : f32
    %39 = vector.broadcast %cst_18 : f32 to vector<80x32xf32>
    %40 = arith.mulf %39, %38 : vector<80x32xf32>
    %41 = math.tanh %40 : vector<80x32xf32>
    %cst_19 = arith.constant 1.000000e+00 : f32
    %42 = vector.broadcast %cst_19 : f32 to vector<80x32xf32>
    %43 = arith.addf %42, %41 : vector<80x32xf32>
    %cst_20 = arith.constant 5.000000e-01 : f32
    %44 = vector.broadcast %cst_20 : f32 to vector<80x32xf32>
    %45 = arith.mulf %44, %43 : vector<80x32xf32>
    %46 = arith.mulf %33, %45 : vector<80x32xf32>
    %c0_21 = arith.constant 0 : index
    %c0_22 = arith.constant 0 : index
    %c0_23 = arith.constant 0 : index
    %47 = vector.load %arg4[%c0_21, %c0_22, %c0_23] : memref<3x32x32xbf16, #tpu.memory_space<vmem>>, vector<1x32x32xbf16>
    %48 = vector.shape_cast %47 : vector<1x32x32xbf16> to vector<32x32xbf16>
    %49 = arith.truncf %22 : vector<80x32xf32> to vector<80x32xbf16>
    %cst_24 = arith.constant dense<0.000000e+00> : vector<80x32xf32>
    %50 = tpu.matmul %49, %48, %cst_24 {dimension_numbers = #tpu.dot_dimension_numbers<[1], [0], [0], [1], [0, 0, 1, 1], [], []>} : vector<80x32xbf16>, vector<32x32xbf16>, vector<80x32xf32> -> vector<80x32xf32>
    %c1_25 = arith.constant 1 : index
    %c0_26 = arith.constant 0 : index
    %c0_27 = arith.constant 0 : index
    %51 = vector.load %arg4[%c1_25, %c0_26, %c0_27] : memref<3x32x32xbf16, #tpu.memory_space<vmem>>, vector<1x32x32xbf16>
    %52 = vector.shape_cast %51 : vector<1x32x32xbf16> to vector<32x32xbf16>
    %53 = arith.truncf %46 : vector<80x32xf32> to vector<80x32xbf16>
    %cst_28 = arith.constant dense<0.000000e+00> : vector<80x32xf32>
    %54 = tpu.matmul %53, %52, %cst_28 {dimension_numbers = #tpu.dot_dimension_numbers<[1], [0], [0], [1], [0, 0, 1, 1], [], []>} : vector<80x32xbf16>, vector<32x32xbf16>, vector<80x32xf32> -> vector<80x32xf32>
    %55 = arith.addf %50, %54 : vector<80x32xf32>
    %c79_i32_29 = arith.constant 79 : i32
    %56 = tpu.dynamic_rotate %22 by %c79_i32_29 dim 0 : vector<80x32xf32>, i32 -> vector<80x32xf32>
    %c2_30 = arith.constant 2 : index
    %c0_31 = arith.constant 0 : index
    %c0_32 = arith.constant 0 : index
    %57 = vector.load %arg4[%c2_30, %c0_31, %c0_32] : memref<3x32x32xbf16, #tpu.memory_space<vmem>>, vector<1x32x32xbf16>
    %58 = vector.shape_cast %57 : vector<1x32x32xbf16> to vector<32x32xbf16>
    %59 = arith.truncf %56 : vector<80x32xf32> to vector<80x32xbf16>
    %cst_33 = arith.constant dense<0.000000e+00> : vector<80x32xf32>
    %60 = tpu.matmul %59, %58, %cst_33 {dimension_numbers = #tpu.dot_dimension_numbers<[1], [0], [0], [1], [0, 0, 1, 1], [], []>} : vector<80x32xbf16>, vector<32x32xbf16>, vector<80x32xf32> -> vector<80x32xf32>
    %61 = arith.addf %55, %60 : vector<80x32xf32>
    %c0_34 = arith.constant 0 : index
    %c0_35 = arith.constant 0 : index
    %62 = vector.load %arg5[%c0_34, %c0_35] : memref<1x32xf32, #tpu.memory_space<vmem>>, vector<1x32xf32>
    %63 = vector.broadcast %62 : vector<1x32xf32> to vector<80x32xf32>
    %64 = arith.addf %61, %63 : vector<80x32xf32>
    %65 = arith.mulf %64, %64 : vector<80x32xf32>
    %66 = arith.mulf %64, %65 : vector<80x32xf32>
    %cst_36 = arith.constant 4.471500e-02 : f32
    %67 = vector.broadcast %cst_36 : f32 to vector<80x32xf32>
    %68 = arith.mulf %67, %66 : vector<80x32xf32>
    %69 = arith.addf %64, %68 : vector<80x32xf32>
    %cst_37 = arith.constant 0.797884583 : f32
    %70 = vector.broadcast %cst_37 : f32 to vector<80x32xf32>
    %71 = arith.mulf %70, %69 : vector<80x32xf32>
    %72 = math.tanh %71 : vector<80x32xf32>
    %cst_38 = arith.constant 1.000000e+00 : f32
    %73 = vector.broadcast %cst_38 : f32 to vector<80x32xf32>
    %74 = arith.addf %73, %72 : vector<80x32xf32>
    %cst_39 = arith.constant 5.000000e-01 : f32
    %75 = vector.broadcast %cst_39 : f32 to vector<80x32xf32>
    %76 = arith.mulf %75, %74 : vector<80x32xf32>
    %77 = arith.mulf %64, %76 : vector<80x32xf32>
    %c0_40 = arith.constant 0 : index
    %c0_41 = arith.constant 0 : index
    %78 = vector.load %arg6[%c0_40, %c0_41] : memref<1x32xf32, #tpu.memory_space<vmem>>, vector<1x32xf32>
    %c0_42 = arith.constant 0 : index
    %c0_43 = arith.constant 0 : index
    %79 = vector.load %arg7[%c0_42, %c0_43] : memref<1x32xf32, #tpu.memory_space<vmem>>, vector<1x32xf32>
    %cst_44 = arith.constant dense<0.000000e+00> : vector<80xf32>
    %80 = vector.multi_reduction <add>, %77, %cst_44 [1] : vector<80x32xf32> to vector<80xf32>
    %81 = vector.shape_cast %80 : vector<80xf32> to vector<80x1xf32>
    %cst_45 = arith.constant 3.200000e+01 : f32
    %82 = vector.broadcast %cst_45 : f32 to vector<80x1xf32>
    %83 = arith.divf %81, %82 : vector<80x1xf32>
    %84 = vector.broadcast %83 : vector<80x1xf32> to vector<80x32xf32>
    %85 = arith.subf %77, %84 : vector<80x32xf32>
    %86 = arith.mulf %85, %85 : vector<80x32xf32>
    %cst_46 = arith.constant dense<0.000000e+00> : vector<80xf32>
    %87 = vector.multi_reduction <add>, %86, %cst_46 [1] : vector<80x32xf32> to vector<80xf32>
    %88 = vector.shape_cast %87 : vector<80xf32> to vector<80x1xf32>
    %cst_47 = arith.constant 3.200000e+01 : f32
    %89 = vector.broadcast %cst_47 : f32 to vector<80x1xf32>
    %90 = arith.divf %88, %89 : vector<80x1xf32>
    %91 = vector.broadcast %83 : vector<80x1xf32> to vector<80x32xf32>
    %92 = arith.subf %77, %91 : vector<80x32xf32>
    %cst_48 = arith.constant 9.99999974E-6 : f32
    %93 = vector.broadcast %cst_48 : f32 to vector<80x1xf32>
    %94 = arith.addf %90, %93 : vector<80x1xf32>
    %95 = math.rsqrt %94 : vector<80x1xf32>
    %96 = vector.broadcast %95 : vector<80x1xf32> to vector<80x32xf32>
    %97 = arith.mulf %92, %96 : vector<80x32xf32>
    %98 = vector.broadcast %78 : vector<1x32xf32> to vector<80x32xf32>
    %99 = arith.mulf %97, %98 : vector<80x32xf32>
    %100 = vector.broadcast %79 : vector<1x32xf32> to vector<80x32xf32>
    %101 = arith.addf %99, %100 : vector<80x32xf32>
    %c0_49 = arith.constant 0 : index
    %c0_50 = arith.constant 0 : index
    %102 = vector.load %arg8[%c0_49, %c0_50] : memref<32x32xbf16, #tpu.memory_space<vmem>>, vector<32x32xbf16>
    %103 = arith.truncf %101 : vector<80x32xf32> to vector<80x32xbf16>
    %cst_51 = arith.constant dense<0.000000e+00> : vector<80x32xf32>
    %104 = tpu.matmul %103, %102, %cst_51 {dimension_numbers = #tpu.dot_dimension_numbers<[1], [0], [0], [1], [0, 0, 1, 1], [], []>} : vector<80x32xbf16>, vector<32x32xbf16>, vector<80x32xf32> -> vector<80x32xf32>
    %c0_52 = arith.constant 0 : index
    %c0_53 = arith.constant 0 : index
    %105 = vector.load %arg9[%c0_52, %c0_53] : memref<1x32xf32, #tpu.memory_space<vmem>>, vector<1x32xf32>
    %106 = vector.broadcast %105 : vector<1x32xf32> to vector<80x32xf32>
    %107 = arith.addf %104, %106 : vector<80x32xf32>
    %108 = tpu.iota {dimensions = array<i32: 0>} : vector<80x32xi32>
    %c79_i32_54 = arith.constant 79 : i32
    %109 = vector.broadcast %c79_i32_54 : i32 to vector<80x32xi32>
    %110 = arith.cmpi slt, %108, %109 : vector<80x32xi32>
    %cst_55 = arith.constant 0.000000e+00 : f32
    %111 = vector.broadcast %cst_55 : f32 to vector<80x32xf32>
    %112 = arith.select %110, %107, %111 : vector<80x32xi1>, vector<80x32xf32>
    %c1_i32 = arith.constant 1 : i32
    %113 = tpu.dynamic_rotate %112 by %c1_i32 dim 0 : vector<80x32xf32>, i32 -> vector<80x32xf32>
    %c0_56 = arith.constant 0 : index
    %c0_57 = arith.constant 0 : index
    %c0_58 = arith.constant 0 : index
    %114 = vector.load %arg10[%c0_56, %c0_57, %c0_58] : memref<3x32x32xbf16, #tpu.memory_space<vmem>>, vector<1x32x32xbf16>
    %115 = vector.shape_cast %114 : vector<1x32x32xbf16> to vector<32x32xbf16>
    %116 = arith.truncf %113 : vector<80x32xf32> to vector<80x32xbf16>
    %cst_59 = arith.constant dense<0.000000e+00> : vector<80x32xf32>
    %117 = tpu.matmul %116, %115, %cst_59 {dimension_numbers = #tpu.dot_dimension_numbers<[1], [0], [0], [1], [0, 0, 1, 1], [], []>} : vector<80x32xbf16>, vector<32x32xbf16>, vector<80x32xf32> -> vector<80x32xf32>
    %c1_60 = arith.constant 1 : index
    %c0_61 = arith.constant 0 : index
    %c0_62 = arith.constant 0 : index
    %118 = vector.load %arg10[%c1_60, %c0_61, %c0_62] : memref<3x32x32xbf16, #tpu.memory_space<vmem>>, vector<1x32x32xbf16>
    %119 = vector.shape_cast %118 : vector<1x32x32xbf16> to vector<32x32xbf16>
    %120 = arith.truncf %112 : vector<80x32xf32> to vector<80x32xbf16>
    %cst_63 = arith.constant dense<0.000000e+00> : vector<80x32xf32>
    %121 = tpu.matmul %120, %119, %cst_63 {dimension_numbers = #tpu.dot_dimension_numbers<[1], [0], [0], [1], [0, 0, 1, 1], [], []>} : vector<80x32xbf16>, vector<32x32xbf16>, vector<80x32xf32> -> vector<80x32xf32>
    %122 = arith.addf %117, %121 : vector<80x32xf32>
    %c79_i32_64 = arith.constant 79 : i32
    %123 = tpu.dynamic_rotate %112 by %c79_i32_64 dim 0 : vector<80x32xf32>, i32 -> vector<80x32xf32>
    %c2_65 = arith.constant 2 : index
    %c0_66 = arith.constant 0 : index
    %c0_67 = arith.constant 0 : index
    %124 = vector.load %arg10[%c2_65, %c0_66, %c0_67] : memref<3x32x32xbf16, #tpu.memory_space<vmem>>, vector<1x32x32xbf16>
    %125 = vector.shape_cast %124 : vector<1x32x32xbf16> to vector<32x32xbf16>
    %126 = arith.truncf %123 : vector<80x32xf32> to vector<80x32xbf16>
    %cst_68 = arith.constant dense<0.000000e+00> : vector<80x32xf32>
    %127 = tpu.matmul %126, %125, %cst_68 {dimension_numbers = #tpu.dot_dimension_numbers<[1], [0], [0], [1], [0, 0, 1, 1], [], []>} : vector<80x32xbf16>, vector<32x32xbf16>, vector<80x32xf32> -> vector<80x32xf32>
    %128 = arith.addf %122, %127 : vector<80x32xf32>
    %c0_69 = arith.constant 0 : index
    %c0_70 = arith.constant 0 : index
    %129 = vector.load %arg11[%c0_69, %c0_70] : memref<1x32xf32, #tpu.memory_space<vmem>>, vector<1x32xf32>
    %130 = vector.broadcast %129 : vector<1x32xf32> to vector<80x32xf32>
    %131 = arith.addf %128, %130 : vector<80x32xf32>
    %132 = arith.mulf %131, %131 : vector<80x32xf32>
    %133 = arith.mulf %131, %132 : vector<80x32xf32>
    %cst_71 = arith.constant 4.471500e-02 : f32
    %134 = vector.broadcast %cst_71 : f32 to vector<80x32xf32>
    %135 = arith.mulf %134, %133 : vector<80x32xf32>
    %136 = arith.addf %131, %135 : vector<80x32xf32>
    %cst_72 = arith.constant 0.797884583 : f32
    %137 = vector.broadcast %cst_72 : f32 to vector<80x32xf32>
    %138 = arith.mulf %137, %136 : vector<80x32xf32>
    %139 = math.tanh %138 : vector<80x32xf32>
    %cst_73 = arith.constant 1.000000e+00 : f32
    %140 = vector.broadcast %cst_73 : f32 to vector<80x32xf32>
    %141 = arith.addf %140, %139 : vector<80x32xf32>
    %cst_74 = arith.constant 5.000000e-01 : f32
    %142 = vector.broadcast %cst_74 : f32 to vector<80x32xf32>
    %143 = arith.mulf %142, %141 : vector<80x32xf32>
    %144 = arith.mulf %131, %143 : vector<80x32xf32>
    %145 = arith.addf %144, %112 : vector<80x32xf32>
    %c0_75 = arith.constant 0 : index
    %c0_76 = arith.constant 0 : index
    %146 = vector.load %arg12[%c0_75, %c0_76] : memref<1x32xf32, #tpu.memory_space<vmem>>, vector<1x32xf32>
    %c0_77 = arith.constant 0 : index
    %c0_78 = arith.constant 0 : index
    %147 = vector.load %arg13[%c0_77, %c0_78] : memref<1x32xf32, #tpu.memory_space<vmem>>, vector<1x32xf32>
    %cst_79 = arith.constant dense<0.000000e+00> : vector<80xf32>
    %148 = vector.multi_reduction <add>, %145, %cst_79 [1] : vector<80x32xf32> to vector<80xf32>
    %149 = vector.shape_cast %148 : vector<80xf32> to vector<80x1xf32>
    %cst_80 = arith.constant 3.200000e+01 : f32
    %150 = vector.broadcast %cst_80 : f32 to vector<80x1xf32>
    %151 = arith.divf %149, %150 : vector<80x1xf32>
    %152 = vector.broadcast %151 : vector<80x1xf32> to vector<80x32xf32>
    %153 = arith.subf %145, %152 : vector<80x32xf32>
    %154 = arith.mulf %153, %153 : vector<80x32xf32>
    %cst_81 = arith.constant dense<0.000000e+00> : vector<80xf32>
    %155 = vector.multi_reduction <add>, %154, %cst_81 [1] : vector<80x32xf32> to vector<80xf32>
    %156 = vector.shape_cast %155 : vector<80xf32> to vector<80x1xf32>
    %cst_82 = arith.constant 3.200000e+01 : f32
    %157 = vector.broadcast %cst_82 : f32 to vector<80x1xf32>
    %158 = arith.divf %156, %157 : vector<80x1xf32>
    %159 = vector.broadcast %151 : vector<80x1xf32> to vector<80x32xf32>
    %160 = arith.subf %145, %159 : vector<80x32xf32>
    %cst_83 = arith.constant 9.99999974E-6 : f32
    %161 = vector.broadcast %cst_83 : f32 to vector<80x1xf32>
    %162 = arith.addf %158, %161 : vector<80x1xf32>
    %163 = math.rsqrt %162 : vector<80x1xf32>
    %164 = vector.broadcast %163 : vector<80x1xf32> to vector<80x32xf32>
    %165 = arith.mulf %160, %164 : vector<80x32xf32>
    %166 = vector.broadcast %146 : vector<1x32xf32> to vector<80x32xf32>
    %167 = arith.mulf %165, %166 : vector<80x32xf32>
    %168 = vector.broadcast %147 : vector<1x32xf32> to vector<80x32xf32>
    %169 = arith.addf %167, %168 : vector<80x32xf32>
    %170 = tpu.iota {dimensions = array<i32: 1>} : vector<80x80xi32>
    %c79_i32_84 = arith.constant 79 : i32
    %171 = vector.broadcast %c79_i32_84 : i32 to vector<80x80xi32>
    %172 = arith.cmpi slt, %170, %171 : vector<80x80xi32>
    %173 = arith.truncf %169 : vector<80x32xf32> to vector<80x32xbf16>
    %cst_85 = arith.constant 0.000000e+00 : f32
    %174 = vector.broadcast %cst_85 : f32 to vector<80x32xf32>
    %c0_86 = arith.constant 0 : index
    %c0_87 = arith.constant 0 : index
    %c0_88 = arith.constant 0 : index
    %c0_89 = arith.constant 0 : index
    %175 = vector.load %arg14[%c0_86, %c0_87, %c0_88, %c0_89] : memref<2x4x32x8xbf16, #tpu.memory_space<vmem>>, vector<1x1x32x8xbf16>
    %176 = vector.shape_cast %175 : vector<1x1x32x8xbf16> to vector<32x8xbf16>
    %cst_90 = arith.constant dense<0.000000e+00> : vector<80x8xf32>
    %177 = tpu.matmul %173, %176, %cst_90 {dimension_numbers = #tpu.dot_dimension_numbers<[1], [0], [0], [1], [0, 0, 1, 1], [], []>} : vector<80x32xbf16>, vector<32x8xbf16>, vector<80x8xf32> -> vector<80x8xf32>
    %c0_91 = arith.constant 0 : index
    %c0_92 = arith.constant 0 : index
    %c0_93 = arith.constant 0 : index
    %c0_94 = arith.constant 0 : index
    %178 = vector.load %arg17[%c0_91, %c0_92, %c0_93, %c0_94] : memref<2x4x1x8xf32, #tpu.memory_space<vmem>>, vector<1x1x1x8xf32>
    %179 = vector.shape_cast %178 : vector<1x1x1x8xf32> to vector<1x8xf32>
    %180 = vector.broadcast %179 : vector<1x8xf32> to vector<80x8xf32>
    %181 = arith.addf %177, %180 : vector<80x8xf32>
    %c0_95 = arith.constant 0 : index
    %c0_96 = arith.constant 0 : index
    %c0_97 = arith.constant 0 : index
    %c0_98 = arith.constant 0 : index
    %182 = vector.load %arg15[%c0_95, %c0_96, %c0_97, %c0_98] : memref<2x4x32x8xbf16, #tpu.memory_space<vmem>>, vector<1x1x32x8xbf16>
    %183 = vector.shape_cast %182 : vector<1x1x32x8xbf16> to vector<32x8xbf16>
    %cst_99 = arith.constant dense<0.000000e+00> : vector<80x8xf32>
    %184 = tpu.matmul %173, %183, %cst_99 {dimension_numbers = #tpu.dot_dimension_numbers<[1], [0], [0], [1], [0, 0, 1, 1], [], []>} : vector<80x32xbf16>, vector<32x8xbf16>, vector<80x8xf32> -> vector<80x8xf32>
    %c0_100 = arith.constant 0 : index
    %c0_101 = arith.constant 0 : index
    %c0_102 = arith.constant 0 : index
    %c0_103 = arith.constant 0 : index
    %185 = vector.load %arg16[%c0_100, %c0_101, %c0_102, %c0_103] : memref<2x4x32x8xbf16, #tpu.memory_space<vmem>>, vector<1x1x32x8xbf16>
    %186 = vector.shape_cast %185 : vector<1x1x32x8xbf16> to vector<32x8xbf16>
    %cst_104 = arith.constant dense<0.000000e+00> : vector<80x8xf32>
    %187 = tpu.matmul %173, %186, %cst_104 {dimension_numbers = #tpu.dot_dimension_numbers<[1], [0], [0], [1], [0, 0, 1, 1], [], []>} : vector<80x32xbf16>, vector<32x8xbf16>, vector<80x8xf32> -> vector<80x8xf32>
    %188 = arith.truncf %181 : vector<80x8xf32> to vector<80x8xbf16>
    %189 = arith.truncf %184 : vector<80x8xf32> to vector<80x8xbf16>
    %cst_105 = arith.constant dense<0.000000e+00> : vector<80x80xf32>
    %190 = tpu.matmul %188, %189, %cst_105 {dimension_numbers = #tpu.dot_dimension_numbers<[1], [1], [0], [0], [0, 0, 1, 0], [], []>} : vector<80x8xbf16>, vector<80x8xbf16>, vector<80x80xf32> -> vector<80x80xf32>
    %cst_106 = arith.constant 0.353553385 : f32
    %191 = vector.broadcast %cst_106 : f32 to vector<80x80xf32>
    %192 = arith.mulf %190, %191 : vector<80x80xf32>
    %cst_107 = arith.constant -1.000000e+30 : f32
    %193 = vector.broadcast %cst_107 : f32 to vector<80x80xf32>
    %194 = arith.select %172, %192, %193 : vector<80x80xi1>, vector<80x80xf32>
    %cst_108 = arith.constant dense<0xFF800000> : vector<80xf32>
    %195 = vector.multi_reduction <maximumf>, %194, %cst_108 [1] : vector<80x80xf32> to vector<80xf32>
    %196 = vector.shape_cast %195 : vector<80xf32> to vector<80x1xf32>
    %197 = vector.broadcast %196 : vector<80x1xf32> to vector<80x80xf32>
    %198 = arith.subf %194, %197 : vector<80x80xf32>
    %199 = math.exp %198 : vector<80x80xf32>
    %cst_109 = arith.constant dense<0.000000e+00> : vector<80xf32>
    %200 = vector.multi_reduction <add>, %199, %cst_109 [1] : vector<80x80xf32> to vector<80xf32>
    %201 = vector.shape_cast %200 : vector<80xf32> to vector<80x1xf32>
    %202 = arith.truncf %187 : vector<80x8xf32> to vector<80x8xbf16>
    %203 = arith.truncf %199 : vector<80x80xf32> to vector<80x80xbf16>
    %cst_110 = arith.constant dense<0.000000e+00> : vector<80x8xf32>
    %204 = tpu.matmul %203, %202, %cst_110 {dimension_numbers = #tpu.dot_dimension_numbers<[1], [0], [0], [1], [0, 0, 1, 1], [], []>} : vector<80x80xbf16>, vector<80x8xbf16>, vector<80x8xf32> -> vector<80x8xf32>
    %cst_111 = arith.constant 1.000000e+00 : f32
    %205 = vector.broadcast %cst_111 : f32 to vector<80x1xf32>
    %206 = arith.divf %205, %201 : vector<80x1xf32>
    %207 = vector.broadcast %206 : vector<80x1xf32> to vector<80x8xf32>
    %208 = arith.mulf %204, %207 : vector<80x8xf32>
    %c0_112 = arith.constant 0 : index
    %c0_113 = arith.constant 0 : index
    %c0_114 = arith.constant 0 : index
    %c0_115 = arith.constant 0 : index
    %209 = vector.load %arg18[%c0_112, %c0_113, %c0_114, %c0_115] : memref<2x4x8x32xbf16, #tpu.memory_space<vmem>>, vector<1x1x8x32xbf16>
    %210 = vector.shape_cast %209 : vector<1x1x8x32xbf16> to vector<8x32xbf16>
    %211 = arith.truncf %208 : vector<80x8xf32> to vector<80x8xbf16>
    %cst_116 = arith.constant dense<0.000000e+00> : vector<80x32xf32>
    %212 = tpu.matmul %211, %210, %cst_116 {dimension_numbers = #tpu.dot_dimension_numbers<[1], [0], [0], [1], [0, 0, 1, 1], [], []>} : vector<80x8xbf16>, vector<8x32xbf16>, vector<80x32xf32> -> vector<80x32xf32>
    %213 = arith.addf %174, %212 : vector<80x32xf32>
    %c0_117 = arith.constant 0 : index
    %c1_118 = arith.constant 1 : index
    %c0_119 = arith.constant 0 : index
    %c0_120 = arith.constant 0 : index
    %214 = vector.load %arg14[%c0_117, %c1_118, %c0_119, %c0_120] : memref<2x4x32x8xbf16, #tpu.memory_space<vmem>>, vector<1x1x32x8xbf16>
    %215 = vector.shape_cast %214 : vector<1x1x32x8xbf16> to vector<32x8xbf16>
    %cst_121 = arith.constant dense<0.000000e+00> : vector<80x8xf32>
    %216 = tpu.matmul %173, %215, %cst_121 {dimension_numbers = #tpu.dot_dimension_numbers<[1], [0], [0], [1], [0, 0, 1, 1], [], []>} : vector<80x32xbf16>, vector<32x8xbf16>, vector<80x8xf32> -> vector<80x8xf32>
    %c0_122 = arith.constant 0 : index
    %c1_123 = arith.constant 1 : index
    %c0_124 = arith.constant 0 : index
    %c0_125 = arith.constant 0 : index
    %217 = vector.load %arg17[%c0_122, %c1_123, %c0_124, %c0_125] : memref<2x4x1x8xf32, #tpu.memory_space<vmem>>, vector<1x1x1x8xf32>
    %218 = vector.shape_cast %217 : vector<1x1x1x8xf32> to vector<1x8xf32>
    %219 = vector.broadcast %218 : vector<1x8xf32> to vector<80x8xf32>
    %220 = arith.addf %216, %219 : vector<80x8xf32>
    %c0_126 = arith.constant 0 : index
    %c1_127 = arith.constant 1 : index
    %c0_128 = arith.constant 0 : index
    %c0_129 = arith.constant 0 : index
    %221 = vector.load %arg15[%c0_126, %c1_127, %c0_128, %c0_129] : memref<2x4x32x8xbf16, #tpu.memory_space<vmem>>, vector<1x1x32x8xbf16>
    %222 = vector.shape_cast %221 : vector<1x1x32x8xbf16> to vector<32x8xbf16>
    %cst_130 = arith.constant dense<0.000000e+00> : vector<80x8xf32>
    %223 = tpu.matmul %173, %222, %cst_130 {dimension_numbers = #tpu.dot_dimension_numbers<[1], [0], [0], [1], [0, 0, 1, 1], [], []>} : vector<80x32xbf16>, vector<32x8xbf16>, vector<80x8xf32> -> vector<80x8xf32>
    %c0_131 = arith.constant 0 : index
    %c1_132 = arith.constant 1 : index
    %c0_133 = arith.constant 0 : index
    %c0_134 = arith.constant 0 : index
    %224 = vector.load %arg16[%c0_131, %c1_132, %c0_133, %c0_134] : memref<2x4x32x8xbf16, #tpu.memory_space<vmem>>, vector<1x1x32x8xbf16>
    %225 = vector.shape_cast %224 : vector<1x1x32x8xbf16> to vector<32x8xbf16>
    %cst_135 = arith.constant dense<0.000000e+00> : vector<80x8xf32>
    %226 = tpu.matmul %173, %225, %cst_135 {dimension_numbers = #tpu.dot_dimension_numbers<[1], [0], [0], [1], [0, 0, 1, 1], [], []>} : vector<80x32xbf16>, vector<32x8xbf16>, vector<80x8xf32> -> vector<80x8xf32>
    %227 = arith.truncf %220 : vector<80x8xf32> to vector<80x8xbf16>
    %228 = arith.truncf %223 : vector<80x8xf32> to vector<80x8xbf16>
    %cst_136 = arith.constant dense<0.000000e+00> : vector<80x80xf32>
    %229 = tpu.matmul %227, %228, %cst_136 {dimension_numbers = #tpu.dot_dimension_numbers<[1], [1], [0], [0], [0, 0, 1, 0], [], []>} : vector<80x8xbf16>, vector<80x8xbf16>, vector<80x80xf32> -> vector<80x80xf32>
    %cst_137 = arith.constant 0.353553385 : f32
    %230 = vector.broadcast %cst_137 : f32 to vector<80x80xf32>
    %231 = arith.mulf %229, %230 : vector<80x80xf32>
    %cst_138 = arith.constant -1.000000e+30 : f32
    %232 = vector.broadcast %cst_138 : f32 to vector<80x80xf32>
    %233 = arith.select %172, %231, %232 : vector<80x80xi1>, vector<80x80xf32>
    %cst_139 = arith.constant dense<0xFF800000> : vector<80xf32>
    %234 = vector.multi_reduction <maximumf>, %233, %cst_139 [1] : vector<80x80xf32> to vector<80xf32>
    %235 = vector.shape_cast %234 : vector<80xf32> to vector<80x1xf32>
    %236 = vector.broadcast %235 : vector<80x1xf32> to vector<80x80xf32>
    %237 = arith.subf %233, %236 : vector<80x80xf32>
    %238 = math.exp %237 : vector<80x80xf32>
    %cst_140 = arith.constant dense<0.000000e+00> : vector<80xf32>
    %239 = vector.multi_reduction <add>, %238, %cst_140 [1] : vector<80x80xf32> to vector<80xf32>
    %240 = vector.shape_cast %239 : vector<80xf32> to vector<80x1xf32>
    %241 = arith.truncf %226 : vector<80x8xf32> to vector<80x8xbf16>
    %242 = arith.truncf %238 : vector<80x80xf32> to vector<80x80xbf16>
    %cst_141 = arith.constant dense<0.000000e+00> : vector<80x8xf32>
    %243 = tpu.matmul %242, %241, %cst_141 {dimension_numbers = #tpu.dot_dimension_numbers<[1], [0], [0], [1], [0, 0, 1, 1], [], []>} : vector<80x80xbf16>, vector<80x8xbf16>, vector<80x8xf32> -> vector<80x8xf32>
    %cst_142 = arith.constant 1.000000e+00 : f32
    %244 = vector.broadcast %cst_142 : f32 to vector<80x1xf32>
    %245 = arith.divf %244, %240 : vector<80x1xf32>
    %246 = vector.broadcast %245 : vector<80x1xf32> to vector<80x8xf32>
    %247 = arith.mulf %243, %246 : vector<80x8xf32>
    %c0_143 = arith.constant 0 : index
    %c1_144 = arith.constant 1 : index
    %c0_145 = arith.constant 0 : index
    %c0_146 = arith.constant 0 : index
    %248 = vector.load %arg18[%c0_143, %c1_144, %c0_145, %c0_146] : memref<2x4x8x32xbf16, #tpu.memory_space<vmem>>, vector<1x1x8x32xbf16>
    %249 = vector.shape_cast %248 : vector<1x1x8x32xbf16> to vector<8x32xbf16>
    %250 = arith.truncf %247 : vector<80x8xf32> to vector<80x8xbf16>
    %cst_147 = arith.constant dense<0.000000e+00> : vector<80x32xf32>
    %251 = tpu.matmul %250, %249, %cst_147 {dimension_numbers = #tpu.dot_dimension_numbers<[1], [0], [0], [1], [0, 0, 1, 1], [], []>} : vector<80x8xbf16>, vector<8x32xbf16>, vector<80x32xf32> -> vector<80x32xf32>
    %252 = arith.addf %213, %251 : vector<80x32xf32>
    %c0_148 = arith.constant 0 : index
    %c2_149 = arith.constant 2 : index
    %c0_150 = arith.constant 0 : index
    %c0_151 = arith.constant 0 : index
    %253 = vector.load %arg14[%c0_148, %c2_149, %c0_150, %c0_151] : memref<2x4x32x8xbf16, #tpu.memory_space<vmem>>, vector<1x1x32x8xbf16>
    %254 = vector.shape_cast %253 : vector<1x1x32x8xbf16> to vector<32x8xbf16>
    %cst_152 = arith.constant dense<0.000000e+00> : vector<80x8xf32>
    %255 = tpu.matmul %173, %254, %cst_152 {dimension_numbers = #tpu.dot_dimension_numbers<[1], [0], [0], [1], [0, 0, 1, 1], [], []>} : vector<80x32xbf16>, vector<32x8xbf16>, vector<80x8xf32> -> vector<80x8xf32>
    %c0_153 = arith.constant 0 : index
    %c2_154 = arith.constant 2 : index
    %c0_155 = arith.constant 0 : index
    %c0_156 = arith.constant 0 : index
    %256 = vector.load %arg17[%c0_153, %c2_154, %c0_155, %c0_156] : memref<2x4x1x8xf32, #tpu.memory_space<vmem>>, vector<1x1x1x8xf32>
    %257 = vector.shape_cast %256 : vector<1x1x1x8xf32> to vector<1x8xf32>
    %258 = vector.broadcast %257 : vector<1x8xf32> to vector<80x8xf32>
    %259 = arith.addf %255, %258 : vector<80x8xf32>
    %c0_157 = arith.constant 0 : index
    %c2_158 = arith.constant 2 : index
    %c0_159 = arith.constant 0 : index
    %c0_160 = arith.constant 0 : index
    %260 = vector.load %arg15[%c0_157, %c2_158, %c0_159, %c0_160] : memref<2x4x32x8xbf16, #tpu.memory_space<vmem>>, vector<1x1x32x8xbf16>
    %261 = vector.shape_cast %260 : vector<1x1x32x8xbf16> to vector<32x8xbf16>
    %cst_161 = arith.constant dense<0.000000e+00> : vector<80x8xf32>
    %262 = tpu.matmul %173, %261, %cst_161 {dimension_numbers = #tpu.dot_dimension_numbers<[1], [0], [0], [1], [0, 0, 1, 1], [], []>} : vector<80x32xbf16>, vector<32x8xbf16>, vector<80x8xf32> -> vector<80x8xf32>
    %c0_162 = arith.constant 0 : index
    %c2_163 = arith.constant 2 : index
    %c0_164 = arith.constant 0 : index
    %c0_165 = arith.constant 0 : index
    %263 = vector.load %arg16[%c0_162, %c2_163, %c0_164, %c0_165] : memref<2x4x32x8xbf16, #tpu.memory_space<vmem>>, vector<1x1x32x8xbf16>
    %264 = vector.shape_cast %263 : vector<1x1x32x8xbf16> to vector<32x8xbf16>
    %cst_166 = arith.constant dense<0.000000e+00> : vector<80x8xf32>
    %265 = tpu.matmul %173, %264, %cst_166 {dimension_numbers = #tpu.dot_dimension_numbers<[1], [0], [0], [1], [0, 0, 1, 1], [], []>} : vector<80x32xbf16>, vector<32x8xbf16>, vector<80x8xf32> -> vector<80x8xf32>
    %266 = arith.truncf %259 : vector<80x8xf32> to vector<80x8xbf16>
    %267 = arith.truncf %262 : vector<80x8xf32> to vector<80x8xbf16>
    %cst_167 = arith.constant dense<0.000000e+00> : vector<80x80xf32>
    %268 = tpu.matmul %266, %267, %cst_167 {dimension_numbers = #tpu.dot_dimension_numbers<[1], [1], [0], [0], [0, 0, 1, 0], [], []>} : vector<80x8xbf16>, vector<80x8xbf16>, vector<80x80xf32> -> vector<80x80xf32>
    %cst_168 = arith.constant 0.353553385 : f32
    %269 = vector.broadcast %cst_168 : f32 to vector<80x80xf32>
    %270 = arith.mulf %268, %269 : vector<80x80xf32>
    %cst_169 = arith.constant -1.000000e+30 : f32
    %271 = vector.broadcast %cst_169 : f32 to vector<80x80xf32>
    %272 = arith.select %172, %270, %271 : vector<80x80xi1>, vector<80x80xf32>
    %cst_170 = arith.constant dense<0xFF800000> : vector<80xf32>
    %273 = vector.multi_reduction <maximumf>, %272, %cst_170 [1] : vector<80x80xf32> to vector<80xf32>
    %274 = vector.shape_cast %273 : vector<80xf32> to vector<80x1xf32>
    %275 = vector.broadcast %274 : vector<80x1xf32> to vector<80x80xf32>
    %276 = arith.subf %272, %275 : vector<80x80xf32>
    %277 = math.exp %276 : vector<80x80xf32>
    %cst_171 = arith.constant dense<0.000000e+00> : vector<80xf32>
    %278 = vector.multi_reduction <add>, %277, %cst_171 [1] : vector<80x80xf32> to vector<80xf32>
    %279 = vector.shape_cast %278 : vector<80xf32> to vector<80x1xf32>
    %280 = arith.truncf %265 : vector<80x8xf32> to vector<80x8xbf16>
    %281 = arith.truncf %277 : vector<80x80xf32> to vector<80x80xbf16>
    %cst_172 = arith.constant dense<0.000000e+00> : vector<80x8xf32>
    %282 = tpu.matmul %281, %280, %cst_172 {dimension_numbers = #tpu.dot_dimension_numbers<[1], [0], [0], [1], [0, 0, 1, 1], [], []>} : vector<80x80xbf16>, vector<80x8xbf16>, vector<80x8xf32> -> vector<80x8xf32>
    %cst_173 = arith.constant 1.000000e+00 : f32
    %283 = vector.broadcast %cst_173 : f32 to vector<80x1xf32>
    %284 = arith.divf %283, %279 : vector<80x1xf32>
    %285 = vector.broadcast %284 : vector<80x1xf32> to vector<80x8xf32>
    %286 = arith.mulf %282, %285 : vector<80x8xf32>
    %c0_174 = arith.constant 0 : index
    %c2_175 = arith.constant 2 : index
    %c0_176 = arith.constant 0 : index
    %c0_177 = arith.constant 0 : index
    %287 = vector.load %arg18[%c0_174, %c2_175, %c0_176, %c0_177] : memref<2x4x8x32xbf16, #tpu.memory_space<vmem>>, vector<1x1x8x32xbf16>
    %288 = vector.shape_cast %287 : vector<1x1x8x32xbf16> to vector<8x32xbf16>
    %289 = arith.truncf %286 : vector<80x8xf32> to vector<80x8xbf16>
    %cst_178 = arith.constant dense<0.000000e+00> : vector<80x32xf32>
    %290 = tpu.matmul %289, %288, %cst_178 {dimension_numbers = #tpu.dot_dimension_numbers<[1], [0], [0], [1], [0, 0, 1, 1], [], []>} : vector<80x8xbf16>, vector<8x32xbf16>, vector<80x32xf32> -> vector<80x32xf32>
    %291 = arith.addf %252, %290 : vector<80x32xf32>
    %c0_179 = arith.constant 0 : index
    %c3 = arith.constant 3 : index
    %c0_180 = arith.constant 0 : index
    %c0_181 = arith.constant 0 : index
    %292 = vector.load %arg14[%c0_179, %c3, %c0_180, %c0_181] : memref<2x4x32x8xbf16, #tpu.memory_space<vmem>>, vector<1x1x32x8xbf16>
    %293 = vector.shape_cast %292 : vector<1x1x32x8xbf16> to vector<32x8xbf16>
    %cst_182 = arith.constant dense<0.000000e+00> : vector<80x8xf32>
    %294 = tpu.matmul %173, %293, %cst_182 {dimension_numbers = #tpu.dot_dimension_numbers<[1], [0], [0], [1], [0, 0, 1, 1], [], []>} : vector<80x32xbf16>, vector<32x8xbf16>, vector<80x8xf32> -> vector<80x8xf32>
    %c0_183 = arith.constant 0 : index
    %c3_184 = arith.constant 3 : index
    %c0_185 = arith.constant 0 : index
    %c0_186 = arith.constant 0 : index
    %295 = vector.load %arg17[%c0_183, %c3_184, %c0_185, %c0_186] : memref<2x4x1x8xf32, #tpu.memory_space<vmem>>, vector<1x1x1x8xf32>
    %296 = vector.shape_cast %295 : vector<1x1x1x8xf32> to vector<1x8xf32>
    %297 = vector.broadcast %296 : vector<1x8xf32> to vector<80x8xf32>
    %298 = arith.addf %294, %297 : vector<80x8xf32>
    %c0_187 = arith.constant 0 : index
    %c3_188 = arith.constant 3 : index
    %c0_189 = arith.constant 0 : index
    %c0_190 = arith.constant 0 : index
    %299 = vector.load %arg15[%c0_187, %c3_188, %c0_189, %c0_190] : memref<2x4x32x8xbf16, #tpu.memory_space<vmem>>, vector<1x1x32x8xbf16>
    %300 = vector.shape_cast %299 : vector<1x1x32x8xbf16> to vector<32x8xbf16>
    %cst_191 = arith.constant dense<0.000000e+00> : vector<80x8xf32>
    %301 = tpu.matmul %173, %300, %cst_191 {dimension_numbers = #tpu.dot_dimension_numbers<[1], [0], [0], [1], [0, 0, 1, 1], [], []>} : vector<80x32xbf16>, vector<32x8xbf16>, vector<80x8xf32> -> vector<80x8xf32>
    %c0_192 = arith.constant 0 : index
    %c3_193 = arith.constant 3 : index
    %c0_194 = arith.constant 0 : index
    %c0_195 = arith.constant 0 : index
    %302 = vector.load %arg16[%c0_192, %c3_193, %c0_194, %c0_195] : memref<2x4x32x8xbf16, #tpu.memory_space<vmem>>, vector<1x1x32x8xbf16>
    %303 = vector.shape_cast %302 : vector<1x1x32x8xbf16> to vector<32x8xbf16>
    %cst_196 = arith.constant dense<0.000000e+00> : vector<80x8xf32>
    %304 = tpu.matmul %173, %303, %cst_196 {dimension_numbers = #tpu.dot_dimension_numbers<[1], [0], [0], [1], [0, 0, 1, 1], [], []>} : vector<80x32xbf16>, vector<32x8xbf16>, vector<80x8xf32> -> vector<80x8xf32>
    %305 = arith.truncf %298 : vector<80x8xf32> to vector<80x8xbf16>
    %306 = arith.truncf %301 : vector<80x8xf32> to vector<80x8xbf16>
    %cst_197 = arith.constant dense<0.000000e+00> : vector<80x80xf32>
    %307 = tpu.matmul %305, %306, %cst_197 {dimension_numbers = #tpu.dot_dimension_numbers<[1], [1], [0], [0], [0, 0, 1, 0], [], []>} : vector<80x8xbf16>, vector<80x8xbf16>, vector<80x80xf32> -> vector<80x80xf32>
    %cst_198 = arith.constant 0.353553385 : f32
    %308 = vector.broadcast %cst_198 : f32 to vector<80x80xf32>
    %309 = arith.mulf %307, %308 : vector<80x80xf32>
    %cst_199 = arith.constant -1.000000e+30 : f32
    %310 = vector.broadcast %cst_199 : f32 to vector<80x80xf32>
    %311 = arith.select %172, %309, %310 : vector<80x80xi1>, vector<80x80xf32>
    %cst_200 = arith.constant dense<0xFF800000> : vector<80xf32>
    %312 = vector.multi_reduction <maximumf>, %311, %cst_200 [1] : vector<80x80xf32> to vector<80xf32>
    %313 = vector.shape_cast %312 : vector<80xf32> to vector<80x1xf32>
    %314 = vector.broadcast %313 : vector<80x1xf32> to vector<80x80xf32>
    %315 = arith.subf %311, %314 : vector<80x80xf32>
    %316 = math.exp %315 : vector<80x80xf32>
    %cst_201 = arith.constant dense<0.000000e+00> : vector<80xf32>
    %317 = vector.multi_reduction <add>, %316, %cst_201 [1] : vector<80x80xf32> to vector<80xf32>
    %318 = vector.shape_cast %317 : vector<80xf32> to vector<80x1xf32>
    %319 = arith.truncf %304 : vector<80x8xf32> to vector<80x8xbf16>
    %320 = arith.truncf %316 : vector<80x80xf32> to vector<80x80xbf16>
    %cst_202 = arith.constant dense<0.000000e+00> : vector<80x8xf32>
    %321 = tpu.matmul %320, %319, %cst_202 {dimension_numbers = #tpu.dot_dimension_numbers<[1], [0], [0], [1], [0, 0, 1, 1], [], []>} : vector<80x80xbf16>, vector<80x8xbf16>, vector<80x8xf32> -> vector<80x8xf32>
    %cst_203 = arith.constant 1.000000e+00 : f32
    %322 = vector.broadcast %cst_203 : f32 to vector<80x1xf32>
    %323 = arith.divf %322, %318 : vector<80x1xf32>
    %324 = vector.broadcast %323 : vector<80x1xf32> to vector<80x8xf32>
    %325 = arith.mulf %321, %324 : vector<80x8xf32>
    %c0_204 = arith.constant 0 : index
    %c3_205 = arith.constant 3 : index
    %c0_206 = arith.constant 0 : index
    %c0_207 = arith.constant 0 : index
    %326 = vector.load %arg18[%c0_204, %c3_205, %c0_206, %c0_207] : memref<2x4x8x32xbf16, #tpu.memory_space<vmem>>, vector<1x1x8x32xbf16>
    %327 = vector.shape_cast %326 : vector<1x1x8x32xbf16> to vector<8x32xbf16>
    %328 = arith.truncf %325 : vector<80x8xf32> to vector<80x8xbf16>
    %cst_208 = arith.constant dense<0.000000e+00> : vector<80x32xf32>
    %329 = tpu.matmul %328, %327, %cst_208 {dimension_numbers = #tpu.dot_dimension_numbers<[1], [0], [0], [1], [0, 0, 1, 1], [], []>} : vector<80x8xbf16>, vector<8x32xbf16>, vector<80x32xf32> -> vector<80x32xf32>
    %330 = arith.addf %291, %329 : vector<80x32xf32>
    %c0_209 = arith.constant 0 : index
    %c0_210 = arith.constant 0 : index
    %c0_211 = arith.constant 0 : index
    %331 = vector.load %arg19[%c0_209, %c0_210, %c0_211] : memref<2x1x32xf32, #tpu.memory_space<vmem>>, vector<1x1x32xf32>
    %332 = vector.shape_cast %331 : vector<1x1x32xf32> to vector<1x32xf32>
    %333 = vector.broadcast %332 : vector<1x32xf32> to vector<80x32xf32>
    %334 = arith.addf %330, %333 : vector<80x32xf32>
    %335 = arith.addf %334, %169 : vector<80x32xf32>
    %c0_212 = arith.constant 0 : index
    %c0_213 = arith.constant 0 : index
    %c0_214 = arith.constant 0 : index
    %336 = vector.load %arg20[%c0_212, %c0_213, %c0_214] : memref<2x1x32xf32, #tpu.memory_space<vmem>>, vector<1x1x32xf32>
    %337 = vector.shape_cast %336 : vector<1x1x32xf32> to vector<1x32xf32>
    %c0_215 = arith.constant 0 : index
    %c0_216 = arith.constant 0 : index
    %c0_217 = arith.constant 0 : index
    %338 = vector.load %arg21[%c0_215, %c0_216, %c0_217] : memref<2x1x32xf32, #tpu.memory_space<vmem>>, vector<1x1x32xf32>
    %339 = vector.shape_cast %338 : vector<1x1x32xf32> to vector<1x32xf32>
    %cst_218 = arith.constant dense<0.000000e+00> : vector<80xf32>
    %340 = vector.multi_reduction <add>, %335, %cst_218 [1] : vector<80x32xf32> to vector<80xf32>
    %341 = vector.shape_cast %340 : vector<80xf32> to vector<80x1xf32>
    %cst_219 = arith.constant 3.200000e+01 : f32
    %342 = vector.broadcast %cst_219 : f32 to vector<80x1xf32>
    %343 = arith.divf %341, %342 : vector<80x1xf32>
    %344 = vector.broadcast %343 : vector<80x1xf32> to vector<80x32xf32>
    %345 = arith.subf %335, %344 : vector<80x32xf32>
    %346 = arith.mulf %345, %345 : vector<80x32xf32>
    %cst_220 = arith.constant dense<0.000000e+00> : vector<80xf32>
    %347 = vector.multi_reduction <add>, %346, %cst_220 [1] : vector<80x32xf32> to vector<80xf32>
    %348 = vector.shape_cast %347 : vector<80xf32> to vector<80x1xf32>
    %cst_221 = arith.constant 3.200000e+01 : f32
    %349 = vector.broadcast %cst_221 : f32 to vector<80x1xf32>
    %350 = arith.divf %348, %349 : vector<80x1xf32>
    %351 = vector.broadcast %343 : vector<80x1xf32> to vector<80x32xf32>
    %352 = arith.subf %335, %351 : vector<80x32xf32>
    %cst_222 = arith.constant 9.99999974E-6 : f32
    %353 = vector.broadcast %cst_222 : f32 to vector<80x1xf32>
    %354 = arith.addf %350, %353 : vector<80x1xf32>
    %355 = math.rsqrt %354 : vector<80x1xf32>
    %356 = vector.broadcast %355 : vector<80x1xf32> to vector<80x32xf32>
    %357 = arith.mulf %352, %356 : vector<80x32xf32>
    %358 = vector.broadcast %337 : vector<1x32xf32> to vector<80x32xf32>
    %359 = arith.mulf %357, %358 : vector<80x32xf32>
    %360 = vector.broadcast %339 : vector<1x32xf32> to vector<80x32xf32>
    %361 = arith.addf %359, %360 : vector<80x32xf32>
    %c0_223 = arith.constant 0 : index
    %c0_224 = arith.constant 0 : index
    %c0_225 = arith.constant 0 : index
    %362 = vector.load %arg22[%c0_223, %c0_224, %c0_225] : memref<2x32x64xbf16, #tpu.memory_space<vmem>>, vector<1x32x64xbf16>
    %363 = vector.shape_cast %362 : vector<1x32x64xbf16> to vector<32x64xbf16>
    %364 = arith.truncf %361 : vector<80x32xf32> to vector<80x32xbf16>
    %cst_226 = arith.constant dense<0.000000e+00> : vector<80x64xf32>
    %365 = tpu.matmul %364, %363, %cst_226 {dimension_numbers = #tpu.dot_dimension_numbers<[1], [0], [0], [1], [0, 0, 1, 1], [], []>} : vector<80x32xbf16>, vector<32x64xbf16>, vector<80x64xf32> -> vector<80x64xf32>
    %c0_227 = arith.constant 0 : index
    %c0_228 = arith.constant 0 : index
    %c0_229 = arith.constant 0 : index
    %366 = vector.load %arg23[%c0_227, %c0_228, %c0_229] : memref<2x1x64xf32, #tpu.memory_space<vmem>>, vector<1x1x64xf32>
    %367 = vector.shape_cast %366 : vector<1x1x64xf32> to vector<1x64xf32>
    %368 = vector.broadcast %367 : vector<1x64xf32> to vector<80x64xf32>
    %369 = arith.addf %365, %368 : vector<80x64xf32>
    %370 = arith.mulf %369, %369 : vector<80x64xf32>
    %371 = arith.mulf %369, %370 : vector<80x64xf32>
    %cst_230 = arith.constant 4.471500e-02 : f32
    %372 = vector.broadcast %cst_230 : f32 to vector<80x64xf32>
    %373 = arith.mulf %372, %371 : vector<80x64xf32>
    %374 = arith.addf %369, %373 : vector<80x64xf32>
    %cst_231 = arith.constant 0.797884583 : f32
    %375 = vector.broadcast %cst_231 : f32 to vector<80x64xf32>
    %376 = arith.mulf %375, %374 : vector<80x64xf32>
    %377 = math.tanh %376 : vector<80x64xf32>
    %cst_232 = arith.constant 1.000000e+00 : f32
    %378 = vector.broadcast %cst_232 : f32 to vector<80x64xf32>
    %379 = arith.addf %378, %377 : vector<80x64xf32>
    %cst_233 = arith.constant 5.000000e-01 : f32
    %380 = vector.broadcast %cst_233 : f32 to vector<80x64xf32>
    %381 = arith.mulf %380, %379 : vector<80x64xf32>
    %382 = arith.mulf %369, %381 : vector<80x64xf32>
    %c0_234 = arith.constant 0 : index
    %c0_235 = arith.constant 0 : index
    %c0_236 = arith.constant 0 : index
    %383 = vector.load %arg24[%c0_234, %c0_235, %c0_236] : memref<2x64x32xbf16, #tpu.memory_space<vmem>>, vector<1x64x32xbf16>
    %384 = vector.shape_cast %383 : vector<1x64x32xbf16> to vector<64x32xbf16>
    %385 = arith.truncf %382 : vector<80x64xf32> to vector<80x64xbf16>
    %cst_237 = arith.constant dense<0.000000e+00> : vector<80x32xf32>
    %386 = tpu.matmul %385, %384, %cst_237 {dimension_numbers = #tpu.dot_dimension_numbers<[1], [0], [0], [1], [0, 0, 1, 1], [], []>} : vector<80x64xbf16>, vector<64x32xbf16>, vector<80x32xf32> -> vector<80x32xf32>
    %c0_238 = arith.constant 0 : index
    %c0_239 = arith.constant 0 : index
    %c0_240 = arith.constant 0 : index
    %387 = vector.load %arg25[%c0_238, %c0_239, %c0_240] : memref<2x1x32xf32, #tpu.memory_space<vmem>>, vector<1x1x32xf32>
    %388 = vector.shape_cast %387 : vector<1x1x32xf32> to vector<1x32xf32>
    %389 = vector.broadcast %388 : vector<1x32xf32> to vector<80x32xf32>
    %390 = arith.addf %386, %389 : vector<80x32xf32>
    %391 = arith.addf %390, %361 : vector<80x32xf32>
    %c0_241 = arith.constant 0 : index
    %c0_242 = arith.constant 0 : index
    %c0_243 = arith.constant 0 : index
    %392 = vector.load %arg26[%c0_241, %c0_242, %c0_243] : memref<2x1x32xf32, #tpu.memory_space<vmem>>, vector<1x1x32xf32>
    %393 = vector.shape_cast %392 : vector<1x1x32xf32> to vector<1x32xf32>
    %c0_244 = arith.constant 0 : index
    %c0_245 = arith.constant 0 : index
    %c0_246 = arith.constant 0 : index
    %394 = vector.load %arg27[%c0_244, %c0_245, %c0_246] : memref<2x1x32xf32, #tpu.memory_space<vmem>>, vector<1x1x32xf32>
    %395 = vector.shape_cast %394 : vector<1x1x32xf32> to vector<1x32xf32>
    %cst_247 = arith.constant dense<0.000000e+00> : vector<80xf32>
    %396 = vector.multi_reduction <add>, %391, %cst_247 [1] : vector<80x32xf32> to vector<80xf32>
    %397 = vector.shape_cast %396 : vector<80xf32> to vector<80x1xf32>
    %cst_248 = arith.constant 3.200000e+01 : f32
    %398 = vector.broadcast %cst_248 : f32 to vector<80x1xf32>
    %399 = arith.divf %397, %398 : vector<80x1xf32>
    %400 = vector.broadcast %399 : vector<80x1xf32> to vector<80x32xf32>
    %401 = arith.subf %391, %400 : vector<80x32xf32>
    %402 = arith.mulf %401, %401 : vector<80x32xf32>
    %cst_249 = arith.constant dense<0.000000e+00> : vector<80xf32>
    %403 = vector.multi_reduction <add>, %402, %cst_249 [1] : vector<80x32xf32> to vector<80xf32>
    %404 = vector.shape_cast %403 : vector<80xf32> to vector<80x1xf32>
    %cst_250 = arith.constant 3.200000e+01 : f32
    %405 = vector.broadcast %cst_250 : f32 to vector<80x1xf32>
    %406 = arith.divf %404, %405 : vector<80x1xf32>
    %407 = vector.broadcast %399 : vector<80x1xf32> to vector<80x32xf32>
    %408 = arith.subf %391, %407 : vector<80x32xf32>
    %cst_251 = arith.constant 9.99999974E-6 : f32
    %409 = vector.broadcast %cst_251 : f32 to vector<80x1xf32>
    %410 = arith.addf %406, %409 : vector<80x1xf32>
    %411 = math.rsqrt %410 : vector<80x1xf32>
    %412 = vector.broadcast %411 : vector<80x1xf32> to vector<80x32xf32>
    %413 = arith.mulf %408, %412 : vector<80x32xf32>
    %414 = vector.broadcast %393 : vector<1x32xf32> to vector<80x32xf32>
    %415 = arith.mulf %413, %414 : vector<80x32xf32>
    %416 = vector.broadcast %395 : vector<1x32xf32> to vector<80x32xf32>
    %417 = arith.addf %415, %416 : vector<80x32xf32>
    %418 = arith.truncf %417 : vector<80x32xf32> to vector<80x32xbf16>
    %cst_252 = arith.constant 0.000000e+00 : f32
    %419 = vector.broadcast %cst_252 : f32 to vector<80x32xf32>
    %c1_253 = arith.constant 1 : index
    %c0_254 = arith.constant 0 : index
    %c0_255 = arith.constant 0 : index
    %c0_256 = arith.constant 0 : index
    %420 = vector.load %arg14[%c1_253, %c0_254, %c0_255, %c0_256] : memref<2x4x32x8xbf16, #tpu.memory_space<vmem>>, vector<1x1x32x8xbf16>
    %421 = vector.shape_cast %420 : vector<1x1x32x8xbf16> to vector<32x8xbf16>
    %cst_257 = arith.constant dense<0.000000e+00> : vector<80x8xf32>
    %422 = tpu.matmul %418, %421, %cst_257 {dimension_numbers = #tpu.dot_dimension_numbers<[1], [0], [0], [1], [0, 0, 1, 1], [], []>} : vector<80x32xbf16>, vector<32x8xbf16>, vector<80x8xf32> -> vector<80x8xf32>
    %c1_258 = arith.constant 1 : index
    %c0_259 = arith.constant 0 : index
    %c0_260 = arith.constant 0 : index
    %c0_261 = arith.constant 0 : index
    %423 = vector.load %arg17[%c1_258, %c0_259, %c0_260, %c0_261] : memref<2x4x1x8xf32, #tpu.memory_space<vmem>>, vector<1x1x1x8xf32>
    %424 = vector.shape_cast %423 : vector<1x1x1x8xf32> to vector<1x8xf32>
    %425 = vector.broadcast %424 : vector<1x8xf32> to vector<80x8xf32>
    %426 = arith.addf %422, %425 : vector<80x8xf32>
    %c1_262 = arith.constant 1 : index
    %c0_263 = arith.constant 0 : index
    %c0_264 = arith.constant 0 : index
    %c0_265 = arith.constant 0 : index
    %427 = vector.load %arg15[%c1_262, %c0_263, %c0_264, %c0_265] : memref<2x4x32x8xbf16, #tpu.memory_space<vmem>>, vector<1x1x32x8xbf16>
    %428 = vector.shape_cast %427 : vector<1x1x32x8xbf16> to vector<32x8xbf16>
    %cst_266 = arith.constant dense<0.000000e+00> : vector<80x8xf32>
    %429 = tpu.matmul %418, %428, %cst_266 {dimension_numbers = #tpu.dot_dimension_numbers<[1], [0], [0], [1], [0, 0, 1, 1], [], []>} : vector<80x32xbf16>, vector<32x8xbf16>, vector<80x8xf32> -> vector<80x8xf32>
    %c1_267 = arith.constant 1 : index
    %c0_268 = arith.constant 0 : index
    %c0_269 = arith.constant 0 : index
    %c0_270 = arith.constant 0 : index
    %430 = vector.load %arg16[%c1_267, %c0_268, %c0_269, %c0_270] : memref<2x4x32x8xbf16, #tpu.memory_space<vmem>>, vector<1x1x32x8xbf16>
    %431 = vector.shape_cast %430 : vector<1x1x32x8xbf16> to vector<32x8xbf16>
    %cst_271 = arith.constant dense<0.000000e+00> : vector<80x8xf32>
    %432 = tpu.matmul %418, %431, %cst_271 {dimension_numbers = #tpu.dot_dimension_numbers<[1], [0], [0], [1], [0, 0, 1, 1], [], []>} : vector<80x32xbf16>, vector<32x8xbf16>, vector<80x8xf32> -> vector<80x8xf32>
    %433 = arith.truncf %426 : vector<80x8xf32> to vector<80x8xbf16>
    %434 = arith.truncf %429 : vector<80x8xf32> to vector<80x8xbf16>
    %cst_272 = arith.constant dense<0.000000e+00> : vector<80x80xf32>
    %435 = tpu.matmul %433, %434, %cst_272 {dimension_numbers = #tpu.dot_dimension_numbers<[1], [1], [0], [0], [0, 0, 1, 0], [], []>} : vector<80x8xbf16>, vector<80x8xbf16>, vector<80x80xf32> -> vector<80x80xf32>
    %cst_273 = arith.constant 0.353553385 : f32
    %436 = vector.broadcast %cst_273 : f32 to vector<80x80xf32>
    %437 = arith.mulf %435, %436 : vector<80x80xf32>
    %cst_274 = arith.constant -1.000000e+30 : f32
    %438 = vector.broadcast %cst_274 : f32 to vector<80x80xf32>
    %439 = arith.select %172, %437, %438 : vector<80x80xi1>, vector<80x80xf32>
    %cst_275 = arith.constant dense<0xFF800000> : vector<80xf32>
    %440 = vector.multi_reduction <maximumf>, %439, %cst_275 [1] : vector<80x80xf32> to vector<80xf32>
    %441 = vector.shape_cast %440 : vector<80xf32> to vector<80x1xf32>
    %442 = vector.broadcast %441 : vector<80x1xf32> to vector<80x80xf32>
    %443 = arith.subf %439, %442 : vector<80x80xf32>
    %444 = math.exp %443 : vector<80x80xf32>
    %cst_276 = arith.constant dense<0.000000e+00> : vector<80xf32>
    %445 = vector.multi_reduction <add>, %444, %cst_276 [1] : vector<80x80xf32> to vector<80xf32>
    %446 = vector.shape_cast %445 : vector<80xf32> to vector<80x1xf32>
    %447 = arith.truncf %432 : vector<80x8xf32> to vector<80x8xbf16>
    %448 = arith.truncf %444 : vector<80x80xf32> to vector<80x80xbf16>
    %cst_277 = arith.constant dense<0.000000e+00> : vector<80x8xf32>
    %449 = tpu.matmul %448, %447, %cst_277 {dimension_numbers = #tpu.dot_dimension_numbers<[1], [0], [0], [1], [0, 0, 1, 1], [], []>} : vector<80x80xbf16>, vector<80x8xbf16>, vector<80x8xf32> -> vector<80x8xf32>
    %cst_278 = arith.constant 1.000000e+00 : f32
    %450 = vector.broadcast %cst_278 : f32 to vector<80x1xf32>
    %451 = arith.divf %450, %446 : vector<80x1xf32>
    %452 = vector.broadcast %451 : vector<80x1xf32> to vector<80x8xf32>
    %453 = arith.mulf %449, %452 : vector<80x8xf32>
    %c1_279 = arith.constant 1 : index
    %c0_280 = arith.constant 0 : index
    %c0_281 = arith.constant 0 : index
    %c0_282 = arith.constant 0 : index
    %454 = vector.load %arg18[%c1_279, %c0_280, %c0_281, %c0_282] : memref<2x4x8x32xbf16, #tpu.memory_space<vmem>>, vector<1x1x8x32xbf16>
    %455 = vector.shape_cast %454 : vector<1x1x8x32xbf16> to vector<8x32xbf16>
    %456 = arith.truncf %453 : vector<80x8xf32> to vector<80x8xbf16>
    %cst_283 = arith.constant dense<0.000000e+00> : vector<80x32xf32>
    %457 = tpu.matmul %456, %455, %cst_283 {dimension_numbers = #tpu.dot_dimension_numbers<[1], [0], [0], [1], [0, 0, 1, 1], [], []>} : vector<80x8xbf16>, vector<8x32xbf16>, vector<80x32xf32> -> vector<80x32xf32>
    %458 = arith.addf %419, %457 : vector<80x32xf32>
    %c1_284 = arith.constant 1 : index
    %c1_285 = arith.constant 1 : index
    %c0_286 = arith.constant 0 : index
    %c0_287 = arith.constant 0 : index
    %459 = vector.load %arg14[%c1_284, %c1_285, %c0_286, %c0_287] : memref<2x4x32x8xbf16, #tpu.memory_space<vmem>>, vector<1x1x32x8xbf16>
    %460 = vector.shape_cast %459 : vector<1x1x32x8xbf16> to vector<32x8xbf16>
    %cst_288 = arith.constant dense<0.000000e+00> : vector<80x8xf32>
    %461 = tpu.matmul %418, %460, %cst_288 {dimension_numbers = #tpu.dot_dimension_numbers<[1], [0], [0], [1], [0, 0, 1, 1], [], []>} : vector<80x32xbf16>, vector<32x8xbf16>, vector<80x8xf32> -> vector<80x8xf32>
    %c1_289 = arith.constant 1 : index
    %c1_290 = arith.constant 1 : index
    %c0_291 = arith.constant 0 : index
    %c0_292 = arith.constant 0 : index
    %462 = vector.load %arg17[%c1_289, %c1_290, %c0_291, %c0_292] : memref<2x4x1x8xf32, #tpu.memory_space<vmem>>, vector<1x1x1x8xf32>
    %463 = vector.shape_cast %462 : vector<1x1x1x8xf32> to vector<1x8xf32>
    %464 = vector.broadcast %463 : vector<1x8xf32> to vector<80x8xf32>
    %465 = arith.addf %461, %464 : vector<80x8xf32>
    %c1_293 = arith.constant 1 : index
    %c1_294 = arith.constant 1 : index
    %c0_295 = arith.constant 0 : index
    %c0_296 = arith.constant 0 : index
    %466 = vector.load %arg15[%c1_293, %c1_294, %c0_295, %c0_296] : memref<2x4x32x8xbf16, #tpu.memory_space<vmem>>, vector<1x1x32x8xbf16>
    %467 = vector.shape_cast %466 : vector<1x1x32x8xbf16> to vector<32x8xbf16>
    %cst_297 = arith.constant dense<0.000000e+00> : vector<80x8xf32>
    %468 = tpu.matmul %418, %467, %cst_297 {dimension_numbers = #tpu.dot_dimension_numbers<[1], [0], [0], [1], [0, 0, 1, 1], [], []>} : vector<80x32xbf16>, vector<32x8xbf16>, vector<80x8xf32> -> vector<80x8xf32>
    %c1_298 = arith.constant 1 : index
    %c1_299 = arith.constant 1 : index
    %c0_300 = arith.constant 0 : index
    %c0_301 = arith.constant 0 : index
    %469 = vector.load %arg16[%c1_298, %c1_299, %c0_300, %c0_301] : memref<2x4x32x8xbf16, #tpu.memory_space<vmem>>, vector<1x1x32x8xbf16>
    %470 = vector.shape_cast %469 : vector<1x1x32x8xbf16> to vector<32x8xbf16>
    %cst_302 = arith.constant dense<0.000000e+00> : vector<80x8xf32>
    %471 = tpu.matmul %418, %470, %cst_302 {dimension_numbers = #tpu.dot_dimension_numbers<[1], [0], [0], [1], [0, 0, 1, 1], [], []>} : vector<80x32xbf16>, vector<32x8xbf16>, vector<80x8xf32> -> vector<80x8xf32>
    %472 = arith.truncf %465 : vector<80x8xf32> to vector<80x8xbf16>
    %473 = arith.truncf %468 : vector<80x8xf32> to vector<80x8xbf16>
    %cst_303 = arith.constant dense<0.000000e+00> : vector<80x80xf32>
    %474 = tpu.matmul %472, %473, %cst_303 {dimension_numbers = #tpu.dot_dimension_numbers<[1], [1], [0], [0], [0, 0, 1, 0], [], []>} : vector<80x8xbf16>, vector<80x8xbf16>, vector<80x80xf32> -> vector<80x80xf32>
    %cst_304 = arith.constant 0.353553385 : f32
    %475 = vector.broadcast %cst_304 : f32 to vector<80x80xf32>
    %476 = arith.mulf %474, %475 : vector<80x80xf32>
    %cst_305 = arith.constant -1.000000e+30 : f32
    %477 = vector.broadcast %cst_305 : f32 to vector<80x80xf32>
    %478 = arith.select %172, %476, %477 : vector<80x80xi1>, vector<80x80xf32>
    %cst_306 = arith.constant dense<0xFF800000> : vector<80xf32>
    %479 = vector.multi_reduction <maximumf>, %478, %cst_306 [1] : vector<80x80xf32> to vector<80xf32>
    %480 = vector.shape_cast %479 : vector<80xf32> to vector<80x1xf32>
    %481 = vector.broadcast %480 : vector<80x1xf32> to vector<80x80xf32>
    %482 = arith.subf %478, %481 : vector<80x80xf32>
    %483 = math.exp %482 : vector<80x80xf32>
    %cst_307 = arith.constant dense<0.000000e+00> : vector<80xf32>
    %484 = vector.multi_reduction <add>, %483, %cst_307 [1] : vector<80x80xf32> to vector<80xf32>
    %485 = vector.shape_cast %484 : vector<80xf32> to vector<80x1xf32>
    %486 = arith.truncf %471 : vector<80x8xf32> to vector<80x8xbf16>
    %487 = arith.truncf %483 : vector<80x80xf32> to vector<80x80xbf16>
    %cst_308 = arith.constant dense<0.000000e+00> : vector<80x8xf32>
    %488 = tpu.matmul %487, %486, %cst_308 {dimension_numbers = #tpu.dot_dimension_numbers<[1], [0], [0], [1], [0, 0, 1, 1], [], []>} : vector<80x80xbf16>, vector<80x8xbf16>, vector<80x8xf32> -> vector<80x8xf32>
    %cst_309 = arith.constant 1.000000e+00 : f32
    %489 = vector.broadcast %cst_309 : f32 to vector<80x1xf32>
    %490 = arith.divf %489, %485 : vector<80x1xf32>
    %491 = vector.broadcast %490 : vector<80x1xf32> to vector<80x8xf32>
    %492 = arith.mulf %488, %491 : vector<80x8xf32>
    %c1_310 = arith.constant 1 : index
    %c1_311 = arith.constant 1 : index
    %c0_312 = arith.constant 0 : index
    %c0_313 = arith.constant 0 : index
    %493 = vector.load %arg18[%c1_310, %c1_311, %c0_312, %c0_313] : memref<2x4x8x32xbf16, #tpu.memory_space<vmem>>, vector<1x1x8x32xbf16>
    %494 = vector.shape_cast %493 : vector<1x1x8x32xbf16> to vector<8x32xbf16>
    %495 = arith.truncf %492 : vector<80x8xf32> to vector<80x8xbf16>
    %cst_314 = arith.constant dense<0.000000e+00> : vector<80x32xf32>
    %496 = tpu.matmul %495, %494, %cst_314 {dimension_numbers = #tpu.dot_dimension_numbers<[1], [0], [0], [1], [0, 0, 1, 1], [], []>} : vector<80x8xbf16>, vector<8x32xbf16>, vector<80x32xf32> -> vector<80x32xf32>
    %497 = arith.addf %458, %496 : vector<80x32xf32>
    %c1_315 = arith.constant 1 : index
    %c2_316 = arith.constant 2 : index
    %c0_317 = arith.constant 0 : index
    %c0_318 = arith.constant 0 : index
    %498 = vector.load %arg14[%c1_315, %c2_316, %c0_317, %c0_318] : memref<2x4x32x8xbf16, #tpu.memory_space<vmem>>, vector<1x1x32x8xbf16>
    %499 = vector.shape_cast %498 : vector<1x1x32x8xbf16> to vector<32x8xbf16>
    %cst_319 = arith.constant dense<0.000000e+00> : vector<80x8xf32>
    %500 = tpu.matmul %418, %499, %cst_319 {dimension_numbers = #tpu.dot_dimension_numbers<[1], [0], [0], [1], [0, 0, 1, 1], [], []>} : vector<80x32xbf16>, vector<32x8xbf16>, vector<80x8xf32> -> vector<80x8xf32>
    %c1_320 = arith.constant 1 : index
    %c2_321 = arith.constant 2 : index
    %c0_322 = arith.constant 0 : index
    %c0_323 = arith.constant 0 : index
    %501 = vector.load %arg17[%c1_320, %c2_321, %c0_322, %c0_323] : memref<2x4x1x8xf32, #tpu.memory_space<vmem>>, vector<1x1x1x8xf32>
    %502 = vector.shape_cast %501 : vector<1x1x1x8xf32> to vector<1x8xf32>
    %503 = vector.broadcast %502 : vector<1x8xf32> to vector<80x8xf32>
    %504 = arith.addf %500, %503 : vector<80x8xf32>
    %c1_324 = arith.constant 1 : index
    %c2_325 = arith.constant 2 : index
    %c0_326 = arith.constant 0 : index
    %c0_327 = arith.constant 0 : index
    %505 = vector.load %arg15[%c1_324, %c2_325, %c0_326, %c0_327] : memref<2x4x32x8xbf16, #tpu.memory_space<vmem>>, vector<1x1x32x8xbf16>
    %506 = vector.shape_cast %505 : vector<1x1x32x8xbf16> to vector<32x8xbf16>
    %cst_328 = arith.constant dense<0.000000e+00> : vector<80x8xf32>
    %507 = tpu.matmul %418, %506, %cst_328 {dimension_numbers = #tpu.dot_dimension_numbers<[1], [0], [0], [1], [0, 0, 1, 1], [], []>} : vector<80x32xbf16>, vector<32x8xbf16>, vector<80x8xf32> -> vector<80x8xf32>
    %c1_329 = arith.constant 1 : index
    %c2_330 = arith.constant 2 : index
    %c0_331 = arith.constant 0 : index
    %c0_332 = arith.constant 0 : index
    %508 = vector.load %arg16[%c1_329, %c2_330, %c0_331, %c0_332] : memref<2x4x32x8xbf16, #tpu.memory_space<vmem>>, vector<1x1x32x8xbf16>
    %509 = vector.shape_cast %508 : vector<1x1x32x8xbf16> to vector<32x8xbf16>
    %cst_333 = arith.constant dense<0.000000e+00> : vector<80x8xf32>
    %510 = tpu.matmul %418, %509, %cst_333 {dimension_numbers = #tpu.dot_dimension_numbers<[1], [0], [0], [1], [0, 0, 1, 1], [], []>} : vector<80x32xbf16>, vector<32x8xbf16>, vector<80x8xf32> -> vector<80x8xf32>
    %511 = arith.truncf %504 : vector<80x8xf32> to vector<80x8xbf16>
    %512 = arith.truncf %507 : vector<80x8xf32> to vector<80x8xbf16>
    %cst_334 = arith.constant dense<0.000000e+00> : vector<80x80xf32>
    %513 = tpu.matmul %511, %512, %cst_334 {dimension_numbers = #tpu.dot_dimension_numbers<[1], [1], [0], [0], [0, 0, 1, 0], [], []>} : vector<80x8xbf16>, vector<80x8xbf16>, vector<80x80xf32> -> vector<80x80xf32>
    %cst_335 = arith.constant 0.353553385 : f32
    %514 = vector.broadcast %cst_335 : f32 to vector<80x80xf32>
    %515 = arith.mulf %513, %514 : vector<80x80xf32>
    %cst_336 = arith.constant -1.000000e+30 : f32
    %516 = vector.broadcast %cst_336 : f32 to vector<80x80xf32>
    %517 = arith.select %172, %515, %516 : vector<80x80xi1>, vector<80x80xf32>
    %cst_337 = arith.constant dense<0xFF800000> : vector<80xf32>
    %518 = vector.multi_reduction <maximumf>, %517, %cst_337 [1] : vector<80x80xf32> to vector<80xf32>
    %519 = vector.shape_cast %518 : vector<80xf32> to vector<80x1xf32>
    %520 = vector.broadcast %519 : vector<80x1xf32> to vector<80x80xf32>
    %521 = arith.subf %517, %520 : vector<80x80xf32>
    %522 = math.exp %521 : vector<80x80xf32>
    %cst_338 = arith.constant dense<0.000000e+00> : vector<80xf32>
    %523 = vector.multi_reduction <add>, %522, %cst_338 [1] : vector<80x80xf32> to vector<80xf32>
    %524 = vector.shape_cast %523 : vector<80xf32> to vector<80x1xf32>
    %525 = arith.truncf %510 : vector<80x8xf32> to vector<80x8xbf16>
    %526 = arith.truncf %522 : vector<80x80xf32> to vector<80x80xbf16>
    %cst_339 = arith.constant dense<0.000000e+00> : vector<80x8xf32>
    %527 = tpu.matmul %526, %525, %cst_339 {dimension_numbers = #tpu.dot_dimension_numbers<[1], [0], [0], [1], [0, 0, 1, 1], [], []>} : vector<80x80xbf16>, vector<80x8xbf16>, vector<80x8xf32> -> vector<80x8xf32>
    %cst_340 = arith.constant 1.000000e+00 : f32
    %528 = vector.broadcast %cst_340 : f32 to vector<80x1xf32>
    %529 = arith.divf %528, %524 : vector<80x1xf32>
    %530 = vector.broadcast %529 : vector<80x1xf32> to vector<80x8xf32>
    %531 = arith.mulf %527, %530 : vector<80x8xf32>
    %c1_341 = arith.constant 1 : index
    %c2_342 = arith.constant 2 : index
    %c0_343 = arith.constant 0 : index
    %c0_344 = arith.constant 0 : index
    %532 = vector.load %arg18[%c1_341, %c2_342, %c0_343, %c0_344] : memref<2x4x8x32xbf16, #tpu.memory_space<vmem>>, vector<1x1x8x32xbf16>
    %533 = vector.shape_cast %532 : vector<1x1x8x32xbf16> to vector<8x32xbf16>
    %534 = arith.truncf %531 : vector<80x8xf32> to vector<80x8xbf16>
    %cst_345 = arith.constant dense<0.000000e+00> : vector<80x32xf32>
    %535 = tpu.matmul %534, %533, %cst_345 {dimension_numbers = #tpu.dot_dimension_numbers<[1], [0], [0], [1], [0, 0, 1, 1], [], []>} : vector<80x8xbf16>, vector<8x32xbf16>, vector<80x32xf32> -> vector<80x32xf32>
    %536 = arith.addf %497, %535 : vector<80x32xf32>
    %c1_346 = arith.constant 1 : index
    %c3_347 = arith.constant 3 : index
    %c0_348 = arith.constant 0 : index
    %c0_349 = arith.constant 0 : index
    %537 = vector.load %arg14[%c1_346, %c3_347, %c0_348, %c0_349] : memref<2x4x32x8xbf16, #tpu.memory_space<vmem>>, vector<1x1x32x8xbf16>
    %538 = vector.shape_cast %537 : vector<1x1x32x8xbf16> to vector<32x8xbf16>
    %cst_350 = arith.constant dense<0.000000e+00> : vector<80x8xf32>
    %539 = tpu.matmul %418, %538, %cst_350 {dimension_numbers = #tpu.dot_dimension_numbers<[1], [0], [0], [1], [0, 0, 1, 1], [], []>} : vector<80x32xbf16>, vector<32x8xbf16>, vector<80x8xf32> -> vector<80x8xf32>
    %c1_351 = arith.constant 1 : index
    %c3_352 = arith.constant 3 : index
    %c0_353 = arith.constant 0 : index
    %c0_354 = arith.constant 0 : index
    %540 = vector.load %arg17[%c1_351, %c3_352, %c0_353, %c0_354] : memref<2x4x1x8xf32, #tpu.memory_space<vmem>>, vector<1x1x1x8xf32>
    %541 = vector.shape_cast %540 : vector<1x1x1x8xf32> to vector<1x8xf32>
    %542 = vector.broadcast %541 : vector<1x8xf32> to vector<80x8xf32>
    %543 = arith.addf %539, %542 : vector<80x8xf32>
    %c1_355 = arith.constant 1 : index
    %c3_356 = arith.constant 3 : index
    %c0_357 = arith.constant 0 : index
    %c0_358 = arith.constant 0 : index
    %544 = vector.load %arg15[%c1_355, %c3_356, %c0_357, %c0_358] : memref<2x4x32x8xbf16, #tpu.memory_space<vmem>>, vector<1x1x32x8xbf16>
    %545 = vector.shape_cast %544 : vector<1x1x32x8xbf16> to vector<32x8xbf16>
    %cst_359 = arith.constant dense<0.000000e+00> : vector<80x8xf32>
    %546 = tpu.matmul %418, %545, %cst_359 {dimension_numbers = #tpu.dot_dimension_numbers<[1], [0], [0], [1], [0, 0, 1, 1], [], []>} : vector<80x32xbf16>, vector<32x8xbf16>, vector<80x8xf32> -> vector<80x8xf32>
    %c1_360 = arith.constant 1 : index
    %c3_361 = arith.constant 3 : index
    %c0_362 = arith.constant 0 : index
    %c0_363 = arith.constant 0 : index
    %547 = vector.load %arg16[%c1_360, %c3_361, %c0_362, %c0_363] : memref<2x4x32x8xbf16, #tpu.memory_space<vmem>>, vector<1x1x32x8xbf16>
    %548 = vector.shape_cast %547 : vector<1x1x32x8xbf16> to vector<32x8xbf16>
    %cst_364 = arith.constant dense<0.000000e+00> : vector<80x8xf32>
    %549 = tpu.matmul %418, %548, %cst_364 {dimension_numbers = #tpu.dot_dimension_numbers<[1], [0], [0], [1], [0, 0, 1, 1], [], []>} : vector<80x32xbf16>, vector<32x8xbf16>, vector<80x8xf32> -> vector<80x8xf32>
    %550 = arith.truncf %543 : vector<80x8xf32> to vector<80x8xbf16>
    %551 = arith.truncf %546 : vector<80x8xf32> to vector<80x8xbf16>
    %cst_365 = arith.constant dense<0.000000e+00> : vector<80x80xf32>
    %552 = tpu.matmul %550, %551, %cst_365 {dimension_numbers = #tpu.dot_dimension_numbers<[1], [1], [0], [0], [0, 0, 1, 0], [], []>} : vector<80x8xbf16>, vector<80x8xbf16>, vector<80x80xf32> -> vector<80x80xf32>
    %cst_366 = arith.constant 0.353553385 : f32
    %553 = vector.broadcast %cst_366 : f32 to vector<80x80xf32>
    %554 = arith.mulf %552, %553 : vector<80x80xf32>
    %cst_367 = arith.constant -1.000000e+30 : f32
    %555 = vector.broadcast %cst_367 : f32 to vector<80x80xf32>
    %556 = arith.select %172, %554, %555 : vector<80x80xi1>, vector<80x80xf32>
    %cst_368 = arith.constant dense<0xFF800000> : vector<80xf32>
    %557 = vector.multi_reduction <maximumf>, %556, %cst_368 [1] : vector<80x80xf32> to vector<80xf32>
    %558 = vector.shape_cast %557 : vector<80xf32> to vector<80x1xf32>
    %559 = vector.broadcast %558 : vector<80x1xf32> to vector<80x80xf32>
    %560 = arith.subf %556, %559 : vector<80x80xf32>
    %561 = math.exp %560 : vector<80x80xf32>
    %cst_369 = arith.constant dense<0.000000e+00> : vector<80xf32>
    %562 = vector.multi_reduction <add>, %561, %cst_369 [1] : vector<80x80xf32> to vector<80xf32>
    %563 = vector.shape_cast %562 : vector<80xf32> to vector<80x1xf32>
    %564 = arith.truncf %549 : vector<80x8xf32> to vector<80x8xbf16>
    %565 = arith.truncf %561 : vector<80x80xf32> to vector<80x80xbf16>
    %cst_370 = arith.constant dense<0.000000e+00> : vector<80x8xf32>
    %566 = tpu.matmul %565, %564, %cst_370 {dimension_numbers = #tpu.dot_dimension_numbers<[1], [0], [0], [1], [0, 0, 1, 1], [], []>} : vector<80x80xbf16>, vector<80x8xbf16>, vector<80x8xf32> -> vector<80x8xf32>
    %cst_371 = arith.constant 1.000000e+00 : f32
    %567 = vector.broadcast %cst_371 : f32 to vector<80x1xf32>
    %568 = arith.divf %567, %563 : vector<80x1xf32>
    %569 = vector.broadcast %568 : vector<80x1xf32> to vector<80x8xf32>
    %570 = arith.mulf %566, %569 : vector<80x8xf32>
    %c1_372 = arith.constant 1 : index
    %c3_373 = arith.constant 3 : index
    %c0_374 = arith.constant 0 : index
    %c0_375 = arith.constant 0 : index
    %571 = vector.load %arg18[%c1_372, %c3_373, %c0_374, %c0_375] : memref<2x4x8x32xbf16, #tpu.memory_space<vmem>>, vector<1x1x8x32xbf16>
    %572 = vector.shape_cast %571 : vector<1x1x8x32xbf16> to vector<8x32xbf16>
    %573 = arith.truncf %570 : vector<80x8xf32> to vector<80x8xbf16>
    %cst_376 = arith.constant dense<0.000000e+00> : vector<80x32xf32>
    %574 = tpu.matmul %573, %572, %cst_376 {dimension_numbers = #tpu.dot_dimension_numbers<[1], [0], [0], [1], [0, 0, 1, 1], [], []>} : vector<80x8xbf16>, vector<8x32xbf16>, vector<80x32xf32> -> vector<80x32xf32>
    %575 = arith.addf %536, %574 : vector<80x32xf32>
    %c1_377 = arith.constant 1 : index
    %c0_378 = arith.constant 0 : index
    %c0_379 = arith.constant 0 : index
    %576 = vector.load %arg19[%c1_377, %c0_378, %c0_379] : memref<2x1x32xf32, #tpu.memory_space<vmem>>, vector<1x1x32xf32>
    %577 = vector.shape_cast %576 : vector<1x1x32xf32> to vector<1x32xf32>
    %578 = vector.broadcast %577 : vector<1x32xf32> to vector<80x32xf32>
    %579 = arith.addf %575, %578 : vector<80x32xf32>
    %580 = arith.addf %579, %417 : vector<80x32xf32>
    %c1_380 = arith.constant 1 : index
    %c0_381 = arith.constant 0 : index
    %c0_382 = arith.constant 0 : index
    %581 = vector.load %arg20[%c1_380, %c0_381, %c0_382] : memref<2x1x32xf32, #tpu.memory_space<vmem>>, vector<1x1x32xf32>
    %582 = vector.shape_cast %581 : vector<1x1x32xf32> to vector<1x32xf32>
    %c1_383 = arith.constant 1 : index
    %c0_384 = arith.constant 0 : index
    %c0_385 = arith.constant 0 : index
    %583 = vector.load %arg21[%c1_383, %c0_384, %c0_385] : memref<2x1x32xf32, #tpu.memory_space<vmem>>, vector<1x1x32xf32>
    %584 = vector.shape_cast %583 : vector<1x1x32xf32> to vector<1x32xf32>
    %cst_386 = arith.constant dense<0.000000e+00> : vector<80xf32>
    %585 = vector.multi_reduction <add>, %580, %cst_386 [1] : vector<80x32xf32> to vector<80xf32>
    %586 = vector.shape_cast %585 : vector<80xf32> to vector<80x1xf32>
    %cst_387 = arith.constant 3.200000e+01 : f32
    %587 = vector.broadcast %cst_387 : f32 to vector<80x1xf32>
    %588 = arith.divf %586, %587 : vector<80x1xf32>
    %589 = vector.broadcast %588 : vector<80x1xf32> to vector<80x32xf32>
    %590 = arith.subf %580, %589 : vector<80x32xf32>
    %591 = arith.mulf %590, %590 : vector<80x32xf32>
    %cst_388 = arith.constant dense<0.000000e+00> : vector<80xf32>
    %592 = vector.multi_reduction <add>, %591, %cst_388 [1] : vector<80x32xf32> to vector<80xf32>
    %593 = vector.shape_cast %592 : vector<80xf32> to vector<80x1xf32>
    %cst_389 = arith.constant 3.200000e+01 : f32
    %594 = vector.broadcast %cst_389 : f32 to vector<80x1xf32>
    %595 = arith.divf %593, %594 : vector<80x1xf32>
    %596 = vector.broadcast %588 : vector<80x1xf32> to vector<80x32xf32>
    %597 = arith.subf %580, %596 : vector<80x32xf32>
    %cst_390 = arith.constant 9.99999974E-6 : f32
    %598 = vector.broadcast %cst_390 : f32 to vector<80x1xf32>
    %599 = arith.addf %595, %598 : vector<80x1xf32>
    %600 = math.rsqrt %599 : vector<80x1xf32>
    %601 = vector.broadcast %600 : vector<80x1xf32> to vector<80x32xf32>
    %602 = arith.mulf %597, %601 : vector<80x32xf32>
    %603 = vector.broadcast %582 : vector<1x32xf32> to vector<80x32xf32>
    %604 = arith.mulf %602, %603 : vector<80x32xf32>
    %605 = vector.broadcast %584 : vector<1x32xf32> to vector<80x32xf32>
    %606 = arith.addf %604, %605 : vector<80x32xf32>
    %c1_391 = arith.constant 1 : index
    %c0_392 = arith.constant 0 : index
    %c0_393 = arith.constant 0 : index
    %607 = vector.load %arg22[%c1_391, %c0_392, %c0_393] : memref<2x32x64xbf16, #tpu.memory_space<vmem>>, vector<1x32x64xbf16>
    %608 = vector.shape_cast %607 : vector<1x32x64xbf16> to vector<32x64xbf16>
    %609 = arith.truncf %606 : vector<80x32xf32> to vector<80x32xbf16>
    %cst_394 = arith.constant dense<0.000000e+00> : vector<80x64xf32>
    %610 = tpu.matmul %609, %608, %cst_394 {dimension_numbers = #tpu.dot_dimension_numbers<[1], [0], [0], [1], [0, 0, 1, 1], [], []>} : vector<80x32xbf16>, vector<32x64xbf16>, vector<80x64xf32> -> vector<80x64xf32>
    %c1_395 = arith.constant 1 : index
    %c0_396 = arith.constant 0 : index
    %c0_397 = arith.constant 0 : index
    %611 = vector.load %arg23[%c1_395, %c0_396, %c0_397] : memref<2x1x64xf32, #tpu.memory_space<vmem>>, vector<1x1x64xf32>
    %612 = vector.shape_cast %611 : vector<1x1x64xf32> to vector<1x64xf32>
    %613 = vector.broadcast %612 : vector<1x64xf32> to vector<80x64xf32>
    %614 = arith.addf %610, %613 : vector<80x64xf32>
    %615 = arith.mulf %614, %614 : vector<80x64xf32>
    %616 = arith.mulf %614, %615 : vector<80x64xf32>
    %cst_398 = arith.constant 4.471500e-02 : f32
    %617 = vector.broadcast %cst_398 : f32 to vector<80x64xf32>
    %618 = arith.mulf %617, %616 : vector<80x64xf32>
    %619 = arith.addf %614, %618 : vector<80x64xf32>
    %cst_399 = arith.constant 0.797884583 : f32
    %620 = vector.broadcast %cst_399 : f32 to vector<80x64xf32>
    %621 = arith.mulf %620, %619 : vector<80x64xf32>
    %622 = math.tanh %621 : vector<80x64xf32>
    %cst_400 = arith.constant 1.000000e+00 : f32
    %623 = vector.broadcast %cst_400 : f32 to vector<80x64xf32>
    %624 = arith.addf %623, %622 : vector<80x64xf32>
    %cst_401 = arith.constant 5.000000e-01 : f32
    %625 = vector.broadcast %cst_401 : f32 to vector<80x64xf32>
    %626 = arith.mulf %625, %624 : vector<80x64xf32>
    %627 = arith.mulf %614, %626 : vector<80x64xf32>
    %c1_402 = arith.constant 1 : index
    %c0_403 = arith.constant 0 : index
    %c0_404 = arith.constant 0 : index
    %628 = vector.load %arg24[%c1_402, %c0_403, %c0_404] : memref<2x64x32xbf16, #tpu.memory_space<vmem>>, vector<1x64x32xbf16>
    %629 = vector.shape_cast %628 : vector<1x64x32xbf16> to vector<64x32xbf16>
    %630 = arith.truncf %627 : vector<80x64xf32> to vector<80x64xbf16>
    %cst_405 = arith.constant dense<0.000000e+00> : vector<80x32xf32>
    %631 = tpu.matmul %630, %629, %cst_405 {dimension_numbers = #tpu.dot_dimension_numbers<[1], [0], [0], [1], [0, 0, 1, 1], [], []>} : vector<80x64xbf16>, vector<64x32xbf16>, vector<80x32xf32> -> vector<80x32xf32>
    %c1_406 = arith.constant 1 : index
    %c0_407 = arith.constant 0 : index
    %c0_408 = arith.constant 0 : index
    %632 = vector.load %arg25[%c1_406, %c0_407, %c0_408] : memref<2x1x32xf32, #tpu.memory_space<vmem>>, vector<1x1x32xf32>
    %633 = vector.shape_cast %632 : vector<1x1x32xf32> to vector<1x32xf32>
    %634 = vector.broadcast %633 : vector<1x32xf32> to vector<80x32xf32>
    %635 = arith.addf %631, %634 : vector<80x32xf32>
    %636 = arith.addf %635, %606 : vector<80x32xf32>
    %c1_409 = arith.constant 1 : index
    %c0_410 = arith.constant 0 : index
    %c0_411 = arith.constant 0 : index
    %637 = vector.load %arg26[%c1_409, %c0_410, %c0_411] : memref<2x1x32xf32, #tpu.memory_space<vmem>>, vector<1x1x32xf32>
    %638 = vector.shape_cast %637 : vector<1x1x32xf32> to vector<1x32xf32>
    %c1_412 = arith.constant 1 : index
    %c0_413 = arith.constant 0 : index
    %c0_414 = arith.constant 0 : index
    %639 = vector.load %arg27[%c1_412, %c0_413, %c0_414] : memref<2x1x32xf32, #tpu.memory_space<vmem>>, vector<1x1x32xf32>
    %640 = vector.shape_cast %639 : vector<1x1x32xf32> to vector<1x32xf32>
    %cst_415 = arith.constant dense<0.000000e+00> : vector<80xf32>
    %641 = vector.multi_reduction <add>, %636, %cst_415 [1] : vector<80x32xf32> to vector<80xf32>
    %642 = vector.shape_cast %641 : vector<80xf32> to vector<80x1xf32>
    %cst_416 = arith.constant 3.200000e+01 : f32
    %643 = vector.broadcast %cst_416 : f32 to vector<80x1xf32>
    %644 = arith.divf %642, %643 : vector<80x1xf32>
    %645 = vector.broadcast %644 : vector<80x1xf32> to vector<80x32xf32>
    %646 = arith.subf %636, %645 : vector<80x32xf32>
    %647 = arith.mulf %646, %646 : vector<80x32xf32>
    %cst_417 = arith.constant dense<0.000000e+00> : vector<80xf32>
    %648 = vector.multi_reduction <add>, %647, %cst_417 [1] : vector<80x32xf32> to vector<80xf32>
    %649 = vector.shape_cast %648 : vector<80xf32> to vector<80x1xf32>
    %cst_418 = arith.constant 3.200000e+01 : f32
    %650 = vector.broadcast %cst_418 : f32 to vector<80x1xf32>
    %651 = arith.divf %649, %650 : vector<80x1xf32>
    %652 = vector.broadcast %644 : vector<80x1xf32> to vector<80x32xf32>
    %653 = arith.subf %636, %652 : vector<80x32xf32>
    %cst_419 = arith.constant 9.99999974E-6 : f32
    %654 = vector.broadcast %cst_419 : f32 to vector<80x1xf32>
    %655 = arith.addf %651, %654 : vector<80x1xf32>
    %656 = math.rsqrt %655 : vector<80x1xf32>
    %657 = vector.broadcast %656 : vector<80x1xf32> to vector<80x32xf32>
    %658 = arith.mulf %653, %657 : vector<80x32xf32>
    %659 = vector.broadcast %638 : vector<1x32xf32> to vector<80x32xf32>
    %660 = arith.mulf %658, %659 : vector<80x32xf32>
    %661 = vector.broadcast %640 : vector<1x32xf32> to vector<80x32xf32>
    %662 = arith.addf %660, %661 : vector<80x32xf32>
    %c0_420 = arith.constant 0 : index
    %c0_421 = arith.constant 0 : index
    %c0_422 = arith.constant 0 : index
    %663 = vector.load %arg28[%c0_420, %c0_421, %c0_422] : memref<1x80x32xf32, #tpu.memory_space<vmem>>, vector<1x80x32xf32>
    %664 = vector.shape_cast %663 : vector<1x80x32xf32> to vector<80x32xf32>
    %665 = vector.shape_cast %662 : vector<80x32xf32> to vector<1x80x32xf32>
    tpu.vector_store %arg28[%c0_420, %c0_421, %c0_422], %665 {strides = array<i32>} : memref<1x80x32xf32, #tpu.memory_space<vmem>>, vector<1x80x32xf32>,
    return
  }
  func.func @transform_0(%arg0: i32) -> (i32, i32, i32) {
    %c0_i32 = arith.constant 0 : i32
    %c0_i32_0 = arith.constant 0 : i32
    %c0_i32_1 = arith.constant 0 : i32
    return %arg0, %c0_i32, %c0_i32_0 : i32, i32, i32
  }
  func.func @transform_1(%arg0: i32) -> (i32, i32, i32) {
    %c0_i32 = arith.constant 0 : i32
    %c0_i32_0 = arith.constant 0 : i32
    %c0_i32_1 = arith.constant 0 : i32
    %c0_i32_2 = arith.constant 0 : i32
    return %c0_i32, %c0_i32_0, %c0_i32_1 : i32, i32, i32
  }
  func.func @transform_2(%arg0: i32) -> (i32, i32) {
    %c0_i32 = arith.constant 0 : i32
    %c0_i32_0 = arith.constant 0 : i32
    %c0_i32_1 = arith.constant 0 : i32
    return %c0_i32, %c0_i32_0 : i32, i32
  }
  func.func @transform_3(%arg0: i32) -> (i32, i32, i32) {
    %c0_i32 = arith.constant 0 : i32
    %c0_i32_0 = arith.constant 0 : i32
    %c0_i32_1 = arith.constant 0 : i32
    %c0_i32_2 = arith.constant 0 : i32
    return %c0_i32, %c0_i32_0, %c0_i32_1 : i32, i32, i32
  }
  func.func @transform_4(%arg0: i32) -> (i32, i32) {
    %c0_i32 = arith.constant 0 : i32
    %c0_i32_0 = arith.constant 0 : i32
    %c0_i32_1 = arith.constant 0 : i32
    return %c0_i32, %c0_i32_0 : i32, i32
  }
  func.func @transform_5(%arg0: i32) -> (i32, i32) {
    %c0_i32 = arith.constant 0 : i32
    %c0_i32_0 = arith.constant 0 : i32
    %c0_i32_1 = arith.constant 0 : i32
    return %c0_i32, %c0_i32_0 : i32, i32
  }
  func.func @transform_6(%arg0: i32) -> (i32, i32) {
    %c0_i32 = arith.constant 0 : i32
    %c0_i32_0 = arith.constant 0 : i32
    %c0_i32_1 = arith.constant 0 : i32
    return %c0_i32, %c0_i32_0 : i32, i32
  }
  func.func @transform_7(%arg0: i32) -> (i32, i32) {
    %c0_i32 = arith.constant 0 : i32
    %c0_i32_0 = arith.constant 0 : i32
    %c0_i32_1 = arith.constant 0 : i32
    return %c0_i32, %c0_i32_0 : i32, i32
  }
  func.func @transform_8(%arg0: i32) -> (i32, i32) {
    %c0_i32 = arith.constant 0 : i32
    %c0_i32_0 = arith.constant 0 : i32
    %c0_i32_1 = arith.constant 0 : i32
    return %c0_i32, %c0_i32_0 : i32, i32
  }
  func.func @transform_9(%arg0: i32) -> (i32, i32, i32) {
    %c0_i32 = arith.constant 0 : i32
    %c0_i32_0 = arith.constant 0 : i32
    %c0_i32_1 = arith.constant 0 : i32
    %c0_i32_2 = arith.constant 0 : i32
    return %c0_i32, %c0_i32_0, %c0_i32_1 : i32, i32, i32
  }
  func.func @transform_10(%arg0: i32) -> (i32, i32) {
    %c0_i32 = arith.constant 0 : i32
    %c0_i32_0 = arith.constant 0 : i32
    %c0_i32_1 = arith.constant 0 : i32
    return %c0_i32, %c0_i32_0 : i32, i32
  }
  func.func @transform_11(%arg0: i32) -> (i32, i32) {
    %c0_i32 = arith.constant 0 : i32
    %c0_i32_0 = arith.constant 0 : i32
    %c0_i32_1 = arith.constant 0 : i32
    return %c0_i32, %c0_i32_0 : i32, i32
  }
  func.func @transform_12(%arg0: i32) -> (i32, i32) {
    %c0_i32 = arith.constant 0 : i32
    %c0_i32_0 = arith.constant 0 : i32
    %c0_i32_1 = arith.constant 0 : i32
    return %c0_i32, %c0_i32_0 : i32, i32
  }
  func.func @transform_13(%arg0: i32) -> (i32, i32, i32, i32) {
    %c0_i32 = arith.constant 0 : i32
    %c0_i32_0 = arith.constant 0 : i32
    %c0_i32_1 = arith.constant 0 : i32
    %c0_i32_2 = arith.constant 0 : i32
    %c0_i32_3 = arith.constant 0 : i32
    return %c0_i32, %c0_i32_0, %c0_i32_1, %c0_i32_2 : i32, i32, i32, i32
  }
  func.func @transform_14(%arg0: i32) -> (i32, i32, i32, i32) {
    %c0_i32 = arith.constant 0 : i32
    %c0_i32_0 = arith.constant 0 : i32
    %c0_i32_1 = arith.constant 0 : i32
    %c0_i32_2 = arith.constant 0 : i32
    %c0_i32_3 = arith.constant 0 : i32
    return %c0_i32, %c0_i32_0, %c0_i32_1, %c0_i32_2 : i32, i32, i32, i32
  }
  func.func @transform_15(%arg0: i32) -> (i32, i32, i32, i32) {
    %c0_i32 = arith.constant 0 : i32
    %c0_i32_0 = arith.constant 0 : i32
    %c0_i32_1 = arith.constant 0 : i32
    %c0_i32_2 = arith.constant 0 : i32
    %c0_i32_3 = arith.constant 0 : i32
    return %c0_i32, %c0_i32_0, %c0_i32_1, %c0_i32_2 : i32, i32, i32, i32
  }
  func.func @transform_16(%arg0: i32) -> (i32, i32, i32, i32) {
    %c0_i32 = arith.constant 0 : i32
    %c0_i32_0 = arith.constant 0 : i32
    %c0_i32_1 = arith.constant 0 : i32
    %c0_i32_2 = arith.constant 0 : i32
    %c0_i32_3 = arith.constant 0 : i32
    return %c0_i32, %c0_i32_0, %c0_i32_1, %c0_i32_2 : i32, i32, i32, i32
  }
  func.func @transform_17(%arg0: i32) -> (i32, i32, i32, i32) {
    %c0_i32 = arith.constant 0 : i32
    %c0_i32_0 = arith.constant 0 : i32
    %c0_i32_1 = arith.constant 0 : i32
    %c0_i32_2 = arith.constant 0 : i32
    %c0_i32_3 = arith.constant 0 : i32
    return %c0_i32, %c0_i32_0, %c0_i32_1, %c0_i32_2 : i32, i32, i32, i32
  }
  func.func @transform_18(%arg0: i32) -> (i32, i32, i32) {
    %c0_i32 = arith.constant 0 : i32
    %c0_i32_0 = arith.constant 0 : i32
    %c0_i32_1 = arith.constant 0 : i32
    %c0_i32_2 = arith.constant 0 : i32
    return %c0_i32, %c0_i32_0, %c0_i32_1 : i32, i32, i32
  }
  func.func @transform_19(%arg0: i32) -> (i32, i32, i32) {
    %c0_i32 = arith.constant 0 : i32
    %c0_i32_0 = arith.constant 0 : i32
    %c0_i32_1 = arith.constant 0 : i32
    %c0_i32_2 = arith.constant 0 : i32
    return %c0_i32, %c0_i32_0, %c0_i32_1 : i32, i32, i32
  }
  func.func @transform_20(%arg0: i32) -> (i32, i32, i32) {
    %c0_i32 = arith.constant 0 : i32
    %c0_i32_0 = arith.constant 0 : i32
    %c0_i32_1 = arith.constant 0 : i32
    %c0_i32_2 = arith.constant 0 : i32
    return %c0_i32, %c0_i32_0, %c0_i32_1 : i32, i32, i32
  }
  func.func @transform_21(%arg0: i32) -> (i32, i32, i32) {
    %c0_i32 = arith.constant 0 : i32
    %c0_i32_0 = arith.constant 0 : i32
    %c0_i32_1 = arith.constant 0 : i32
    %c0_i32_2 = arith.constant 0 : i32
    return %c0_i32, %c0_i32_0, %c0_i32_1 : i32, i32, i32
  }
  func.func @transform_22(%arg0: i32) -> (i32, i32, i32) {
    %c0_i32 = arith.constant 0 : i32
    %c0_i32_0 = arith.constant 0 : i32
    %c0_i32_1 = arith.constant 0 : i32
    %c0_i32_2 = arith.constant 0 : i32
    return %c0_i32, %c0_i32_0, %c0_i32_1 : i32, i32, i32
  }
  func.func @transform_23(%arg0: i32) -> (i32, i32, i32) {
    %c0_i32 = arith.constant 0 : i32
    %c0_i32_0 = arith.constant 0 : i32
    %c0_i32_1 = arith.constant 0 : i32
    %c0_i32_2 = arith.constant 0 : i32
    return %c0_i32, %c0_i32_0, %c0_i32_1 : i32, i32, i32
  }
  func.func @transform_24(%arg0: i32) -> (i32, i32, i32) {
    %c0_i32 = arith.constant 0 : i32
    %c0_i32_0 = arith.constant 0 : i32
    %c0_i32_1 = arith.constant 0 : i32
    %c0_i32_2 = arith.constant 0 : i32
    return %c0_i32, %c0_i32_0, %c0_i32_1 : i32, i32, i32
  }
  func.func @transform_25(%arg0: i32) -> (i32, i32, i32) {
    %c0_i32 = arith.constant 0 : i32
    %c0_i32_0 = arith.constant 0 : i32
    %c0_i32_1 = arith.constant 0 : i32
    %c0_i32_2 = arith.constant 0 : i32
    return %c0_i32, %c0_i32_0, %c0_i32_1 : i32, i32, i32
  }
  func.func @transform_26(%arg0: i32) -> (i32, i32, i32) {
    %c0_i32 = arith.constant 0 : i32
    %c0_i32_0 = arith.constant 0 : i32
    %c0_i32_1 = arith.constant 0 : i32
    %c0_i32_2 = arith.constant 0 : i32
    return %c0_i32, %c0_i32_0, %c0_i32_1 : i32, i32, i32
  }
  func.func @transform_27(%arg0: i32) -> (i32, i32, i32) {
    %c0_i32 = arith.constant 0 : i32
    %c0_i32_0 = arith.constant 0 : i32
    %c0_i32_1 = arith.constant 0 : i32
    return %arg0, %c0_i32, %c0_i32_0 : i32, i32, i32
  }
}

</mosaic_0001>

<llo_original>
// kernel: squeeze.1
$region0: #{squeeze.1}
  %s0 = inlined_call_operand.vmem [shape: f32[2,800], index: 0, kind: input, shape index: {}]
  %s1 = inlined_call_operand.vmem [shape: f32[2,80,10], index: 1, kind: output, shape index: {}]
  $region1: #{squeeze.1} parent=0
    #allocation0 [shape = 'u8[28672]{0}', space=vmem, size = 0x7000, scoped, tag = 'scoped mem for input reshape']
    %s3 = ssub.s32 4, 1
    %s4 = scalar_lea.vmem %s0, 12
    %v5 = vld [vmem:[%s4] sm:%s3]
    %s6 = scalar_lea.vmem [#allocation0], 48
    %7 = vst [vmem:[%s6] sm:%s3] %v5
    %s8 = scalar_lea.vmem %s0, 10
    %v9 = vld [vmem:[%s8] sm:%s3]
    %s10 = scalar_lea.vmem [#allocation0], 40
    %11 = vst [vmem:[%s10] sm:%s3] %v9
    %s12 = scalar_lea.vmem %s0, 8
    %v13 = vld [vmem:[%s12] sm:%s3]
    %s14 = scalar_lea.vmem [#allocation0], 32
    %15 = vst [vmem:[%s14] sm:%s3] %v13
    %s16 = scalar_lea.vmem %s0, 6
    %v17 = vld [vmem:[%s16] sm:%s3]
    %s18 = scalar_lea.vmem [#allocation0], 24
    %19 = vst [vmem:[%s18] sm:%s3] %v17
    %s20 = scalar_lea.vmem %s0, 4
    %v21 = vld [vmem:[%s20] sm:%s3]
    %s22 = scalar_lea.vmem [#allocation0], 16
    %23 = vst [vmem:[%s22] sm:%s3] %v21
    %s24 = scalar_lea.vmem %s0, 2
    %v25 = vld [vmem:[%s24] sm:%s3]
    %s26 = scalar_lea.vmem [#allocation0], 8
    %27 = vst [vmem:[%s26] sm:%s3] %v25
    %v28 = vld [vmem:[%s0] sm:%s3]
    %29 = vst [vmem:[#allocation0] sm:%s3] %v28
    %v30 = vld [vmem:[#allocation0] sm:$0x3]
    %vm31 = vcmask 80896
    %32 = vst.msk [vmem:[%s1] ss:$80 sm:$0x3] %vm31, %v30
    %s33 = scalar_lea.vmem [#allocation0], 40
    %v34 = vld [vmem:[%s33] sm:$0x3]
    %vm35 = vcmask 80896
    %s36 = scalar_lea.vmem %s1, 64
    %37 = vst.msk [vmem:[%s36] ss:$80 sm:$0x3] %vm35, %v34
    %s38 = scalar_lea.vmem [#allocation0], 8
    %v39 = vld [vmem:[%s38] sm:$0x3]
    %s40 = scalar_lea.vmem [#allocation0], 46
    %v41 = vld [vmem:[%s40] sm:$0xc]
    %vm42 = vcmask 1043458
    %v43 = vsel %vm42, %v41, %v39
    %44 = vrot.lane.b32.xlu0 %v43, 126
    %v45 = vpop.permute.xlu0 %44
    %vm46 = vcmask 80896
    %s47 = scalar_lea.vmem %s1, 13
    %48 = vst.msk [vmem:[%s47] ss:$80 sm:$0x3] %vm46, %v45
    %s49 = scalar_lea.vmem %s1, 4294967213
    %50 = vst.msk [vmem:[%s49] ss:$80 sm:$0xc] %vm46, %v45
    %s51 = scalar_lea.vmem [#allocation0], 17
    %s52 = smov 3
    %v53 = vld [vmem:[%s51] ss:$-1 sm:%s52]
    %54 = vrot.lane.b32.xlu0 %v53, 124
    %v55 = vpop.permute.xlu0 %54
    %vm56 = vcmask 80896
    %s57 = scalar_lea.vmem %s1, 106
    %58 = vst.msk [vmem:[%s57] ss:$-80 sm:$0x3] %vm56, %v55
    %s59 = scalar_lea.vmem [#allocation0], 24
    %v60 = vld [vmem:[%s59] sm:$0x3]
    %61 = vrot.lane.b32.xlu0 %v60, 122
    %v62 = vpop.permute.xlu0 %61
    %vm63 = vcmask 80896
    %s64 = scalar_lea.vmem %s1, 39
    %65 = vst.msk [vmem:[%s64] ss:$80 sm:$0x3] %vm63, %v62
    %s66 = scalar_lea.vmem [#allocation0], 33
    %s67 = smov 3
    %v68 = vld [vmem:[%s66] ss:$-1 sm:%s67]
    %69 = vrot.lane.b32.xlu0 %v68, 120
    %v70 = vpop.permute.xlu0 %69
    %vm71 = vcmask 80896
    %s72 = scalar_lea.vmem %s1, 132
    %73 = vst.msk [vmem:[%s72] ss:$-80 sm:$0x3] %vm71, %v70
    %v74 = vld [vmem:[#allocation0] sm:$0x3]
    %s75 = scalar_lea.vmem [#allocation0], 38
    %v76 = vld [vmem:[%s75] sm:$0xc]
    %vm77 = vcmask 1043458
    %v78 = vsel %vm77, %v76, %v74
    %79 = vrot.lane.b32.xlu0 %v78, 118
    %v80 = vpop.permute.xlu0 %79
    %vm81 = vcmask 80896
    %s82 = scalar_lea.vmem %s1, 1
    %83 = vst.msk [vmem:[%s82] ss:$80 sm:$0x3] %vm81, %v80
    %s84 = scalar_lea.vmem %s1, 4294967201
    %85 = vst.msk [vmem:[%s84] ss:$80 sm:$0xc] %vm81, %v80
    %s86 = scalar_lea.vmem [#allocation0], 8
    %v87 = vld [vmem:[%s86] sm:$0x3]
    %s88 = scalar_lea.vmem [#allocation0], 46
    %v89 = vld [vmem:[%s88] sm:$0xc]
    %vm90 = vcmask 1043458
    %v91 = vsel %vm90, %v89, %v87
    %92 = vrot.lane.b32.xlu0 %v91, 116
    %v93 = vpop.permute.xlu0 %92
    %vm94 = vcmask 80896
    %s95 = scalar_lea.vmem %s1, 14
    %96 = vst.msk [vmem:[%s95] ss:$80 sm:$0x3] %vm94, %v93
    %s97 = scalar_lea.vmem %s1, 4294967214
    %98 = vst.msk [vmem:[%s97] ss:$80 sm:$0xc] %vm94, %v93
    %s99 = scalar_lea.vmem [#allocation0], 17
    %s100 = smov 3
    %v101 = vld [vmem:[%s99] ss:$-1 sm:%s100]
    %102 = vrot.lane.b32.xlu0 %v101, 114
    %v103 = vpop.permute.xlu0 %102
    %vm104 = vcmask 80896
    %s105 = scalar_lea.vmem %s1, 107
    %106 = vst.msk [vmem:[%s105] ss:$-80 sm:$0x3] %vm104, %v103
    %s107 = scalar_lea.vmem [#allocation0], 24
    %v108 = vld [vmem:[%s107] sm:$0x3]
    %109 = vrot.lane.b32.xlu0 %v108, 112
    %v110 = vpop.permute.xlu0 %109
    %vm111 = vcmask 80896
    %s112 = scalar_lea.vmem %s1, 40
    %113 = vst.msk [vmem:[%s112] ss:$80 sm:$0x3] %vm111, %v110
    %s114 = scalar_lea.vmem [#allocation0], 33
    %s115 = smov 3
    %v116 = vld [vmem:[%s114] ss:$-1 sm:%s115]
    %117 = vrot.lane.b32.xlu0 %v116, 110
    %v118 = vpop.permute.xlu0 %117
    %vm119 = vcmask 80896
    %s120 = scalar_lea.vmem %s1, 133
    %121 = vst.msk [vmem:[%s120] ss:$-80 sm:$0x3] %vm119, %v118
    %v122 = vld [vmem:[#allocation0] sm:$0x3]
    %s123 = scalar_lea.vmem [#allocation0], 38
    %v124 = vld [vmem:[%s123] sm:$0xc]
    %vm125 = vcmask 1043458
    %v126 = vsel %vm125, %v124, %v122
    %127 = vrot.lane.b32.xlu0 %v126, 108
    %v128 = vpop.permute.xlu0 %127
    %vm129 = vcmask 80896
    %s130 = scalar_lea.vmem %s1, 2
    %131 = vst.msk [vmem:[%s130] ss:$80 sm:$0x3] %vm129, %v128
    %s132 = scalar_lea.vmem %s1, 4294967202
    %133 = vst.msk [vmem:[%s132] ss:$80 sm:$0xc] %vm129, %v128
    %s134 = scalar_lea.vmem [#allocation0], 8
    %v135 = vld [vmem:[%s134] sm:$0x3]
    %s136 = scalar_lea.vmem [#allocation0], 46
    %v137 = vld [vmem:[%s136] sm:$0xc]
    %vm138 = vcmask 1043458
    %v139 = vsel %vm138, %v137, %v135
    %140 = vrot.lane.b32.xlu0 %v139, 106
    %v141 = vpop.permute.xlu0 %140
    %vm142 = vcmask 80896
    %s143 = scalar_lea.vmem %s1, 15
    %144 = vst.msk [vmem:[%s143] ss:$80 sm:$0x3] %vm142, %v141
    %s145 = scalar_lea.vmem %s1, 4294967215
    %146 = vst.msk [vmem:[%s145] ss:$80 sm:$0xc] %vm142, %v141
    %s147 = scalar_lea.vmem [#allocation0], 17
    %s148 = smov 3
    %v149 = vld [vmem:[%s147] ss:$-1 sm:%s148]
    %150 = vrot.lane.b32.xlu0 %v149, 104
    %v151 = vpop.permute.xlu0 %150
    %vm152 = vcmask 80896
    %s153 = scalar_lea.vmem %s1, 108
    %154 = vst.msk [vmem:[%s153] ss:$-80 sm:$0x3] %vm152, %v151
    %s155 = scalar_lea.vmem [#allocation0], 24
    %v156 = vld [vmem:[%s155] sm:$0x3]
    %157 = vrot.lane.b32.xlu0 %v156, 102
    %v158 = vpop.permute.xlu0 %157
    %vm159 = vcmask 80896
    %s160 = scalar_lea.vmem %s1, 41
    %161 = vst.msk [vmem:[%s160] ss:$80 sm:$0x3] %vm159, %v158
    %s162 = scalar_lea.vmem [#allocation0], 33
    %s163 = smov 3
    %v164 = vld [vmem:[%s162] ss:$-1 sm:%s163]
    %165 = vrot.lane.b32.xlu0 %v164, 100
    %v166 = vpop.permute.xlu0 %165
    %vm167 = vcmask 80896
    %s168 = scalar_lea.vmem %s1, 134
    %169 = vst.msk [vmem:[%s168] ss:$-80 sm:$0x3] %vm167, %v166
    %v170 = vld [vmem:[#allocation0] sm:$0x3]
    %s171 = scalar_lea.vmem [#allocation0], 38
    %v172 = vld [vmem:[%s171] sm:$0xc]
    %vm173 = vcmask 1043458
    %v174 = vsel %vm173, %v172, %v170
    %175 = vrot.lane.b32.xlu0 %v174, 98
    %v176 = vpop.permute.xlu0 %175
    %vm177 = vcmask 80896
    %s178 = scalar_lea.vmem %s1, 3
    %179 = vst.msk [vmem:[%s178] ss:$80 sm:$0x3] %vm177, %v176
    %s180 = scalar_lea.vmem %s1, 4294967203
    %181 = vst.msk [vmem:[%s180] ss:$80 sm:$0xc] %vm177, %v176
    %s182 = scalar_lea.vmem [#allocation0], 9
    %s183 = smov 3
    %v184 = vld [vmem:[%s182] ss:$-1 sm:%s183]
    %185 = vrot.lane.b32.xlu0 %v184, 96
    %v186 = vpop.permute.xlu0 %185
    %vm187 = vcmask 80896
    %s188 = scalar_lea.vmem %s1, 96
    %189 = vst.msk [vmem:[%s188] ss:$-80 sm:$0x3] %vm187, %v186
    %s190 = scalar_lea.vmem [#allocation0], 17
    %s191 = smov 3
    %v192 = vld [vmem:[%s190] ss:$-1 sm:%s191]
    %193 = vrot.lane.b32.xlu0 %v192, 94
    %v194 = vpop.permute.xlu0 %193
    %vm195 = vcmask 80896
    %s196 = scalar_lea.vmem %s1, 109
    %197 = vst.msk [vmem:[%s196] ss:$-80 sm:$0x3] %vm195, %v194
    %s198 = scalar_lea.vmem [#allocation0], 24
    %v199 = vld [vmem:[%s198] sm:$0x3]
    %200 = vrot.lane.b32.xlu0 %v199, 92
    %v201 = vpop.permute.xlu0 %200
    %vm202 = vcmask 80896
    %s203 = scalar_lea.vmem %s1, 42
    %204 = vst.msk [vmem:[%s203] ss:$80 sm:$0x3] %vm202, %v201
    %s205 = scalar_lea.vmem [#allocation0], 33
    %s206 = smov 3
    %v207 = vld [vmem:[%s205] ss:$-1 sm:%s206]
    %208 = vrot.lane.b32.xlu0 %v207, 90
    %v209 = vpop.permute.xlu0 %208
    %vm210 = vcmask 80896
    %s211 = scalar_lea.vmem %s1, 135
    %212 = vst.msk [vmem:[%s211] ss:$-80 sm:$0x3] %vm210, %v209
    %v213 = vld [vmem:[#allocation0] sm:$0x3]
    %s214 = scalar_lea.vmem [#allocation0], 38
    %v215 = vld [vmem:[%s214] sm:$0xc]
    %vm216 = vcmask 1043458
    %v217 = vsel %vm216, %v215, %v213
    %218 = vrot.lane.b32.xlu0 %v217, 88
    %v219 = vpop.permute.xlu0 %218
    %vm220 = vcmask 80896
    %s221 = scalar_lea.vmem %s1, 4
    %222 = vst.msk [vmem:[%s221] ss:$80 sm:$0x3] %vm220, %v219
    %s223 = scalar_lea.vmem %s1, 4294967204
    %224 = vst.msk [vmem:[%s223] ss:$80 sm:$0xc] %vm220, %v219
    %s225 = scalar_lea.vmem [#allocation0], 9
    %s226 = smov 3
    %v227 = vld [vmem:[%s225] ss:$-1 sm:%s226]
    %228 = vrot.lane.b32.xlu0 %v227, 86
    %v229 = vpop.permute.xlu0 %228
    %vm230 = vcmask 80896
    %s231 = scalar_lea.vmem %s1, 97
    %232 = vst.msk [vmem:[%s231] ss:$-80 sm:$0x3] %vm230, %v229
    %s233 = scalar_lea.vmem [#allocation0], 17
    %s234 = smov 3
    %v235 = vld [vmem:[%s233] ss:$-1 sm:%s234]
    %236 = vrot.lane.b32.xlu0 %v235, 84
    %v237 = vpop.permute.xlu0 %236
    %vm238 = vcmask 80896
    %s239 = scalar_lea.vmem %s1, 110
    %240 = vst.msk [vmem:[%s239] ss:$-80 sm:$0x3] %vm238, %v237
    %s241 = scalar_lea.vmem [#allocation0], 24
    %v242 = vld [vmem:[%s241] sm:$0x3]
    %243 = vrot.lane.b32.xlu0 %v242, 82
    %v244 = vpop.permute.xlu0 %243
    %vm245 = vcmask 80896
    %s246 = scalar_lea.vmem %s1, 43
    %247 = vst.msk [vmem:[%s246] ss:$80 sm:$0x3] %vm245, %v244
    %s248 = scalar_lea.vmem [#allocation0], 33
    %s249 = smov 3
    %v250 = vld [vmem:[%s248] ss:$-1 sm:%s249]
    %251 = vrot.lane.b32.xlu0 %v250, 80
    %v252 = vpop.permute.xlu0 %251
    %vm253 = vcmask 80896
    %s254 = scalar_lea.vmem %s1, 136
    %255 = vst.msk [vmem:[%s254] ss:$-80 sm:$0x3] %vm253, %v252
    %v256 = vld [vmem:[#allocation0] sm:$0x3]
    %s257 = scalar_lea.vmem [#allocation0], 38
    %v258 = vld [vmem:[%s257] sm:$0xc]
    %vm259 = vcmask 1043458
    %v260 = vsel %vm259, %v258, %v256
    %261 = vrot.lane.b32.xlu0 %v260, 78
    %v262 = vpop.permute.xlu0 %261
    %vm263 = vcmask 80896
    %s264 = scalar_lea.vmem %s1, 5
    %265 = vst.msk [vmem:[%s264] ss:$80 sm:$0x3] %vm263, %v262
    %s266 = scalar_lea.vmem %s1, 4294967205
    %267 = vst.msk [vmem:[%s266] ss:$80 sm:$0xc] %vm263, %v262
    %s268 = scalar_lea.vmem [#allocation0], 9
    %s269 = smov 3
    %v270 = vld [vmem:[%s268] ss:$-1 sm:%s269]
    %271 = vrot.lane.b32.xlu0 %v270, 76
    %v272 = vpop.permute.xlu0 %271
    %vm273 = vcmask 80896
    %s274 = scalar_lea.vmem %s1, 98
    %275 = vst.msk [vmem:[%s274] ss:$-80 sm:$0x3] %vm273, %v272
    %s276 = scalar_lea.vmem [#allocation0], 17
    %s277 = smov 3
    %v278 = vld [vmem:[%s276] ss:$-1 sm:%s277]
    %279 = vrot.lane.b32.xlu0 %v278, 74
    %v280 = vpop.permute.xlu0 %279
    %vm281 = vcmask 80896
    %s282 = scalar_lea.vmem %s1, 111
    %283 = vst.msk [vmem:[%s282] ss:$-80 sm:$0x3] %vm281, %v280
    %s284 = scalar_lea.vmem [#allocation0], 24
    %v285 = vld [vmem:[%s284] sm:$0x3]
    %286 = vrot.lane.b32.xlu0 %v285, 72
    %v287 = vpop.permute.xlu0 %286
    %vm288 = vcmask 80896
    %s289 = scalar_lea.vmem %s1, 44
    %290 = vst.msk [vmem:[%s289] ss:$80 sm:$0x3] %vm288, %v287
    %s291 = scalar_lea.vmem [#allocation0], 33
    %s292 = smov 3
    %v293 = vld [vmem:[%s291] ss:$-1 sm:%s292]
    %294 = vrot.lane.b32.xlu0 %v293, 70
    %v295 = vpop.permute.xlu0 %294
    %vm296 = vcmask 80896
    %s297 = scalar_lea.vmem %s1, 137
    %298 = vst.msk [vmem:[%s297] ss:$-80 sm:$0x3] %vm296, %v295
    %v299 = vld [vmem:[#allocation0] sm:$0x3]
    %s300 = scalar_lea.vmem [#allocation0], 38
    %v301 = vld [vmem:[%s300] sm:$0xc]
    %vm302 = vcmask 1043458
    %v303 = vsel %vm302, %v301, %v299
    %304 = vrot.lane.b32.xlu0 %v303, 68
    %v305 = vpop.permute.xlu0 %304
    %vm306 = vcmask 80896
    %s307 = scalar_lea.vmem %s1, 6
    %308 = vst.msk [vmem:[%s307] ss:$80 sm:$0x3] %vm306, %v305
    %s309 = scalar_lea.vmem %s1, 4294967206
    %310 = vst.msk [vmem:[%s309] ss:$80 sm:$0xc] %vm306, %v305
    %s311 = scalar_lea.vmem [#allocation0], 9
    %s312 = smov 3
    %v313 = vld [vmem:[%s311] ss:$-1 sm:%s312]
    %314 = vrot.lane.b32.xlu0 %v313, 66
    %v315 = vpop.permute.xlu0 %314
    %vm316 = vcmask 80896
    %s317 = scalar_lea.vmem %s1, 99
    %318 = vst.msk [vmem:[%s317] ss:$-80 sm:$0x3] %vm316, %v315
    %s319 = scalar_lea.vmem [#allocation0], 16
    %v320 = vld [vmem:[%s319] sm:$0x3]
    %321 = vrot.lane.b32.xlu0 %v320, 64
    %v322 = vpop.permute.xlu0 %321
    %vm323 = vcmask 80896
    %s324 = scalar_lea.vmem %s1, 32
    %325 = vst.msk [vmem:[%s324] ss:$80 sm:$0x3] %vm323, %v322
    %s326 = scalar_lea.vmem [#allocation0], 24
    %v327 = vld [vmem:[%s326] sm:$0x3]
    %328 = vrot.lane.b32.xlu0 %v327, 62
    %v329 = vpop.permute.xlu0 %328
    %vm330 = vcmask 80896
    %s331 = scalar_lea.vmem %s1, 45
    %332 = vst.msk [vmem:[%s331] ss:$80 sm:$0x3] %vm330, %v329
    %s333 = scalar_lea.vmem [#allocation0], 33
    %s334 = smov 3
    %v335 = vld [vmem:[%s333] ss:$-1 sm:%s334]
    %336 = vrot.lane.b32.xlu0 %v335, 60
    %v337 = vpop.permute.xlu0 %336
    %vm338 = vcmask 80896
    %s339 = scalar_lea.vmem %s1, 138
    %340 = vst.msk [vmem:[%s339] ss:$-80 sm:$0x3] %vm338, %v337
    %v341 = vld [vmem:[#allocation0] sm:$0x3]
    %s342 = scalar_lea.vmem [#allocation0], 38
    %v343 = vld [vmem:[%s342] sm:$0xc]
    %vm344 = vcmask 1043458
    %v345 = vsel %vm344, %v343, %v341
    %346 = vrot.lane.b32.xlu0 %v345, 58
    %v347 = vpop.permute.xlu0 %346
    %vm348 = vcmask 80896
    %s349 = scalar_lea.vmem %s1, 7
    %350 = vst.msk [vmem:[%s349] ss:$80 sm:$0x3] %vm348, %v347
    %s351 = scalar_lea.vmem %s1, 4294967207
    %352 = vst.msk [vmem:[%s351] ss:$80 sm:$0xc] %vm348, %v347
    %s353 = scalar_lea.vmem [#allocation0], 9
    %s354 = smov 3
    %v355 = vld [vmem:[%s353] ss:$-1 sm:%s354]
    %356 = vrot.lane.b32.xlu0 %v355, 56
    %v357 = vpop.permute.xlu0 %356
    %vm358 = vcmask 80896
    %s359 = scalar_lea.vmem %s1, 100
    %360 = vst.msk [vmem:[%s359] ss:$-80 sm:$0x3] %vm358, %v357
    %s361 = scalar_lea.vmem [#allocation0], 16
    %v362 = vld [vmem:[%s361] sm:$0x3]
    %363 = vrot.lane.b32.xlu0 %v362, 54
    %v364 = vpop.permute.xlu0 %363
    %vm365 = vcmask 80896
    %s366 = scalar_lea.vmem %s1, 33
    %367 = vst.msk [vmem:[%s366] ss:$80 sm:$0x3] %vm365, %v364
    %s368 = scalar_lea.vmem [#allocation0], 24
    %v369 = vld [vmem:[%s368] sm:$0x3]
    %370 = vrot.lane.b32.xlu0 %v369, 52
    %v371 = vpop.permute.xlu0 %370
    %vm372 = vcmask 80896
    %s373 = scalar_lea.vmem %s1, 46
    %374 = vst.msk [vmem:[%s373] ss:$80 sm:$0x3] %vm372, %v371
    %s375 = scalar_lea.vmem [#allocation0], 33
    %s376 = smov 3
    %v377 = vld [vmem:[%s375] ss:$-1 sm:%s376]
    %378 = vrot.lane.b32.xlu0 %v377, 50
    %v379 = vpop.permute.xlu0 %378
    %vm380 = vcmask 80896
    %s381 = scalar_lea.vmem %s1, 139
    %382 = vst.msk [vmem:[%s381] ss:$-80 sm:$0x3] %vm380, %v379
    %v383 = vld [vmem:[#allocation0] sm:$0x3]
    %s384 = scalar_lea.vmem [#allocation0], 38
    %v385 = vld [vmem:[%s384] sm:$0xc]
    %vm386 = vcmask 1043458
    %v387 = vsel %vm386, %v385, %v383
    %388 = vrot.lane.b32.xlu0 %v387, 48
    %v389 = vpop.permute.xlu0 %388
    %vm390 = vcmask 80896
    %s391 = scalar_lea.vmem %s1, 8
    %392 = vst.msk [vmem:[%s391] ss:$80 sm:$0x3] %vm390, %v389
    %s393 = scalar_lea.vmem %s1, 4294967208
    %394 = vst.msk [vmem:[%s393] ss:$80 sm:$0xc] %vm390, %v389
    %s395 = scalar_lea.vmem [#allocation0], 9
    %s396 = smov 3
    %v397 = vld [vmem:[%s395] ss:$-1 sm:%s396]
    %398 = vrot.lane.b32.xlu0 %v397, 46
    %v399 = vpop.permute.xlu0 %398
    %vm400 = vcmask 80896
    %s401 = scalar_lea.vmem %s1, 101
    %402 = vst.msk [vmem:[%s401] ss:$-80 sm:$0x3] %vm400, %v399
    %s403 = scalar_lea.vmem [#allocation0], 16
    %v404 = vld [vmem:[%s403] sm:$0x3]
    %405 = vrot.lane.b32.xlu0 %v404, 44
    %v406 = vpop.permute.xlu0 %405
    %vm407 = vcmask 80896
    %s408 = scalar_lea.vmem %s1, 34
    %409 = vst.msk [vmem:[%s408] ss:$80 sm:$0x3] %vm407, %v406
    %s410 = scalar_lea.vmem [#allocation0], 24
    %v411 = vld [vmem:[%s410] sm:$0x3]
    %412 = vrot.lane.b32.xlu0 %v411, 42
    %v413 = vpop.permute.xlu0 %412
    %vm414 = vcmask 80896
    %s415 = scalar_lea.vmem %s1, 47
    %416 = vst.msk [vmem:[%s415] ss:$80 sm:$0x3] %vm414, %v413
    %s417 = scalar_lea.vmem [#allocation0], 33
    %s418 = smov 3
    %v419 = vld [vmem:[%s417] ss:$-1 sm:%s418]
    %420 = vrot.lane.b32.xlu0 %v419, 40
    %v421 = vpop.permute.xlu0 %420
    %vm422 = vcmask 80896
    %s423 = scalar_lea.vmem %s1, 140
    %424 = vst.msk [vmem:[%s423] ss:$-80 sm:$0x3] %vm422, %v421
    %v425 = vld [vmem:[#allocation0] sm:$0x3]
    %s426 = scalar_lea.vmem [#allocation0], 38
    %v427 = vld [vmem:[%s426] sm:$0xc]
    %vm428 = vcmask 1043458
    %v429 = vsel %vm428, %v427, %v425
    %430 = vrot.lane.b32.xlu0 %v429, 38
    %v431 = vpop.permute.xlu0 %430
    %vm432 = vcmask 80896
    %s433 = scalar_lea.vmem %s1, 9
    %434 = vst.msk [vmem:[%s433] ss:$80 sm:$0x3] %vm432, %v431
    %s435 = scalar_lea.vmem %s1, 4294967209
    %436 = vst.msk [vmem:[%s435] ss:$80 sm:$0xc] %vm432, %v431
    %s437 = scalar_lea.vmem [#allocation0], 9
    %s438 = smov 3
    %v439 = vld [vmem:[%s437] ss:$-1 sm:%s438]
    %440 = vrot.lane.b32.xlu0 %v439, 36
    %v441 = vpop.permute.xlu0 %440
    %vm442 = vcmask 80896
    %s443 = scalar_lea.vmem %s1, 102
    %444 = vst.msk [vmem:[%s443] ss:$-80 sm:$0x3] %vm442, %v441
    %s445 = scalar_lea.vmem [#allocation0], 16
    %v446 = vld [vmem:[%s445] sm:$0x3]
    %447 = vrot.lane.b32.xlu0 %v446, 34
    %v448 = vpop.permute.xlu0 %447
    %vm449 = vcmask 80896
    %s450 = scalar_lea.vmem %s1, 35
    %451 = vst.msk [vmem:[%s450] ss:$80 sm:$0x3] %vm449, %v448
    %s452 = scalar_lea.vmem [#allocation0], 25
    %s453 = smov 3
    %v454 = vld [vmem:[%s452] ss:$-1 sm:%s453]
    %455 = vrot.lane.b32.xlu0 %v454, 32
    %v456 = vpop.permute.xlu0 %455
    %vm457 = vcmask 80896
    %s458 = scalar_lea.vmem %s1, 128
    %459 = vst.msk [vmem:[%s458] ss:$-80 sm:$0x3] %vm457, %v456
    %s460 = scalar_lea.vmem [#allocation0], 33
    %s461 = smov 3
    %v462 = vld [vmem:[%s460] ss:$-1 sm:%s461]
    %463 = vrot.lane.b32.xlu0 %v462, 30
    %v464 = vpop.permute.xlu0 %463
    %vm465 = vcmask 80896
    %s466 = scalar_lea.vmem %s1, 141
    %467 = vst.msk [vmem:[%s466] ss:$-80 sm:$0x3] %vm465, %v464
    %v468 = vld [vmem:[#allocation0] sm:$0x3]
    %s469 = scalar_lea.vmem [#allocation0], 38
    %v470 = vld [vmem:[%s469] sm:$0xc]
    %vm471 = vcmask 1043458
    %v472 = vsel %vm471, %v470, %v468
    %473 = vrot.lane.b32.xlu0 %v472, 28
    %v474 = vpop.permute.xlu0 %473
    %vm475 = vcmask 80896
    %s476 = scalar_lea.vmem %s1, 10
    %477 = vst.msk [vmem:[%s476] ss:$80 sm:$0x3] %vm475, %v474
    %s478 = scalar_lea.vmem %s1, 4294967210
    %479 = vst.msk [vmem:[%s478] ss:$80 sm:$0xc] %vm475, %v474
    %s480 = scalar_lea.vmem [#allocation0], 9
    %s481 = smov 3
    %v482 = vld [vmem:[%s480] ss:$-1 sm:%s481]
    %483 = vrot.lane.b32.xlu0 %v482, 26
    %v484 = vpop.permute.xlu0 %483
    %vm485 = vcmask 80896
    %s486 = scalar_lea.vmem %s1, 103
    %487 = vst.msk [vmem:[%s486] ss:$-80 sm:$0x3] %vm485, %v484
    %s488 = scalar_lea.vmem [#allocation0], 16
    %v489 = vld [vmem:[%s488] sm:$0x3]
    %490 = vrot.lane.b32.xlu0 %v489, 24
    %v491 = vpop.permute.xlu0 %490
    %vm492 = vcmask 80896
    %s493 = scalar_lea.vmem %s1, 36
    %494 = vst.msk [vmem:[%s493] ss:$80 sm:$0x3] %vm492, %v491
    %s495 = scalar_lea.vmem [#allocation0], 25
    %s496 = smov 3
    %v497 = vld [vmem:[%s495] ss:$-1 sm:%s496]
    %498 = vrot.lane.b32.xlu0 %v497, 22
    %v499 = vpop.permute.xlu0 %498
    %vm500 = vcmask 80896
    %s501 = scalar_lea.vmem %s1, 129
    %502 = vst.msk [vmem:[%s501] ss:$-80 sm:$0x3] %vm500, %v499
    %s503 = scalar_lea.vmem [#allocation0], 33
    %s504 = smov 3
    %v505 = vld [vmem:[%s503] ss:$-1 sm:%s504]
    %506 = vrot.lane.b32.xlu0 %v505, 20
    %v507 = vpop.permute.xlu0 %506
    %vm508 = vcmask 80896
    %s509 = scalar_lea.vmem %s1, 142
    %510 = vst.msk [vmem:[%s509] ss:$-80 sm:$0x3] %vm508, %v507
    %v511 = vld [vmem:[#allocation0] sm:$0x3]
    %s512 = scalar_lea.vmem [#allocation0], 38
    %v513 = vld [vmem:[%s512] sm:$0xc]
    %vm514 = vcmask 1043458
    %v515 = vsel %vm514, %v513, %v511
    %516 = vrot.lane.b32.xlu0 %v515, 18
    %v517 = vpop.permute.xlu0 %516
    %vm518 = vcmask 80896
    %s519 = scalar_lea.vmem %s1, 11
    %520 = vst.msk [vmem:[%s519] ss:$80 sm:$0x3] %vm518, %v517
    %s521 = scalar_lea.vmem %s1, 4294967211
    %522 = vst.msk [vmem:[%s521] ss:$80 sm:$0xc] %vm518, %v517
    %s523 = scalar_lea.vmem [#allocation0], 9
    %s524 = smov 3
    %v525 = vld [vmem:[%s523] ss:$-1 sm:%s524]
    %526 = vrot.lane.b32.xlu0 %v525, 16
    %v527 = vpop.permute.xlu0 %526
    %vm528 = vcmask 80896
    %s529 = scalar_lea.vmem %s1, 104
    %530 = vst.msk [vmem:[%s529] ss:$-80 sm:$0x3] %vm528, %v527
    %s531 = scalar_lea.vmem [#allocation0], 16
    %v532 = vld [vmem:[%s531] sm:$0x3]
    %533 = vrot.lane.b32.xlu0 %v532, 14
    %v534 = vpop.permute.xlu0 %533
    %vm535 = vcmask 80896
    %s536 = scalar_lea.vmem %s1, 37
    %537 = vst.msk [vmem:[%s536] ss:$80 sm:$0x3] %vm535, %v534
    %s538 = scalar_lea.vmem [#allocation0], 25
    %s539 = smov 3
    %v540 = vld [vmem:[%s538] ss:$-1 sm:%s539]
    %541 = vrot.lane.b32.xlu0 %v540, 12
    %v542 = vpop.permute.xlu0 %541
    %vm543 = vcmask 80896
    %s544 = scalar_lea.vmem %s1, 130
    %545 = vst.msk [vmem:[%s544] ss:$-80 sm:$0x3] %vm543, %v542
    %s546 = scalar_lea.vmem [#allocation0], 33
    %s547 = smov 3
    %v548 = vld [vmem:[%s546] ss:$-1 sm:%s547]
    %549 = vrot.lane.b32.xlu0 %v548, 10
    %v550 = vpop.permute.xlu0 %549
    %vm551 = vcmask 80896
    %s552 = scalar_lea.vmem %s1, 143
    %553 = vst.msk [vmem:[%s552] ss:$-80 sm:$0x3] %vm551, %v550
    %v554 = vld [vmem:[#allocation0] sm:$0x3]
    %s555 = scalar_lea.vmem [#allocation0], 38
    %v556 = vld [vmem:[%s555] sm:$0xc]
    %vm557 = vcmask 1043458
    %v558 = vsel %vm557, %v556, %v554
    %s559 = scalar_lea.vmem [#allocation0], 8
    %v560 = vld [vmem:[%s559] sm:$0x3]
    %s561 = scalar_lea.vmem [#allocation0], 46
    %v562 = vld [vmem:[%s561] sm:$0xc]
    %vm563 = vcmask 1043458
    %v564 = vsel %vm563, %v562, %v560
    %vm565 = vcmask 982016
    %v566 = vsel %vm565, %v564, %v558
    %567 = vrot.lane.b32.xlu0 %v566, 8
    %v568 = vpop.permute.xlu0 %567
    %vm569 = vcmask 64512
    %s570 = scalar_lea.vmem %s1, 12
    %571 = vst.msk [vmem:[%s570] ss:$80 sm:$0x3] %vm569, %v568
    %s572 = scalar_lea.vmem %s1, 4294967212
    %573 = vst.msk [vmem:[%s572] ss:$80 sm:$0xc] %vm569, %v568
    %vm574 = vcmask 80960
    %s575 = scalar_lea.vmem %s1, 12
    %576 = vst.msk [vmem:[%s575] ss:$80 sm:$0x3] %vm574, %v568
    %s577 = scalar_lea.vmem %s1, 4294967212
    %578 = vst.msk [vmem:[%s577] ss:$80 sm:$0xc] %vm574, %v568
    %s579 = scalar_lea.vmem [#allocation0], 9
    %s580 = smov 3
    %v581 = vld [vmem:[%s579] ss:$-1 sm:%s580]
    %s582 = scalar_lea.vmem [#allocation0], 17
    %s583 = smov 3
    %v584 = vld [vmem:[%s582] ss:$-1 sm:%s583]
    %vm585 = vcmask 998400
    %v586 = vsel %vm585, %v584, %v581
    %587 = vrot.lane.b32.xlu0 %v586, 6
    %v588 = vpop.permute.xlu0 %587
    %vm589 = vcmask 48128
    %s590 = scalar_lea.vmem %s1, 105
    %591 = vst.msk [vmem:[%s590] ss:$-80 sm:$0x3] %vm589, %v588
    %vm592 = vcmask 80944
    %s593 = scalar_lea.vmem %s1, 105
    %594 = vst.msk [vmem:[%s593] ss:$-80 sm:$0x3] %vm592, %v588
    %s595 = scalar_lea.vmem [#allocation0], 16
    %v596 = vld [vmem:[%s595] sm:$0x3]
    %s597 = scalar_lea.vmem [#allocation0], 24
    %v598 = vld [vmem:[%s597] sm:$0x3]
    %vm599 = vcmask 1014784
    %v600 = vsel %vm599, %v598, %v596
    %601 = vrot.lane.b32.xlu0 %v600, 4
    %v602 = vpop.permute.xlu0 %601
    %vm603 = vcmask 31744
    %s604 = scalar_lea.vmem %s1, 38
    %605 = vst.msk [vmem:[%s604] ss:$80 sm:$0x3] %vm603, %v602
    %vm606 = vcmask 80928
    %s607 = scalar_lea.vmem %s1, 38
    %608 = vst.msk [vmem:[%s607] ss:$80 sm:$0x3] %vm606, %v602
    %s609 = scalar_lea.vmem [#allocation0], 25
    %s610 = smov 3
    %v611 = vld [vmem:[%s609] ss:$-1 sm:%s610]
    %s612 = scalar_lea.vmem [#allocation0], 33
    %s613 = smov 3
    %v614 = vld [vmem:[%s612] ss:$-1 sm:%s613]
    %vm615 = vcmask 1031168
    %v616 = vsel %vm615, %v614, %v611
    %617 = vrot.lane.b32.xlu0 %v616, 2
    %v618 = vpop.permute.xlu0 %617
    %vm619 = vcmask 15360
    %s620 = scalar_lea.vmem %s1, 131
    %621 = vst.msk [vmem:[%s620] ss:$-80 sm:$0x3] %vm619, %v618
    %vm622 = vcmask 80912
    %s623 = scalar_lea.vmem %s1, 131
    %624 = vst.msk [vmem:[%s623] ss:$-80 sm:$0x3] %vm622, %v618

// kernel: wav2vec2_forward.1
$region0: #{wav2vec2_forward.1}
  #allocation0 [shape = 'u32[]', space=smem, size = 0x4, offset = 0x4, fixed_abs, tag = 'smem constant byte address 0x4 - core index']
  #allocation1 [shape = 'u32[72,128]{1,0:T(1,128)}', space=vmem, size = 0x9000, scoped, tag = 'internal scratch']
  %s0 = inlined_call_operand.vmem [shape: f32[2,80,10], index: 0, kind: input, shape index: {}]
  %s1 = inlined_call_operand.vmem [shape: bf16[3,10,32], index: 1, kind: input, shape index: {}]
  %s2 = inlined_call_operand.vmem [shape: f32[1,32], index: 2, kind: input, shape index: {}]
  %s3 = inlined_call_operand.vmem [shape: bf16[3,32,32], index: 3, kind: input, shape index: {}]
  %s4 = inlined_call_operand.vmem [shape: f32[1,32], index: 4, kind: input, shape index: {}]
  %s5 = inlined_call_operand.vmem [shape: f32[1,32], index: 5, kind: input, shape index: {}]
  %s6 = inlined_call_operand.vmem [shape: f32[1,32], index: 6, kind: input, shape index: {}]
  %s7 = inlined_call_operand.vmem [shape: bf16[32,32], index: 7, kind: input, shape index: {}]
  %s8 = inlined_call_operand.vmem [shape: f32[1,32], index: 8, kind: input, shape index: {}]
  %s9 = inlined_call_operand.vmem [shape: bf16[3,32,32], index: 9, kind: input, shape index: {}]
  %s10 = inlined_call_operand.vmem [shape: f32[1,32], index: 10, kind: input, shape index: {}]
  %s11 = inlined_call_operand.vmem [shape: f32[1,32], index: 11, kind: input, shape index: {}]
  %s12 = inlined_call_operand.vmem [shape: f32[1,32], index: 12, kind: input, shape index: {}]
  %s13 = inlined_call_operand.vmem [shape: bf16[2,4,32,8], index: 13, kind: input, shape index: {}]
  %s14 = inlined_call_operand.vmem [shape: bf16[2,4,32,8], index: 14, kind: input, shape index: {}]
  %s15 = inlined_call_operand.vmem [shape: bf16[2,4,32,8], index: 15, kind: input, shape index: {}]
  %s16 = inlined_call_operand.vmem [shape: f32[2,4,1,8], index: 16, kind: input, shape index: {}]
  %s17 = inlined_call_operand.vmem [shape: bf16[2,4,8,32], index: 17, kind: input, shape index: {}]
  %s18 = inlined_call_operand.vmem [shape: f32[2,1,32], index: 18, kind: input, shape index: {}]
  %s19 = inlined_call_operand.vmem [shape: f32[2,1,32], index: 19, kind: input, shape index: {}]
  %s20 = inlined_call_operand.vmem [shape: f32[2,1,32], index: 20, kind: input, shape index: {}]
  %s21 = inlined_call_operand.vmem [shape: bf16[2,32,64], index: 21, kind: input, shape index: {}]
  %s22 = inlined_call_operand.vmem [shape: f32[2,1,64], index: 22, kind: input, shape index: {}]
  %s23 = inlined_call_operand.vmem [shape: bf16[2,64,32], index: 23, kind: input, shape index: {}]
  %s24 = inlined_call_operand.vmem [shape: f32[2,1,32], index: 24, kind: input, shape index: {}]
  %s25 = inlined_call_operand.vmem [shape: f32[2,1,32], index: 25, kind: input, shape index: {}]
  %s26 = inlined_call_operand.vmem [shape: f32[2,1,32], index: 26, kind: input, shape index: {}]
  %s27 = inlined_call_operand.vmem [shape: f32[2,80,32], index: 27, kind: output, shape index: {}]
  %s28 = sld [smem:[#allocation0]]
  $region141: #{wav2vec2_forward.1} parent=0
    _
  %s30 = ssub.s32 1, %s28
  %s31 = scalar_select 0, %s30, %s28
  loop: start=0, step=1, limit=4
  $region2: #{wav2vec2_forward.1} parent=0 // loop_pre_header
    _
  $region3: #{wav2vec2_forward.1} parent=0 // loop_header
    %s33 = sphi 0, %s37
    %p34 = scmp.ge.s32.totalorder %s33, 4
    %s43 = sphi 0, %s45
    %s46 = sphi 0, %s43
    %s47 = sphi 0, %s46
    %s63 = sphi 0, %s47
    %s67 = sphi 0, %s67
    %s69 = sphi 0, %s67
    %s70 = sphi 0, %s69
    %s84 = sphi 0, %s70
    %s88 = sphi 0, %s88
    %s90 = sphi 0, %s88
    %s91 = sphi 0, %s90
    %s105 = sphi 0, %s91
    %s109 = sphi 0, %s109
    %s111 = sphi 0, %s109
    %s112 = sphi 0, %s111
    %s126 = sphi 0, %s112
    %s130 = sphi 0, %s130
    %s132 = sphi 0, %s130
    %s133 = sphi 0, %s132
    %s147 = sphi 0, %s133
    %s151 = sphi 0, %s151
    %s153 = sphi 0, %s151
    %s154 = sphi 0, %s153
    %s168 = sphi 0, %s154
    %s172 = sphi 0, %s172
    %s174 = sphi 0, %s172
    %s175 = sphi 0, %s174
    %s189 = sphi 0, %s175
    %s193 = sphi 0, %s193
    %s195 = sphi 0, %s193
    %s196 = sphi 0, %s195
    %s210 = sphi 0, %s196
    %s214 = sphi 0, %s214
    %s216 = sphi 0, %s214
    %s217 = sphi 0, %s216
    %s231 = sphi 0, %s217
    %s235 = sphi 0, %s235
    %s237 = sphi 0, %s235
    %s238 = sphi 0, %s237
    %s252 = sphi 0, %s238
    %s256 = sphi 0, %s256
    %s258 = sphi 0, %s256
    %s259 = sphi 0, %s258
    %s273 = sphi 0, %s259
    %s277 = sphi 0, %s277
    %s279 = sphi 0, %s277
    %s280 = sphi 0, %s279
    %s294 = sphi 0, %s280
    %s298 = sphi 0, %s298
    %s300 = sphi 0, %s298
    %s301 = sphi 0, %s300
    %s315 = sphi 0, %s301
    %s319 = sphi 0, %s319
    %s321 = sphi 0, %s319
    %s322 = sphi 0, %s321
    %s336 = sphi 0, %s322
    %s340 = sphi 0, %s340
    %s342 = sphi 0, %s340
    %s343 = sphi 0, %s342
    %s357 = sphi 0, %s343
    %s361 = sphi 0, %s361
    %s363 = sphi 0, %s361
    %s364 = sphi 0, %s363
    %s378 = sphi 0, %s364
    %s382 = sphi 0, %s382
    %s384 = sphi 0, %s382
    %s385 = sphi 0, %s384
    %s399 = sphi 0, %s385
    %s403 = sphi 0, %s403
    %s405 = sphi 0, %s403
    %s406 = sphi 0, %s405
    %s420 = sphi 0, %s406
    %s424 = sphi 0, %s424
    %s426 = sphi 0, %s424
    %s427 = sphi 0, %s426
    %s441 = sphi 0, %s427
    %s445 = sphi 0, %s445
    %s447 = sphi 0, %s445
    %s448 = sphi 0, %s447
    %s462 = sphi 0, %s448
    %s466 = sphi 0, %s466
    %s468 = sphi 0, %s466
    %s469 = sphi 0, %s468
    %s483 = sphi 0, %s469
    %s487 = sphi 0, %s487
    %s489 = sphi 0, %s487
    %s490 = sphi 0, %s489
    %s504 = sphi 0, %s490
    %s508 = sphi 0, %s508
    %s510 = sphi 0, %s508
    %s511 = sphi 0, %s510
    %s525 = sphi 0, %s511
    %s529 = sphi 0, %s529
    %s531 = sphi 0, %s529
    %s532 = sphi 0, %s531
    %s546 = sphi 0, %s532
    %s550 = sphi 0, %s550
    %s552 = sphi 0, %s550
    %s553 = sphi 0, %s552
    %s567 = sphi 0, %s553
    %s571 = sphi 0, %s571
    %s573 = sphi 0, %s571
    %s574 = sphi 0, %s573
    %s588 = sphi 0, %s574
    %s592 = sphi 0, %s592
    %s594 = sphi 0, %s592
    %s595 = sphi 0, %s594
    %s609 = sphi 0, %s595
    %s615 = sphi 0, %s617
    %s618 = sphi 0, %s615
    %s619 = sphi 0, %s618
    %s635 = sphi 0, %s619
  $region4: #{wav2vec2_forward.1} parent=0 // loop_header_branch
    %36 = sbr.rel (%p34) target = $region8
  $region5: #{wav2vec2_forward.1} parent=0 // loop_body
    %s38 = ssub.s32 %s33, 1
    %s39 = ssub.s32 %s33, 2
    %s40 = sadd.s32 %s33, 1
    %s41 = ssub.s32 %s33, %s40
    %p42 = scmp.eq.s32.totalorder %s41, 0
    %s44 = sadd.s32 %s43, 1
    %s45 = scalar_select %p42, %s43, %s44
    %p48 = pneg %p42
    %p49 = scmp.eq.s32.totalorder %s33, 1
    %p50 = por %p48, %p49
    %p51 = scmp.ne.s32.totalorder %s43, %s46
    %p52 = scmp.eq.s32.totalorder %s33, 0
    %p53 = por %p51, %p52
    %p54 = scmp.ne.s32.totalorder %s43, %s46
    %p55 = scmp.eq.s32.totalorder %s38, 1
    %p56 = por %p54, %p55
    %p57 = scmp.ne.s32.totalorder %s46, %s47
    %p58 = scmp.eq.s32.totalorder %s38, 0
    %p59 = por %p57, %p58
    %p60 = scmp.ne.s32.totalorder %s46, %s47
    %p61 = scmp.eq.s32.totalorder %s39, 1
    %p62 = por %p60, %p61
    %p64 = scmp.ne.s32.totalorder %s47, %s63
    %p65 = scmp.eq.s32.totalorder %s39, 0
    %p66 = por %p64, %p65
    %s68 = sadd.s32 %s67, 1
    %p71 = scmp.eq.s32.totalorder %s33, 1
    %p72 = scmp.ne.s32.totalorder %s67, %s69
    %p73 = scmp.eq.s32.totalorder %s33, 0
    %p74 = por %p72, %p73
    %p75 = scmp.ne.s32.totalorder %s67, %s69
    %p76 = scmp.eq.s32.totalorder %s38, 1
    %p77 = por %p75, %p76
    %p78 = scmp.ne.s32.totalorder %s69, %s70
    %p79 = scmp.eq.s32.totalorder %s38, 0
    %p80 = por %p78, %p79
    %p81 = scmp.ne.s32.totalorder %s69, %s70
    %p82 = scmp.eq.s32.totalorder %s39, 1
    %p83 = por %p81, %p82
    %p85 = scmp.ne.s32.totalorder %s70, %s84
    %p86 = scmp.eq.s32.totalorder %s39, 0
    %p87 = por %p85, %p86
    %s89 = sadd.s32 %s88, 1
    %p92 = scmp.eq.s32.totalorder %s33, 1
    %p93 = scmp.ne.s32.totalorder %s88, %s90
    %p94 = scmp.eq.s32.totalorder %s33, 0
    %p95 = por %p93, %p94
    %p96 = scmp.ne.s32.totalorder %s88, %s90
    %p97 = scmp.eq.s32.totalorder %s38, 1
    %p98 = por %p96, %p97
    %p99 = scmp.ne.s32.totalorder %s90, %s91
    %p100 = scmp.eq.s32.totalorder %s38, 0
    %p101 = por %p99, %p100
    %p102 = scmp.ne.s32.totalorder %s90, %s91
    %p103 = scmp.eq.s32.totalorder %s39, 1
    %p104 = por %p102, %p103
    %p106 = scmp.ne.s32.totalorder %s91, %s105
    %p107 = scmp.eq.s32.totalorder %s39, 0
    %p108 = por %p106, %p107
    %s110 = sadd.s32 %s109, 1
    %p113 = scmp.eq.s32.totalorder %s33, 1
    %p114 = scmp.ne.s32.totalorder %s109, %s111
    %p115 = scmp.eq.s32.totalorder %s33, 0
    %p116 = por %p114, %p115
    %p117 = scmp.ne.s32.totalorder %s109, %s111
    %p118 = scmp.eq.s32.totalorder %s38, 1
    %p119 = por %p117, %p118
    %p120 = scmp.ne.s32.totalorder %s111, %s112
    %p121 = scmp.eq.s32.totalorder %s38, 0
    %p122 = por %p120, %p121
    %p123 = scmp.ne.s32.totalorder %s111, %s112
    %p124 = scmp.eq.s32.totalorder %s39, 1
    %p125 = por %p123, %p124
    %p127 = scmp.ne.s32.totalorder %s112, %s126
    %p128 = scmp.eq.s32.totalorder %s39, 0
    %p129 = por %p127, %p128
    %s131 = sadd.s32 %s130, 1
    %p134 = scmp.eq.s32.totalorder %s33, 1
    %p135 = scmp.ne.s32.totalorder %s130, %s132
    %p136 = scmp.eq.s32.totalorder %s33, 0
    %p137 = por %p135, %p136
    %p138 = scmp.ne.s32.totalorder %s130, %s132
    %p139 = scmp.eq.s32.totalorder %s38, 1
    %p140 = por %p138, %p139
    %p141 = scmp.ne.s32.totalorder %s132, %s133
    %p142 = scmp.eq.s32.totalorder %s38, 0
    %p143 = por %p141, %p142
    %p144 = scmp.ne.s32.totalorder %s132, %s133
    %p145 = scmp.eq.s32.totalorder %s39, 1
    %p146 = por %p144, %p145
    %p148 = scmp.ne.s32.totalorder %s133, %s147
    %p149 = scmp.eq.s32.totalorder %s39, 0
    %p150 = por %p148, %p149
    %s152 = sadd.s32 %s151, 1
    %p155 = scmp.eq.s32.totalorder %s33, 1
    %p156 = scmp.ne.s32.totalorder %s151, %s153
    %p157 = scmp.eq.s32.totalorder %s33, 0
    %p158 = por %p156, %p157
    %p159 = scmp.ne.s32.totalorder %s151, %s153
    %p160 = scmp.eq.s32.totalorder %s38, 1
    %p161 = por %p159, %p160
    %p162 = scmp.ne.s32.totalorder %s153, %s154
    %p163 = scmp.eq.s32.totalorder %s38, 0
    %p164 = por %p162, %p163
    %p165 = scmp.ne.s32.totalorder %s153, %s154
    %p166 = scmp.eq.s32.totalorder %s39, 1
    %p167 = por %p165, %p166
    %p169 = scmp.ne.s32.totalorder %s154, %s168
    %p170 = scmp.eq.s32.totalorder %s39, 0
    %p171 = por %p169, %p170
    %s173 = sadd.s32 %s172, 1
    %p176 = scmp.eq.s32.totalorder %s33, 1
    %p177 = scmp.ne.s32.totalorder %s172, %s174
    %p178 = scmp.eq.s32.totalorder %s33, 0
    %p179 = por %p177, %p178
    %p180 = scmp.ne.s32.totalorder %s172, %s174
    %p181 = scmp.eq.s32.totalorder %s38, 1
    %p182 = por %p180, %p181
    %p183 = scmp.ne.s32.totalorder %s174, %s175
    %p184 = scmp.eq.s32.totalorder %s38, 0
    %p185 = por %p183, %p184
    %p186 = scmp.ne.s32.totalorder %s174, %s175
    %p187 = scmp.eq.s32.totalorder %s39, 1
    %p188 = por %p186, %p187
    %p190 = scmp.ne.s32.totalorder %s175, %s189
    %p191 = scmp.eq.s32.totalorder %s39, 0
    %p192 = por %p190, %p191
    %s194 = sadd.s32 %s193, 1
    %p197 = scmp.eq.s32.totalorder %s33, 1
    %p198 = scmp.ne.s32.totalorder %s193, %s195
    %p199 = scmp.eq.s32.totalorder %s33, 0
    %p200 = por %p198, %p199
    %p201 = scmp.ne.s32.totalorder %s193, %s195
    %p202 = scmp.eq.s32.totalorder %s38, 1
    %p203 = por %p201, %p202
    %p204 = scmp.ne.s32.totalorder %s195, %s196
    %p205 = scmp.eq.s32.totalorder %s38, 0
    %p206 = por %p204, %p205
    %p207 = scmp.ne.s32.totalorder %s195, %s196
    %p208 = scmp.eq.s32.totalorder %s39, 1
    %p209 = por %p207, %p208
    %p211 = scmp.ne.s32.totalorder %s196, %s210
    %p212 = scmp.eq.s32.totalorder %s39, 0
    %p213 = por %p211, %p212
    %s215 = sadd.s32 %s214, 1
    %p218 = scmp.eq.s32.totalorder %s33, 1
    %p219 = scmp.ne.s32.totalorder %s214, %s216
    %p220 = scmp.eq.s32.totalorder %s33, 0
    %p221 = por %p219, %p220
    %p222 = scmp.ne.s32.totalorder %s214, %s216
    %p223 = scmp.eq.s32.totalorder %s38, 1
    %p224 = por %p222, %p223
    %p225 = scmp.ne.s32.totalorder %s216, %s217
    %p226 = scmp.eq.s32.totalorder %s38, 0
    %p227 = por %p225, %p226
    %p228 = scmp.ne.s32.totalorder %s216, %s217
    %p229 = scmp.eq.s32.totalorder %s39, 1
    %p230 = por %p228, %p229
    %p232 = scmp.ne.s32.totalorder %s217, %s231
    %p233 = scmp.eq.s32.totalorder %s39, 0
    %p234 = por %p232, %p233
    %s236 = sadd.s32 %s235, 1
    %p239 = scmp.eq.s32.totalorder %s33, 1
    %p240 = scmp.ne.s32.totalorder %s235, %s237
    %p241 = scmp.eq.s32.totalorder %s33, 0
    %p242 = por %p240, %p241
    %p243 = scmp.ne.s32.totalorder %s235, %s237
    %p244 = scmp.eq.s32.totalorder %s38, 1
    %p245 = por %p243, %p244
    %p246 = scmp.ne.s32.totalorder %s237, %s238
    %p247 = scmp.eq.s32.totalorder %s38, 0
    %p248 = por %p246, %p247
    %p249 = scmp.ne.s32.totalorder %s237, %s238
    %p250 = scmp.eq.s32.totalorder %s39, 1
    %p251 = por %p249, %p250
    %p253 = scmp.ne.s32.totalorder %s238, %s252
    %p254 = scmp.eq.s32.totalorder %s39, 0
    %p255 = por %p253, %p254
    %s257 = sadd.s32 %s256, 1
    %p260 = scmp.eq.s32.totalorder %s33, 1
    %p261 = scmp.ne.s32.totalorder %s256, %s258
    %p262 = scmp.eq.s32.totalorder %s33, 0
    %p263 = por %p261, %p262
    %p264 = scmp.ne.s32.totalorder %s256, %s258
    %p265 = scmp.eq.s32.totalorder %s38, 1
    %p266 = por %p264, %p265
    %p267 = scmp.ne.s32.totalorder %s258, %s259
    %p268 = scmp.eq.s32.totalorder %s38, 0
    %p269 = por %p267, %p268
    %p270 = scmp.ne.s32.totalorder %s258, %s259
    %p271 = scmp.eq.s32.totalorder %s39, 1
    %p272 = por %p270, %p271
    %p274 = scmp.ne.s32.totalorder %s259, %s273
    %p275 = scmp.eq.s32.totalorder %s39, 0
    %p276 = por %p274, %p275
    %s278 = sadd.s32 %s277, 1
    %p281 = scmp.eq.s32.totalorder %s33, 1
    %p282 = scmp.ne.s32.totalorder %s277, %s279
    %p283 = scmp.eq.s32.totalorder %s33, 0
    %p284 = por %p282, %p283
    %p285 = scmp.ne.s32.totalorder %s277, %s279
    %p286 = scmp.eq.s32.totalorder %s38, 1
    %p287 = por %p285, %p286
    %p288 = scmp.ne.s32.totalorder %s279, %s280
    %p289 = scmp.eq.s32.totalorder %s38, 0
    %p290 = por %p288, %p289
    %p291 = scmp.ne.s32.totalorder %s279, %s280
    %p292 = scmp.eq.s32.totalorder %s39, 1
    %p293 = por %p291, %p292
    %p295 = scmp.ne.s32.totalorder %s280, %s294
    %p296 = scmp.eq.s32.totalorder %s39, 0
    %p297 = por %p295, %p296
    %s299 = sadd.s32 %s298, 1
    %p302 = scmp.eq.s32.totalorder %s33, 1
    %p303 = scmp.ne.s32.totalorder %s298, %s300
    %p304 = scmp.eq.s32.totalorder %s33, 0
    %p305 = por %p303, %p304
    %p306 = scmp.ne.s32.totalorder %s298, %s300
    %p307 = scmp.eq.s32.totalorder %s38, 1
    %p308 = por %p306, %p307
    %p309 = scmp.ne.s32.totalorder %s300, %s301
    %p310 = scmp.eq.s32.totalorder %s38, 0
    %p311 = por %p309, %p310
    %p312 = scmp.ne.s32.totalorder %s300, %s301
    %p313 = scmp.eq.s32.totalorder %s39, 1
    %p314 = por %p312, %p313
    %p316 = scmp.ne.s32.totalorder %s301, %s315
    %p317 = scmp.eq.s32.totalorder %s39, 0
    %p318 = por %p316, %p317
    %s320 = sadd.s32 %s319, 1
    %p323 = scmp.eq.s32.totalorder %s33, 1
    %p324 = scmp.ne.s32.totalorder %s319, %s321
    %p325 = scmp.eq.s32.totalorder %s33, 0
    %p326 = por %p324, %p325
    %p327 = scmp.ne.s32.totalorder %s319, %s321
    %p328 = scmp.eq.s32.totalorder %s38, 1
    %p329 = por %p327, %p328
    %p330 = scmp.ne.s32.totalorder %s321, %s322
    %p331 = scmp.eq.s32.totalorder %s38, 0
    %p332 = por %p330, %p331
    %p333 = scmp.ne.s32.totalorder %s321, %s322
    %p334 = scmp.eq.s32.totalorder %s39, 1
    %p335 = por %p333, %p334
    %p337 = scmp.ne.s32.totalorder %s322, %s336
    %p338 = scmp.eq.s32.totalorder %s39, 0
    %p339 = por %p337, %p338
    %s341 = sadd.s32 %s340, 1
    %p344 = scmp.eq.s32.totalorder %s33, 1
    %p345 = scmp.ne.s32.totalorder %s340, %s342
    %p346 = scmp.eq.s32.totalorder %s33, 0
    %p347 = por %p345, %p346
    %p348 = scmp.ne.s32.totalorder %s340, %s342
    %p349 = scmp.eq.s32.totalorder %s38, 1
    %p350 = por %p348, %p349
    %p351 = scmp.ne.s32.totalorder %s342, %s343
    %p352 = scmp.eq.s32.totalorder %s38, 0
    %p353 = por %p351, %p352
    %p354 = scmp.ne.s32.totalorder %s342, %s343
    %p355 = scmp.eq.s32.totalorder %s39, 1
    %p356 = por %p354, %p355
    %p358 = scmp.ne.s32.totalorder %s343, %s357
    %p359 = scmp.eq.s32.totalorder %s39, 0
    %p360 = por %p358, %p359
    %s362 = sadd.s32 %s361, 1
    %p365 = scmp.eq.s32.totalorder %s33, 1
    %p366 = scmp.ne.s32.totalorder %s361, %s363
    %p367 = scmp.eq.s32.totalorder %s33, 0
    %p368 = por %p366, %p367
    %p369 = scmp.ne.s32.totalorder %s361, %s363
    %p370 = scmp.eq.s32.totalorder %s38, 1
    %p371 = por %p369, %p370
    %p372 = scmp.ne.s32.totalorder %s363, %s364
    %p373 = scmp.eq.s32.totalorder %s38, 0
    %p374 = por %p372, %p373
    %p375 = scmp.ne.s32.totalorder %s363, %s364
    %p376 = scmp.eq.s32.totalorder %s39, 1
    %p377 = por %p375, %p376
    %p379 = scmp.ne.s32.totalorder %s364, %s378
    %p380 = scmp.eq.s32.totalorder %s39, 0
    %p381 = por %p379, %p380
    %s383 = sadd.s32 %s382, 1
    %p386 = scmp.eq.s32.totalorder %s33, 1
    %p387 = scmp.ne.s32.totalorder %s382, %s384
    %p388 = scmp.eq.s32.totalorder %s33, 0
    %p389 = por %p387, %p388
    %p390 = scmp.ne.s32.totalorder %s382, %s384
    %p391 = scmp.eq.s32.totalorder %s38, 1
    %p392 = por %p390, %p391
    %p393 = scmp.ne.s32.totalorder %s384, %s385
    %p394 = scmp.eq.s32.totalorder %s38, 0
    %p395 = por %p393, %p394
    %p396 = scmp.ne.s32.totalorder %s384, %s385
    %p397 = scmp.eq.s32.totalorder %s39, 1
    %p398 = por %p396, %p397
    %p400 = scmp.ne.s32.totalorder %s385, %s399
    %p401 = scmp.eq.s32.totalorder %s39, 0
    %p402 = por %p400, %p401
    %s404 = sadd.s32 %s403, 1
    %p407 = scmp.eq.s32.totalorder %s33, 1
    %p408 = scmp.ne.s32.totalorder %s403, %s405
    %p409 = scmp.eq.s32.totalorder %s33, 0
    %p410 = por %p408, %p409
    %p411 = scmp.ne.s32.totalorder %s403, %s405
    %p412 = scmp.eq.s32.totalorder %s38, 1
    %p413 = por %p411, %p412
    %p414 = scmp.ne.s32.totalorder %s405, %s406
    %p415 = scmp.eq.s32.totalorder %s38, 0
    %p416 = por %p414, %p415
    %p417 = scmp.ne.s32.totalorder %s405, %s406
    %p418 = scmp.eq.s32.totalorder %s39, 1
    %p419 = por %p417, %p418
    %p421 = scmp.ne.s32.totalorder %s406, %s420
    %p422 = scmp.eq.s32.totalorder %s39, 0
    %p423 = por %p421, %p422
    %s425 = sadd.s32 %s424, 1
    %p428 = scmp.eq.s32.totalorder %s33, 1
    %p429 = scmp.ne.s32.totalorder %s424, %s426
    %p430 = scmp.eq.s32.totalorder %s33, 0
    %p431 = por %p429, %p430
    %p432 = scmp.ne.s32.totalorder %s424, %s426
    %p433 = scmp.eq.s32.totalorder %s38, 1
    %p434 = por %p432, %p433
    %p435 = scmp.ne.s32.totalorder %s426, %s427
    %p436 = scmp.eq.s32.totalorder %s38, 0
    %p437 = por %p435, %p436
    %p438 = scmp.ne.s32.totalorder %s426, %s427
    %p439 = scmp.eq.s32.totalorder %s39, 1
    %p440 = por %p438, %p439
    %p442 = scmp.ne.s32.totalorder %s427, %s441
    %p443 = scmp.eq.s32.totalorder %s39, 0
    %p444 = por %p442, %p443
    %s446 = sadd.s32 %s445, 1
    %p449 = scmp.eq.s32.totalorder %s33, 1
    %p450 = scmp.ne.s32.totalorder %s445, %s447
    %p451 = scmp.eq.s32.totalorder %s33, 0
    %p452 = por %p450, %p451
    %p453 = scmp.ne.s32.totalorder %s445, %s447
    %p454 = scmp.eq.s32.totalorder %s38, 1
    %p455 = por %p453, %p454
    %p456 = scmp.ne.s32.totalorder %s447, %s448
    %p457 = scmp.eq.s32.totalorder %s38, 0
    %p458 = por %p456, %p457
    %p459 = scmp.ne.s32.totalorder %s447, %s448
    %p460 = scmp.eq.s32.totalorder %s39, 1
    %p461 = por %p459, %p460
    %p463 = scmp.ne.s32.totalorder %s448, %s462
    %p464 = scmp.eq.s32.totalorder %s39, 0
    %p465 = por %p463, %p464
    %s467 = sadd.s32 %s466, 1
    %p470 = scmp.eq.s32.totalorder %s33, 1
    %p471 = scmp.ne.s32.totalorder %s466, %s468
    %p472 = scmp.eq.s32.totalorder %s33, 0
    %p473 = por %p471, %p472
    %p474 = scmp.ne.s32.totalorder %s466, %s468
    %p475 = scmp.eq.s32.totalorder %s38, 1
    %p476 = por %p474, %p475
    %p477 = scmp.ne.s32.totalorder %s468, %s469
    %p478 = scmp.eq.s32.totalorder %s38, 0
    %p479 = por %p477, %p478
    %p480 = scmp.ne.s32.totalorder %s468, %s469
    %p481 = scmp.eq.s32.totalorder %s39, 1
    %p482 = por %p480, %p481
    %p484 = scmp.ne.s32.totalorder %s469, %s483
    %p485 = scmp.eq.s32.totalorder %s39, 0
    %p486 = por %p484, %p485
    %s488 = sadd.s32 %s487, 1
    %p491 = scmp.eq.s32.totalorder %s33, 1
    %p492 = scmp.ne.s32.totalorder %s487, %s489
    %p493 = scmp.eq.s32.totalorder %s33, 0
    %p494 = por %p492, %p493
    %p495 = scmp.ne.s32.totalorder %s487, %s489
    %p496 = scmp.eq.s32.totalorder %s38, 1
    %p497 = por %p495, %p496
    %p498 = scmp.ne.s32.totalorder %s489, %s490
    %p499 = scmp.eq.s32.totalorder %s38, 0
    %p500 = por %p498, %p499
    %p501 = scmp.ne.s32.totalorder %s489, %s490
    %p502 = scmp.eq.s32.totalorder %s39, 1
    %p503 = por %p501, %p502
    %p505 = scmp.ne.s32.totalorder %s490, %s504
    %p506 = scmp.eq.s32.totalorder %s39, 0
    %p507 = por %p505, %p506
    %s509 = sadd.s32 %s508, 1
    %p512 = scmp.eq.s32.totalorder %s33, 1
    %p513 = scmp.ne.s32.totalorder %s508, %s510
    %p514 = scmp.eq.s32.totalorder %s33, 0
    %p515 = por %p513, %p514
    %p516 = scmp.ne.s32.totalorder %s508, %s510
    %p517 = scmp.eq.s32.totalorder %s38, 1
    %p518 = por %p516, %p517
    %p519 = scmp.ne.s32.totalorder %s510, %s511
    %p520 = scmp.eq.s32.totalorder %s38, 0
    %p521 = por %p519, %p520
    %p522 = scmp.ne.s32.totalorder %s510, %s511
    %p523 = scmp.eq.s32.totalorder %s39, 1
    %p524 = por %p522, %p523
    %p526 = scmp.ne.s32.totalorder %s511, %s525
    %p527 = scmp.eq.s32.totalorder %s39, 0
    %p528 = por %p526, %p527
    %s530 = sadd.s32 %s529, 1
    %p533 = scmp.eq.s32.totalorder %s33, 1
    %p534 = scmp.ne.s32.totalorder %s529, %s531
    %p535 = scmp.eq.s32.totalorder %s33, 0
    %p536 = por %p534, %p535
    %p537 = scmp.ne.s32.totalorder %s529, %s531
    %p538 = scmp.eq.s32.totalorder %s38, 1
    %p539 = por %p537, %p538
    %p540 = scmp.ne.s32.totalorder %s531, %s532
    %p541 = scmp.eq.s32.totalorder %s38, 0
    %p542 = por %p540, %p541
    %p543 = scmp.ne.s32.totalorder %s531, %s532
    %p544 = scmp.eq.s32.totalorder %s39, 1
    %p545 = por %p543, %p544
    %p547 = scmp.ne.s32.totalorder %s532, %s546
    %p548 = scmp.eq.s32.totalorder %s39, 0
    %p549 = por %p547, %p548
    %s551 = sadd.s32 %s550, 1
    %p554 = scmp.eq.s32.totalorder %s33, 1
    %p555 = scmp.ne.s32.totalorder %s550, %s552
    %p556 = scmp.eq.s32.totalorder %s33, 0
    %p557 = por %p555, %p556
    %p558 = scmp.ne.s32.totalorder %s550, %s552
    %p559 = scmp.eq.s32.totalorder %s38, 1
    %p560 = por %p558, %p559
    %p561 = scmp.ne.s32.totalorder %s552, %s553
    %p562 = scmp.eq.s32.totalorder %s38, 0
    %p563 = por %p561, %p562
    %p564 = scmp.ne.s32.totalorder %s552, %s553
    %p565 = scmp.eq.s32.totalorder %s39, 1
    %p566 = por %p564, %p565
    %p568 = scmp.ne.s32.totalorder %s553, %s567
    %p569 = scmp.eq.s32.totalorder %s39, 0
    %p570 = por %p568, %p569
    %s572 = sadd.s32 %s571, 1
    %p575 = scmp.eq.s32.totalorder %s33, 1
    %p576 = scmp.ne.s32.totalorder %s571, %s573
    %p577 = scmp.eq.s32.totalorder %s33, 0
    %p578 = por %p576, %p577
    %p579 = scmp.ne.s32.totalorder %s571, %s573
    %p580 = scmp.eq.s32.totalorder %s38, 1
    %p581 = por %p579, %p580
    %p582 = scmp.ne.s32.totalorder %s573, %s574
    %p583 = scmp.eq.s32.totalorder %s38, 0
    %p584 = por %p582, %p583
    %p585 = scmp.ne.s32.totalorder %s573, %s574
    %p586 = scmp.eq.s32.totalorder %s39, 1
    %p587 = por %p585, %p586
    %p589 = scmp.ne.s32.totalorder %s574, %s588
    %p590 = scmp.eq.s32.totalorder %s39, 0
    %p591 = por %p589, %p590
    %s593 = sadd.s32 %s592, 1
    %p596 = scmp.eq.s32.totalorder %s33, 1
    %p597 = scmp.ne.s32.totalorder %s592, %s594
    %p598 = scmp.eq.s32.totalorder %s33, 0
    %p599 = por %p597, %p598
    %p600 = scmp.ne.s32.totalorder %s592, %s594
    %p601 = scmp.eq.s32.totalorder %s38, 1
    %p602 = por %p600, %p601
    %p603 = scmp.ne.s32.totalorder %s594, %s595
    %p604 = scmp.eq.s32.totalorder %s38, 0
    %p605 = por %p603, %p604
    %p606 = scmp.ne.s32.totalorder %s594, %s595
    %p607 = scmp.eq.s32.totalorder %s39, 1
    %p608 = por %p606, %p607
    %p610 = scmp.ne.s32.totalorder %s595, %s609
    %p611 = scmp.eq.s32.totalorder %s39, 0
    %p612 = por %p610, %p611
    %s613 = ssub.s32 %s33, %s40
    %p614 = scmp.eq.s32.totalorder %s613, 0
    %s616 = sadd.s32 %s615, 1
    %s617 = scalar_select %p614, %s615, %s616
    %p620 = pneg %p614
    %p621 = scmp.eq.s32.totalorder %s33, 1
    %p622 = por %p620, %p621
    %p623 = scmp.ne.s32.totalorder %s615, %s618
    %p624 = scmp.eq.s32.totalorder %s33, 0
    %p625 = por %p623, %p624
    %p626 = scmp.ne.s32.totalorder %s615, %s618
    %p627 = scmp.eq.s32.totalorder %s38, 1
    %p628 = por %p626, %p627
    %p629 = scmp.ne.s32.totalorder %s618, %s619
    %p630 = scmp.eq.s32.totalorder %s38, 0
    %p631 = por %p629, %p630
    %p632 = scmp.ne.s32.totalorder %s618, %s619
    %p633 = scmp.eq.s32.totalorder %s39, 1
    %p634 = por %p632, %p633
    %p636 = scmp.ne.s32.totalorder %s619, %s635
    %p637 = scmp.eq.s32.totalorder %s39, 0
    %p638 = por %p636, %p637
    %p639 = scmp.le.s32.totalorder 1, %s33
    %p640 = scmp.lt.s32.totalorder %s33, 3
    %p641 = pnand %p639, %p640
    %p642 = pneg %p641
    // Predicated region
    $region9: #{wav2vec2_forward.1} parent=5 // pred_check
      _
    $region10: #{wav2vec2_forward.1} parent=5 // pred_check_branch
      %644 = sbr.rel (%p641) target = $region12
    $region11: #{wav2vec2_forward.1} parent=5 // pred_region
      %s645 = ssub.s32 %s33, 1
      // Predicated region
      $region13: #{wav2vec2_forward.1} parent=11 // pred_check
        %p646 = pneg %p80
      $region14: #{wav2vec2_forward.1} parent=11 // pred_check_branch
        %648 = sbr.rel (%p646) target = $region16
      $region15: #{wav2vec2_forward.1} parent=11 // pred_region
        _
      $region16: #{wav2vec2_forward.1} parent=11 // pred_fallthru
        _
      // Predicated region
      $region17: #{wav2vec2_forward.1} parent=11 // pred_check
        %p649 = pneg %p101
      $region18: #{wav2vec2_forward.1} parent=11 // pred_check_branch
        %651 = sbr.rel (%p649) target = $region20
      $region19: #{wav2vec2_forward.1} parent=11 // pred_region
        _
      $region20: #{wav2vec2_forward.1} parent=11 // pred_fallthru
        _
      // Predicated region
      $region21: #{wav2vec2_forward.1} parent=11 // pred_check
        %p652 = pneg %p122
      $region22: #{wav2vec2_forward.1} parent=11 // pred_check_branch
        %654 = sbr.rel (%p652) target = $region24
      $region23: #{wav2vec2_forward.1} parent=11 // pred_region
        _
      $region24: #{wav2vec2_forward.1} parent=11 // pred_fallthru
        _
      // Predicated region
      $region25: #{wav2vec2_forward.1} parent=11 // pred_check
        %p655 = pneg %p143
      $region26: #{wav2vec2_forward.1} parent=11 // pred_check_branch
        %657 = sbr.rel (%p655) target = $region28
      $region27: #{wav2vec2_forward.1} parent=11 // pred_region
        _
      $region28: #{wav2vec2_forward.1} parent=11 // pred_fallthru
        _
      // Predicated region
      $region29: #{wav2vec2_forward.1} parent=11 // pred_check
        %p658 = pneg %p164
      $region30: #{wav2vec2_forward.1} parent=11 // pred_check_branch
        %660 = sbr.rel (%p658) target = $region32
      $region31: #{wav2vec2_forward.1} parent=11 // pred_region
        _
      $region32: #{wav2vec2_forward.1} parent=11 // pred_fallthru
        _
      // Predicated region
      $region33: #{wav2vec2_forward.1} parent=11 // pred_check
        %p661 = pneg %p185
      $region34: #{wav2vec2_forward.1} parent=11 // pred_check_branch
        %663 = sbr.rel (%p661) target = $region36
      $region35: #{wav2vec2_forward.1} parent=11 // pred_region
        _
      $region36: #{wav2vec2_forward.1} parent=11 // pred_fallthru
        _
      // Predicated region
      $region37: #{wav2vec2_forward.1} parent=11 // pred_check
        %p664 = pneg %p206
      $region38: #{wav2vec2_forward.1} parent=11 // pred_check_branch
        %666 = sbr.rel (%p664) target = $region40
      $region39: #{wav2vec2_forward.1} parent=11 // pred_region
        _
      $region40: #{wav2vec2_forward.1} parent=11 // pred_fallthru
        _
      // Predicated region
      $region41: #{wav2vec2_forward.1} parent=11 // pred_check
        %p667 = pneg %p227
      $region42: #{wav2vec2_forward.1} parent=11 // pred_check_branch
        %669 = sbr.rel (%p667) target = $region44
      $region43: #{wav2vec2_forward.1} parent=11 // pred_region
        _
      $region44: #{wav2vec2_forward.1} parent=11 // pred_fallthru
        _
      // Predicated region
      $region45: #{wav2vec2_forward.1} parent=11 // pred_check
        %p670 = pneg %p248
      $region46: #{wav2vec2_forward.1} parent=11 // pred_check_branch
        %672 = sbr.rel (%p670) target = $region48
      $region47: #{wav2vec2_forward.1} parent=11 // pred_region
        _
      $region48: #{wav2vec2_forward.1} parent=11 // pred_fallthru
        _
      // Predicated region
      $region49: #{wav2vec2_forward.1} parent=11 // pred_check
        %p673 = pneg %p269
      $region50: #{wav2vec2_forward.1} parent=11 // pred_check_branch
        %675 = sbr.rel (%p673) target = $region52
      $region51: #{wav2vec2_forward.1} parent=11 // pred_region
        _
      $region52: #{wav2vec2_forward.1} parent=11 // pred_fallthru
        _
      // Predicated region
      $region53: #{wav2vec2_forward.1} parent=11 // pred_check
        %p676 = pneg %p290
      $region54: #{wav2vec2_forward.1} parent=11 // pred_check_branch
        %678 = sbr.rel (%p676) target = $region56
      $region55: #{wav2vec2_forward.1} parent=11 // pred_region
        _
      $region56: #{wav2vec2_forward.1} parent=11 // pred_fallthru
        _
      // Predicated region
      $region57: #{wav2vec2_forward.1} parent=11 // pred_check
        %p679 = pneg %p311
      $region58: #{wav2vec2_forward.1} parent=11 // pred_check_branch
        %681 = sbr.rel (%p679) target = $region60
      $region59: #{wav2vec2_forward.1} parent=11 // pred_region
        _
      $region60: #{wav2vec2_forward.1} parent=11 // pred_fallthru
        _
      // Predicated region
      $region61: #{wav2vec2_forward.1} parent=11 // pred_check
        %p682 = pneg %p332
      $region62: #{wav2vec2_forward.1} parent=11 // pred_check_branch
        %684 = sbr.rel (%p682) target = $region64
      $region63: #{wav2vec2_forward.1} parent=11 // pred_region
        _
      $region64: #{wav2vec2_forward.1} parent=11 // pred_fallthru
        _
      // Predicated region
      $region65: #{wav2vec2_forward.1} parent=11 // pred_check
        %p685 = pneg %p353
      $region66: #{wav2vec2_forward.1} parent=11 // pred_check_branch
        %687 = sbr.rel (%p685) target = $region68
      $region67: #{wav2vec2_forward.1} parent=11 // pred_region
        _
      $region68: #{wav2vec2_forward.1} parent=11 // pred_fallthru
        _
      // Predicated region
      $region69: #{wav2vec2_forward.1} parent=11 // pred_check
        %p688 = pneg %p374
      $region70: #{wav2vec2_forward.1} parent=11 // pred_check_branch
        %690 = sbr.rel (%p688) target = $region72
      $region71: #{wav2vec2_forward.1} parent=11 // pred_region
        _
      $region72: #{wav2vec2_forward.1} parent=11 // pred_fallthru
        _
      // Predicated region
      $region73: #{wav2vec2_forward.1} parent=11 // pred_check
        %p691 = pneg %p395
      $region74: #{wav2vec2_forward.1} parent=11 // pred_check_branch
        %693 = sbr.rel (%p691) target = $region76
      $region75: #{wav2vec2_forward.1} parent=11 // pred_region
        _
      $region76: #{wav2vec2_forward.1} parent=11 // pred_fallthru
        _
      // Predicated region
      $region77: #{wav2vec2_forward.1} parent=11 // pred_check
        %p694 = pneg %p416
      $region78: #{wav2vec2_forward.1} parent=11 // pred_check_branch
        %696 = sbr.rel (%p694) target = $region80
      $region79: #{wav2vec2_forward.1} parent=11 // pred_region
        _
      $region80: #{wav2vec2_forward.1} parent=11 // pred_fallthru
        _
      // Predicated region
      $region81: #{wav2vec2_forward.1} parent=11 // pred_check
        %p697 = pneg %p437
      $region82: #{wav2vec2_forward.1} parent=11 // pred_check_branch
        %699 = sbr.rel (%p697) target = $region84
      $region83: #{wav2vec2_forward.1} parent=11 // pred_region
        _
      $region84: #{wav2vec2_forward.1} parent=11 // pred_fallthru
        _
      // Predicated region
      $region85: #{wav2vec2_forward.1} parent=11 // pred_check
        %p700 = pneg %p458
      $region86: #{wav2vec2_forward.1} parent=11 // pred_check_branch
        %702 = sbr.rel (%p700) target = $region88
      $region87: #{wav2vec2_forward.1} parent=11 // pred_region
        _
      $region88: #{wav2vec2_forward.1} parent=11 // pred_fallthru
        _
      // Predicated region
      $region89: #{wav2vec2_forward.1} parent=11 // pred_check
        %p703 = pneg %p479
      $region90: #{wav2vec2_forward.1} parent=11 // pred_check_branch
        %705 = sbr.rel (%p703) target = $region92
      $region91: #{wav2vec2_forward.1} parent=11 // pred_region
        _
      $region92: #{wav2vec2_forward.1} parent=11 // pred_fallthru
        _
      // Predicated region
      $region93: #{wav2vec2_forward.1} parent=11 // pred_check
        %p706 = pneg %p500
      $region94: #{wav2vec2_forward.1} parent=11 // pred_check_branch
        %708 = sbr.rel (%p706) target = $region96
      $region95: #{wav2vec2_forward.1} parent=11 // pred_region
        _
      $region96: #{wav2vec2_forward.1} parent=11 // pred_fallthru
        _
      // Predicated region
      $region97: #{wav2vec2_forward.1} parent=11 // pred_check
        %p709 = pneg %p521
      $region98: #{wav2vec2_forward.1} parent=11 // pred_check_branch
        %711 = sbr.rel (%p709) target = $region100
      $region99: #{wav2vec2_forward.1} parent=11 // pred_region
        _
      $region100: #{wav2vec2_forward.1} parent=11 // pred_fallthru
        _
      // Predicated region
      $region101: #{wav2vec2_forward.1} parent=11 // pred_check
        %p712 = pneg %p542
      $region102: #{wav2vec2_forward.1} parent=11 // pred_check_branch
        %714 = sbr.rel (%p712) target = $region104
      $region103: #{wav2vec2_forward.1} parent=11 // pred_region
        _
      $region104: #{wav2vec2_forward.1} parent=11 // pred_fallthru
        _
      // Predicated region
      $region105: #{wav2vec2_forward.1} parent=11 // pred_check
        %p715 = pneg %p563
      $region106: #{wav2vec2_forward.1} parent=11 // pred_check_branch
        %717 = sbr.rel (%p715) target = $region108
      $region107: #{wav2vec2_forward.1} parent=11 // pred_region
        _
      $region108: #{wav2vec2_forward.1} parent=11 // pred_fallthru
        _
      // Predicated region
      $region109: #{wav2vec2_forward.1} parent=11 // pred_check
        %p718 = pneg %p584
      $region110: #{wav2vec2_forward.1} parent=11 // pred_check_branch
        %720 = sbr.rel (%p718) target = $region112
      $region111: #{wav2vec2_forward.1} parent=11 // pred_region
        _
      $region112: #{wav2vec2_forward.1} parent=11 // pred_fallthru
        _
      // Predicated region
      $region113: #{wav2vec2_forward.1} parent=11 // pred_check
        %p721 = pneg %p605
      $region114: #{wav2vec2_forward.1} parent=11 // pred_check_branch
        %723 = sbr.rel (%p721) target = $region116
      $region115: #{wav2vec2_forward.1} parent=11 // pred_region
        _
      $region116: #{wav2vec2_forward.1} parent=11 // pred_fallthru
        _
    $region12: #{wav2vec2_forward.1} parent=5 // pred_fallthru
      _
    %p724 = scmp.lt.s32.totalorder %s33, 2
    // Predicated region
    $region117: #{wav2vec2_forward.1} parent=5 // pred_check
      %p725 = pneg %p724
    $region118: #{wav2vec2_forward.1} parent=5 // pred_check_branch
      %727 = sbr.rel (%p725) target = $region120
    $region119: #{wav2vec2_forward.1} parent=5 // pred_region
      // Predicated region
      $region121: #{wav2vec2_forward.1} parent=119 // pred_check
        %p728 = pneg %p53
      $region122: #{wav2vec2_forward.1} parent=119 // pred_check_branch
        %730 = sbr.rel (%p728) target = $region124
      $region123: #{wav2vec2_forward.1} parent=119 // pred_region
        %p731 = scmp.lt.s32.totalorder %s33, 1
        %s732 = scalar_select %p731, %s33, 1
        %s733 = smul.addr %s732, 10
        %s734 = smul.addr %s733, 8
        %s735 = scalar_lea.vmem %s0, %s734
      $region124: #{wav2vec2_forward.1} parent=119 // pred_fallthru
        _
    $region120: #{wav2vec2_forward.1} parent=5 // pred_fallthru
      _
    %p736 = scmp.le.s32.totalorder 1, %s33
    %p737 = scmp.lt.s32.totalorder %s33, 3
    %p738 = pnand %p736, %p737
    %p739 = pneg %p738
    // Predicated region
    $region125: #{wav2vec2_forward.1} parent=5 // pred_check
      _
    $region126: #{wav2vec2_forward.1} parent=5 // pred_check_branch
      %741 = sbr.rel (%p738) target = $region128
    $region127: #{wav2vec2_forward.1} parent=5 // pred_region
      %s742 = ssub.s32 %s33, 1
      %p743 = scmp.lt.s32.totalorder %s38, 1
      %s744 = scalar_select %p743, %s38, 1
      %s745 = smul.addr %s744, 10
      %s746 = smul.addr %s745, 8
      %s747 = scalar_lea.vmem %s0, %s746
      %p748 = pneg %p59
      %p749 = pneg %p56
      %p750 = pneg %p80
      %p751 = pneg %p77
      %p752 = pneg %p101
      %p753 = pneg %p98
      %p754 = pneg %p122
      %p755 = pneg %p119
      %p756 = pneg %p143
      %p757 = pneg %p140
      %p758 = pneg %p164
      %p759 = pneg %p161
      %p760 = pneg %p185
      %p761 = pneg %p182
      %p762 = pneg %p206
      %p763 = pneg %p203
      %p764 = pneg %p227
      %p765 = pneg %p224
      %p766 = pneg %p248
      %p767 = pneg %p245
      %p768 = pneg %p269
      %p769 = pneg %p266
      %p770 = pneg %p290
      %p771 = pneg %p287
      %p772 = pneg %p311
      %p773 = pneg %p308
      %p774 = pneg %p332
      %p775 = pneg %p329
      %p776 = pneg %p353
      %p777 = pneg %p350
      %p778 = pneg %p374
      %p779 = pneg %p371
      %p780 = pneg %p395
      %p781 = pneg %p392
      %p782 = pneg %p416
      %p783 = pneg %p413
      %p784 = pneg %p437
      %p785 = pneg %p434
      %p786 = pneg %p458
      %p787 = pneg %p455
      %p788 = pneg %p479
      %p789 = pneg %p476
      %p790 = pneg %p500
      %p791 = pneg %p497
      %p792 = pneg %p521
      %p793 = pneg %p518
      %p794 = pneg %p542
      %p795 = pneg %p539
      %p796 = pneg %p563
      %p797 = pneg %p560
      %p798 = pneg %p584
      %p799 = pneg %p581
      %p800 = pneg %p605
      %p801 = pneg %p602
      %p802 = pneg %p631
      %p803 = pneg %p628
      %p804 = scmp.lt.s32.totalorder %s38, 1
      %s805 = scalar_select %p804, %s38, 1
      %s806 = smul.addr %s805, 10
      %s807 = smul.addr %s806, 8
      %s808 = scalar_lea.vmem %s27, %s807
      %p809 = scmp.lt.s32.totalorder %s38, 1
      %s810 = scalar_select %p809, %s38, 1
      %s811 = smul.addr %s810, 10
      %s812 = smul.addr %s811, 8
      %s813 = scalar_lea.vmem %s0, %s812
      %p814 = scmp.lt.s32.totalorder %s38, 1
      %s815 = scalar_select %p814, %s38, 1
      %s816 = smul.addr %s815, 10
      %s817 = smul.addr %s816, 8
      %s818 = scalar_lea.vmem %s27, %s817
      %v820 = vld [vmem:[%s813] sm:$0xff]
      %v821 = vld [vmem:[%s813 + $0x8] sm:$0xff]
      %v822 = vld [vmem:[%s813 + $0x10] sm:$0xff]
      %v823 = vld [vmem:[%s813 + $0x18] sm:$0xff]
      %v824 = vld [vmem:[%s813 + $0x20] sm:$0xff]
      %v825 = vld [vmem:[%s813 + $0x28] sm:$0xff]
      %v826 = vld [vmem:[%s813 + $0x30] sm:$0xff]
      %v827 = vld [vmem:[%s813 + $0x38] sm:$0xff]
      %v828 = vld [vmem:[%s813 + $0x40] sm:$0xff]
      %v829 = vld [vmem:[%s813 + $0x48] sm:$0xff]
      %v830 = vrot.slane %v820, 1
      %v831 = vrot.slane %v821, 1
      %v832 = vrot.slane %v822, 1
      %v833 = vrot.slane %v823, 1
      %v834 = vrot.slane %v824, 1
      %v835 = vrot.slane %v825, 1
      %v836 = vrot.slane %v826, 1
      %v837 = vrot.slane %v827, 1
      %v838 = vrot.slane %v828, 1
      %v839 = vrot.slane %v829, 1
      %v840 = vlaneseq
      %v841 = vshrl.u32 %v840, 7
      %vm842 = vcmp.lt.s32.totalorder %v841, 7
      %v843 = vsel %vm842, %v838, %v839
      %v844 = vsel %vm842, %v837, %v838
      %v845 = vsel %vm842, %v836, %v837
      %v846 = vsel %vm842, %v835, %v836
      %v847 = vsel %vm842, %v834, %v835
      %v848 = vsel %vm842, %v833, %v834
      %v849 = vsel %vm842, %v832, %v833
      %v850 = vsel %vm842, %v831, %v832
      %v851 = vsel %vm842, %v830, %v831
      %v852 = vsel %vm842, %v839, %v830
      %v853 = vld [vmem:[%s2] sm:$0x1]
      %v854 = vld [vmem:[%s1] sm:$0xf]
      %v855 = vld [vmem:[%s1 + $0x4] sm:$0x1]
      %v856 = vpack.c.bf16 %v821, %v820
      %v857 = vpack.c.bf16 %v823, %v822
      %v858 = vpack.c.bf16 %v825, %v824
      %v859 = vpack.c.bf16 %v827, %v826
      %v860 = vpack.c.bf16 %v829, %v828
      %v862 = vperm.slane %v853, 0
      %v866 = vunpack.c.l.b16 %v854
      %v867 = vunpack.c.l.b16 %v855
      %v868 = vpack.c.b16 %v867, %v866
      %vm869 = vcmask 80896
      %v871 = vsel %vm869, %v856, 0
      %v874 = vsel %vm869, %v857, 0
      %v877 = vsel %vm869, %v858, 0
      %v880 = vsel %vm869, %v859, 0
      %v883 = vsel %vm869, %v860, 0
      %vm885 = vcmask 1044480
      %v887 = vsel %vm885, %v868, 0
      %889 = vmatpush.bf16.msra.mxu0 0
      %890 = vmatpush.bf16.msra.mxu0 0
      %891 = vmatpush.bf16.msra.mxu0 0
      %892 = vmatpush.bf16.msra.mxu0 0
      %893 = vmatpush.bf16.msra.mxu0 0
      %894 = vmatpush.bf16.msra.mxu0 0
      %895 = vmatpush.bf16.msra.mxu0 0
      %896 = vmatpush.bf16.msra.mxu0 %v887
      %897 = vmatmul.bf16.gmra.mxu0 %v871
      %v898 = vpop.f32.mrf.mxu0
      %v899 = vadd.f32 %v862, %v898
      %v900 = vpop.f32.mrf.mxu0
      %v901 = vadd.f32 %v862, %v900
      %902 = vmatmul.bf16.gmra.mxu0 %v874
      %v903 = vpop.f32.mrf.mxu0
      %v904 = vadd.f32 %v862, %v903
      %v905 = vpop.f32.mrf.mxu0
      %v906 = vadd.f32 %v862, %v905
      %907 = vmatmul.bf16.gmra.mxu0 %v877
      %v908 = vpop.f32.mrf.mxu0
      %v909 = vadd.f32 %v862, %v908
      %v910 = vpop.f32.mrf.mxu0
      %v911 = vadd.f32 %v862, %v910
      %912 = vmatmul.bf16.gmra.mxu0 %v880
      %v913 = vpop.f32.mrf.mxu0
      %v914 = vadd.f32 %v862, %v913
      %v915 = vpop.f32.mrf.mxu0
      %v916 = vadd.f32 %v862, %v915
      %917 = vmatmul.bf16.gmra.mxu0 %v883
      %v918 = vpop.f32.mrf.mxu0
      %v919 = vadd.f32 %v862, %v918
      %v920 = vpop.f32.mrf.mxu0
      %v921 = vadd.f32 %v862, %v920
      %922 = vdwg.mxu0
      %v923 = vmul.f32 %v899, %v899
      %v924 = vmul.f32 %v901, %v901
      %v925 = vmul.f32 %v904, %v904
      %v926 = vmul.f32 %v906, %v906
      %v927 = vmul.f32 %v909, %v909
      %v928 = vmul.f32 %v911, %v911
      %v929 = vmul.f32 %v914, %v914
      %v930 = vmul.f32 %v916, %v916
      %v931 = vmul.f32 %v919, %v919
      %v932 = vmul.f32 %v921, %v921
      %v933 = vmul.f32 %v899, %v923
      %v934 = vmul.f32 %v901, %v924
      %v935 = vmul.f32 %v904, %v925
      %v936 = vmul.f32 %v906, %v926
      %v937 = vmul.f32 %v909, %v927
      %v938 = vmul.f32 %v911, %v928
      %v939 = vmul.f32 %v914, %v929
      %v940 = vmul.f32 %v916, %v930
      %v941 = vmul.f32 %v919, %v931
      %v942 = vmul.f32 %v921, %v932
      %v943 = vmul.f32 %v933, 0.044715
      %v944 = vmul.f32 %v934, 0.044715
      %v945 = vmul.f32 %v935, 0.044715
      %v946 = vmul.f32 %v936, 0.044715
      %v947 = vmul.f32 %v937, 0.044715
      %v948 = vmul.f32 %v938, 0.044715
      %v949 = vmul.f32 %v939, 0.044715
      %v950 = vmul.f32 %v940, 0.044715
      %v951 = vmul.f32 %v941, 0.044715
      %v952 = vmul.f32 %v942, 0.044715
      %v953 = vadd.f32 %v899, %v943
      %v954 = vadd.f32 %v901, %v944
      %v955 = vadd.f32 %v904, %v945
      %v956 = vadd.f32 %v906, %v946
      %v957 = vadd.f32 %v909, %v947
      %v958 = vadd.f32 %v911, %v948
      %v959 = vadd.f32 %v914, %v949
      %v960 = vadd.f32 %v916, %v950
      %v961 = vadd.f32 %v919, %v951
      %v962 = vadd.f32 %v921, %v952
      %v963 = vmul.f32 %v953, 0.7978846
      %v964 = vmul.f32 %v954, 0.7978846
      %v965 = vmul.f32 %v955, 0.7978846
      %v966 = vmul.f32 %v956, 0.7978846
      %v967 = vmul.f32 %v957, 0.7978846
      %v968 = vmul.f32 %v958, 0.7978846
      %v969 = vmul.f32 %v959, 0.7978846
      %v970 = vmul.f32 %v960, 0.7978846
      %v971 = vmul.f32 %v961, 0.7978846
      %v972 = vmul.f32 %v962, 0.7978846
      %v973 = vtanh.pop %v963
      %v974 = vtanh.pop %v964
      %v975 = vtanh.pop %v965
      %v976 = vtanh.pop %v966
      %v977 = vtanh.pop %v967
      %v978 = vtanh.pop %v968
      %v979 = vtanh.pop %v969
      %v980 = vtanh.pop %v970
      %v981 = vtanh.pop %v971
      %v982 = vtanh.pop %v972
      %v983 = vadd.f32 %v973, 1.0
      %v984 = vadd.f32 %v974, 1.0
      %v985 = vadd.f32 %v975, 1.0
      %v986 = vadd.f32 %v976, 1.0
      %v987 = vadd.f32 %v977, 1.0
      %v988 = vadd.f32 %v978, 1.0
      %v989 = vadd.f32 %v979, 1.0
      %v990 = vadd.f32 %v980, 1.0
      %v991 = vadd.f32 %v981, 1.0
      %v992 = vadd.f32 %v982, 1.0
      %v993 = vmul.f32 %v983, 0.5
      %v994 = vmul.f32 %v984, 0.5
      %v995 = vmul.f32 %v985, 0.5
      %v996 = vmul.f32 %v986, 0.5
      %v997 = vmul.f32 %v987, 0.5
      %v998 = vmul.f32 %v988, 0.5
      %v999 = vmul.f32 %v989, 0.5
      %v1000 = vmul.f32 %v990, 0.5
      %v1001 = vmul.f32 %v991, 0.5
      %v1002 = vmul.f32 %v992, 0.5
      %v1003 = vmul.f32 %v899, %v993
      %v1004 = vmul.f32 %v901, %v994
      %v1005 = vmul.f32 %v904, %v995
      %v1006 = vmul.f32 %v906, %v996
      %v1007 = vmul.f32 %v909, %v997
      %v1008 = vmul.f32 %v911, %v998
      %v1009 = vmul.f32 %v914, %v999
      %v1010 = vmul.f32 %v916, %v1000
      %v1011 = vmul.f32 %v919, %v1001
      %v1012 = vmul.f32 %v921, %v1002
      %s1013 = scalar_lea.vmem %s1, 8
      %v1014 = vld [vmem:[%s1013] sm:$0xf]
      %v1015 = vld [vmem:[%s1013 + $0x4] sm:$0x1]
      %s1016 = scalar_lea.vmem %s1, 16
      %v1017 = vld [vmem:[%s1016] sm:$0xf]
      %v1018 = vld [vmem:[%s1016 + $0x4] sm:$0x1]
      %v1019 = vpack.c.bf16 %v850, %v851
      %v1020 = vpack.c.bf16 %v848, %v849
      %v1021 = vpack.c.bf16 %v846, %v847
      %v1022 = vpack.c.bf16 %v844, %v845
      %v1023 = vpack.c.bf16 %v852, %v843
      %v1026 = vunpack.c.l.b16 %v1017
      %v1027 = vunpack.c.l.b16 %v1018
      %v1028 = vpack.c.b16 %v1027, %v1026
      %v1030 = vsel %vm869, %v1019, 0
      %v1033 = vsel %vm869, %v1020, 0
      %v1036 = vsel %vm869, %v1021, 0
      %v1039 = vsel %vm869, %v1022, 0
      %v1042 = vsel %vm869, %v1023, 0
      %v1045 = vsel %vm885, %v1028, 0
      %1047 = vmatpush.bf16.msra.mxu0 0
      %1048 = vmatpush.bf16.msra.mxu0 0
      %1049 = vmatpush.bf16.msra.mxu0 0
      %1050 = vmatpush.bf16.msra.mxu0 0
      %1051 = vmatpush.bf16.msra.mxu0 0
      %1052 = vmatpush.bf16.msra.mxu0 0
      %1053 = vmatpush.bf16.msra.mxu0 0
      %1054 = vmatpush.bf16.msra.mxu0 %v1045
      %1055 = vmatmul.bf16.gmra.mxu0 %v1030
      %v1056 = vpop.f32.mrf.mxu0
      %v1057 = vadd.f32 0.0, %v1056
      %v1058 = vpop.f32.mrf.mxu0
      %v1059 = vadd.f32 0.0, %v1058
      %1060 = vmatmul.bf16.gmra.mxu0 %v1033
      %v1061 = vpop.f32.mrf.mxu0
      %v1062 = vadd.f32 0.0, %v1061
      %v1063 = vpop.f32.mrf.mxu0
      %v1064 = vadd.f32 0.0, %v1063
      %1065 = vmatmul.bf16.gmra.mxu0 %v1036
      %v1066 = vpop.f32.mrf.mxu0
      %v1067 = vadd.f32 0.0, %v1066
      %v1068 = vpop.f32.mrf.mxu0
      %v1069 = vadd.f32 0.0, %v1068
      %1070 = vmatmul.bf16.gmra.mxu0 %v1039
      %v1071 = vpop.f32.mrf.mxu0
      %v1072 = vadd.f32 0.0, %v1071
      %v1073 = vpop.f32.mrf.mxu0
      %v1074 = vadd.f32 0.0, %v1073
      %1075 = vmatmul.bf16.gmra.mxu0 %v1042
      %v1076 = vpop.f32.mrf.mxu0
      %v1077 = vadd.f32 0.0, %v1076
      %v1078 = vpop.f32.mrf.mxu0
      %v1079 = vadd.f32 0.0, %v1078
      %1080 = vdwg.mxu0
      %v1083 = vunpack.c.l.b16 %v1014
      %v1084 = vunpack.c.l.b16 %v1015
      %v1085 = vpack.c.b16 %v1084, %v1083
      %v1087 = vsel %vm885, %v1085, 0
      %1089 = vmatpush.bf16.msra.mxu0 0
      %1090 = vmatpush.bf16.msra.mxu0 0
      %1091 = vmatpush.bf16.msra.mxu0 0
      %1092 = vmatpush.bf16.msra.mxu0 0
      %1093 = vmatpush.bf16.msra.mxu0 0
      %1094 = vmatpush.bf16.msra.mxu0 0
      %1095 = vmatpush.bf16.msra.mxu0 0
      %1096 = vmatpush.bf16.msra.mxu0 %v1087
      %1097 = vmatmul.bf16.gmra.mxu0 %v871
      %v1098 = vpop.f32.mrf.mxu0
      %v1099 = vadd.f32 %v1057, %v1098
      %v1100 = vpop.f32.mrf.mxu0
      %v1101 = vadd.f32 %v1059, %v1100
      %1102 = vmatmul.bf16.gmra.mxu0 %v874
      %v1103 = vpop.f32.mrf.mxu0
      %v1104 = vadd.f32 %v1062, %v1103
      %v1105 = vpop.f32.mrf.mxu0
      %v1106 = vadd.f32 %v1064, %v1105
      %1107 = vmatmul.bf16.gmra.mxu0 %v877
      %v1108 = vpop.f32.mrf.mxu0
      %v1109 = vadd.f32 %v1067, %v1108
      %v1110 = vpop.f32.mrf.mxu0
      %v1111 = vadd.f32 %v1069, %v1110
      %1112 = vmatmul.bf16.gmra.mxu0 %v880
      %v1113 = vpop.f32.mrf.mxu0
      %v1114 = vadd.f32 %v1072, %v1113
      %v1115 = vpop.f32.mrf.mxu0
      %v1116 = vadd.f32 %v1074, %v1115
      %1117 = vmatmul.bf16.gmra.mxu0 %v883
      %v1118 = vpop.f32.mrf.mxu0
      %v1119 = vadd.f32 %v1077, %v1118
      %v1120 = vpop.f32.mrf.mxu0
      %v1121 = vadd.f32 %v1079, %v1120
      %1122 = vdwg.mxu0
      %v1123 = vadd.f32 %v1099, %v862
      %v1124 = vadd.f32 %v1101, %v862
      %v1125 = vadd.f32 %v1104, %v862
      %v1126 = vadd.f32 %v1106, %v862
      %v1127 = vadd.f32 %v1109, %v862
      %v1128 = vadd.f32 %v1111, %v862
      %v1129 = vadd.f32 %v1114, %v862
      %v1130 = vadd.f32 %v1116, %v862
      %v1131 = vadd.f32 %v1119, %v862
      %v1132 = vadd.f32 %v1121, %v862
      %v1133 = vmul.f32 %v1123, %v1123
      %v1134 = vmul.f32 %v1124, %v1124
      %v1135 = vmul.f32 %v1125, %v1125
      %v1136 = vmul.f32 %v1126, %v1126
      %v1137 = vmul.f32 %v1127, %v1127
      %v1138 = vmul.f32 %v1128, %v1128
      %v1139 = vmul.f32 %v1129, %v1129
      %v1140 = vmul.f32 %v1130, %v1130
      %v1141 = vmul.f32 %v1131, %v1131
      %v1142 = vmul.f32 %v1132, %v1132
      %v1143 = vmul.f32 %v1123, %v1133
      %v1144 = vmul.f32 %v1124, %v1134
      %v1145 = vmul.f32 %v1125, %v1135
      %v1146 = vmul.f32 %v1126, %v1136
      %v1147 = vmul.f32 %v1127, %v1137
      %v1148 = vmul.f32 %v1128, %v1138
      %v1149 = vmul.f32 %v1129, %v1139
      %v1150 = vmul.f32 %v1130, %v1140
      %v1151 = vmul.f32 %v1131, %v1141
      %v1152 = vmul.f32 %v1132, %v1142
      %v1153 = vmul.f32 %v1143, 0.044715
      %v1154 = vmul.f32 %v1144, 0.044715
      %v1155 = vmul.f32 %v1145, 0.044715
      %v1156 = vmul.f32 %v1146, 0.044715
      %v1157 = vmul.f32 %v1147, 0.044715
      %v1158 = vmul.f32 %v1148, 0.044715
      %v1159 = vmul.f32 %v1149, 0.044715
      %v1160 = vmul.f32 %v1150, 0.044715
      %v1161 = vmul.f32 %v1151, 0.044715
      %v1162 = vmul.f32 %v1152, 0.044715
      %v1163 = vadd.f32 %v1123, %v1153
      %v1164 = vadd.f32 %v1124, %v1154
      %v1165 = vadd.f32 %v1125, %v1155
      %v1166 = vadd.f32 %v1126, %v1156
      %v1167 = vadd.f32 %v1127, %v1157
      %v1168 = vadd.f32 %v1128, %v1158
      %v1169 = vadd.f32 %v1129, %v1159
      %v1170 = vadd.f32 %v1130, %v1160
      %v1171 = vadd.f32 %v1131, %v1161
      %v1172 = vadd.f32 %v1132, %v1162
      %v1173 = vmul.f32 %v1163, 0.7978846
      %v1174 = vmul.f32 %v1164, 0.7978846
      %v1175 = vmul.f32 %v1165, 0.7978846
      %v1176 = vmul.f32 %v1166, 0.7978846
      %v1177 = vmul.f32 %v1167, 0.7978846
      %v1178 = vmul.f32 %v1168, 0.7978846
      %v1179 = vmul.f32 %v1169, 0.7978846
      %v1180 = vmul.f32 %v1170, 0.7978846
      %v1181 = vmul.f32 %v1171, 0.7978846
      %v1182 = vmul.f32 %v1172, 0.7978846
      %v1183 = vtanh.pop %v1173
      %v1184 = vtanh.pop %v1174
      %v1185 = vtanh.pop %v1175
      %v1186 = vtanh.pop %v1176
      %v1187 = vtanh.pop %v1177
      %v1188 = vtanh.pop %v1178
      %v1189 = vtanh.pop %v1179
      %v1190 = vtanh.pop %v1180
      %v1191 = vtanh.pop %v1181
      %v1192 = vtanh.pop %v1182
      %v1193 = vadd.f32 %v1183, 1.0
      %v1194 = vadd.f32 %v1184, 1.0
      %v1195 = vadd.f32 %v1185, 1.0
      %v1196 = vadd.f32 %v1186, 1.0
      %v1197 = vadd.f32 %v1187, 1.0
      %v1198 = vadd.f32 %v1188, 1.0
      %v1199 = vadd.f32 %v1189, 1.0
      %v1200 = vadd.f32 %v1190, 1.0
      %v1201 = vadd.f32 %v1191, 1.0
      %v1202 = vadd.f32 %v1192, 1.0
      %v1203 = vmul.f32 %v1193, 0.5
      %v1204 = vmul.f32 %v1194, 0.5
      %v1205 = vmul.f32 %v1195, 0.5
      %v1206 = vmul.f32 %v1196, 0.5
      %v1207 = vmul.f32 %v1197, 0.5
      %v1208 = vmul.f32 %v1198, 0.5
      %v1209 = vmul.f32 %v1199, 0.5
      %v1210 = vmul.f32 %v1200, 0.5
      %v1211 = vmul.f32 %v1201, 0.5
      %v1212 = vmul.f32 %v1202, 0.5
      %v1213 = vmul.f32 %v1123, %v1203
      %v1214 = vmul.f32 %v1124, %v1204
      %v1215 = vmul.f32 %v1125, %v1205
      %v1216 = vmul.f32 %v1126, %v1206
      %v1217 = vmul.f32 %v1127, %v1207
      %v1218 = vmul.f32 %v1128, %v1208
      %v1219 = vmul.f32 %v1129, %v1209
      %v1220 = vmul.f32 %v1130, %v1210
      %v1221 = vmul.f32 %v1131, %v1211
      %v1222 = vmul.f32 %v1132, %v1212
      %v1223 = vld [vmem:[%s3] sm:$0xf]
      %v1224 = vld [vmem:[%s3 + $0x4] sm:$0xf]
      %v1225 = vld [vmem:[%s3 + $0x8] sm:$0xf]
      %v1226 = vld [vmem:[%s3 + $0xc] sm:$0xf]
      %v1227 = vpack.c.bf16 %v1004, %v1003
      %v1228 = vpack.c.bf16 %v1006, %v1005
      %v1229 = vpack.c.bf16 %v1008, %v1007
      %v1230 = vpack.c.bf16 %v1010, %v1009
      %v1231 = vpack.c.bf16 %v1012, %v1011
      %s1232 = scalar_lea.vmem %s3, 16
      %v1233 = vld [vmem:[%s1232] sm:$0xf]
      %v1234 = vld [vmem:[%s1232 + $0x4] sm:$0xf]
      %v1235 = vld [vmem:[%s1232 + $0x8] sm:$0xf]
      %v1236 = vld [vmem:[%s1232 + $0xc] sm:$0xf]
      %v1237 = vpack.c.bf16 %v1214, %v1213
      %v1238 = vpack.c.bf16 %v1216, %v1215
      %v1239 = vpack.c.bf16 %v1218, %v1217
      %v1240 = vpack.c.bf16 %v1220, %v1219
      %v1241 = vpack.c.bf16 %v1222, %v1221
      %v1246 = vunpack.c.l.b16 %v1233
      %v1247 = vunpack.c.l.b16 %v1234
      %v1248 = vunpack.c.l.b16 %v1235
      %v1249 = vunpack.c.l.b16 %v1236
      %v1250 = vpack.c.b16 %v1247, %v1246
      %v1251 = vpack.c.b16 %v1249, %v1248
      %vm1254 = vcmask 261120
      %v1256 = vsel %vm1254, %v1237, 0
      %v1259 = vsel %vm1254, %v1238, 0
      %v1262 = vsel %vm1254, %v1239, 0
      %v1265 = vsel %vm1254, %v1240, 0
      %v1268 = vsel %vm1254, %v1241, 0
      %1270 = vmatpush.bf16.msra.mxu0 0
      %1271 = vmatpush.bf16.msra.mxu0 0
      %1272 = vmatpush.bf16.msra.mxu0 0
      %1273 = vmatpush.bf16.msra.mxu0 0
      %1274 = vmatpush.bf16.msra.mxu0 0
      %1275 = vmatpush.bf16.msra.mxu0 0
      %1276 = vmatpush.bf16.msra.mxu0 %v1251
      %1277 = vmatpush.bf16.msra.mxu0 %v1250
      %1278 = vmatmul.bf16.gmra.mxu0 %v1256
      %v1279 = vpop.f32.mrf.mxu0
      %v1280 = vadd.f32 0.0, %v1279
      %v1281 = vpop.f32.mrf.mxu0
      %v1282 = vadd.f32 0.0, %v1281
      %1283 = vmatmul.bf16.gmra.mxu0 %v1259
      %v1284 = vpop.f32.mrf.mxu0
      %v1285 = vadd.f32 0.0, %v1284
      %v1286 = vpop.f32.mrf.mxu0
      %v1287 = vadd.f32 0.0, %v1286
      %1288 = vmatmul.bf16.gmra.mxu0 %v1262
      %v1289 = vpop.f32.mrf.mxu0
      %v1290 = vadd.f32 0.0, %v1289
      %v1291 = vpop.f32.mrf.mxu0
      %v1292 = vadd.f32 0.0, %v1291
      %1293 = vmatmul.bf16.gmra.mxu0 %v1265
      %v1294 = vpop.f32.mrf.mxu0
      %v1295 = vadd.f32 0.0, %v1294
      %v1296 = vpop.f32.mrf.mxu0
      %v1297 = vadd.f32 0.0, %v1296
      %1298 = vmatmul.bf16.gmra.mxu0 %v1268
      %v1299 = vpop.f32.mrf.mxu0
      %v1300 = vadd.f32 0.0, %v1299
      %v1301 = vpop.f32.mrf.mxu0
      %v1302 = vadd.f32 0.0, %v1301
      %1303 = vdwg.mxu0
      %v1308 = vunpack.c.l.b16 %v1223
      %v1309 = vunpack.c.l.b16 %v1224
      %v1310 = vunpack.c.l.b16 %v1225
      %v1311 = vunpack.c.l.b16 %v1226
      %v1312 = vpack.c.b16 %v1309, %v1308
      %v1313 = vpack.c.b16 %v1311, %v1310
      %v1317 = vsel %vm1254, %v1227, 0
      %v1320 = vsel %vm1254, %v1228, 0
      %v1323 = vsel %vm1254, %v1229, 0
      %v1326 = vsel %vm1254, %v1230, 0
      %v1329 = vsel %vm1254, %v1231, 0
      %1331 = vmatpush.bf16.msra.mxu0 0
      %1332 = vmatpush.bf16.msra.mxu0 0
      %1333 = vmatpush.bf16.msra.mxu0 0
      %1334 = vmatpush.bf16.msra.mxu0 0
      %1335 = vmatpush.bf16.msra.mxu0 0
      %1336 = vmatpush.bf16.msra.mxu0 0
      %1337 = vmatpush.bf16.msra.mxu0 %v1313
      %1338 = vmatpush.bf16.msra.mxu0 %v1312
      %1339 = vmatmul.bf16.gmra.mxu0 %v1317
      %v1340 = vpop.f32.mrf.mxu0
      %v1341 = vadd.f32 %v1280, %v1340
      %v1342 = vpop.f32.mrf.mxu0
      %v1343 = vadd.f32 %v1282, %v1342
      %1344 = vmatmul.bf16.gmra.mxu0 %v1320
      %v1345 = vpop.f32.mrf.mxu0
      %v1346 = vadd.f32 %v1285, %v1345
      %v1347 = vpop.f32.mrf.mxu0
      %v1348 = vadd.f32 %v1287, %v1347
      %1349 = vmatmul.bf16.gmra.mxu0 %v1323
      %v1350 = vpop.f32.mrf.mxu0
      %v1351 = vadd.f32 %v1290, %v1350
      %v1352 = vpop.f32.mrf.mxu0
      %v1353 = vadd.f32 %v1292, %v1352
      %1354 = vmatmul.bf16.gmra.mxu0 %v1326
      %v1355 = vpop.f32.mrf.mxu0
      %v1356 = vadd.f32 %v1295, %v1355
      %v1357 = vpop.f32.mrf.mxu0
      %v1358 = vadd.f32 %v1297, %v1357
      %1359 = vmatmul.bf16.gmra.mxu0 %v1329
      %v1360 = vpop.f32.mrf.mxu0
      %v1361 = vadd.f32 %v1300, %v1360
      %v1362 = vpop.f32.mrf.mxu0
      %v1363 = vadd.f32 %v1302, %v1362
      %1364 = vdwg.mxu0
      %v1365 = vrot.slane %v1003, 1
      %v1366 = vrot.slane %v1004, 1
      %v1367 = vrot.slane %v1005, 1
      %v1368 = vrot.slane %v1006, 1
      %v1369 = vrot.slane %v1007, 1
      %v1370 = vrot.slane %v1008, 1
      %v1371 = vrot.slane %v1009, 1
      %v1372 = vrot.slane %v1010, 1
      %v1373 = vrot.slane %v1011, 1
      %v1374 = vrot.slane %v1012, 1
      %v1375 = vsel %vm842, %v1373, %v1374
      %v1376 = vsel %vm842, %v1372, %v1373
      %v1377 = vsel %vm842, %v1371, %v1372
      %v1378 = vsel %vm842, %v1370, %v1371
      %v1379 = vsel %vm842, %v1369, %v1370
      %v1380 = vsel %vm842, %v1368, %v1369
      %v1381 = vsel %vm842, %v1367, %v1368
      %v1382 = vsel %vm842, %v1366, %v1367
      %v1383 = vsel %vm842, %v1365, %v1366
      %v1384 = vsel %vm842, %v1374, %v1365
      %s1385 = scalar_lea.vmem %s3, 32
      %v1386 = vld [vmem:[%s1385] sm:$0xf]
      %v1387 = vld [vmem:[%s1385 + $0x4] sm:$0xf]
      %v1388 = vld [vmem:[%s1385 + $0x8] sm:$0xf]
      %v1389 = vld [vmem:[%s1385 + $0xc] sm:$0xf]
      %v1390 = vpack.c.bf16 %v1382, %v1383
      %v1391 = vpack.c.bf16 %v1380, %v1381
      %v1392 = vpack.c.bf16 %v1378, %v1379
      %v1393 = vpack.c.bf16 %v1376, %v1377
      %v1394 = vpack.c.bf16 %v1384, %v1375
      %v1399 = vunpack.c.l.b16 %v1386
      %v1400 = vunpack.c.l.b16 %v1387
      %v1401 = vunpack.c.l.b16 %v1388
      %v1402 = vunpack.c.l.b16 %v1389
      %v1403 = vpack.c.b16 %v1400, %v1399
      %v1404 = vpack.c.b16 %v1402, %v1401
      %v1408 = vsel %vm1254, %v1390, 0
      %v1411 = vsel %vm1254, %v1391, 0
      %v1414 = vsel %vm1254, %v1392, 0
      %v1417 = vsel %vm1254, %v1393, 0
      %v1420 = vsel %vm1254, %v1394, 0
      %1422 = vmatpush.bf16.msra.mxu0 0
      %1423 = vmatpush.bf16.msra.mxu0 0
      %1424 = vmatpush.bf16.msra.mxu0 0
      %1425 = vmatpush.bf16.msra.mxu0 0
      %1426 = vmatpush.bf16.msra.mxu0 0
      %1427 = vmatpush.bf16.msra.mxu0 0
      %1428 = vmatpush.bf16.msra.mxu0 %v1404
      %1429 = vmatpush.bf16.msra.mxu0 %v1403
      %1430 = vmatmul.bf16.gmra.mxu0 %v1408
      %v1431 = vpop.f32.mrf.mxu0
      %v1432 = vadd.f32 0.0, %v1431
      %v1433 = vpop.f32.mrf.mxu0
      %v1434 = vadd.f32 0.0, %v1433
      %1435 = vmatmul.bf16.gmra.mxu0 %v1411
      %v1436 = vpop.f32.mrf.mxu0
      %v1437 = vadd.f32 0.0, %v1436
      %v1438 = vpop.f32.mrf.mxu0
      %v1439 = vadd.f32 0.0, %v1438
      %1440 = vmatmul.bf16.gmra.mxu0 %v1414
      %v1441 = vpop.f32.mrf.mxu0
      %v1442 = vadd.f32 0.0, %v1441
      %v1443 = vpop.f32.mrf.mxu0
      %v1444 = vadd.f32 0.0, %v1443
      %1445 = vmatmul.bf16.gmra.mxu0 %v1417
      %v1446 = vpop.f32.mrf.mxu0
      %v1447 = vadd.f32 0.0, %v1446
      %v1448 = vpop.f32.mrf.mxu0
      %v1449 = vadd.f32 0.0, %v1448
      %1450 = vmatmul.bf16.gmra.mxu0 %v1420
      %v1451 = vpop.f32.mrf.mxu0
      %v1452 = vadd.f32 0.0, %v1451
      %v1453 = vpop.f32.mrf.mxu0
      %v1454 = vadd.f32 0.0, %v1453
      %1455 = vdwg.mxu0
      %v1456 = vadd.f32 %v1341, %v1432
      %v1457 = vadd.f32 %v1343, %v1434
      %v1458 = vadd.f32 %v1346, %v1437
      %v1459 = vadd.f32 %v1348, %v1439
      %v1460 = vadd.f32 %v1351, %v1442
      %v1461 = vadd.f32 %v1353, %v1444
      %v1462 = vadd.f32 %v1356, %v1447
      %v1463 = vadd.f32 %v1358, %v1449
      %v1464 = vadd.f32 %v1361, %v1452
      %v1465 = vadd.f32 %v1363, %v1454
      %v1466 = vld [vmem:[%s4] sm:$0x1]
      %v1468 = vperm.slane %v1466, 0
      %v1470 = vadd.f32 %v1456, %v1468
      %v1471 = vadd.f32 %v1457, %v1468
      %v1472 = vadd.f32 %v1458, %v1468
      %v1473 = vadd.f32 %v1459, %v1468
      %v1474 = vadd.f32 %v1460, %v1468
      %v1475 = vadd.f32 %v1461, %v1468
      %v1476 = vadd.f32 %v1462, %v1468
      %v1477 = vadd.f32 %v1463, %v1468
      %v1478 = vadd.f32 %v1464, %v1468
      %v1479 = vadd.f32 %v1465, %v1468
      %v1480 = vmul.f32 %v1470, %v1470
      %v1481 = vmul.f32 %v1471, %v1471
      %v1482 = vmul.f32 %v1472, %v1472
      %v1483 = vmul.f32 %v1473, %v1473
      %v1484 = vmul.f32 %v1474, %v1474
      %v1485 = vmul.f32 %v1475, %v1475
      %v1486 = vmul.f32 %v1476, %v1476
      %v1487 = vmul.f32 %v1477, %v1477
      %v1488 = vmul.f32 %v1478, %v1478
      %v1489 = vmul.f32 %v1479, %v1479
      %v1490 = vmul.f32 %v1470, %v1480
      %v1491 = vmul.f32 %v1471, %v1481
      %v1492 = vmul.f32 %v1472, %v1482
      %v1493 = vmul.f32 %v1473, %v1483
      %v1494 = vmul.f32 %v1474, %v1484
      %v1495 = vmul.f32 %v1475, %v1485
      %v1496 = vmul.f32 %v1476, %v1486
      %v1497 = vmul.f32 %v1477, %v1487
      %v1498 = vmul.f32 %v1478, %v1488
      %v1499 = vmul.f32 %v1479, %v1489
      %v1500 = vmul.f32 %v1490, 0.044715
      %v1501 = vmul.f32 %v1491, 0.044715
      %v1502 = vmul.f32 %v1492, 0.044715
      %v1503 = vmul.f32 %v1493, 0.044715
      %v1504 = vmul.f32 %v1494, 0.044715
      %v1505 = vmul.f32 %v1495, 0.044715
      %v1506 = vmul.f32 %v1496, 0.044715
      %v1507 = vmul.f32 %v1497, 0.044715
      %v1508 = vmul.f32 %v1498, 0.044715
      %v1509 = vmul.f32 %v1499, 0.044715
      %v1510 = vadd.f32 %v1470, %v1500
      %v1511 = vadd.f32 %v1471, %v1501
      %v1512 = vadd.f32 %v1472, %v1502
      %v1513 = vadd.f32 %v1473, %v1503
      %v1514 = vadd.f32 %v1474, %v1504
      %v1515 = vadd.f32 %v1475, %v1505
      %v1516 = vadd.f32 %v1476, %v1506
      %v1517 = vadd.f32 %v1477, %v1507
      %v1518 = vadd.f32 %v1478, %v1508
      %v1519 = vadd.f32 %v1479, %v1509
      %v1520 = vmul.f32 %v1510, 0.7978846
      %v1521 = vmul.f32 %v1511, 0.7978846
      %v1522 = vmul.f32 %v1512, 0.7978846
      %v1523 = vmul.f32 %v1513, 0.7978846
      %v1524 = vmul.f32 %v1514, 0.7978846
      %v1525 = vmul.f32 %v1515, 0.7978846
      %v1526 = vmul.f32 %v1516, 0.7978846
      %v1527 = vmul.f32 %v1517, 0.7978846
      %v1528 = vmul.f32 %v1518, 0.7978846
      %v1529 = vmul.f32 %v1519, 0.7978846
      %v1530 = vtanh.pop %v1520
      %v1531 = vtanh.pop %v1521
      %v1532 = vtanh.pop %v1522
      %v1533 = vtanh.pop %v1523
      %v1534 = vtanh.pop %v1524
      %v1535 = vtanh.pop %v1525
      %v1536 = vtanh.pop %v1526
      %v1537 = vtanh.pop %v1527
      %v1538 = vtanh.pop %v1528
      %v1539 = vtanh.pop %v1529
      %v1540 = vadd.f32 %v1530, 1.0
      %v1541 = vadd.f32 %v1531, 1.0
      %v1542 = vadd.f32 %v1532, 1.0
      %v1543 = vadd.f32 %v1533, 1.0
      %v1544 = vadd.f32 %v1534, 1.0
      %v1545 = vadd.f32 %v1535, 1.0
      %v1546 = vadd.f32 %v1536, 1.0
      %v1547 = vadd.f32 %v1537, 1.0
      %v1548 = vadd.f32 %v1538, 1.0
      %v1549 = vadd.f32 %v1539, 1.0
      %v1550 = vmul.f32 %v1540, 0.5
      %v1551 = vmul.f32 %v1541, 0.5
      %v1552 = vmul.f32 %v1542, 0.5
      %v1553 = vmul.f32 %v1543, 0.5
      %v1554 = vmul.f32 %v1544, 0.5
      %v1555 = vmul.f32 %v1545, 0.5
      %v1556 = vmul.f32 %v1546, 0.5
      %v1557 = vmul.f32 %v1547, 0.5
      %v1558 = vmul.f32 %v1548, 0.5
      %v1559 = vmul.f32 %v1549, 0.5
      %v1560 = vmul.f32 %v1470, %v1550
      %v1561 = vmul.f32 %v1471, %v1551
      %v1562 = vmul.f32 %v1472, %v1552
      %v1563 = vmul.f32 %v1473, %v1553
      %v1564 = vmul.f32 %v1474, %v1554
      %v1565 = vmul.f32 %v1475, %v1555
      %v1566 = vmul.f32 %v1476, %v1556
      %v1567 = vmul.f32 %v1477, %v1557
      %v1568 = vmul.f32 %v1478, %v1558
      %v1569 = vmul.f32 %v1479, %v1559
      %v1570 = vld [vmem:[%s5] sm:$0x1]
      %v1571 = vld [vmem:[%s6] sm:$0x1]
      %v1572 = vsel %vm1254, %v1560, 0.0
      %1573 = vadd.xlane.f32.xlu0 %v1572
      %v1574 = vpop.xlane.xlu0 %1573
      %v1575 = vsel %vm1254, %v1561, 0.0
      %1576 = vadd.xlane.f32.xlu0 %v1575
      %v1577 = vpop.xlane.xlu0 %1576
      %v1578 = vsel %vm1254, %v1562, 0.0
      %1579 = vadd.xlane.f32.xlu0 %v1578
      %v1580 = vpop.xlane.xlu0 %1579
      %v1581 = vsel %vm1254, %v1563, 0.0
      %1582 = vadd.xlane.f32.xlu0 %v1581
      %v1583 = vpop.xlane.xlu0 %1582
      %v1584 = vsel %vm1254, %v1564, 0.0
      %1585 = vadd.xlane.f32.xlu0 %v1584
      %v1586 = vpop.xlane.xlu0 %1585
      %v1587 = vsel %vm1254, %v1565, 0.0
      %1588 = vadd.xlane.f32.xlu0 %v1587
      %v1589 = vpop.xlane.xlu0 %1588
      %v1590 = vsel %vm1254, %v1566, 0.0
      %1591 = vadd.xlane.f32.xlu0 %v1590
      %v1592 = vpop.xlane.xlu0 %1591
      %v1593 = vsel %vm1254, %v1567, 0.0
      %1594 = vadd.xlane.f32.xlu0 %v1593
      %v1595 = vpop.xlane.xlu0 %1594
      %v1596 = vsel %vm1254, %v1568, 0.0
      %1597 = vadd.xlane.f32.xlu0 %v1596
      %v1598 = vpop.xlane.xlu0 %1597
      %v1599 = vsel %vm1254, %v1569, 0.0
      %1600 = vadd.xlane.f32.xlu0 %v1599
      %v1601 = vpop.xlane.xlu0 %1600
      %v1602 = vrcp.pop 32.0
      %v1603 = vmul.f32 32.0, %v1602
      %v1604 = vsub.f32 1.0, %v1603
      %v1605 = vmul.f32 %v1602, %v1604
      %v1606 = vadd.f32 %v1602, %v1605
      %vm1607 = vweird.f32 %v1602
      %v1608 = vsel %vm1607, %v1602, %v1606
      %v1609 = vmul.f32 %v1574, %v1608
      %v1610 = vmul.f32 %v1577, %v1608
      %v1611 = vmul.f32 %v1580, %v1608
      %v1612 = vmul.f32 %v1583, %v1608
      %v1613 = vmul.f32 %v1586, %v1608
      %v1614 = vmul.f32 %v1589, %v1608
      %v1615 = vmul.f32 %v1592, %v1608
      %v1616 = vmul.f32 %v1595, %v1608
      %v1617 = vmul.f32 %v1598, %v1608
      %v1618 = vmul.f32 %v1601, %v1608
      %v1619 = vsub.f32 %v1560, %v1609
      %v1620 = vsub.f32 %v1561, %v1610
      %v1621 = vsub.f32 %v1562, %v1611
      %v1622 = vsub.f32 %v1563, %v1612
      %v1623 = vsub.f32 %v1564, %v1613
      %v1624 = vsub.f32 %v1565, %v1614
      %v1625 = vsub.f32 %v1566, %v1615
      %v1626 = vsub.f32 %v1567, %v1616
      %v1627 = vsub.f32 %v1568, %v1617
      %v1628 = vsub.f32 %v1569, %v1618
      %v1629 = vmul.f32 %v1619, %v1619
      %v1630 = vmul.f32 %v1620, %v1620
      %v1631 = vmul.f32 %v1621, %v1621
      %v1632 = vmul.f32 %v1622, %v1622
      %v1633 = vmul.f32 %v1623, %v1623
      %v1634 = vmul.f32 %v1624, %v1624
      %v1635 = vmul.f32 %v1625, %v1625
      %v1636 = vmul.f32 %v1626, %v1626
      %v1637 = vmul.f32 %v1627, %v1627
      %v1638 = vmul.f32 %v1628, %v1628
      %v1639 = vsel %vm1254, %v1629, 0.0
      %1640 = vadd.xlane.f32.xlu0 %v1639
      %v1641 = vpop.xlane.xlu0 %1640
      %v1642 = vsel %vm1254, %v1630, 0.0
      %1643 = vadd.xlane.f32.xlu0 %v1642
      %v1644 = vpop.xlane.xlu0 %1643
      %v1645 = vsel %vm1254, %v1631, 0.0
      %1646 = vadd.xlane.f32.xlu0 %v1645
      %v1647 = vpop.xlane.xlu0 %1646
      %v1648 = vsel %vm1254, %v1632, 0.0
      %1649 = vadd.xlane.f32.xlu0 %v1648
      %v1650 = vpop.xlane.xlu0 %1649
      %v1651 = vsel %vm1254, %v1633, 0.0
      %1652 = vadd.xlane.f32.xlu0 %v1651
      %v1653 = vpop.xlane.xlu0 %1652
      %v1654 = vsel %vm1254, %v1634, 0.0
      %1655 = vadd.xlane.f32.xlu0 %v1654
      %v1656 = vpop.xlane.xlu0 %1655
      %v1657 = vsel %vm1254, %v1635, 0.0
      %1658 = vadd.xlane.f32.xlu0 %v1657
      %v1659 = vpop.xlane.xlu0 %1658
      %v1660 = vsel %vm1254, %v1636, 0.0
      %1661 = vadd.xlane.f32.xlu0 %v1660
      %v1662 = vpop.xlane.xlu0 %1661
      %v1663 = vsel %vm1254, %v1637, 0.0
      %1664 = vadd.xlane.f32.xlu0 %v1663
      %v1665 = vpop.xlane.xlu0 %1664
      %v1666 = vsel %vm1254, %v1638, 0.0
      %1667 = vadd.xlane.f32.xlu0 %v1666
      %v1668 = vpop.xlane.xlu0 %1667
      %v1669 = vmul.f32 %v1641, %v1608
      %v1670 = vmul.f32 %v1644, %v1608
      %v1671 = vmul.f32 %v1647, %v1608
      %v1672 = vmul.f32 %v1650, %v1608
      %v1673 = vmul.f32 %v1653, %v1608
      %v1674 = vmul.f32 %v1656, %v1608
      %v1675 = vmul.f32 %v1659, %v1608
      %v1676 = vmul.f32 %v1662, %v1608
      %v1677 = vmul.f32 %v1665, %v1608
      %v1678 = vmul.f32 %v1668, %v1608
      %v1679 = vadd.f32 %v1669, 1e-05
      %v1680 = vadd.f32 %v1670, 1e-05
      %v1681 = vadd.f32 %v1671, 1e-05
      %v1682 = vadd.f32 %v1672, 1e-05
      %v1683 = vadd.f32 %v1673, 1e-05
      %v1684 = vadd.f32 %v1674, 1e-05
      %v1685 = vadd.f32 %v1675, 1e-05
      %v1686 = vadd.f32 %v1676, 1e-05
      %v1687 = vadd.f32 %v1677, 1e-05
      %v1688 = vadd.f32 %v1678, 1e-05
      %v1689 = vrsqrt.pop %v1679
      %v1690 = vmul.f32 %v1689, %v1679
      %v1691 = vmul.f32 %v1690, %v1689
      %v1692 = vmul.f32 0.5, %v1691
      %v1693 = vsub.f32 1.5, %v1692
      %v1694 = vmul.f32 %v1689, %v1693
      %vm1695 = vweird.f32 %v1679
      %vm1696 = vweird.f32 %v1689
      %vm1697 = vmor %vm1695, %vm1696
      %v1698 = vsel %vm1697, %v1689, %v1694
      %v1699 = vrsqrt.pop %v1680
      %v1700 = vmul.f32 %v1699, %v1680
      %v1701 = vmul.f32 %v1700, %v1699
      %v1702 = vmul.f32 0.5, %v1701
      %v1703 = vsub.f32 1.5, %v1702
      %v1704 = vmul.f32 %v1699, %v1703
      %vm1705 = vweird.f32 %v1680
      %vm1706 = vweird.f32 %v1699
      %vm1707 = vmor %vm1705, %vm1706
      %v1708 = vsel %vm1707, %v1699, %v1704
      %v1709 = vrsqrt.pop %v1681
      %v1710 = vmul.f32 %v1709, %v1681
      %v1711 = vmul.f32 %v1710, %v1709
      %v1712 = vmul.f32 0.5, %v1711
      %v1713 = vsub.f32 1.5, %v1712
      %v1714 = vmul.f32 %v1709, %v1713
      %vm1715 = vweird.f32 %v1681
      %vm1716 = vweird.f32 %v1709
      %vm1717 = vmor %vm1715, %vm1716
      %v1718 = vsel %vm1717, %v1709, %v1714
      %v1719 = vrsqrt.pop %v1682
      %v1720 = vmul.f32 %v1719, %v1682
      %v1721 = vmul.f32 %v1720, %v1719
      %v1722 = vmul.f32 0.5, %v1721
      %v1723 = vsub.f32 1.5, %v1722
      %v1724 = vmul.f32 %v1719, %v1723
      %vm1725 = vweird.f32 %v1682
      %vm1726 = vweird.f32 %v1719
      %vm1727 = vmor %vm1725, %vm1726
      %v1728 = vsel %vm1727, %v1719, %v1724
      %v1729 = vrsqrt.pop %v1683
      %v1730 = vmul.f32 %v1729, %v1683
      %v1731 = vmul.f32 %v1730, %v1729
      %v1732 = vmul.f32 0.5, %v1731
      %v1733 = vsub.f32 1.5, %v1732
      %v1734 = vmul.f32 %v1729, %v1733
      %vm1735 = vweird.f32 %v1683
      %vm1736 = vweird.f32 %v1729
      %vm1737 = vmor %vm1735, %vm1736
      %v1738 = vsel %vm1737, %v1729, %v1734
      %v1739 = vrsqrt.pop %v1684
      %v1740 = vmul.f32 %v1739, %v1684
      %v1741 = vmul.f32 %v1740, %v1739
      %v1742 = vmul.f32 0.5, %v1741
      %v1743 = vsub.f32 1.5, %v1742
      %v1744 = vmul.f32 %v1739, %v1743
      %vm1745 = vweird.f32 %v1684
      %vm1746 = vweird.f32 %v1739
      %vm1747 = vmor %vm1745, %vm1746
      %v1748 = vsel %vm1747, %v1739, %v1744
      %v1749 = vrsqrt.pop %v1685
      %v1750 = vmul.f32 %v1749, %v1685
      %v1751 = vmul.f32 %v1750, %v1749
      %v1752 = vmul.f32 0.5, %v1751
      %v1753 = vsub.f32 1.5, %v1752
      %v1754 = vmul.f32 %v1749, %v1753
      %vm1755 = vweird.f32 %v1685
      %vm1756 = vweird.f32 %v1749
      %vm1757 = vmor %vm1755, %vm1756
      %v1758 = vsel %vm1757, %v1749, %v1754
      %v1759 = vrsqrt.pop %v1686
      %v1760 = vmul.f32 %v1759, %v1686
      %v1761 = vmul.f32 %v1760, %v1759
      %v1762 = vmul.f32 0.5, %v1761
      %v1763 = vsub.f32 1.5, %v1762
      %v1764 = vmul.f32 %v1759, %v1763
      %vm1765 = vweird.f32 %v1686
      %vm1766 = vweird.f32 %v1759
      %vm1767 = vmor %vm1765, %vm1766
      %v1768 = vsel %vm1767, %v1759, %v1764
      %v1769 = vrsqrt.pop %v1687
      %v1770 = vmul.f32 %v1769, %v1687
      %v1771 = vmul.f32 %v1770, %v1769
      %v1772 = vmul.f32 0.5, %v1771
      %v1773 = vsub.f32 1.5, %v1772
      %v1774 = vmul.f32 %v1769, %v1773
      %vm1775 = vweird.f32 %v1687
      %vm1776 = vweird.f32 %v1769
      %vm1777 = vmor %vm1775, %vm1776
      %v1778 = vsel %vm1777, %v1769, %v1774
      %v1779 = vrsqrt.pop %v1688
      %v1780 = vmul.f32 %v1779, %v1688
      %v1781 = vmul.f32 %v1780, %v1779
      %v1782 = vmul.f32 0.5, %v1781
      %v1783 = vsub.f32 1.5, %v1782
      %v1784 = vmul.f32 %v1779, %v1783
      %vm1785 = vweird.f32 %v1688
      %vm1786 = vweird.f32 %v1779
      %vm1787 = vmor %vm1785, %vm1786
      %v1788 = vsel %vm1787, %v1779, %v1784
      %v1789 = vmul.f32 %v1619, %v1698
      %v1790 = vmul.f32 %v1620, %v1708
      %v1791 = vmul.f32 %v1621, %v1718
      %v1792 = vmul.f32 %v1622, %v1728
      %v1793 = vmul.f32 %v1623, %v1738
      %v1794 = vmul.f32 %v1624, %v1748
      %v1795 = vmul.f32 %v1625, %v1758
      %v1796 = vmul.f32 %v1626, %v1768
      %v1797 = vmul.f32 %v1627, %v1778
      %v1798 = vmul.f32 %v1628, %v1788
      %v1800 = vperm.slane %v1570, 0
      %v1802 = vmul.f32 %v1789, %v1800
      %v1803 = vmul.f32 %v1790, %v1800
      %v1804 = vmul.f32 %v1791, %v1800
      %v1805 = vmul.f32 %v1792, %v1800
      %v1806 = vmul.f32 %v1793, %v1800
      %v1807 = vmul.f32 %v1794, %v1800
      %v1808 = vmul.f32 %v1795, %v1800
      %v1809 = vmul.f32 %v1796, %v1800
      %v1810 = vmul.f32 %v1797, %v1800
      %v1811 = vmul.f32 %v1798, %v1800
      %v1813 = vperm.slane %v1571, 0
      %v1815 = vadd.f32 %v1802, %v1813
      %v1816 = vadd.f32 %v1803, %v1813
      %v1817 = vadd.f32 %v1804, %v1813
      %v1818 = vadd.f32 %v1805, %v1813
      %v1819 = vadd.f32 %v1806, %v1813
      %v1820 = vadd.f32 %v1807, %v1813
      %v1821 = vadd.f32 %v1808, %v1813
      %v1822 = vadd.f32 %v1809, %v1813
      %v1823 = vadd.f32 %v1810, %v1813
      %v1824 = vadd.f32 %v1811, %v1813
      %v1825 = vld [vmem:[%s7] sm:$0xf]
      %v1826 = vld [vmem:[%s7 + $0x4] sm:$0xf]
      %v1827 = vld [vmem:[%s7 + $0x8] sm:$0xf]
      %v1828 = vld [vmem:[%s7 + $0xc] sm:$0xf]
      %v1829 = vpack.c.bf16 %v1816, %v1815
      %v1830 = vpack.c.bf16 %v1818, %v1817
      %v1831 = vpack.c.bf16 %v1820, %v1819
      %v1832 = vpack.c.bf16 %v1822, %v1821
      %v1833 = vpack.c.bf16 %v1824, %v1823
      %v1834 = vld [vmem:[%s8] sm:$0x1]
      %v1836 = vperm.slane %v1834, 0
      %v1842 = vunpack.c.l.b16 %v1825
      %v1843 = vunpack.c.l.b16 %v1826
      %v1844 = vunpack.c.l.b16 %v1827
      %v1845 = vunpack.c.l.b16 %v1828
      %v1846 = vpack.c.b16 %v1843, %v1842
      %v1847 = vpack.c.b16 %v1845, %v1844
      %v1851 = vsel %vm1254, %v1829, 0
      %v1854 = vsel %vm1254, %v1830, 0
      %v1857 = vsel %vm1254, %v1831, 0
      %v1860 = vsel %vm1254, %v1832, 0
      %v1863 = vsel %vm1254, %v1833, 0
      %1865 = vmatpush.bf16.msra.mxu0 0
      %1866 = vmatpush.bf16.msra.mxu0 0
      %1867 = vmatpush.bf16.msra.mxu0 0
      %1868 = vmatpush.bf16.msra.mxu0 0
      %1869 = vmatpush.bf16.msra.mxu0 0
      %1870 = vmatpush.bf16.msra.mxu0 0
      %1871 = vmatpush.bf16.msra.mxu0 %v1847
      %1872 = vmatpush.bf16.msra.mxu0 %v1846
      %1873 = vmatmul.bf16.gmra.mxu0 %v1851
      %v1874 = vpop.f32.mrf.mxu0
      %v1875 = vadd.f32 %v1836, %v1874
      %v1876 = vpop.f32.mrf.mxu0
      %v1877 = vadd.f32 %v1836, %v1876
      %1878 = vmatmul.bf16.gmra.mxu0 %v1854
      %v1879 = vpop.f32.mrf.mxu0
      %v1880 = vadd.f32 %v1836, %v1879
      %v1881 = vpop.f32.mrf.mxu0
      %v1882 = vadd.f32 %v1836, %v1881
      %1883 = vmatmul.bf16.gmra.mxu0 %v1857
      %v1884 = vpop.f32.mrf.mxu0
      %v1885 = vadd.f32 %v1836, %v1884
      %v1886 = vpop.f32.mrf.mxu0
      %v1887 = vadd.f32 %v1836, %v1886
      %1888 = vmatmul.bf16.gmra.mxu0 %v1860
      %v1889 = vpop.f32.mrf.mxu0
      %v1890 = vadd.f32 %v1836, %v1889
      %v1891 = vpop.f32.mrf.mxu0
      %v1892 = vadd.f32 %v1836, %v1891
      %1893 = vmatmul.bf16.gmra.mxu0 %v1863
      %v1894 = vpop.f32.mrf.mxu0
      %v1895 = vadd.f32 %v1836, %v1894
      %v1896 = vpop.f32.mrf.mxu0
      %v1897 = vadd.f32 %v1836, %v1896
      %1898 = vdwg.mxu0
      %v1899 = vadd.s32 %v841, 8
      %v1900 = vadd.s32 %v841, 16
      %v1901 = vadd.s32 %v841, 24
      %v1902 = vadd.s32 %v841, 32
      %v1903 = vadd.s32 %v841, 40
      %v1904 = vadd.s32 %v841, 48
      %v1905 = vadd.s32 %v841, 56
      %v1906 = vadd.s32 %v841, 64
      %v1907 = vadd.s32 %v841, 72
      %vm1908 = vcmp.lt.s32.totalorder %v841, 79
      %vm1909 = vcmp.lt.s32.totalorder %v1899, 79
      %vm1910 = vcmp.lt.s32.totalorder %v1900, 79
      %vm1911 = vcmp.lt.s32.totalorder %v1901, 79
      %vm1912 = vcmp.lt.s32.totalorder %v1902, 79
      %vm1913 = vcmp.lt.s32.totalorder %v1903, 79
      %vm1914 = vcmp.lt.s32.totalorder %v1904, 79
      %vm1915 = vcmp.lt.s32.totalorder %v1905, 79
      %vm1916 = vcmp.lt.s32.totalorder %v1906, 79
      %vm1917 = vcmp.lt.s32.totalorder %v1907, 79
      %v1918 = vsel %vm1908, %v1875, 0.0
      %v1919 = vsel %vm1909, %v1877, 0.0
      %v1920 = vsel %vm1910, %v1880, 0.0
      %v1921 = vsel %vm1911, %v1882, 0.0
      %v1922 = vsel %vm1912, %v1885, 0.0
      %v1923 = vsel %vm1913, %v1887, 0.0
      %v1924 = vsel %vm1914, %v1890, 0.0
      %v1925 = vsel %vm1915, %v1892, 0.0
      %v1926 = vsel %vm1916, %v1895, 0.0
      %v1927 = vsel %vm1917, %v1897, 0.0
      %v1928 = vrot.slane %v1918, 7
      %v1929 = vrot.slane %v1919, 7
      %v1930 = vrot.slane %v1920, 7
      %v1931 = vrot.slane %v1921, 7
      %v1932 = vrot.slane %v1922, 7
      %v1933 = vrot.slane %v1923, 7
      %v1934 = vrot.slane %v1924, 7
      %v1935 = vrot.slane %v1925, 7
      %v1936 = vrot.slane %v1926, 7
      %v1937 = vrot.slane %v1927, 7
      %vm1938 = vcmp.lt.s32.totalorder %v841, 1
      %v1939 = vsel %vm1938, %v1936, %v1937
      %v1940 = vsel %vm1938, %v1935, %v1936
      %v1941 = vsel %vm1938, %v1934, %v1935
      %v1942 = vsel %vm1938, %v1933, %v1934
      %v1943 = vsel %vm1938, %v1932, %v1933
      %v1944 = vsel %vm1938, %v1931, %v1932
      %v1945 = vsel %vm1938, %v1930, %v1931
      %v1946 = vsel %vm1938, %v1929, %v1930
      %v1947 = vsel %vm1938, %v1928, %v1929
      %v1948 = vsel %vm1938, %v1937, %v1928
      %v1949 = vld [vmem:[%s9] sm:$0xf]
      %v1950 = vld [vmem:[%s9 + $0x4] sm:$0xf]
      %v1951 = vld [vmem:[%s9 + $0x8] sm:$0xf]
      %v1952 = vld [vmem:[%s9 + $0xc] sm:$0xf]
      %v1953 = vpack.c.bf16 %v1947, %v1948
      %v1954 = vpack.c.bf16 %v1945, %v1946
      %v1955 = vpack.c.bf16 %v1943, %v1944
      %v1956 = vpack.c.bf16 %v1941, %v1942
      %v1957 = vpack.c.bf16 %v1939, %v1940
      %s1958 = scalar_lea.vmem %s9, 16
      %v1959 = vld [vmem:[%s1958] sm:$0xf]
      %v1960 = vld [vmem:[%s1958 + $0x4] sm:$0xf]
      %v1961 = vld [vmem:[%s1958 + $0x8] sm:$0xf]
      %v1962 = vld [vmem:[%s1958 + $0xc] sm:$0xf]
      %v1963 = vpack.c.bf16 %v1919, %v1918
      %v1964 = vpack.c.bf16 %v1921, %v1920
      %v1965 = vpack.c.bf16 %v1923, %v1922
      %v1966 = vpack.c.bf16 %v1925, %v1924
      %v1967 = vpack.c.bf16 %v1927, %v1926
      %v1972 = vunpack.c.l.b16 %v1959
      %v1973 = vunpack.c.l.b16 %v1960
      %v1974 = vunpack.c.l.b16 %v1961
      %v1975 = vunpack.c.l.b16 %v1962
      %v1976 = vpack.c.b16 %v1973, %v1972
      %v1977 = vpack.c.b16 %v1975, %v1974
      %v1981 = vsel %vm1254, %v1963, 0
      %v1984 = vsel %vm1254, %v1964, 0
      %v1987 = vsel %vm1254, %v1965, 0
      %v1990 = vsel %vm1254, %v1966, 0
      %v1993 = vsel %vm1254, %v1967, 0
      %1995 = vmatpush.bf16.msra.mxu0 0
      %1996 = vmatpush.bf16.msra.mxu0 0
      %1997 = vmatpush.bf16.msra.mxu0 0
      %1998 = vmatpush.bf16.msra.mxu0 0
      %1999 = vmatpush.bf16.msra.mxu0 0
      %2000 = vmatpush.bf16.msra.mxu0 0
      %2001 = vmatpush.bf16.msra.mxu0 %v1977
      %2002 = vmatpush.bf16.msra.mxu0 %v1976
      %2003 = vmatmul.bf16.gmra.mxu0 %v1981
      %v2004 = vpop.f32.mrf.mxu0
      %v2005 = vadd.f32 0.0, %v2004
      %v2006 = vpop.f32.mrf.mxu0
      %v2007 = vadd.f32 0.0, %v2006
      %2008 = vmatmul.bf16.gmra.mxu0 %v1984
      %v2009 = vpop.f32.mrf.mxu0
      %v2010 = vadd.f32 0.0, %v2009
      %v2011 = vpop.f32.mrf.mxu0
      %v2012 = vadd.f32 0.0, %v2011
      %2013 = vmatmul.bf16.gmra.mxu0 %v1987
      %v2014 = vpop.f32.mrf.mxu0
      %v2015 = vadd.f32 0.0, %v2014
      %v2016 = vpop.f32.mrf.mxu0
      %v2017 = vadd.f32 0.0, %v2016
      %2018 = vmatmul.bf16.gmra.mxu0 %v1990
      %v2019 = vpop.f32.mrf.mxu0
      %v2020 = vadd.f32 0.0, %v2019
      %v2021 = vpop.f32.mrf.mxu0
      %v2022 = vadd.f32 0.0, %v2021
      %2023 = vmatmul.bf16.gmra.mxu0 %v1993
      %v2024 = vpop.f32.mrf.mxu0
      %v2025 = vadd.f32 0.0, %v2024
      %v2026 = vpop.f32.mrf.mxu0
      %v2027 = vadd.f32 0.0, %v2026
      %2028 = vdwg.mxu0
      %v2033 = vunpack.c.l.b16 %v1949
      %v2034 = vunpack.c.l.b16 %v1950
      %v2035 = vunpack.c.l.b16 %v1951
      %v2036 = vunpack.c.l.b16 %v1952
      %v2037 = vpack.c.b16 %v2034, %v2033
      %v2038 = vpack.c.b16 %v2036, %v2035
      %v2042 = vsel %vm1254, %v1953, 0
      %v2045 = vsel %vm1254, %v1954, 0
      %v2048 = vsel %vm1254, %v1955, 0
      %v2051 = vsel %vm1254, %v1956, 0
      %v2054 = vsel %vm1254, %v1957, 0
      %2056 = vmatpush.bf16.msra.mxu0 0
      %2057 = vmatpush.bf16.msra.mxu0 0
      %2058 = vmatpush.bf16.msra.mxu0 0
      %2059 = vmatpush.bf16.msra.mxu0 0
      %2060 = vmatpush.bf16.msra.mxu0 0
      %2061 = vmatpush.bf16.msra.mxu0 0
      %2062 = vmatpush.bf16.msra.mxu0 %v2038
      %2063 = vmatpush.bf16.msra.mxu0 %v2037
      %2064 = vmatmul.bf16.gmra.mxu0 %v2042
      %v2065 = vpop.f32.mrf.mxu0
      %v2066 = vadd.f32 %v2005, %v2065
      %v2067 = vpop.f32.mrf.mxu0
      %v2068 = vadd.f32 %v2007, %v2067
      %2069 = vmatmul.bf16.gmra.mxu0 %v2045
      %v2070 = vpop.f32.mrf.mxu0
      %v2071 = vadd.f32 %v2010, %v2070
      %v2072 = vpop.f32.mrf.mxu0
      %v2073 = vadd.f32 %v2012, %v2072
      %2074 = vmatmul.bf16.gmra.mxu0 %v2048
      %v2075 = vpop.f32.mrf.mxu0
      %v2076 = vadd.f32 %v2015, %v2075
      %v2077 = vpop.f32.mrf.mxu0
      %v2078 = vadd.f32 %v2017, %v2077
      %2079 = vmatmul.bf16.gmra.mxu0 %v2051
      %v2080 = vpop.f32.mrf.mxu0
      %v2081 = vadd.f32 %v2020, %v2080
      %v2082 = vpop.f32.mrf.mxu0
      %v2083 = vadd.f32 %v2022, %v2082
      %2084 = vmatmul.bf16.gmra.mxu0 %v2054
      %v2085 = vpop.f32.mrf.mxu0
      %v2086 = vadd.f32 %v2025, %v2085
      %v2087 = vpop.f32.mrf.mxu0
      %v2088 = vadd.f32 %v2027, %v2087
      %2089 = vdwg.mxu0
      %v2090 = vrot.slane %v1918, 1
      %v2091 = vrot.slane %v1919, 1
      %v2092 = vrot.slane %v1920, 1
      %v2093 = vrot.slane %v1921, 1
      %v2094 = vrot.slane %v1922, 1
      %v2095 = vrot.slane %v1923, 1
      %v2096 = vrot.slane %v1924, 1
      %v2097 = vrot.slane %v1925, 1
      %v2098 = vrot.slane %v1926, 1
      %v2099 = vrot.slane %v1927, 1
      %v2100 = vsel %vm842, %v2098, %v2099
      %v2101 = vsel %vm842, %v2097, %v2098
      %v2102 = vsel %vm842, %v2096, %v2097
      %v2103 = vsel %vm842, %v2095, %v2096
      %v2104 = vsel %vm842, %v2094, %v2095
      %v2105 = vsel %vm842, %v2093, %v2094
      %v2106 = vsel %vm842, %v2092, %v2093
      %v2107 = vsel %vm842, %v2091, %v2092
      %v2108 = vsel %vm842, %v2090, %v2091
      %v2109 = vsel %vm842, %v2099, %v2090
      %s2110 = scalar_lea.vmem %s9, 32
      %v2111 = vld [vmem:[%s2110] sm:$0xf]
      %v2112 = vld [vmem:[%s2110 + $0x4] sm:$0xf]
      %v2113 = vld [vmem:[%s2110 + $0x8] sm:$0xf]
      %v2114 = vld [vmem:[%s2110 + $0xc] sm:$0xf]
      %v2115 = vpack.c.bf16 %v2107, %v2108
      %v2116 = vpack.c.bf16 %v2105, %v2106
      %v2117 = vpack.c.bf16 %v2103, %v2104
      %v2118 = vpack.c.bf16 %v2101, %v2102
      %v2119 = vpack.c.bf16 %v2109, %v2100
      %v2124 = vunpack.c.l.b16 %v2111
      %v2125 = vunpack.c.l.b16 %v2112
      %v2126 = vunpack.c.l.b16 %v2113
      %v2127 = vunpack.c.l.b16 %v2114
      %v2128 = vpack.c.b16 %v2125, %v2124
      %v2129 = vpack.c.b16 %v2127, %v2126
      %v2133 = vsel %vm1254, %v2115, 0
      %v2136 = vsel %vm1254, %v2116, 0
      %v2139 = vsel %vm1254, %v2117, 0
      %v2142 = vsel %vm1254, %v2118, 0
      %v2145 = vsel %vm1254, %v2119, 0
      %2147 = vmatpush.bf16.msra.mxu0 0
      %2148 = vmatpush.bf16.msra.mxu0 0
      %2149 = vmatpush.bf16.msra.mxu0 0
      %2150 = vmatpush.bf16.msra.mxu0 0
      %2151 = vmatpush.bf16.msra.mxu0 0
      %2152 = vmatpush.bf16.msra.mxu0 0
      %2153 = vmatpush.bf16.msra.mxu0 %v2129
      %2154 = vmatpush.bf16.msra.mxu0 %v2128
      %2155 = vmatmul.bf16.gmra.mxu0 %v2133
      %v2156 = vpop.f32.mrf.mxu0
      %v2157 = vadd.f32 0.0, %v2156
      %v2158 = vpop.f32.mrf.mxu0
      %v2159 = vadd.f32 0.0, %v2158
      %2160 = vmatmul.bf16.gmra.mxu0 %v2136
      %v2161 = vpop.f32.mrf.mxu0
      %v2162 = vadd.f32 0.0, %v2161
      %v2163 = vpop.f32.mrf.mxu0
      %v2164 = vadd.f32 0.0, %v2163
      %2165 = vmatmul.bf16.gmra.mxu0 %v2139
      %v2166 = vpop.f32.mrf.mxu0
      %v2167 = vadd.f32 0.0, %v2166
      %v2168 = vpop.f32.mrf.mxu0
      %v2169 = vadd.f32 0.0, %v2168
      %2170 = vmatmul.bf16.gmra.mxu0 %v2142
      %v2171 = vpop.f32.mrf.mxu0
      %v2172 = vadd.f32 0.0, %v2171
      %v2173 = vpop.f32.mrf.mxu0
      %v2174 = vadd.f32 0.0, %v2173
      %2175 = vmatmul.bf16.gmra.mxu0 %v2145
      %v2176 = vpop.f32.mrf.mxu0
      %v2177 = vadd.f32 0.0, %v2176
      %v2178 = vpop.f32.mrf.mxu0
      %v2179 = vadd.f32 0.0, %v2178
      %2180 = vdwg.mxu0
      %v2181 = vadd.f32 %v2066, %v2157
      %v2182 = vadd.f32 %v2068, %v2159
      %v2183 = vadd.f32 %v2071, %v2162
      %v2184 = vadd.f32 %v2073, %v2164
      %v2185 = vadd.f32 %v2076, %v2167
      %v2186 = vadd.f32 %v2078, %v2169
      %v2187 = vadd.f32 %v2081, %v2172
      %v2188 = vadd.f32 %v2083, %v2174
      %v2189 = vadd.f32 %v2086, %v2177
      %v2190 = vadd.f32 %v2088, %v2179
      %v2191 = vld [vmem:[%s10] sm:$0x1]
      %v2193 = vperm.slane %v2191, 0
      %v2195 = vadd.f32 %v2181, %v2193
      %v2196 = vadd.f32 %v2182, %v2193
      %v2197 = vadd.f32 %v2183, %v2193
      %v2198 = vadd.f32 %v2184, %v2193
      %v2199 = vadd.f32 %v2185, %v2193
      %v2200 = vadd.f32 %v2186, %v2193
      %v2201 = vadd.f32 %v2187, %v2193
      %v2202 = vadd.f32 %v2188, %v2193
      %v2203 = vadd.f32 %v2189, %v2193
      %v2204 = vadd.f32 %v2190, %v2193
      %v2205 = vmul.f32 %v2195, %v2195
      %v2206 = vmul.f32 %v2196, %v2196
      %v2207 = vmul.f32 %v2197, %v2197
      %v2208 = vmul.f32 %v2198, %v2198
      %v2209 = vmul.f32 %v2199, %v2199
      %v2210 = vmul.f32 %v2200, %v2200
      %v2211 = vmul.f32 %v2201, %v2201
      %v2212 = vmul.f32 %v2202, %v2202
      %v2213 = vmul.f32 %v2203, %v2203
      %v2214 = vmul.f32 %v2204, %v2204
      %v2215 = vmul.f32 %v2195, %v2205
      %v2216 = vmul.f32 %v2196, %v2206
      %v2217 = vmul.f32 %v2197, %v2207
      %v2218 = vmul.f32 %v2198, %v2208
      %v2219 = vmul.f32 %v2199, %v2209
      %v2220 = vmul.f32 %v2200, %v2210
      %v2221 = vmul.f32 %v2201, %v2211
      %v2222 = vmul.f32 %v2202, %v2212
      %v2223 = vmul.f32 %v2203, %v2213
      %v2224 = vmul.f32 %v2204, %v2214
      %v2225 = vmul.f32 %v2215, 0.044715
      %v2226 = vmul.f32 %v2216, 0.044715
      %v2227 = vmul.f32 %v2217, 0.044715
      %v2228 = vmul.f32 %v2218, 0.044715
      %v2229 = vmul.f32 %v2219, 0.044715
      %v2230 = vmul.f32 %v2220, 0.044715
      %v2231 = vmul.f32 %v2221, 0.044715
      %v2232 = vmul.f32 %v2222, 0.044715
      %v2233 = vmul.f32 %v2223, 0.044715
      %v2234 = vmul.f32 %v2224, 0.044715
      %v2235 = vadd.f32 %v2195, %v2225
      %v2236 = vadd.f32 %v2196, %v2226
      %v2237 = vadd.f32 %v2197, %v2227
      %v2238 = vadd.f32 %v2198, %v2228
      %v2239 = vadd.f32 %v2199, %v2229
      %v2240 = vadd.f32 %v2200, %v2230
      %v2241 = vadd.f32 %v2201, %v2231
      %v2242 = vadd.f32 %v2202, %v2232
      %v2243 = vadd.f32 %v2203, %v2233
      %v2244 = vadd.f32 %v2204, %v2234
      %v2245 = vmul.f32 %v2235, 0.7978846
      %v2246 = vmul.f32 %v2236, 0.7978846
      %v2247 = vmul.f32 %v2237, 0.7978846
      %v2248 = vmul.f32 %v2238, 0.7978846
      %v2249 = vmul.f32 %v2239, 0.7978846
      %v2250 = vmul.f32 %v2240, 0.7978846
      %v2251 = vmul.f32 %v2241, 0.7978846
      %v2252 = vmul.f32 %v2242, 0.7978846
      %v2253 = vmul.f32 %v2243, 0.7978846
      %v2254 = vmul.f32 %v2244, 0.7978846
      %v2255 = vtanh.pop %v2245
      %v2256 = vtanh.pop %v2246
      %v2257 = vtanh.pop %v2247
      %v2258 = vtanh.pop %v2248
      %v2259 = vtanh.pop %v2249
      %v2260 = vtanh.pop %v2250
      %v2261 = vtanh.pop %v2251
      %v2262 = vtanh.pop %v2252
      %v2263 = vtanh.pop %v2253
      %v2264 = vtanh.pop %v2254
      %v2265 = vadd.f32 %v2255, 1.0
      %v2266 = vadd.f32 %v2256, 1.0
      %v2267 = vadd.f32 %v2257, 1.0
      %v2268 = vadd.f32 %v2258, 1.0
      %v2269 = vadd.f32 %v2259, 1.0
      %v2270 = vadd.f32 %v2260, 1.0
      %v2271 = vadd.f32 %v2261, 1.0
      %v2272 = vadd.f32 %v2262, 1.0
      %v2273 = vadd.f32 %v2263, 1.0
      %v2274 = vadd.f32 %v2264, 1.0
      %v2275 = vmul.f32 %v2265, 0.5
      %v2276 = vmul.f32 %v2266, 0.5
      %v2277 = vmul.f32 %v2267, 0.5
      %v2278 = vmul.f32 %v2268, 0.5
      %v2279 = vmul.f32 %v2269, 0.5
      %v2280 = vmul.f32 %v2270, 0.5
      %v2281 = vmul.f32 %v2271, 0.5
      %v2282 = vmul.f32 %v2272, 0.5
      %v2283 = vmul.f32 %v2273, 0.5
      %v2284 = vmul.f32 %v2274, 0.5
      %v2285 = vmul.f32 %v2195, %v2275
      %v2286 = vmul.f32 %v2196, %v2276
      %v2287 = vmul.f32 %v2197, %v2277
      %v2288 = vmul.f32 %v2198, %v2278
      %v2289 = vmul.f32 %v2199, %v2279
      %v2290 = vmul.f32 %v2200, %v2280
      %v2291 = vmul.f32 %v2201, %v2281
      %v2292 = vmul.f32 %v2202, %v2282
      %v2293 = vmul.f32 %v2203, %v2283
      %v2294 = vmul.f32 %v2204, %v2284
      %v2295 = vadd.f32 %v2285, %v1918
      %v2296 = vadd.f32 %v2286, %v1919
      %v2297 = vadd.f32 %v2287, %v1920
      %v2298 = vadd.f32 %v2288, %v1921
      %v2299 = vadd.f32 %v2289, %v1922
      %v2300 = vadd.f32 %v2290, %v1923
      %v2301 = vadd.f32 %v2291, %v1924
      %v2302 = vadd.f32 %v2292, %v1925
      %v2303 = vadd.f32 %v2293, %v1926
      %v2304 = vadd.f32 %v2294, %v1927
      %v2305 = vld [vmem:[%s11] sm:$0x1]
      %v2306 = vld [vmem:[%s12] sm:$0x1]
      %v2307 = vsel %vm1254, %v2295, 0.0
      %2308 = vadd.xlane.f32.xlu0 %v2307
      %v2309 = vpop.xlane.xlu0 %2308
      %v2310 = vsel %vm1254, %v2296, 0.0
      %2311 = vadd.xlane.f32.xlu0 %v2310
      %v2312 = vpop.xlane.xlu0 %2311
      %v2313 = vsel %vm1254, %v2297, 0.0
      %2314 = vadd.xlane.f32.xlu0 %v2313
      %v2315 = vpop.xlane.xlu0 %2314
      %v2316 = vsel %vm1254, %v2298, 0.0
      %2317 = vadd.xlane.f32.xlu0 %v2316
      %v2318 = vpop.xlane.xlu0 %2317
      %v2319 = vsel %vm1254, %v2299, 0.0
      %2320 = vadd.xlane.f32.xlu0 %v2319
      %v2321 = vpop.xlane.xlu0 %2320
      %v2322 = vsel %vm1254, %v2300, 0.0
      %2323 = vadd.xlane.f32.xlu0 %v2322
      %v2324 = vpop.xlane.xlu0 %2323
      %v2325 = vsel %vm1254, %v2301, 0.0
      %2326 = vadd.xlane.f32.xlu0 %v2325
      %v2327 = vpop.xlane.xlu0 %2326
      %v2328 = vsel %vm1254, %v2302, 0.0
      %2329 = vadd.xlane.f32.xlu0 %v2328
      %v2330 = vpop.xlane.xlu0 %2329
      %v2331 = vsel %vm1254, %v2303, 0.0
      %2332 = vadd.xlane.f32.xlu0 %v2331
      %v2333 = vpop.xlane.xlu0 %2332
      %v2334 = vsel %vm1254, %v2304, 0.0
      %2335 = vadd.xlane.f32.xlu0 %v2334
      %v2336 = vpop.xlane.xlu0 %2335
      %v2337 = vmul.f32 %v2309, %v1608
      %v2338 = vmul.f32 %v2312, %v1608
      %v2339 = vmul.f32 %v2315, %v1608
      %v2340 = vmul.f32 %v2318, %v1608
      %v2341 = vmul.f32 %v2321, %v1608
      %v2342 = vmul.f32 %v2324, %v1608
      %v2343 = vmul.f32 %v2327, %v1608
      %v2344 = vmul.f32 %v2330, %v1608
      %v2345 = vmul.f32 %v2333, %v1608
      %v2346 = vmul.f32 %v2336, %v1608
      %v2347 = vsub.f32 %v2295, %v2337
      %v2348 = vsub.f32 %v2296, %v2338
      %v2349 = vsub.f32 %v2297, %v2339
      %v2350 = vsub.f32 %v2298, %v2340
      %v2351 = vsub.f32 %v2299, %v2341
      %v2352 = vsub.f32 %v2300, %v2342
      %v2353 = vsub.f32 %v2301, %v2343
      %v2354 = vsub.f32 %v2302, %v2344
      %v2355 = vsub.f32 %v2303, %v2345
      %v2356 = vsub.f32 %v2304, %v2346
      %v2357 = vmul.f32 %v2347, %v2347
      %v2358 = vmul.f32 %v2348, %v2348
      %v2359 = vmul.f32 %v2349, %v2349
      %v2360 = vmul.f32 %v2350, %v2350
      %v2361 = vmul.f32 %v2351, %v2351
      %v2362 = vmul.f32 %v2352, %v2352
      %v2363 = vmul.f32 %v2353, %v2353
      %v2364 = vmul.f32 %v2354, %v2354
      %v2365 = vmul.f32 %v2355, %v2355
      %v2366 = vmul.f32 %v2356, %v2356
      %v2367 = vsel %vm1254, %v2357, 0.0
      %2368 = vadd.xlane.f32.xlu0 %v2367
      %v2369 = vpop.xlane.xlu0 %2368
      %v2370 = vsel %vm1254, %v2358, 0.0
      %2371 = vadd.xlane.f32.xlu0 %v2370
      %v2372 = vpop.xlane.xlu0 %2371
      %v2373 = vsel %vm1254, %v2359, 0.0
      %2374 = vadd.xlane.f32.xlu0 %v2373
      %v2375 = vpop.xlane.xlu0 %2374
      %v2376 = vsel %vm1254, %v2360, 0.0
      %2377 = vadd.xlane.f32.xlu0 %v2376
      %v2378 = vpop.xlane.xlu0 %2377
      %v2379 = vsel %vm1254, %v2361, 0.0
      %2380 = vadd.xlane.f32.xlu0 %v2379
      %v2381 = vpop.xlane.xlu0 %2380
      %v2382 = vsel %vm1254, %v2362, 0.0
      %2383 = vadd.xlane.f32.xlu0 %v2382
      %v2384 = vpop.xlane.xlu0 %2383
      %v2385 = vsel %vm1254, %v2363, 0.0
      %2386 = vadd.xlane.f32.xlu0 %v2385
      %v2387 = vpop.xlane.xlu0 %2386
      %v2388 = vsel %vm1254, %v2364, 0.0
      %2389 = vadd.xlane.f32.xlu0 %v2388
      %v2390 = vpop.xlane.xlu0 %2389
      %v2391 = vsel %vm1254, %v2365, 0.0
      %2392 = vadd.xlane.f32.xlu0 %v2391
      %v2393 = vpop.xlane.xlu0 %2392
      %v2394 = vsel %vm1254, %v2366, 0.0
      %2395 = vadd.xlane.f32.xlu0 %v2394
      %v2396 = vpop.xlane.xlu0 %2395
      %v2397 = vmul.f32 %v2369, %v1608
      %v2398 = vmul.f32 %v2372, %v1608
      %v2399 = vmul.f32 %v2375, %v1608
      %v2400 = vmul.f32 %v2378, %v1608
      %v2401 = vmul.f32 %v2381, %v1608
      %v2402 = vmul.f32 %v2384, %v1608
      %v2403 = vmul.f32 %v2387, %v1608
      %v2404 = vmul.f32 %v2390, %v1608
      %v2405 = vmul.f32 %v2393, %v1608
      %v2406 = vmul.f32 %v2396, %v1608
      %v2407 = vadd.f32 %v2397, 1e-05
      %v2408 = vadd.f32 %v2398, 1e-05
      %v2409 = vadd.f32 %v2399, 1e-05
      %v2410 = vadd.f32 %v2400, 1e-05
      %v2411 = vadd.f32 %v2401, 1e-05
      %v2412 = vadd.f32 %v2402, 1e-05
      %v2413 = vadd.f32 %v2403, 1e-05
      %v2414 = vadd.f32 %v2404, 1e-05
      %v2415 = vadd.f32 %v2405, 1e-05
      %v2416 = vadd.f32 %v2406, 1e-05
      %v2417 = vrsqrt.pop %v2407
      %v2418 = vmul.f32 %v2417, %v2407
      %v2419 = vmul.f32 %v2418, %v2417
      %v2420 = vmul.f32 0.5, %v2419
      %v2421 = vsub.f32 1.5, %v2420
      %v2422 = vmul.f32 %v2417, %v2421
      %vm2423 = vweird.f32 %v2407
      %vm2424 = vweird.f32 %v2417
      %vm2425 = vmor %vm2423, %vm2424
      %v2426 = vsel %vm2425, %v2417, %v2422
      %v2427 = vrsqrt.pop %v2408
      %v2428 = vmul.f32 %v2427, %v2408
      %v2429 = vmul.f32 %v2428, %v2427
      %v2430 = vmul.f32 0.5, %v2429
      %v2431 = vsub.f32 1.5, %v2430
      %v2432 = vmul.f32 %v2427, %v2431
      %vm2433 = vweird.f32 %v2408
      %vm2434 = vweird.f32 %v2427
      %vm2435 = vmor %vm2433, %vm2434
      %v2436 = vsel %vm2435, %v2427, %v2432
      %v2437 = vrsqrt.pop %v2409
      %v2438 = vmul.f32 %v2437, %v2409
      %v2439 = vmul.f32 %v2438, %v2437
      %v2440 = vmul.f32 0.5, %v2439
      %v2441 = vsub.f32 1.5, %v2440
      %v2442 = vmul.f32 %v2437, %v2441
      %vm2443 = vweird.f32 %v2409
      %vm2444 = vweird.f32 %v2437
      %vm2445 = vmor %vm2443, %vm2444
      %v2446 = vsel %vm2445, %v2437, %v2442
      %v2447 = vrsqrt.pop %v2410
      %v2448 = vmul.f32 %v2447, %v2410
      %v2449 = vmul.f32 %v2448, %v2447
      %v2450 = vmul.f32 0.5, %v2449
      %v2451 = vsub.f32 1.5, %v2450
      %v2452 = vmul.f32 %v2447, %v2451
      %vm2453 = vweird.f32 %v2410
      %vm2454 = vweird.f32 %v2447
      %vm2455 = vmor %vm2453, %vm2454
      %v2456 = vsel %vm2455, %v2447, %v2452
      %v2457 = vrsqrt.pop %v2411
      %v2458 = vmul.f32 %v2457, %v2411
      %v2459 = vmul.f32 %v2458, %v2457
      %v2460 = vmul.f32 0.5, %v2459
      %v2461 = vsub.f32 1.5, %v2460
      %v2462 = vmul.f32 %v2457, %v2461
      %vm2463 = vweird.f32 %v2411
      %vm2464 = vweird.f32 %v2457
      %vm2465 = vmor %vm2463, %vm2464
      %v2466 = vsel %vm2465, %v2457, %v2462
      %v2467 = vrsqrt.pop %v2412
      %v2468 = vmul.f32 %v2467, %v2412
      %v2469 = vmul.f32 %v2468, %v2467
      %v2470 = vmul.f32 0.5, %v2469
      %v2471 = vsub.f32 1.5, %v2470
      %v2472 = vmul.f32 %v2467, %v2471
      %vm2473 = vweird.f32 %v2412
      %vm2474 = vweird.f32 %v2467
      %vm2475 = vmor %vm2473, %vm2474
      %v2476 = vsel %vm2475, %v2467, %v2472
      %v2477 = vrsqrt.pop %v2413
      %v2478 = vmul.f32 %v2477, %v2413
      %v2479 = vmul.f32 %v2478, %v2477
      %v2480 = vmul.f32 0.5, %v2479
      %v2481 = vsub.f32 1.5, %v2480
      %v2482 = vmul.f32 %v2477, %v2481
      %vm2483 = vweird.f32 %v2413
      %vm2484 = vweird.f32 %v2477
      %vm2485 = vmor %vm2483, %vm2484
      %v2486 = vsel %vm2485, %v2477, %v2482
      %v2487 = vrsqrt.pop %v2414
      %v2488 = vmul.f32 %v2487, %v2414
      %v2489 = vmul.f32 %v2488, %v2487
      %v2490 = vmul.f32 0.5, %v2489
      %v2491 = vsub.f32 1.5, %v2490
      %v2492 = vmul.f32 %v2487, %v2491
      %vm2493 = vweird.f32 %v2414
      %vm2494 = vweird.f32 %v2487
      %vm2495 = vmor %vm2493, %vm2494
      %v2496 = vsel %vm2495, %v2487, %v2492
      %v2497 = vrsqrt.pop %v2415
      %v2498 = vmul.f32 %v2497, %v2415
      %v2499 = vmul.f32 %v2498, %v2497
      %v2500 = vmul.f32 0.5, %v2499
      %v2501 = vsub.f32 1.5, %v2500
      %v2502 = vmul.f32 %v2497, %v2501
      %vm2503 = vweird.f32 %v2415
      %vm2504 = vweird.f32 %v2497
      %vm2505 = vmor %vm2503, %vm2504
      %v2506 = vsel %vm2505, %v2497, %v2502
      %v2507 = vrsqrt.pop %v2416
      %v2508 = vmul.f32 %v2507, %v2416
      %v2509 = vmul.f32 %v2508, %v2507
      %v2510 = vmul.f32 0.5, %v2509
      %v2511 = vsub.f32 1.5, %v2510
      %v2512 = vmul.f32 %v2507, %v2511
      %vm2513 = vweird.f32 %v2416
      %vm2514 = vweird.f32 %v2507
      %vm2515 = vmor %vm2513, %vm2514
      %v2516 = vsel %vm2515, %v2507, %v2512
      %v2517 = vmul.f32 %v2347, %v2426
      %v2518 = vmul.f32 %v2348, %v2436
      %v2519 = vmul.f32 %v2349, %v2446
      %v2520 = vmul.f32 %v2350, %v2456
      %v2521 = vmul.f32 %v2351, %v2466
      %v2522 = vmul.f32 %v2352, %v2476
      %v2523 = vmul.f32 %v2353, %v2486
      %v2524 = vmul.f32 %v2354, %v2496
      %v2525 = vmul.f32 %v2355, %v2506
      %v2526 = vmul.f32 %v2356, %v2516
      %v2528 = vperm.slane %v2305, 0
      %v2530 = vmul.f32 %v2517, %v2528
      %v2531 = vmul.f32 %v2518, %v2528
      %v2532 = vmul.f32 %v2519, %v2528
      %v2533 = vmul.f32 %v2520, %v2528
      %v2534 = vmul.f32 %v2521, %v2528
      %v2535 = vmul.f32 %v2522, %v2528
      %v2536 = vmul.f32 %v2523, %v2528
      %v2537 = vmul.f32 %v2524, %v2528
      %v2538 = vmul.f32 %v2525, %v2528
      %v2539 = vmul.f32 %v2526, %v2528
      %v2541 = vperm.slane %v2306, 0
      %v2543 = vadd.f32 %v2530, %v2541
      %v2544 = vadd.f32 %v2531, %v2541
      %v2545 = vadd.f32 %v2532, %v2541
      %v2546 = vadd.f32 %v2533, %v2541
      %v2547 = vadd.f32 %v2534, %v2541
      %v2548 = vadd.f32 %v2535, %v2541
      %v2549 = vadd.f32 %v2536, %v2541
      %v2550 = vadd.f32 %v2537, %v2541
      %v2551 = vadd.f32 %v2538, %v2541
      %v2552 = vadd.f32 %v2539, %v2541
      %v2553 = vlaneseq
      %v2554 = vand.u32 %v2553, 127
      %vm2555 = vcmp.lt.s32.totalorder %v2554, 79
      %v2556 = vpack.c.bf16 %v2544, %v2543
      %v2557 = vpack.c.bf16 %v2546, %v2545
      %v2558 = vpack.c.bf16 %v2548, %v2547
      %v2559 = vpack.c.bf16 %v2550, %v2549
      %v2560 = vpack.c.bf16 %v2552, %v2551
      %v2561 = vld [vmem:[%s13] sm:$0xf]
      %v2562 = vld [vmem:[%s13 + $0x4] sm:$0xf]
      %v2563 = vld [vmem:[%s13 + $0x8] sm:$0xf]
      %v2564 = vld [vmem:[%s13 + $0xc] sm:$0xf]
      %v2565 = vld [vmem:[%s16] sm:$0x1]
      %v2567 = vperm.slane %v2565, 0
      %v2573 = vunpack.c.l.b16 %v2561
      %v2574 = vunpack.c.l.b16 %v2562
      %v2575 = vunpack.c.l.b16 %v2563
      %v2576 = vunpack.c.l.b16 %v2564
      %v2577 = vpack.c.b16 %v2574, %v2573
      %v2578 = vpack.c.b16 %v2576, %v2575
      %v2582 = vsel %vm1254, %v2556, 0
      %v2585 = vsel %vm1254, %v2557, 0
      %v2588 = vsel %vm1254, %v2558, 0
      %v2591 = vsel %vm1254, %v2559, 0
      %v2594 = vsel %vm1254, %v2560, 0
      %2596 = vmatpush.bf16.msra.mxu0 0
      %2597 = vmatpush.bf16.msra.mxu0 0
      %2598 = vmatpush.bf16.msra.mxu0 0
      %2599 = vmatpush.bf16.msra.mxu0 0
      %2600 = vmatpush.bf16.msra.mxu0 0
      %2601 = vmatpush.bf16.msra.mxu0 0
      %2602 = vmatpush.bf16.msra.mxu0 %v2578
      %2603 = vmatpush.bf16.msra.mxu0 %v2577
      %2604 = vmatmul.bf16.gmra.mxu0 %v2582
      %v2605 = vpop.f32.mrf.mxu0
      %v2606 = vadd.f32 %v2567, %v2605
      %v2607 = vpop.f32.mrf.mxu0
      %v2608 = vadd.f32 %v2567, %v2607
      %2609 = vmatmul.bf16.gmra.mxu0 %v2585
      %v2610 = vpop.f32.mrf.mxu0
      %v2611 = vadd.f32 %v2567, %v2610
      %v2612 = vpop.f32.mrf.mxu0
      %v2613 = vadd.f32 %v2567, %v2612
      %2614 = vmatmul.bf16.gmra.mxu0 %v2588
      %v2615 = vpop.f32.mrf.mxu0
      %v2616 = vadd.f32 %v2567, %v2615
      %v2617 = vpop.f32.mrf.mxu0
      %v2618 = vadd.f32 %v2567, %v2617
      %2619 = vmatmul.bf16.gmra.mxu0 %v2591
      %v2620 = vpop.f32.mrf.mxu0
      %v2621 = vadd.f32 %v2567, %v2620
      %v2622 = vpop.f32.mrf.mxu0
      %v2623 = vadd.f32 %v2567, %v2622
      %2624 = vmatmul.bf16.gmra.mxu0 %v2594
      %v2625 = vpop.f32.mrf.mxu0
      %v2626 = vadd.f32 %v2567, %v2625
      %v2627 = vpop.f32.mrf.mxu0
      %v2628 = vadd.f32 %v2567, %v2627
      %2629 = vdwg.mxu0
      %v2630 = vld [vmem:[%s14] sm:$0xf]
      %v2631 = vld [vmem:[%s14 + $0x4] sm:$0xf]
      %v2632 = vld [vmem:[%s14 + $0x8] sm:$0xf]
      %v2633 = vld [vmem:[%s14 + $0xc] sm:$0xf]
      %v2638 = vunpack.c.l.b16 %v2630
      %v2639 = vunpack.c.l.b16 %v2631
      %v2640 = vunpack.c.l.b16 %v2632
      %v2641 = vunpack.c.l.b16 %v2633
      %v2642 = vpack.c.b16 %v2639, %v2638
      %v2643 = vpack.c.b16 %v2641, %v2640
      %2646 = vmatpush.bf16.msra.mxu0 0
      %2647 = vmatpush.bf16.msra.mxu0 0
      %2648 = vmatpush.bf16.msra.mxu0 0
      %2649 = vmatpush.bf16.msra.mxu0 0
      %2650 = vmatpush.bf16.msra.mxu0 0
      %2651 = vmatpush.bf16.msra.mxu0 0
      %2652 = vmatpush.bf16.msra.mxu0 %v2643
      %2653 = vmatpush.bf16.msra.mxu0 %v2642
      %2654 = vmatmul.bf16.gmra.mxu0 %v2582
      %v2655 = vpop.f32.mrf.mxu0
      %v2656 = vadd.f32 0.0, %v2655
      %v2657 = vpop.f32.mrf.mxu0
      %v2658 = vadd.f32 0.0, %v2657
      %2659 = vmatmul.bf16.gmra.mxu0 %v2585
      %v2660 = vpop.f32.mrf.mxu0
      %v2661 = vadd.f32 0.0, %v2660
      %v2662 = vpop.f32.mrf.mxu0
      %v2663 = vadd.f32 0.0, %v2662
      %2664 = vmatmul.bf16.gmra.mxu0 %v2588
      %v2665 = vpop.f32.mrf.mxu0
      %v2666 = vadd.f32 0.0, %v2665
      %v2667 = vpop.f32.mrf.mxu0
      %v2668 = vadd.f32 0.0, %v2667
      %2669 = vmatmul.bf16.gmra.mxu0 %v2591
      %v2670 = vpop.f32.mrf.mxu0
      %v2671 = vadd.f32 0.0, %v2670
      %v2672 = vpop.f32.mrf.mxu0
      %v2673 = vadd.f32 0.0, %v2672
      %2674 = vmatmul.bf16.gmra.mxu0 %v2594
      %v2675 = vpop.f32.mrf.mxu0
      %v2676 = vadd.f32 0.0, %v2675
      %v2677 = vpop.f32.mrf.mxu0
      %v2678 = vadd.f32 0.0, %v2677
      %2679 = vdwg.mxu0
      %v2680 = vld [vmem:[%s15] sm:$0xf]
      %v2681 = vld [vmem:[%s15 + $0x4] sm:$0xf]
      %v2682 = vld [vmem:[%s15 + $0x8] sm:$0xf]
      %v2683 = vld [vmem:[%s15 + $0xc] sm:$0xf]
      %v2688 = vunpack.c.l.b16 %v2680
      %v2689 = vunpack.c.l.b16 %v2681
      %v2690 = vunpack.c.l.b16 %v2682
      %v2691 = vunpack.c.l.b16 %v2683
      %v2692 = vpack.c.b16 %v2689, %v2688
      %v2693 = vpack.c.b16 %v2691, %v2690
      %2696 = vmatpush.bf16.msra.mxu0 0
      %2697 = vmatpush.bf16.msra.mxu0 0
      %2698 = vmatpush.bf16.msra.mxu0 0
      %2699 = vmatpush.bf16.msra.mxu0 0
      %2700 = vmatpush.bf16.msra.mxu0 0
      %2701 = vmatpush.bf16.msra.mxu0 0
      %2702 = vmatpush.bf16.msra.mxu0 %v2693
      %2703 = vmatpush.bf16.msra.mxu0 %v2692
      %2704 = vmatmul.bf16.gmra.mxu0 %v2582
      %v2705 = vpop.f32.mrf.mxu0
      %v2706 = vadd.f32 0.0, %v2705
      %v2707 = vpop.f32.mrf.mxu0
      %v2708 = vadd.f32 0.0, %v2707
      %2709 = vmatmul.bf16.gmra.mxu0 %v2585
      %v2710 = vpop.f32.mrf.mxu0
      %v2711 = vadd.f32 0.0, %v2710
      %v2712 = vpop.f32.mrf.mxu0
      %v2713 = vadd.f32 0.0, %v2712
      %2714 = vmatmul.bf16.gmra.mxu0 %v2588
      %v2715 = vpop.f32.mrf.mxu0
      %v2716 = vadd.f32 0.0, %v2715
      %v2717 = vpop.f32.mrf.mxu0
      %v2718 = vadd.f32 0.0, %v2717
      %2719 = vmatmul.bf16.gmra.mxu0 %v2591
      %v2720 = vpop.f32.mrf.mxu0
      %v2721 = vadd.f32 0.0, %v2720
      %v2722 = vpop.f32.mrf.mxu0
      %v2723 = vadd.f32 0.0, %v2722
      %2724 = vmatmul.bf16.gmra.mxu0 %v2594
      %v2725 = vpop.f32.mrf.mxu0
      %v2726 = vadd.f32 0.0, %v2725
      %v2727 = vpop.f32.mrf.mxu0
      %v2728 = vadd.f32 0.0, %v2727
      %2729 = vdwg.mxu0
      %v2730 = vpack.c.bf16 %v2608, %v2606
      %v2731 = vpack.c.bf16 %v2613, %v2611
      %v2732 = vpack.c.bf16 %v2618, %v2616
      %v2733 = vpack.c.bf16 %v2623, %v2621
      %v2734 = vpack.c.bf16 %v2628, %v2626
      %v2735 = vpack.c.bf16 %v2658, %v2656
      %v2736 = vpack.c.bf16 %v2663, %v2661
      %v2737 = vpack.c.bf16 %v2668, %v2666
      %v2738 = vpack.c.bf16 %v2673, %v2671
      %v2739 = vpack.c.bf16 %v2678, %v2676
      %vm2740 = vcmask 64512
      %v2742 = vsel %vm2740, %v2730, 0
      %v2745 = vsel %vm2740, %v2731, 0
      %v2748 = vsel %vm2740, %v2732, 0
      %v2751 = vsel %vm2740, %v2733, 0
      %v2754 = vsel %vm2740, %v2734, 0
      %v2757 = vsel %vm2740, %v2735, 0
      %v2760 = vsel %vm2740, %v2736, 0
      %v2763 = vsel %vm2740, %v2737, 0
      %v2766 = vsel %vm2740, %v2738, 0
      %v2769 = vsel %vm2740, %v2739, 0
      %2771 = vmatpush.bf16.xpose.msra.mxu0 0
      %2772 = vmatpush.bf16.xpose.msra.mxu0 0
      %2773 = vmatpush.bf16.xpose.msra.mxu0 0
      %2774 = vmatpush.bf16.xpose.msra.mxu0 %v2769
      %2775 = vmatpush.bf16.xpose.msra.mxu0 %v2766
      %2776 = vmatpush.bf16.xpose.msra.mxu0 %v2763
      %2777 = vmatpush.bf16.xpose.msra.mxu0 %v2760
      %2778 = vmatpush.bf16.xpose.msra.mxu0 %v2757
      %2779 = vmatmul.bf16.gmra.mxu0 %v2742
      %v2780 = vpop.f32.mrf.mxu0
      %v2781 = vadd.f32 0.0, %v2780
      %v2782 = vpop.f32.mrf.mxu0
      %v2783 = vadd.f32 0.0, %v2782
      %2784 = vmatmul.bf16.gmra.mxu0 %v2745
      %v2785 = vpop.f32.mrf.mxu0
      %v2786 = vadd.f32 0.0, %v2785
      %v2787 = vpop.f32.mrf.mxu0
      %v2788 = vadd.f32 0.0, %v2787
      %2789 = vmatmul.bf16.gmra.mxu0 %v2748
      %v2790 = vpop.f32.mrf.mxu0
      %v2791 = vadd.f32 0.0, %v2790
      %v2792 = vpop.f32.mrf.mxu0
      %v2793 = vadd.f32 0.0, %v2792
      %2794 = vmatmul.bf16.gmra.mxu0 %v2751
      %v2795 = vpop.f32.mrf.mxu0
      %v2796 = vadd.f32 0.0, %v2795
      %v2797 = vpop.f32.mrf.mxu0
      %v2798 = vadd.f32 0.0, %v2797
      %2799 = vmatmul.bf16.gmra.mxu0 %v2754
      %v2800 = vpop.f32.mrf.mxu0
      %v2801 = vadd.f32 0.0, %v2800
      %v2802 = vpop.f32.mrf.mxu0
      %v2803 = vadd.f32 0.0, %v2802
      %2804 = vdwg.mxu0
      %v2805 = vmul.f32 %v2781, 0.35355338
      %v2806 = vmul.f32 %v2783, 0.35355338
      %v2807 = vmul.f32 %v2786, 0.35355338
      %v2808 = vmul.f32 %v2788, 0.35355338
      %v2809 = vmul.f32 %v2791, 0.35355338
      %v2810 = vmul.f32 %v2793, 0.35355338
      %v2811 = vmul.f32 %v2796, 0.35355338
      %v2812 = vmul.f32 %v2798, 0.35355338
      %v2813 = vmul.f32 %v2801, 0.35355338
      %v2814 = vmul.f32 %v2803, 0.35355338
      %v2815 = vsel %vm2555, %v2805, -1e+30
      %v2816 = vsel %vm2555, %v2806, -1e+30
      %v2817 = vsel %vm2555, %v2807, -1e+30
      %v2818 = vsel %vm2555, %v2808, -1e+30
      %v2819 = vsel %vm2555, %v2809, -1e+30
      %v2820 = vsel %vm2555, %v2810, -1e+30
      %v2821 = vsel %vm2555, %v2811, -1e+30
      %v2822 = vsel %vm2555, %v2812, -1e+30
      %v2823 = vsel %vm2555, %v2813, -1e+30
      %v2824 = vsel %vm2555, %v2814, -1e+30
      %vm2825 = vcmask 654336
      %v2826 = vsel %vm2825, %v2815, -inf
      %2827 = vmax.xlane.f32.xlu0 %v2826
      %v2828 = vpop.xlane.xlu0 %2827
      %v2829 = vsel %vm2825, %v2816, -inf
      %2830 = vmax.xlane.f32.xlu0 %v2829
      %v2831 = vpop.xlane.xlu0 %2830
      %v2832 = vsel %vm2825, %v2817, -inf
      %2833 = vmax.xlane.f32.xlu0 %v2832
      %v2834 = vpop.xlane.xlu0 %2833
      %v2835 = vsel %vm2825, %v2818, -inf
      %2836 = vmax.xlane.f32.xlu0 %v2835
      %v2837 = vpop.xlane.xlu0 %2836
      %v2838 = vsel %vm2825, %v2819, -inf
      %2839 = vmax.xlane.f32.xlu0 %v2838
      %v2840 = vpop.xlane.xlu0 %2839
      %v2841 = vsel %vm2825, %v2820, -inf
      %2842 = vmax.xlane.f32.xlu0 %v2841
      %v2843 = vpop.xlane.xlu0 %2842
      %v2844 = vsel %vm2825, %v2821, -inf
      %2845 = vmax.xlane.f32.xlu0 %v2844
      %v2846 = vpop.xlane.xlu0 %2845
      %v2847 = vsel %vm2825, %v2822, -inf
      %2848 = vmax.xlane.f32.xlu0 %v2847
      %v2849 = vpop.xlane.xlu0 %2848
      %v2850 = vsel %vm2825, %v2823, -inf
      %2851 = vmax.xlane.f32.xlu0 %v2850
      %v2852 = vpop.xlane.xlu0 %2851
      %v2853 = vsel %vm2825, %v2824, -inf
      %2854 = vmax.xlane.f32.xlu0 %v2853
      %v2855 = vpop.xlane.xlu0 %2854
      %v2856 = vsub.f32 %v2815, %v2828
      %v2857 = vsub.f32 %v2816, %v2831
      %v2858 = vsub.f32 %v2817, %v2834
      %v2859 = vsub.f32 %v2818, %v2837
      %v2860 = vsub.f32 %v2819, %v2840
      %v2861 = vsub.f32 %v2820, %v2843
      %v2862 = vsub.f32 %v2821, %v2846
      %v2863 = vsub.f32 %v2822, %v2849
      %v2864 = vsub.f32 %v2823, %v2852
      %v2865 = vsub.f32 %v2824, %v2855
      %v2866 = vmul.f32 %v2856, 1.442695
      %v2867 = vpow.pop %v2866
      %v2868 = vmul.f32 %v2857, 1.442695
      %v2869 = vpow.pop %v2868
      %v2870 = vmul.f32 %v2858, 1.442695
      %v2871 = vpow.pop %v2870
      %v2872 = vmul.f32 %v2859, 1.442695
      %v2873 = vpow.pop %v2872
      %v2874 = vmul.f32 %v2860, 1.442695
      %v2875 = vpow.pop %v2874
      %v2876 = vmul.f32 %v2861, 1.442695
      %v2877 = vpow.pop %v2876
      %v2878 = vmul.f32 %v2862, 1.442695
      %v2879 = vpow.pop %v2878
      %v2880 = vmul.f32 %v2863, 1.442695
      %v2881 = vpow.pop %v2880
      %v2882 = vmul.f32 %v2864, 1.442695
      %v2883 = vpow.pop %v2882
      %v2884 = vmul.f32 %v2865, 1.442695
      %v2885 = vpow.pop %v2884
      %v2886 = vsel %vm2825, %v2867, 0.0
      %2887 = vadd.xlane.f32.xlu0 %v2886
      %v2888 = vpop.xlane.xlu0 %2887
      %v2889 = vsel %vm2825, %v2869, 0.0
      %2890 = vadd.xlane.f32.xlu0 %v2889
      %v2891 = vpop.xlane.xlu0 %2890
      %v2892 = vsel %vm2825, %v2871, 0.0
      %2893 = vadd.xlane.f32.xlu0 %v2892
      %v2894 = vpop.xlane.xlu0 %2893
      %v2895 = vsel %vm2825, %v2873, 0.0
      %2896 = vadd.xlane.f32.xlu0 %v2895
      %v2897 = vpop.xlane.xlu0 %2896
      %v2898 = vsel %vm2825, %v2875, 0.0
      %2899 = vadd.xlane.f32.xlu0 %v2898
      %v2900 = vpop.xlane.xlu0 %2899
      %v2901 = vsel %vm2825, %v2877, 0.0
      %2902 = vadd.xlane.f32.xlu0 %v2901
      %v2903 = vpop.xlane.xlu0 %2902
      %v2904 = vsel %vm2825, %v2879, 0.0
      %2905 = vadd.xlane.f32.xlu0 %v2904
      %v2906 = vpop.xlane.xlu0 %2905
      %v2907 = vsel %vm2825, %v2881, 0.0
      %2908 = vadd.xlane.f32.xlu0 %v2907
      %v2909 = vpop.xlane.xlu0 %2908
      %v2910 = vsel %vm2825, %v2883, 0.0
      %2911 = vadd.xlane.f32.xlu0 %v2910
      %v2912 = vpop.xlane.xlu0 %2911
      %v2913 = vsel %vm2825, %v2885, 0.0
      %2914 = vadd.xlane.f32.xlu0 %v2913
      %v2915 = vpop.xlane.xlu0 %2914
      %v2916 = vpack.c.bf16 %v2708, %v2706
      %v2917 = vpack.c.bf16 %v2713, %v2711
      %v2918 = vpack.c.bf16 %v2718, %v2716
      %v2919 = vpack.c.bf16 %v2723, %v2721
      %v2920 = vpack.c.bf16 %v2728, %v2726
      %v2921 = vpack.c.bf16 %v2869, %v2867
      %v2922 = vpack.c.bf16 %v2873, %v2871
      %v2923 = vpack.c.bf16 %v2877, %v2875
      %v2924 = vpack.c.bf16 %v2881, %v2879
      %v2925 = vpack.c.bf16 %v2885, %v2883
      %v2927 = vsel %vm2825, %v2921, 0
      %v2930 = vsel %vm2825, %v2922, 0
      %v2933 = vsel %vm2825, %v2923, 0
      %v2936 = vsel %vm2825, %v2924, 0
      %v2939 = vsel %vm2825, %v2925, 0
      %2941 = vmatpush.bf16.msra.mxu0 0
      %2942 = vmatpush.bf16.msra.mxu0 0
      %2943 = vmatpush.bf16.msra.mxu0 0
      %2944 = vmatpush.bf16.msra.mxu0 %v2920
      %2945 = vmatpush.bf16.msra.mxu0 %v2919
      %2946 = vmatpush.bf16.msra.mxu0 %v2918
      %2947 = vmatpush.bf16.msra.mxu0 %v2917
      %2948 = vmatpush.bf16.msra.mxu0 %v2916
      %2949 = vmatmul.bf16.gmra.mxu0 %v2927
      %v2950 = vpop.f32.mrf.mxu0
      %v2951 = vadd.f32 0.0, %v2950
      %v2952 = vpop.f32.mrf.mxu0
      %v2953 = vadd.f32 0.0, %v2952
      %2954 = vmatmul.bf16.gmra.mxu0 %v2930
      %v2955 = vpop.f32.mrf.mxu0
      %v2956 = vadd.f32 0.0, %v2955
      %v2957 = vpop.f32.mrf.mxu0
      %v2958 = vadd.f32 0.0, %v2957
      %2959 = vmatmul.bf16.gmra.mxu0 %v2933
      %v2960 = vpop.f32.mrf.mxu0
      %v2961 = vadd.f32 0.0, %v2960
      %v2962 = vpop.f32.mrf.mxu0
      %v2963 = vadd.f32 0.0, %v2962
      %2964 = vmatmul.bf16.gmra.mxu0 %v2936
      %v2965 = vpop.f32.mrf.mxu0
      %v2966 = vadd.f32 0.0, %v2965
      %v2967 = vpop.f32.mrf.mxu0
      %v2968 = vadd.f32 0.0, %v2967
      %2969 = vmatmul.bf16.gmra.mxu0 %v2939
      %v2970 = vpop.f32.mrf.mxu0
      %v2971 = vadd.f32 0.0, %v2970
      %v2972 = vpop.f32.mrf.mxu0
      %v2973 = vadd.f32 0.0, %v2972
      %2974 = vdwg.mxu0
      %v2975 = vrcp.pop %v2888
      %v2976 = vmul.f32 %v2888, %v2975
      %v2977 = vsub.f32 1.0, %v2976
      %v2978 = vmul.f32 %v2975, %v2977
      %v2979 = vadd.f32 %v2975, %v2978
      %vm2980 = vweird.f32 %v2888
      %vm2981 = vweird.f32 %v2975
      %vm2982 = vmor %vm2980, %vm2981
      %v2983 = vsel %vm2982, %v2975, %v2979
      %v2984 = vand.u32 2147483647, %v2888
      %vm2985 = vcmp.eq.f32.partialorder %v2984, 8.507059e+37
      %v2986 = vand.u32 %v2888, 2147483648
      %v2987 = vor.u32 1.1754944e-38, %v2986
      %v2988 = vsel %vm2985, %v2987, %v2983
      %v2989 = vmul.f32 1.0, %v2988
      %v2990 = vrcp.pop %v2891
      %v2991 = vmul.f32 %v2891, %v2990
      %v2992 = vsub.f32 1.0, %v2991
      %v2993 = vmul.f32 %v2990, %v2992
      %v2994 = vadd.f32 %v2990, %v2993
      %vm2995 = vweird.f32 %v2891
      %vm2996 = vweird.f32 %v2990
      %vm2997 = vmor %vm2995, %vm2996
      %v2998 = vsel %vm2997, %v2990, %v2994
      %v2999 = vand.u32 2147483647, %v2891
      %vm3000 = vcmp.eq.f32.partialorder %v2999, 8.507059e+37
      %v3001 = vand.u32 %v2891, 2147483648
      %v3002 = vor.u32 1.1754944e-38, %v3001
      %v3003 = vsel %vm3000, %v3002, %v2998
      %v3004 = vmul.f32 1.0, %v3003
      %v3005 = vrcp.pop %v2894
      %v3006 = vmul.f32 %v2894, %v3005
      %v3007 = vsub.f32 1.0, %v3006
      %v3008 = vmul.f32 %v3005, %v3007
      %v3009 = vadd.f32 %v3005, %v3008
      %vm3010 = vweird.f32 %v2894
      %vm3011 = vweird.f32 %v3005
      %vm3012 = vmor %vm3010, %vm3011
      %v3013 = vsel %vm3012, %v3005, %v3009
      %v3014 = vand.u32 2147483647, %v2894
      %vm3015 = vcmp.eq.f32.partialorder %v3014, 8.507059e+37
      %v3016 = vand.u32 %v2894, 2147483648
      %v3017 = vor.u32 1.1754944e-38, %v3016
      %v3018 = vsel %vm3015, %v3017, %v3013
      %v3019 = vmul.f32 1.0, %v3018
      %v3020 = vrcp.pop %v2897
      %v3021 = vmul.f32 %v2897, %v3020
      %v3022 = vsub.f32 1.0, %v3021
      %v3023 = vmul.f32 %v3020, %v3022
      %v3024 = vadd.f32 %v3020, %v3023
      %vm3025 = vweird.f32 %v2897
      %vm3026 = vweird.f32 %v3020
      %vm3027 = vmor %vm3025, %vm3026
      %v3028 = vsel %vm3027, %v3020, %v3024
      %v3029 = vand.u32 2147483647, %v2897
      %vm3030 = vcmp.eq.f32.partialorder %v3029, 8.507059e+37
      %v3031 = vand.u32 %v2897, 2147483648
      %v3032 = vor.u32 1.1754944e-38, %v3031
      %v3033 = vsel %vm3030, %v3032, %v3028
      %v3034 = vmul.f32 1.0, %v3033
      %v3035 = vrcp.pop %v2900
      %v3036 = vmul.f32 %v2900, %v3035
      %v3037 = vsub.f32 1.0, %v3036
      %v3038 = vmul.f32 %v3035, %v3037
      %v3039 = vadd.f32 %v3035, %v3038
      %vm3040 = vweird.f32 %v2900
      %vm3041 = vweird.f32 %v3035
      %vm3042 = vmor %vm3040, %vm3041
      %v3043 = vsel %vm3042, %v3035, %v3039
      %v3044 = vand.u32 2147483647, %v2900
      %vm3045 = vcmp.eq.f32.partialorder %v3044, 8.507059e+37
      %v3046 = vand.u32 %v2900, 2147483648
      %v3047 = vor.u32 1.1754944e-38, %v3046
      %v3048 = vsel %vm3045, %v3047, %v3043
      %v3049 = vmul.f32 1.0, %v3048
      %v3050 = vrcp.pop %v2903
      %v3051 = vmul.f32 %v2903, %v3050
      %v3052 = vsub.f32 1.0, %v3051
      %v3053 = vmul.f32 %v3050, %v3052
      %v3054 = vadd.f32 %v3050, %v3053
      %vm3055 = vweird.f32 %v2903
      %vm3056 = vweird.f32 %v3050
      %vm3057 = vmor %vm3055, %vm3056
      %v3058 = vsel %vm3057, %v3050, %v3054
      %v3059 = vand.u32 2147483647, %v2903
      %vm3060 = vcmp.eq.f32.partialorder %v3059, 8.507059e+37
      %v3061 = vand.u32 %v2903, 2147483648
      %v3062 = vor.u32 1.1754944e-38, %v3061
      %v3063 = vsel %vm3060, %v3062, %v3058
      %v3064 = vmul.f32 1.0, %v3063
      %v3065 = vrcp.pop %v2906
      %v3066 = vmul.f32 %v2906, %v3065
      %v3067 = vsub.f32 1.0, %v3066
      %v3068 = vmul.f32 %v3065, %v3067
      %v3069 = vadd.f32 %v3065, %v3068
      %vm3070 = vweird.f32 %v2906
      %vm3071 = vweird.f32 %v3065
      %vm3072 = vmor %vm3070, %vm3071
      %v3073 = vsel %vm3072, %v3065, %v3069
      %v3074 = vand.u32 2147483647, %v2906
      %vm3075 = vcmp.eq.f32.partialorder %v3074, 8.507059e+37
      %v3076 = vand.u32 %v2906, 2147483648
      %v3077 = vor.u32 1.1754944e-38, %v3076
      %v3078 = vsel %vm3075, %v3077, %v3073
      %v3079 = vmul.f32 1.0, %v3078
      %v3080 = vrcp.pop %v2909
      %v3081 = vmul.f32 %v2909, %v3080
      %v3082 = vsub.f32 1.0, %v3081
      %v3083 = vmul.f32 %v3080, %v3082
      %v3084 = vadd.f32 %v3080, %v3083
      %vm3085 = vweird.f32 %v2909
      %vm3086 = vweird.f32 %v3080
      %vm3087 = vmor %vm3085, %vm3086
      %v3088 = vsel %vm3087, %v3080, %v3084
      %v3089 = vand.u32 2147483647, %v2909
      %vm3090 = vcmp.eq.f32.partialorder %v3089, 8.507059e+37
      %v3091 = vand.u32 %v2909, 2147483648
      %v3092 = vor.u32 1.1754944e-38, %v3091
      %v3093 = vsel %vm3090, %v3092, %v3088
      %v3094 = vmul.f32 1.0, %v3093
      %v3095 = vrcp.pop %v2912
      %v3096 = vmul.f32 %v2912, %v3095
      %v3097 = vsub.f32 1.0, %v3096
      %v3098 = vmul.f32 %v3095, %v3097
      %v3099 = vadd.f32 %v3095, %v3098
      %vm3100 = vweird.f32 %v2912
      %vm3101 = vweird.f32 %v3095
      %vm3102 = vmor %vm3100, %vm3101
      %v3103 = vsel %vm3102, %v3095, %v3099
      %v3104 = vand.u32 2147483647, %v2912
      %vm3105 = vcmp.eq.f32.partialorder %v3104, 8.507059e+37
      %v3106 = vand.u32 %v2912, 2147483648
      %v3107 = vor.u32 1.1754944e-38, %v3106
      %v3108 = vsel %vm3105, %v3107, %v3103
      %v3109 = vmul.f32 1.0, %v3108
      %v3110 = vrcp.pop %v2915
      %v3111 = vmul.f32 %v2915, %v3110
      %v3112 = vsub.f32 1.0, %v3111
      %v3113 = vmul.f32 %v3110, %v3112
      %v3114 = vadd.f32 %v3110, %v3113
      %vm3115 = vweird.f32 %v2915
      %vm3116 = vweird.f32 %v3110
      %vm3117 = vmor %vm3115, %vm3116
      %v3118 = vsel %vm3117, %v3110, %v3114
      %v3119 = vand.u32 2147483647, %v2915
      %vm3120 = vcmp.eq.f32.partialorder %v3119, 8.507059e+37
      %v3121 = vand.u32 %v2915, 2147483648
      %v3122 = vor.u32 1.1754944e-38, %v3121
      %v3123 = vsel %vm3120, %v3122, %v3118
      %v3124 = vmul.f32 1.0, %v3123
      %v3125 = vmul.f32 %v2951, %v2989
      %v3126 = vmul.f32 %v2953, %v3004
      %v3127 = vmul.f32 %v2956, %v3019
      %v3128 = vmul.f32 %v2958, %v3034
      %v3129 = vmul.f32 %v2961, %v3049
      %v3130 = vmul.f32 %v2963, %v3064
      %v3131 = vmul.f32 %v2966, %v3079
      %v3132 = vmul.f32 %v2968, %v3094
      %v3133 = vmul.f32 %v2971, %v3109
      %v3134 = vmul.f32 %v2973, %v3124
      %v3135 = vld [vmem:[%s17] sm:$0xf]
      %v3136 = vpack.c.bf16 %v3126, %v3125
      %v3137 = vpack.c.bf16 %v3128, %v3127
      %v3138 = vpack.c.bf16 %v3130, %v3129
      %v3139 = vpack.c.bf16 %v3132, %v3131
      %v3140 = vpack.c.bf16 %v3134, %v3133
      %s3141 = scalar_lea.vmem %s13, 16
      %v3142 = vld [vmem:[%s3141] sm:$0xf]
      %v3143 = vld [vmem:[%s3141 + $0x4] sm:$0xf]
      %v3144 = vld [vmem:[%s3141 + $0x8] sm:$0xf]
      %v3145 = vld [vmem:[%s3141 + $0xc] sm:$0xf]
      %s3146 = scalar_lea.vmem %s16, 1
      %v3147 = vld [vmem:[%s3146] sm:$0x1]
      %v3149 = vperm.slane %v3147, 0
      %v3155 = vunpack.c.l.b16 %v3142
      %v3156 = vunpack.c.l.b16 %v3143
      %v3157 = vunpack.c.l.b16 %v3144
      %v3158 = vunpack.c.l.b16 %v3145
      %v3159 = vpack.c.b16 %v3156, %v3155
      %v3160 = vpack.c.b16 %v3158, %v3157
      %3163 = vmatpush.bf16.msra.mxu0 0
      %3164 = vmatpush.bf16.msra.mxu0 0
      %3165 = vmatpush.bf16.msra.mxu0 0
      %3166 = vmatpush.bf16.msra.mxu0 0
      %3167 = vmatpush.bf16.msra.mxu0 0
      %3168 = vmatpush.bf16.msra.mxu0 0
      %3169 = vmatpush.bf16.msra.mxu0 %v3160
      %3170 = vmatpush.bf16.msra.mxu0 %v3159
      %3171 = vmatmul.bf16.gmra.mxu0 %v2582
      %v3172 = vpop.f32.mrf.mxu0
      %v3173 = vadd.f32 %v3149, %v3172
      %v3174 = vpop.f32.mrf.mxu0
      %v3175 = vadd.f32 %v3149, %v3174
      %3176 = vmatmul.bf16.gmra.mxu0 %v2585
      %v3177 = vpop.f32.mrf.mxu0
      %v3178 = vadd.f32 %v3149, %v3177
      %v3179 = vpop.f32.mrf.mxu0
      %v3180 = vadd.f32 %v3149, %v3179
      %3181 = vmatmul.bf16.gmra.mxu0 %v2588
      %v3182 = vpop.f32.mrf.mxu0
      %v3183 = vadd.f32 %v3149, %v3182
      %v3184 = vpop.f32.mrf.mxu0
      %v3185 = vadd.f32 %v3149, %v3184
      %3186 = vmatmul.bf16.gmra.mxu0 %v2591
      %v3187 = vpop.f32.mrf.mxu0
      %v3188 = vadd.f32 %v3149, %v3187
      %v3189 = vpop.f32.mrf.mxu0
      %v3190 = vadd.f32 %v3149, %v3189
      %3191 = vmatmul.bf16.gmra.mxu0 %v2594
      %v3192 = vpop.f32.mrf.mxu0
      %v3193 = vadd.f32 %v3149, %v3192
      %v3194 = vpop.f32.mrf.mxu0
      %v3195 = vadd.f32 %v3149, %v3194
      %3196 = vdwg.mxu0
      %s3197 = scalar_lea.vmem %s14, 16
      %v3198 = vld [vmem:[%s3197] sm:$0xf]
      %v3199 = vld [vmem:[%s3197 + $0x4] sm:$0xf]
      %v3200 = vld [vmem:[%s3197 + $0x8] sm:$0xf]
      %v3201 = vld [vmem:[%s3197 + $0xc] sm:$0xf]
      %v3206 = vunpack.c.l.b16 %v3198
      %v3207 = vunpack.c.l.b16 %v3199
      %v3208 = vunpack.c.l.b16 %v3200
      %v3209 = vunpack.c.l.b16 %v3201
      %v3210 = vpack.c.b16 %v3207, %v3206
      %v3211 = vpack.c.b16 %v3209, %v3208
      %3214 = vmatpush.bf16.msra.mxu0 0
      %3215 = vmatpush.bf16.msra.mxu0 0
      %3216 = vmatpush.bf16.msra.mxu0 0
      %3217 = vmatpush.bf16.msra.mxu0 0
      %3218 = vmatpush.bf16.msra.mxu0 0
      %3219 = vmatpush.bf16.msra.mxu0 0
      %3220 = vmatpush.bf16.msra.mxu0 %v3211
      %3221 = vmatpush.bf16.msra.mxu0 %v3210
      %3222 = vmatmul.bf16.gmra.mxu0 %v2582
      %v3223 = vpop.f32.mrf.mxu0
      %v3224 = vadd.f32 0.0, %v3223
      %v3225 = vpop.f32.mrf.mxu0
      %v3226 = vadd.f32 0.0, %v3225
      %3227 = vmatmul.bf16.gmra.mxu0 %v2585
      %v3228 = vpop.f32.mrf.mxu0
      %v3229 = vadd.f32 0.0, %v3228
      %v3230 = vpop.f32.mrf.mxu0
      %v3231 = vadd.f32 0.0, %v3230
      %3232 = vmatmul.bf16.gmra.mxu0 %v2588
      %v3233 = vpop.f32.mrf.mxu0
      %v3234 = vadd.f32 0.0, %v3233
      %v3235 = vpop.f32.mrf.mxu0
      %v3236 = vadd.f32 0.0, %v3235
      %3237 = vmatmul.bf16.gmra.mxu0 %v2591
      %v3238 = vpop.f32.mrf.mxu0
      %v3239 = vadd.f32 0.0, %v3238
      %v3240 = vpop.f32.mrf.mxu0
      %v3241 = vadd.f32 0.0, %v3240
      %3242 = vmatmul.bf16.gmra.mxu0 %v2594
      %v3243 = vpop.f32.mrf.mxu0
      %v3244 = vadd.f32 0.0, %v3243
      %v3245 = vpop.f32.mrf.mxu0
      %v3246 = vadd.f32 0.0, %v3245
      %3247 = vdwg.mxu0
      %s3248 = scalar_lea.vmem %s15, 16
      %v3249 = vld [vmem:[%s3248] sm:$0xf]
      %v3250 = vld [vmem:[%s3248 + $0x4] sm:$0xf]
      %v3251 = vld [vmem:[%s3248 + $0x8] sm:$0xf]
      %v3252 = vld [vmem:[%s3248 + $0xc] sm:$0xf]
      %v3257 = vunpack.c.l.b16 %v3249
      %v3258 = vunpack.c.l.b16 %v3250
      %v3259 = vunpack.c.l.b16 %v3251
      %v3260 = vunpack.c.l.b16 %v3252
      %v3261 = vpack.c.b16 %v3258, %v3257
      %v3262 = vpack.c.b16 %v3260, %v3259
      %3265 = vmatpush.bf16.msra.mxu0 0
      %3266 = vmatpush.bf16.msra.mxu0 0
      %3267 = vmatpush.bf16.msra.mxu0 0
      %3268 = vmatpush.bf16.msra.mxu0 0
      %3269 = vmatpush.bf16.msra.mxu0 0
      %3270 = vmatpush.bf16.msra.mxu0 0
      %3271 = vmatpush.bf16.msra.mxu0 %v3262
      %3272 = vmatpush.bf16.msra.mxu0 %v3261
      %3273 = vmatmul.bf16.gmra.mxu0 %v2582
      %v3274 = vpop.f32.mrf.mxu0
      %v3275 = vadd.f32 0.0, %v3274
      %v3276 = vpop.f32.mrf.mxu0
      %v3277 = vadd.f32 0.0, %v3276
      %3278 = vmatmul.bf16.gmra.mxu0 %v2585
      %v3279 = vpop.f32.mrf.mxu0
      %v3280 = vadd.f32 0.0, %v3279
      %v3281 = vpop.f32.mrf.mxu0
      %v3282 = vadd.f32 0.0, %v3281
      %3283 = vmatmul.bf16.gmra.mxu0 %v2588
      %v3284 = vpop.f32.mrf.mxu0
      %v3285 = vadd.f32 0.0, %v3284
      %v3286 = vpop.f32.mrf.mxu0
      %v3287 = vadd.f32 0.0, %v3286
      %3288 = vmatmul.bf16.gmra.mxu0 %v2591
      %v3289 = vpop.f32.mrf.mxu0
      %v3290 = vadd.f32 0.0, %v3289
      %v3291 = vpop.f32.mrf.mxu0
      %v3292 = vadd.f32 0.0, %v3291
      %3293 = vmatmul.bf16.gmra.mxu0 %v2594
      %v3294 = vpop.f32.mrf.mxu0
      %v3295 = vadd.f32 0.0, %v3294
      %v3296 = vpop.f32.mrf.mxu0
      %v3297 = vadd.f32 0.0, %v3296
      %3298 = vdwg.mxu0
      %v3299 = vpack.c.bf16 %v3175, %v3173
      %v3300 = vpack.c.bf16 %v3180, %v3178
      %v3301 = vpack.c.bf16 %v3185, %v3183
      %v3302 = vpack.c.bf16 %v3190, %v3188
      %v3303 = vpack.c.bf16 %v3195, %v3193
      %v3304 = vpack.c.bf16 %v3226, %v3224
      %v3305 = vpack.c.bf16 %v3231, %v3229
      %v3306 = vpack.c.bf16 %v3236, %v3234
      %v3307 = vpack.c.bf16 %v3241, %v3239
      %v3308 = vpack.c.bf16 %v3246, %v3244
      %v3310 = vsel %vm2740, %v3299, 0
      %v3313 = vsel %vm2740, %v3300, 0
      %v3316 = vsel %vm2740, %v3301, 0
      %v3319 = vsel %vm2740, %v3302, 0
      %v3322 = vsel %vm2740, %v3303, 0
      %v3325 = vsel %vm2740, %v3304, 0
      %v3328 = vsel %vm2740, %v3305, 0
      %v3331 = vsel %vm2740, %v3306, 0
      %v3334 = vsel %vm2740, %v3307, 0
      %v3337 = vsel %vm2740, %v3308, 0
      %3339 = vmatpush.bf16.xpose.msra.mxu0 0
      %3340 = vmatpush.bf16.xpose.msra.mxu0 0
      %3341 = vmatpush.bf16.xpose.msra.mxu0 0
      %3342 = vmatpush.bf16.xpose.msra.mxu0 %v3337
      %3343 = vmatpush.bf16.xpose.msra.mxu0 %v3334
      %3344 = vmatpush.bf16.xpose.msra.mxu0 %v3331
      %3345 = vmatpush.bf16.xpose.msra.mxu0 %v3328
      %3346 = vmatpush.bf16.xpose.msra.mxu0 %v3325
      %3347 = vmatmul.bf16.gmra.mxu0 %v3310
      %v3348 = vpop.f32.mrf.mxu0
      %v3349 = vadd.f32 0.0, %v3348
      %v3350 = vpop.f32.mrf.mxu0
      %v3351 = vadd.f32 0.0, %v3350
      %3352 = vmatmul.bf16.gmra.mxu0 %v3313
      %v3353 = vpop.f32.mrf.mxu0
      %v3354 = vadd.f32 0.0, %v3353
      %v3355 = vpop.f32.mrf.mxu0
      %v3356 = vadd.f32 0.0, %v3355
      %3357 = vmatmul.bf16.gmra.mxu0 %v3316
      %v3358 = vpop.f32.mrf.mxu0
      %v3359 = vadd.f32 0.0, %v3358
      %v3360 = vpop.f32.mrf.mxu0
      %v3361 = vadd.f32 0.0, %v3360
      %3362 = vmatmul.bf16.gmra.mxu0 %v3319
      %v3363 = vpop.f32.mrf.mxu0
      %v3364 = vadd.f32 0.0, %v3363
      %v3365 = vpop.f32.mrf.mxu0
      %v3366 = vadd.f32 0.0, %v3365
      %3367 = vmatmul.bf16.gmra.mxu0 %v3322
      %v3368 = vpop.f32.mrf.mxu0
      %v3369 = vadd.f32 0.0, %v3368
      %v3370 = vpop.f32.mrf.mxu0
      %v3371 = vadd.f32 0.0, %v3370
      %3372 = vdwg.mxu0
      %v3373 = vmul.f32 %v3349, 0.35355338
      %v3374 = vmul.f32 %v3351, 0.35355338
      %v3375 = vmul.f32 %v3354, 0.35355338
      %v3376 = vmul.f32 %v3356, 0.35355338
      %v3377 = vmul.f32 %v3359, 0.35355338
      %v3378 = vmul.f32 %v3361, 0.35355338
      %v3379 = vmul.f32 %v3364, 0.35355338
      %v3380 = vmul.f32 %v3366, 0.35355338
      %v3381 = vmul.f32 %v3369, 0.35355338
      %v3382 = vmul.f32 %v3371, 0.35355338
      %v3383 = vsel %vm2555, %v3373, -1e+30
      %v3384 = vsel %vm2555, %v3374, -1e+30
      %v3385 = vsel %vm2555, %v3375, -1e+30
      %v3386 = vsel %vm2555, %v3376, -1e+30
      %v3387 = vsel %vm2555, %v3377, -1e+30
      %v3388 = vsel %vm2555, %v3378, -1e+30
      %v3389 = vsel %vm2555, %v3379, -1e+30
      %v3390 = vsel %vm2555, %v3380, -1e+30
      %v3391 = vsel %vm2555, %v3381, -1e+30
      %v3392 = vsel %vm2555, %v3382, -1e+30
      %v3393 = vsel %vm2825, %v3383, -inf
      %3394 = vmax.xlane.f32.xlu0 %v3393
      %v3395 = vpop.xlane.xlu0 %3394
      %v3396 = vsel %vm2825, %v3384, -inf
      %3397 = vmax.xlane.f32.xlu0 %v3396
      %v3398 = vpop.xlane.xlu0 %3397
      %v3399 = vsel %vm2825, %v3385, -inf
      %3400 = vmax.xlane.f32.xlu0 %v3399
      %v3401 = vpop.xlane.xlu0 %3400
      %v3402 = vsel %vm2825, %v3386, -inf
      %3403 = vmax.xlane.f32.xlu0 %v3402
      %v3404 = vpop.xlane.xlu0 %3403
      %v3405 = vsel %vm2825, %v3387, -inf
      %3406 = vmax.xlane.f32.xlu0 %v3405
      %v3407 = vpop.xlane.xlu0 %3406
      %v3408 = vsel %vm2825, %v3388, -inf
      %3409 = vmax.xlane.f32.xlu0 %v3408
      %v3410 = vpop.xlane.xlu0 %3409
      %v3411 = vsel %vm2825, %v3389, -inf
      %3412 = vmax.xlane.f32.xlu0 %v3411
      %v3413 = vpop.xlane.xlu0 %3412
      %v3414 = vsel %vm2825, %v3390, -inf
      %3415 = vmax.xlane.f32.xlu0 %v3414
      %v3416 = vpop.xlane.xlu0 %3415
      %v3417 = vsel %vm2825, %v3391, -inf
      %3418 = vmax.xlane.f32.xlu0 %v3417
      %v3419 = vpop.xlane.xlu0 %3418
      %v3420 = vsel %vm2825, %v3392, -inf
      %3421 = vmax.xlane.f32.xlu0 %v3420
      %v3422 = vpop.xlane.xlu0 %3421
      %v3423 = vsub.f32 %v3383, %v3395
      %v3424 = vsub.f32 %v3384, %v3398
      %v3425 = vsub.f32 %v3385, %v3401
      %v3426 = vsub.f32 %v3386, %v3404
      %v3427 = vsub.f32 %v3387, %v3407
      %v3428 = vsub.f32 %v3388, %v3410
      %v3429 = vsub.f32 %v3389, %v3413
      %v3430 = vsub.f32 %v3390, %v3416
      %v3431 = vsub.f32 %v3391, %v3419
      %v3432 = vsub.f32 %v3392, %v3422
      %v3433 = vmul.f32 %v3423, 1.442695
      %v3434 = vpow.pop %v3433
      %v3435 = vmul.f32 %v3424, 1.442695
      %v3436 = vpow.pop %v3435
      %v3437 = vmul.f32 %v3425, 1.442695
      %v3438 = vpow.pop %v3437
      %v3439 = vmul.f32 %v3426, 1.442695
      %v3440 = vpow.pop %v3439
      %v3441 = vmul.f32 %v3427, 1.442695
      %v3442 = vpow.pop %v3441
      %v3443 = vmul.f32 %v3428, 1.442695
      %v3444 = vpow.pop %v3443
      %v3445 = vmul.f32 %v3429, 1.442695
      %v3446 = vpow.pop %v3445
      %v3447 = vmul.f32 %v3430, 1.442695
      %v3448 = vpow.pop %v3447
      %v3449 = vmul.f32 %v3431, 1.442695
      %v3450 = vpow.pop %v3449
      %v3451 = vmul.f32 %v3432, 1.442695
      %v3452 = vpow.pop %v3451
      %v3453 = vsel %vm2825, %v3434, 0.0
      %3454 = vadd.xlane.f32.xlu0 %v3453
      %v3455 = vpop.xlane.xlu0 %3454
      %v3456 = vsel %vm2825, %v3436, 0.0
      %3457 = vadd.xlane.f32.xlu0 %v3456
      %v3458 = vpop.xlane.xlu0 %3457
      %v3459 = vsel %vm2825, %v3438, 0.0
      %3460 = vadd.xlane.f32.xlu0 %v3459
      %v3461 = vpop.xlane.xlu0 %3460
      %v3462 = vsel %vm2825, %v3440, 0.0
      %3463 = vadd.xlane.f32.xlu0 %v3462
      %v3464 = vpop.xlane.xlu0 %3463
      %v3465 = vsel %vm2825, %v3442, 0.0
      %3466 = vadd.xlane.f32.xlu0 %v3465
      %v3467 = vpop.xlane.xlu0 %3466
      %v3468 = vsel %vm2825, %v3444, 0.0
      %3469 = vadd.xlane.f32.xlu0 %v3468
      %v3470 = vpop.xlane.xlu0 %3469
      %v3471 = vsel %vm2825, %v3446, 0.0
      %3472 = vadd.xlane.f32.xlu0 %v3471
      %v3473 = vpop.xlane.xlu0 %3472
      %v3474 = vsel %vm2825, %v3448, 0.0
      %3475 = vadd.xlane.f32.xlu0 %v3474
      %v3476 = vpop.xlane.xlu0 %3475
      %v3477 = vsel %vm2825, %v3450, 0.0
      %3478 = vadd.xlane.f32.xlu0 %v3477
      %v3479 = vpop.xlane.xlu0 %3478
      %v3480 = vsel %vm2825, %v3452, 0.0
      %3481 = vadd.xlane.f32.xlu0 %v3480
      %v3482 = vpop.xlane.xlu0 %3481
      %v3483 = vpack.c.bf16 %v3277, %v3275
      %v3484 = vpack.c.bf16 %v3282, %v3280
      %v3485 = vpack.c.bf16 %v3287, %v3285
      %v3486 = vpack.c.bf16 %v3292, %v3290
      %v3487 = vpack.c.bf16 %v3297, %v3295
      %v3488 = vpack.c.bf16 %v3436, %v3434
      %v3489 = vpack.c.bf16 %v3440, %v3438
      %v3490 = vpack.c.bf16 %v3444, %v3442
      %v3491 = vpack.c.bf16 %v3448, %v3446
      %v3492 = vpack.c.bf16 %v3452, %v3450
      %v3494 = vsel %vm2825, %v3488, 0
      %v3497 = vsel %vm2825, %v3489, 0
      %v3500 = vsel %vm2825, %v3490, 0
      %v3503 = vsel %vm2825, %v3491, 0
      %v3506 = vsel %vm2825, %v3492, 0
      %3508 = vmatpush.bf16.msra.mxu0 0
      %3509 = vmatpush.bf16.msra.mxu0 0
      %3510 = vmatpush.bf16.msra.mxu0 0
      %3511 = vmatpush.bf16.msra.mxu0 %v3487
      %3512 = vmatpush.bf16.msra.mxu0 %v3486
      %3513 = vmatpush.bf16.msra.mxu0 %v3485
      %3514 = vmatpush.bf16.msra.mxu0 %v3484
      %3515 = vmatpush.bf16.msra.mxu0 %v3483
      %3516 = vmatmul.bf16.gmra.mxu0 %v3494
      %v3517 = vpop.f32.mrf.mxu0
      %v3518 = vadd.f32 0.0, %v3517
      %v3519 = vpop.f32.mrf.mxu0
      %v3520 = vadd.f32 0.0, %v3519
      %3521 = vmatmul.bf16.gmra.mxu0 %v3497
      %v3522 = vpop.f32.mrf.mxu0
      %v3523 = vadd.f32 0.0, %v3522
      %v3524 = vpop.f32.mrf.mxu0
      %v3525 = vadd.f32 0.0, %v3524
      %3526 = vmatmul.bf16.gmra.mxu0 %v3500
      %v3527 = vpop.f32.mrf.mxu0
      %v3528 = vadd.f32 0.0, %v3527
      %v3529 = vpop.f32.mrf.mxu0
      %v3530 = vadd.f32 0.0, %v3529
      %3531 = vmatmul.bf16.gmra.mxu0 %v3503
      %v3532 = vpop.f32.mrf.mxu0
      %v3533 = vadd.f32 0.0, %v3532
      %v3534 = vpop.f32.mrf.mxu0
      %v3535 = vadd.f32 0.0, %v3534
      %3536 = vmatmul.bf16.gmra.mxu0 %v3506
      %v3537 = vpop.f32.mrf.mxu0
      %v3538 = vadd.f32 0.0, %v3537
      %v3539 = vpop.f32.mrf.mxu0
      %v3540 = vadd.f32 0.0, %v3539
      %3541 = vdwg.mxu0
      %v3542 = vrcp.pop %v3455
      %v3543 = vmul.f32 %v3455, %v3542
      %v3544 = vsub.f32 1.0, %v3543
      %v3545 = vmul.f32 %v3542, %v3544
      %v3546 = vadd.f32 %v3542, %v3545
      %vm3547 = vweird.f32 %v3455
      %vm3548 = vweird.f32 %v3542
      %vm3549 = vmor %vm3547, %vm3548
      %v3550 = vsel %vm3549, %v3542, %v3546
      %v3551 = vand.u32 2147483647, %v3455
      %vm3552 = vcmp.eq.f32.partialorder %v3551, 8.507059e+37
      %v3553 = vand.u32 %v3455, 2147483648
      %v3554 = vor.u32 1.1754944e-38, %v3553
      %v3555 = vsel %vm3552, %v3554, %v3550
      %v3556 = vmul.f32 1.0, %v3555
      %v3557 = vrcp.pop %v3458
      %v3558 = vmul.f32 %v3458, %v3557
      %v3559 = vsub.f32 1.0, %v3558
      %v3560 = vmul.f32 %v3557, %v3559
      %v3561 = vadd.f32 %v3557, %v3560
      %vm3562 = vweird.f32 %v3458
      %vm3563 = vweird.f32 %v3557
      %vm3564 = vmor %vm3562, %vm3563
      %v3565 = vsel %vm3564, %v3557, %v3561
      %v3566 = vand.u32 2147483647, %v3458
      %vm3567 = vcmp.eq.f32.partialorder %v3566, 8.507059e+37
      %v3568 = vand.u32 %v3458, 2147483648
      %v3569 = vor.u32 1.1754944e-38, %v3568
      %v3570 = vsel %vm3567, %v3569, %v3565
      %v3571 = vmul.f32 1.0, %v3570
      %v3572 = vrcp.pop %v3461
      %v3573 = vmul.f32 %v3461, %v3572
      %v3574 = vsub.f32 1.0, %v3573
      %v3575 = vmul.f32 %v3572, %v3574
      %v3576 = vadd.f32 %v3572, %v3575
      %vm3577 = vweird.f32 %v3461
      %vm3578 = vweird.f32 %v3572
      %vm3579 = vmor %vm3577, %vm3578
      %v3580 = vsel %vm3579, %v3572, %v3576
      %v3581 = vand.u32 2147483647, %v3461
      %vm3582 = vcmp.eq.f32.partialorder %v3581, 8.507059e+37
      %v3583 = vand.u32 %v3461, 2147483648
      %v3584 = vor.u32 1.1754944e-38, %v3583
      %v3585 = vsel %vm3582, %v3584, %v3580
      %v3586 = vmul.f32 1.0, %v3585
      %v3587 = vrcp.pop %v3464
      %v3588 = vmul.f32 %v3464, %v3587
      %v3589 = vsub.f32 1.0, %v3588
      %v3590 = vmul.f32 %v3587, %v3589
      %v3591 = vadd.f32 %v3587, %v3590
      %vm3592 = vweird.f32 %v3464
      %vm3593 = vweird.f32 %v3587
      %vm3594 = vmor %vm3592, %vm3593
      %v3595 = vsel %vm3594, %v3587, %v3591
      %v3596 = vand.u32 2147483647, %v3464
      %vm3597 = vcmp.eq.f32.partialorder %v3596, 8.507059e+37
      %v3598 = vand.u32 %v3464, 2147483648
      %v3599 = vor.u32 1.1754944e-38, %v3598
      %v3600 = vsel %vm3597, %v3599, %v3595
      %v3601 = vmul.f32 1.0, %v3600
      %v3602 = vrcp.pop %v3467
      %v3603 = vmul.f32 %v3467, %v3602
      %v3604 = vsub.f32 1.0, %v3603
      %v3605 = vmul.f32 %v3602, %v3604
      %v3606 = vadd.f32 %v3602, %v3605
      %vm3607 = vweird.f32 %v3467
      %vm3608 = vweird.f32 %v3602
      %vm3609 = vmor %vm3607, %vm3608
      %v3610 = vsel %vm3609, %v3602, %v3606
      %v3611 = vand.u32 2147483647, %v3467
      %vm3612 = vcmp.eq.f32.partialorder %v3611, 8.507059e+37
      %v3613 = vand.u32 %v3467, 2147483648
      %v3614 = vor.u32 1.1754944e-38, %v3613
      %v3615 = vsel %vm3612, %v3614, %v3610
      %v3616 = vmul.f32 1.0, %v3615
      %v3617 = vrcp.pop %v3470
      %v3618 = vmul.f32 %v3470, %v3617
      %v3619 = vsub.f32 1.0, %v3618
      %v3620 = vmul.f32 %v3617, %v3619
      %v3621 = vadd.f32 %v3617, %v3620
      %vm3622 = vweird.f32 %v3470
      %vm3623 = vweird.f32 %v3617
      %vm3624 = vmor %vm3622, %vm3623
      %v3625 = vsel %vm3624, %v3617, %v3621
      %v3626 = vand.u32 2147483647, %v3470
      %vm3627 = vcmp.eq.f32.partialorder %v3626, 8.507059e+37
      %v3628 = vand.u32 %v3470, 2147483648
      %v3629 = vor.u32 1.1754944e-38, %v3628
      %v3630 = vsel %vm3627, %v3629, %v3625
      %v3631 = vmul.f32 1.0, %v3630
      %v3632 = vrcp.pop %v3473
      %v3633 = vmul.f32 %v3473, %v3632
      %v3634 = vsub.f32 1.0, %v3633
      %v3635 = vmul.f32 %v3632, %v3634
      %v3636 = vadd.f32 %v3632, %v3635
      %vm3637 = vweird.f32 %v3473
      %vm3638 = vweird.f32 %v3632
      %vm3639 = vmor %vm3637, %vm3638
      %v3640 = vsel %vm3639, %v3632, %v3636
      %v3641 = vand.u32 2147483647, %v3473
      %vm3642 = vcmp.eq.f32.partialorder %v3641, 8.507059e+37
      %v3643 = vand.u32 %v3473, 2147483648
      %v3644 = vor.u32 1.1754944e-38, %v3643
      %v3645 = vsel %vm3642, %v3644, %v3640
      %v3646 = vmul.f32 1.0, %v3645
      %v3647 = vrcp.pop %v3476
      %v3648 = vmul.f32 %v3476, %v3647
      %v3649 = vsub.f32 1.0, %v3648
      %v3650 = vmul.f32 %v3647, %v3649
      %v3651 = vadd.f32 %v3647, %v3650
      %vm3652 = vweird.f32 %v3476
      %vm3653 = vweird.f32 %v3647
      %vm3654 = vmor %vm3652, %vm3653
      %v3655 = vsel %vm3654, %v3647, %v3651
      %v3656 = vand.u32 2147483647, %v3476
      %vm3657 = vcmp.eq.f32.partialorder %v3656, 8.507059e+37
      %v3658 = vand.u32 %v3476, 2147483648
      %v3659 = vor.u32 1.1754944e-38, %v3658
      %v3660 = vsel %vm3657, %v3659, %v3655
      %v3661 = vmul.f32 1.0, %v3660
      %v3662 = vrcp.pop %v3479
      %v3663 = vmul.f32 %v3479, %v3662
      %v3664 = vsub.f32 1.0, %v3663
      %v3665 = vmul.f32 %v3662, %v3664
      %v3666 = vadd.f32 %v3662, %v3665
      %vm3667 = vweird.f32 %v3479
      %vm3668 = vweird.f32 %v3662
      %vm3669 = vmor %vm3667, %vm3668
      %v3670 = vsel %vm3669, %v3662, %v3666
      %v3671 = vand.u32 2147483647, %v3479
      %vm3672 = vcmp.eq.f32.partialorder %v3671, 8.507059e+37
      %v3673 = vand.u32 %v3479, 2147483648
      %v3674 = vor.u32 1.1754944e-38, %v3673
      %v3675 = vsel %vm3672, %v3674, %v3670
      %v3676 = vmul.f32 1.0, %v3675
      %v3677 = vrcp.pop %v3482
      %v3678 = vmul.f32 %v3482, %v3677
      %v3679 = vsub.f32 1.0, %v3678
      %v3680 = vmul.f32 %v3677, %v3679
      %v3681 = vadd.f32 %v3677, %v3680
      %vm3682 = vweird.f32 %v3482
      %vm3683 = vweird.f32 %v3677
      %vm3684 = vmor %vm3682, %vm3683
      %v3685 = vsel %vm3684, %v3677, %v3681
      %v3686 = vand.u32 2147483647, %v3482
      %vm3687 = vcmp.eq.f32.partialorder %v3686, 8.507059e+37
      %v3688 = vand.u32 %v3482, 2147483648
      %v3689 = vor.u32 1.1754944e-38, %v3688
      %v3690 = vsel %vm3687, %v3689, %v3685
      %v3691 = vmul.f32 1.0, %v3690
      %v3692 = vmul.f32 %v3518, %v3556
      %v3693 = vmul.f32 %v3520, %v3571
      %v3694 = vmul.f32 %v3523, %v3586
      %v3695 = vmul.f32 %v3525, %v3601
      %v3696 = vmul.f32 %v3528, %v3616
      %v3697 = vmul.f32 %v3530, %v3631
      %v3698 = vmul.f32 %v3533, %v3646
      %v3699 = vmul.f32 %v3535, %v3661
      %v3700 = vmul.f32 %v3538, %v3676
      %v3701 = vmul.f32 %v3540, %v3691
      %s3702 = scalar_lea.vmem %s17, 4
      %v3703 = vld [vmem:[%s3702] sm:$0xf]
      %v3704 = vpack.c.bf16 %v3693, %v3692
      %v3705 = vpack.c.bf16 %v3695, %v3694
      %v3706 = vpack.c.bf16 %v3697, %v3696
      %v3707 = vpack.c.bf16 %v3699, %v3698
      %v3708 = vpack.c.bf16 %v3701, %v3700
      %v3710 = vsel %vm2740, %v3704, 0
      %v3713 = vsel %vm2740, %v3705, 0
      %v3716 = vsel %vm2740, %v3706, 0
      %v3719 = vsel %vm2740, %v3707, 0
      %v3722 = vsel %vm2740, %v3708, 0
      %vm3724 = vcmask 1043456
      %v3726 = vsel %vm3724, %v3703, 0
      %3728 = vmatpush.bf16.msra.mxu0 0
      %3729 = vmatpush.bf16.msra.mxu0 0
      %3730 = vmatpush.bf16.msra.mxu0 0
      %3731 = vmatpush.bf16.msra.mxu0 0
      %3732 = vmatpush.bf16.msra.mxu0 0
      %3733 = vmatpush.bf16.msra.mxu0 0
      %3734 = vmatpush.bf16.msra.mxu0 0
      %3735 = vmatpush.bf16.msra.mxu0 %v3726
      %3736 = vmatmul.bf16.gmra.mxu0 %v3710
      %v3737 = vpop.f32.mrf.mxu0
      %v3738 = vadd.f32 0.0, %v3737
      %v3739 = vpop.f32.mrf.mxu0
      %v3740 = vadd.f32 0.0, %v3739
      %3741 = vmatmul.bf16.gmra.mxu0 %v3713
      %v3742 = vpop.f32.mrf.mxu0
      %v3743 = vadd.f32 0.0, %v3742
      %v3744 = vpop.f32.mrf.mxu0
      %v3745 = vadd.f32 0.0, %v3744
      %3746 = vmatmul.bf16.gmra.mxu0 %v3716
      %v3747 = vpop.f32.mrf.mxu0
      %v3748 = vadd.f32 0.0, %v3747
      %v3749 = vpop.f32.mrf.mxu0
      %v3750 = vadd.f32 0.0, %v3749
      %3751 = vmatmul.bf16.gmra.mxu0 %v3719
      %v3752 = vpop.f32.mrf.mxu0
      %v3753 = vadd.f32 0.0, %v3752
      %v3754 = vpop.f32.mrf.mxu0
      %v3755 = vadd.f32 0.0, %v3754
      %3756 = vmatmul.bf16.gmra.mxu0 %v3722
      %v3757 = vpop.f32.mrf.mxu0
      %v3758 = vadd.f32 0.0, %v3757
      %v3759 = vpop.f32.mrf.mxu0
      %v3760 = vadd.f32 0.0, %v3759
      %3761 = vdwg.mxu0
      %v3763 = vsel %vm2740, %v3136, 0
      %v3766 = vsel %vm2740, %v3137, 0
      %v3769 = vsel %vm2740, %v3138, 0
      %v3772 = vsel %vm2740, %v3139, 0
      %v3775 = vsel %vm2740, %v3140, 0
      %v3778 = vsel %vm3724, %v3135, 0
      %3780 = vmatpush.bf16.msra.mxu0 0
      %3781 = vmatpush.bf16.msra.mxu0 0
      %3782 = vmatpush.bf16.msra.mxu0 0
      %3783 = vmatpush.bf16.msra.mxu0 0
      %3784 = vmatpush.bf16.msra.mxu0 0
      %3785 = vmatpush.bf16.msra.mxu0 0
      %3786 = vmatpush.bf16.msra.mxu0 0
      %3787 = vmatpush.bf16.msra.mxu0 %v3778
      %3788 = vmatmul.bf16.gmra.mxu0 %v3763
      %v3789 = vpop.f32.mrf.mxu0
      %v3790 = vadd.f32 %v3738, %v3789
      %v3791 = vpop.f32.mrf.mxu0
      %v3792 = vadd.f32 %v3740, %v3791
      %3793 = vmatmul.bf16.gmra.mxu0 %v3766
      %v3794 = vpop.f32.mrf.mxu0
      %v3795 = vadd.f32 %v3743, %v3794
      %v3796 = vpop.f32.mrf.mxu0
      %v3797 = vadd.f32 %v3745, %v3796
      %3798 = vmatmul.bf16.gmra.mxu0 %v3769
      %v3799 = vpop.f32.mrf.mxu0
      %v3800 = vadd.f32 %v3748, %v3799
      %v3801 = vpop.f32.mrf.mxu0
      %v3802 = vadd.f32 %v3750, %v3801
      %3803 = vmatmul.bf16.gmra.mxu0 %v3772
      %v3804 = vpop.f32.mrf.mxu0
      %v3805 = vadd.f32 %v3753, %v3804
      %v3806 = vpop.f32.mrf.mxu0
      %v3807 = vadd.f32 %v3755, %v3806
      %3808 = vmatmul.bf16.gmra.mxu0 %v3775
      %v3809 = vpop.f32.mrf.mxu0
      %v3810 = vadd.f32 %v3758, %v3809
      %v3811 = vpop.f32.mrf.mxu0
      %v3812 = vadd.f32 %v3760, %v3811
      %3813 = vdwg.mxu0
      %s3814 = scalar_lea.vmem %s13, 32
      %v3815 = vld [vmem:[%s3814] sm:$0xf]
      %v3816 = vld [vmem:[%s3814 + $0x4] sm:$0xf]
      %v3817 = vld [vmem:[%s3814 + $0x8] sm:$0xf]
      %v3818 = vld [vmem:[%s3814 + $0xc] sm:$0xf]
      %s3819 = scalar_lea.vmem %s16, 2
      %v3820 = vld [vmem:[%s3819] sm:$0x1]
      %v3822 = vperm.slane %v3820, 0
      %v3828 = vunpack.c.l.b16 %v3815
      %v3829 = vunpack.c.l.b16 %v3816
      %v3830 = vunpack.c.l.b16 %v3817
      %v3831 = vunpack.c.l.b16 %v3818
      %v3832 = vpack.c.b16 %v3829, %v3828
      %v3833 = vpack.c.b16 %v3831, %v3830
      %3836 = vmatpush.bf16.msra.mxu0 0
      %3837 = vmatpush.bf16.msra.mxu0 0
      %3838 = vmatpush.bf16.msra.mxu0 0
      %3839 = vmatpush.bf16.msra.mxu0 0
      %3840 = vmatpush.bf16.msra.mxu0 0
      %3841 = vmatpush.bf16.msra.mxu0 0
      %3842 = vmatpush.bf16.msra.mxu0 %v3833
      %3843 = vmatpush.bf16.msra.mxu0 %v3832
      %3844 = vmatmul.bf16.gmra.mxu0 %v2582
      %v3845 = vpop.f32.mrf.mxu0
      %v3846 = vadd.f32 %v3822, %v3845
      %v3847 = vpop.f32.mrf.mxu0
      %v3848 = vadd.f32 %v3822, %v3847
      %3849 = vmatmul.bf16.gmra.mxu0 %v2585
      %v3850 = vpop.f32.mrf.mxu0
      %v3851 = vadd.f32 %v3822, %v3850
      %v3852 = vpop.f32.mrf.mxu0
      %v3853 = vadd.f32 %v3822, %v3852
      %3854 = vmatmul.bf16.gmra.mxu0 %v2588
      %v3855 = vpop.f32.mrf.mxu0
      %v3856 = vadd.f32 %v3822, %v3855
      %v3857 = vpop.f32.mrf.mxu0
      %v3858 = vadd.f32 %v3822, %v3857
      %3859 = vmatmul.bf16.gmra.mxu0 %v2591
      %v3860 = vpop.f32.mrf.mxu0
      %v3861 = vadd.f32 %v3822, %v3860
      %v3862 = vpop.f32.mrf.mxu0
      %v3863 = vadd.f32 %v3822, %v3862
      %3864 = vmatmul.bf16.gmra.mxu0 %v2594
      %v3865 = vpop.f32.mrf.mxu0
      %v3866 = vadd.f32 %v3822, %v3865
      %v3867 = vpop.f32.mrf.mxu0
      %v3868 = vadd.f32 %v3822, %v3867
      %3869 = vdwg.mxu0
      %s3870 = scalar_lea.vmem %s14, 32
      %v3871 = vld [vmem:[%s3870] sm:$0xf]
      %v3872 = vld [vmem:[%s3870 + $0x4] sm:$0xf]
      %v3873 = vld [vmem:[%s3870 + $0x8] sm:$0xf]
      %v3874 = vld [vmem:[%s3870 + $0xc] sm:$0xf]
      %v3879 = vunpack.c.l.b16 %v3871
      %v3880 = vunpack.c.l.b16 %v3872
      %v3881 = vunpack.c.l.b16 %v3873
      %v3882 = vunpack.c.l.b16 %v3874
      %v3883 = vpack.c.b16 %v3880, %v3879
      %v3884 = vpack.c.b16 %v3882, %v3881
      %3887 = vmatpush.bf16.msra.mxu0 0
      %3888 = vmatpush.bf16.msra.mxu0 0
      %3889 = vmatpush.bf16.msra.mxu0 0
      %3890 = vmatpush.bf16.msra.mxu0 0
      %3891 = vmatpush.bf16.msra.mxu0 0
      %3892 = vmatpush.bf16.msra.mxu0 0
      %3893 = vmatpush.bf16.msra.mxu0 %v3884
      %3894 = vmatpush.bf16.msra.mxu0 %v3883
      %3895 = vmatmul.bf16.gmra.mxu0 %v2582
      %v3896 = vpop.f32.mrf.mxu0
      %v3897 = vadd.f32 0.0, %v3896
      %v3898 = vpop.f32.mrf.mxu0
      %v3899 = vadd.f32 0.0, %v3898
      %3900 = vmatmul.bf16.gmra.mxu0 %v2585
      %v3901 = vpop.f32.mrf.mxu0
      %v3902 = vadd.f32 0.0, %v3901
      %v3903 = vpop.f32.mrf.mxu0
      %v3904 = vadd.f32 0.0, %v3903
      %3905 = vmatmul.bf16.gmra.mxu0 %v2588
      %v3906 = vpop.f32.mrf.mxu0
      %v3907 = vadd.f32 0.0, %v3906
      %v3908 = vpop.f32.mrf.mxu0
      %v3909 = vadd.f32 0.0, %v3908
      %3910 = vmatmul.bf16.gmra.mxu0 %v2591
      %v3911 = vpop.f32.mrf.mxu0
      %v3912 = vadd.f32 0.0, %v3911
      %v3913 = vpop.f32.mrf.mxu0
      %v3914 = vadd.f32 0.0, %v3913
      %3915 = vmatmul.bf16.gmra.mxu0 %v2594
      %v3916 = vpop.f32.mrf.mxu0
      %v3917 = vadd.f32 0.0, %v3916
      %v3918 = vpop.f32.mrf.mxu0
      %v3919 = vadd.f32 0.0, %v3918
      %3920 = vdwg.mxu0
      %s3921 = scalar_lea.vmem %s15, 32
      %v3922 = vld [vmem:[%s3921] sm:$0xf]
      %v3923 = vld [vmem:[%s3921 + $0x4] sm:$0xf]
      %v3924 = vld [vmem:[%s3921 + $0x8] sm:$0xf]
      %v3925 = vld [vmem:[%s3921 + $0xc] sm:$0xf]
      %v3930 = vunpack.c.l.b16 %v3922
      %v3931 = vunpack.c.l.b16 %v3923
      %v3932 = vunpack.c.l.b16 %v3924
      %v3933 = vunpack.c.l.b16 %v3925
      %v3934 = vpack.c.b16 %v3931, %v3930
      %v3935 = vpack.c.b16 %v3933, %v3932
      %3938 = vmatpush.bf16.msra.mxu0 0
      %3939 = vmatpush.bf16.msra.mxu0 0
      %3940 = vmatpush.bf16.msra.mxu0 0
      %3941 = vmatpush.bf16.msra.mxu0 0
      %3942 = vmatpush.bf16.msra.mxu0 0
      %3943 = vmatpush.bf16.msra.mxu0 0
      %3944 = vmatpush.bf16.msra.mxu0 %v3935
      %3945 = vmatpush.bf16.msra.mxu0 %v3934
      %3946 = vmatmul.bf16.gmra.mxu0 %v2582
      %v3947 = vpop.f32.mrf.mxu0
      %v3948 = vadd.f32 0.0, %v3947
      %v3949 = vpop.f32.mrf.mxu0
      %v3950 = vadd.f32 0.0, %v3949
      %3951 = vmatmul.bf16.gmra.mxu0 %v2585
      %v3952 = vpop.f32.mrf.mxu0
      %v3953 = vadd.f32 0.0, %v3952
      %v3954 = vpop.f32.mrf.mxu0
      %v3955 = vadd.f32 0.0, %v3954
      %3956 = vmatmul.bf16.gmra.mxu0 %v2588
      %v3957 = vpop.f32.mrf.mxu0
      %v3958 = vadd.f32 0.0, %v3957
      %v3959 = vpop.f32.mrf.mxu0
      %v3960 = vadd.f32 0.0, %v3959
      %3961 = vmatmul.bf16.gmra.mxu0 %v2591
      %v3962 = vpop.f32.mrf.mxu0
      %v3963 = vadd.f32 0.0, %v3962
      %v3964 = vpop.f32.mrf.mxu0
      %v3965 = vadd.f32 0.0, %v3964
      %3966 = vmatmul.bf16.gmra.mxu0 %v2594
      %v3967 = vpop.f32.mrf.mxu0
      %v3968 = vadd.f32 0.0, %v3967
      %v3969 = vpop.f32.mrf.mxu0
      %v3970 = vadd.f32 0.0, %v3969
      %3971 = vdwg.mxu0
      %v3972 = vpack.c.bf16 %v3848, %v3846
      %v3973 = vpack.c.bf16 %v3853, %v3851
      %v3974 = vpack.c.bf16 %v3858, %v3856
      %v3975 = vpack.c.bf16 %v3863, %v3861
      %v3976 = vpack.c.bf16 %v3868, %v3866
      %v3977 = vpack.c.bf16 %v3899, %v3897
      %v3978 = vpack.c.bf16 %v3904, %v3902
      %v3979 = vpack.c.bf16 %v3909, %v3907
      %v3980 = vpack.c.bf16 %v3914, %v3912
      %v3981 = vpack.c.bf16 %v3919, %v3917
      %v3983 = vsel %vm2740, %v3972, 0
      %v3986 = vsel %vm2740, %v3973, 0
      %v3989 = vsel %vm2740, %v3974, 0
      %v3992 = vsel %vm2740, %v3975, 0
      %v3995 = vsel %vm2740, %v3976, 0
      %v3998 = vsel %vm2740, %v3977, 0
      %v4001 = vsel %vm2740, %v3978, 0
      %v4004 = vsel %vm2740, %v3979, 0
      %v4007 = vsel %vm2740, %v3980, 0
      %v4010 = vsel %vm2740, %v3981, 0
      %4012 = vmatpush.bf16.xpose.msra.mxu0 0
      %4013 = vmatpush.bf16.xpose.msra.mxu0 0
      %4014 = vmatpush.bf16.xpose.msra.mxu0 0
      %4015 = vmatpush.bf16.xpose.msra.mxu0 %v4010
      %4016 = vmatpush.bf16.xpose.msra.mxu0 %v4007
      %4017 = vmatpush.bf16.xpose.msra.mxu0 %v4004
      %4018 = vmatpush.bf16.xpose.msra.mxu0 %v4001
      %4019 = vmatpush.bf16.xpose.msra.mxu0 %v3998
      %4020 = vmatmul.bf16.gmra.mxu0 %v3983
      %v4021 = vpop.f32.mrf.mxu0
      %v4022 = vadd.f32 0.0, %v4021
      %v4023 = vpop.f32.mrf.mxu0
      %v4024 = vadd.f32 0.0, %v4023
      %4025 = vmatmul.bf16.gmra.mxu0 %v3986
      %v4026 = vpop.f32.mrf.mxu0
      %v4027 = vadd.f32 0.0, %v4026
      %v4028 = vpop.f32.mrf.mxu0
      %v4029 = vadd.f32 0.0, %v4028
      %4030 = vmatmul.bf16.gmra.mxu0 %v3989
      %v4031 = vpop.f32.mrf.mxu0
      %v4032 = vadd.f32 0.0, %v4031
      %v4033 = vpop.f32.mrf.mxu0
      %v4034 = vadd.f32 0.0, %v4033
      %4035 = vmatmul.bf16.gmra.mxu0 %v3992
      %v4036 = vpop.f32.mrf.mxu0
      %v4037 = vadd.f32 0.0, %v4036
      %v4038 = vpop.f32.mrf.mxu0
      %v4039 = vadd.f32 0.0, %v4038
      %4040 = vmatmul.bf16.gmra.mxu0 %v3995
      %v4041 = vpop.f32.mrf.mxu0
      %v4042 = vadd.f32 0.0, %v4041
      %v4043 = vpop.f32.mrf.mxu0
      %v4044 = vadd.f32 0.0, %v4043
      %4045 = vdwg.mxu0
      %v4046 = vmul.f32 %v4022, 0.35355338
      %v4047 = vmul.f32 %v4024, 0.35355338
      %v4048 = vmul.f32 %v4027, 0.35355338
      %v4049 = vmul.f32 %v4029, 0.35355338
      %v4050 = vmul.f32 %v4032, 0.35355338
      %v4051 = vmul.f32 %v4034, 0.35355338
      %v4052 = vmul.f32 %v4037, 0.35355338
      %v4053 = vmul.f32 %v4039, 0.35355338
      %v4054 = vmul.f32 %v4042, 0.35355338
      %v4055 = vmul.f32 %v4044, 0.35355338
      %v4056 = vsel %vm2555, %v4046, -1e+30
      %v4057 = vsel %vm2555, %v4047, -1e+30
      %v4058 = vsel %vm2555, %v4048, -1e+30
      %v4059 = vsel %vm2555, %v4049, -1e+30
      %v4060 = vsel %vm2555, %v4050, -1e+30
      %v4061 = vsel %vm2555, %v4051, -1e+30
      %v4062 = vsel %vm2555, %v4052, -1e+30
      %v4063 = vsel %vm2555, %v4053, -1e+30
      %v4064 = vsel %vm2555, %v4054, -1e+30
      %v4065 = vsel %vm2555, %v4055, -1e+30
      %v4066 = vsel %vm2825, %v4056, -inf
      %4067 = vmax.xlane.f32.xlu0 %v4066
      %v4068 = vpop.xlane.xlu0 %4067
      %v4069 = vsel %vm2825, %v4057, -inf
      %4070 = vmax.xlane.f32.xlu0 %v4069
      %v4071 = vpop.xlane.xlu0 %4070
      %v4072 = vsel %vm2825, %v4058, -inf
      %4073 = vmax.xlane.f32.xlu0 %v4072
      %v4074 = vpop.xlane.xlu0 %4073
      %v4075 = vsel %vm2825, %v4059, -inf
      %4076 = vmax.xlane.f32.xlu0 %v4075
      %v4077 = vpop.xlane.xlu0 %4076
      %v4078 = vsel %vm2825, %v4060, -inf
      %4079 = vmax.xlane.f32.xlu0 %v4078
      %v4080 = vpop.xlane.xlu0 %4079
      %v4081 = vsel %vm2825, %v4061, -inf
      %4082 = vmax.xlane.f32.xlu0 %v4081
      %v4083 = vpop.xlane.xlu0 %4082
      %v4084 = vsel %vm2825, %v4062, -inf
      %4085 = vmax.xlane.f32.xlu0 %v4084
      %v4086 = vpop.xlane.xlu0 %4085
      %v4087 = vsel %vm2825, %v4063, -inf
      %4088 = vmax.xlane.f32.xlu0 %v4087
      %v4089 = vpop.xlane.xlu0 %4088
      %v4090 = vsel %vm2825, %v4064, -inf
      %4091 = vmax.xlane.f32.xlu0 %v4090
      %v4092 = vpop.xlane.xlu0 %4091
      %v4093 = vsel %vm2825, %v4065, -inf
      %4094 = vmax.xlane.f32.xlu0 %v4093
      %v4095 = vpop.xlane.xlu0 %4094
      %v4096 = vsub.f32 %v4056, %v4068
      %v4097 = vsub.f32 %v4057, %v4071
      %v4098 = vsub.f32 %v4058, %v4074
      %v4099 = vsub.f32 %v4059, %v4077
      %v4100 = vsub.f32 %v4060, %v4080
      %v4101 = vsub.f32 %v4061, %v4083
      %v4102 = vsub.f32 %v4062, %v4086
      %v4103 = vsub.f32 %v4063, %v4089
      %v4104 = vsub.f32 %v4064, %v4092
      %v4105 = vsub.f32 %v4065, %v4095
      %v4106 = vmul.f32 %v4096, 1.442695
      %v4107 = vpow.pop %v4106
      %v4108 = vmul.f32 %v4097, 1.442695
      %v4109 = vpow.pop %v4108
      %v4110 = vmul.f32 %v4098, 1.442695
      %v4111 = vpow.pop %v4110
      %v4112 = vmul.f32 %v4099, 1.442695
      %v4113 = vpow.pop %v4112
      %v4114 = vmul.f32 %v4100, 1.442695
      %v4115 = vpow.pop %v4114
      %v4116 = vmul.f32 %v4101, 1.442695
      %v4117 = vpow.pop %v4116
      %v4118 = vmul.f32 %v4102, 1.442695
      %v4119 = vpow.pop %v4118
      %v4120 = vmul.f32 %v4103, 1.442695
      %v4121 = vpow.pop %v4120
      %v4122 = vmul.f32 %v4104, 1.442695
      %v4123 = vpow.pop %v4122
      %v4124 = vmul.f32 %v4105, 1.442695
      %v4125 = vpow.pop %v4124
      %v4126 = vsel %vm2825, %v4107, 0.0
      %4127 = vadd.xlane.f32.xlu0 %v4126
      %v4128 = vpop.xlane.xlu0 %4127
      %v4129 = vsel %vm2825, %v4109, 0.0
      %4130 = vadd.xlane.f32.xlu0 %v4129
      %v4131 = vpop.xlane.xlu0 %4130
      %v4132 = vsel %vm2825, %v4111, 0.0
      %4133 = vadd.xlane.f32.xlu0 %v4132
      %v4134 = vpop.xlane.xlu0 %4133
      %v4135 = vsel %vm2825, %v4113, 0.0
      %4136 = vadd.xlane.f32.xlu0 %v4135
      %v4137 = vpop.xlane.xlu0 %4136
      %v4138 = vsel %vm2825, %v4115, 0.0
      %4139 = vadd.xlane.f32.xlu0 %v4138
      %v4140 = vpop.xlane.xlu0 %4139
      %v4141 = vsel %vm2825, %v4117, 0.0
      %4142 = vadd.xlane.f32.xlu0 %v4141
      %v4143 = vpop.xlane.xlu0 %4142
      %v4144 = vsel %vm2825, %v4119, 0.0
      %4145 = vadd.xlane.f32.xlu0 %v4144
      %v4146 = vpop.xlane.xlu0 %4145
      %v4147 = vsel %vm2825, %v4121, 0.0
      %4148 = vadd.xlane.f32.xlu0 %v4147
      %v4149 = vpop.xlane.xlu0 %4148
      %v4150 = vsel %vm2825, %v4123, 0.0
      %4151 = vadd.xlane.f32.xlu0 %v4150
      %v4152 = vpop.xlane.xlu0 %4151
      %v4153 = vsel %vm2825, %v4125, 0.0
      %4154 = vadd.xlane.f32.xlu0 %v4153
      %v4155 = vpop.xlane.xlu0 %4154
      %v4156 = vpack.c.bf16 %v3950, %v3948
      %v4157 = vpack.c.bf16 %v3955, %v3953
      %v4158 = vpack.c.bf16 %v3960, %v3958
      %v4159 = vpack.c.bf16 %v3965, %v3963
      %v4160 = vpack.c.bf16 %v3970, %v3968
      %v4161 = vpack.c.bf16 %v4109, %v4107
      %v4162 = vpack.c.bf16 %v4113, %v4111
      %v4163 = vpack.c.bf16 %v4117, %v4115
      %v4164 = vpack.c.bf16 %v4121, %v4119
      %v4165 = vpack.c.bf16 %v4125, %v4123
      %v4167 = vsel %vm2825, %v4161, 0
      %v4170 = vsel %vm2825, %v4162, 0
      %v4173 = vsel %vm2825, %v4163, 0
      %v4176 = vsel %vm2825, %v4164, 0
      %v4179 = vsel %vm2825, %v4165, 0
      %4181 = vmatpush.bf16.msra.mxu0 0
      %4182 = vmatpush.bf16.msra.mxu0 0
      %4183 = vmatpush.bf16.msra.mxu0 0
      %4184 = vmatpush.bf16.msra.mxu0 %v4160
      %4185 = vmatpush.bf16.msra.mxu0 %v4159
      %4186 = vmatpush.bf16.msra.mxu0 %v4158
      %4187 = vmatpush.bf16.msra.mxu0 %v4157
      %4188 = vmatpush.bf16.msra.mxu0 %v4156
      %4189 = vmatmul.bf16.gmra.mxu0 %v4167
      %v4190 = vpop.f32.mrf.mxu0
      %v4191 = vadd.f32 0.0, %v4190
      %v4192 = vpop.f32.mrf.mxu0
      %v4193 = vadd.f32 0.0, %v4192
      %4194 = vmatmul.bf16.gmra.mxu0 %v4170
      %v4195 = vpop.f32.mrf.mxu0
      %v4196 = vadd.f32 0.0, %v4195
      %v4197 = vpop.f32.mrf.mxu0
      %v4198 = vadd.f32 0.0, %v4197
      %4199 = vmatmul.bf16.gmra.mxu0 %v4173
      %v4200 = vpop.f32.mrf.mxu0
      %v4201 = vadd.f32 0.0, %v4200
      %v4202 = vpop.f32.mrf.mxu0
      %v4203 = vadd.f32 0.0, %v4202
      %4204 = vmatmul.bf16.gmra.mxu0 %v4176
      %v4205 = vpop.f32.mrf.mxu0
      %v4206 = vadd.f32 0.0, %v4205
      %v4207 = vpop.f32.mrf.mxu0
      %v4208 = vadd.f32 0.0, %v4207
      %4209 = vmatmul.bf16.gmra.mxu0 %v4179
      %v4210 = vpop.f32.mrf.mxu0
      %v4211 = vadd.f32 0.0, %v4210
      %v4212 = vpop.f32.mrf.mxu0
      %v4213 = vadd.f32 0.0, %v4212
      %4214 = vdwg.mxu0
      %v4215 = vrcp.pop %v4128
      %v4216 = vmul.f32 %v4128, %v4215
      %v4217 = vsub.f32 1.0, %v4216
      %v4218 = vmul.f32 %v4215, %v4217
      %v4219 = vadd.f32 %v4215, %v4218
      %vm4220 = vweird.f32 %v4128
      %vm4221 = vweird.f32 %v4215
      %vm4222 = vmor %vm4220, %vm4221
      %v4223 = vsel %vm4222, %v4215, %v4219
      %v4224 = vand.u32 2147483647, %v4128
      %vm4225 = vcmp.eq.f32.partialorder %v4224, 8.507059e+37
      %v4226 = vand.u32 %v4128, 2147483648
      %v4227 = vor.u32 1.1754944e-38, %v4226
      %v4228 = vsel %vm4225, %v4227, %v4223
      %v4229 = vmul.f32 1.0, %v4228
      %v4230 = vrcp.pop %v4131
      %v4231 = vmul.f32 %v4131, %v4230
      %v4232 = vsub.f32 1.0, %v4231
      %v4233 = vmul.f32 %v4230, %v4232
      %v4234 = vadd.f32 %v4230, %v4233
      %vm4235 = vweird.f32 %v4131
      %vm4236 = vweird.f32 %v4230
      %vm4237 = vmor %vm4235, %vm4236
      %v4238 = vsel %vm4237, %v4230, %v4234
      %v4239 = vand.u32 2147483647, %v4131
      %vm4240 = vcmp.eq.f32.partialorder %v4239, 8.507059e+37
      %v4241 = vand.u32 %v4131, 2147483648
      %v4242 = vor.u32 1.1754944e-38, %v4241
      %v4243 = vsel %vm4240, %v4242, %v4238
      %v4244 = vmul.f32 1.0, %v4243
      %v4245 = vrcp.pop %v4134
      %v4246 = vmul.f32 %v4134, %v4245
      %v4247 = vsub.f32 1.0, %v4246
      %v4248 = vmul.f32 %v4245, %v4247
      %v4249 = vadd.f32 %v4245, %v4248
      %vm4250 = vweird.f32 %v4134
      %vm4251 = vweird.f32 %v4245
      %vm4252 = vmor %vm4250, %vm4251
      %v4253 = vsel %vm4252, %v4245, %v4249
      %v4254 = vand.u32 2147483647, %v4134
      %vm4255 = vcmp.eq.f32.partialorder %v4254, 8.507059e+37
      %v4256 = vand.u32 %v4134, 2147483648
      %v4257 = vor.u32 1.1754944e-38, %v4256
      %v4258 = vsel %vm4255, %v4257, %v4253
      %v4259 = vmul.f32 1.0, %v4258
      %v4260 = vrcp.pop %v4137
      %v4261 = vmul.f32 %v4137, %v4260
      %v4262 = vsub.f32 1.0, %v4261
      %v4263 = vmul.f32 %v4260, %v4262
      %v4264 = vadd.f32 %v4260, %v4263
      %vm4265 = vweird.f32 %v4137
      %vm4266 = vweird.f32 %v4260
      %vm4267 = vmor %vm4265, %vm4266
      %v4268 = vsel %vm4267, %v4260, %v4264
      %v4269 = vand.u32 2147483647, %v4137
      %vm4270 = vcmp.eq.f32.partialorder %v4269, 8.507059e+37
      %v4271 = vand.u32 %v4137, 2147483648
      %v4272 = vor.u32 1.1754944e-38, %v4271
      %v4273 = vsel %vm4270, %v4272, %v4268
      %v4274 = vmul.f32 1.0, %v4273
      %v4275 = vrcp.pop %v4140
      %v4276 = vmul.f32 %v4140, %v4275
      %v4277 = vsub.f32 1.0, %v4276
      %v4278 = vmul.f32 %v4275, %v4277
      %v4279 = vadd.f32 %v4275, %v4278
      %vm4280 = vweird.f32 %v4140
      %vm4281 = vweird.f32 %v4275
      %vm4282 = vmor %vm4280, %vm4281
      %v4283 = vsel %vm4282, %v4275, %v4279
      %v4284 = vand.u32 2147483647, %v4140
      %vm4285 = vcmp.eq.f32.partialorder %v4284, 8.507059e+37
      %v4286 = vand.u32 %v4140, 2147483648
      %v4287 = vor.u32 1.1754944e-38, %v4286
      %v4288 = vsel %vm4285, %v4287, %v4283
      %v4289 = vmul.f32 1.0, %v4288
      %v4290 = vrcp.pop %v4143
      %v4291 = vmul.f32 %v4143, %v4290
      %v4292 = vsub.f32 1.0, %v4291
      %v4293 = vmul.f32 %v4290, %v4292
      %v4294 = vadd.f32 %v4290, %v4293
      %vm4295 = vweird.f32 %v4143
      %vm4296 = vweird.f32 %v4290
      %vm4297 = vmor %vm4295, %vm4296
      %v4298 = vsel %vm4297, %v4290, %v4294
      %v4299 = vand.u32 2147483647, %v4143
      %vm4300 = vcmp.eq.f32.partialorder %v4299, 8.507059e+37
      %v4301 = vand.u32 %v4143, 2147483648
      %v4302 = vor.u32 1.1754944e-38, %v4301
      %v4303 = vsel %vm4300, %v4302, %v4298
      %v4304 = vmul.f32 1.0, %v4303
      %v4305 = vrcp.pop %v4146
      %v4306 = vmul.f32 %v4146, %v4305
      %v4307 = vsub.f32 1.0, %v4306
      %v4308 = vmul.f32 %v4305, %v4307
      %v4309 = vadd.f32 %v4305, %v4308
      %vm4310 = vweird.f32 %v4146
      %vm4311 = vweird.f32 %v4305
      %vm4312 = vmor %vm4310, %vm4311
      %v4313 = vsel %vm4312, %v4305, %v4309
      %v4314 = vand.u32 2147483647, %v4146
      %vm4315 = vcmp.eq.f32.partialorder %v4314, 8.507059e+37
      %v4316 = vand.u32 %v4146, 2147483648
      %v4317 = vor.u32 1.1754944e-38, %v4316
      %v4318 = vsel %vm4315, %v4317, %v4313
      %v4319 = vmul.f32 1.0, %v4318
      %v4320 = vrcp.pop %v4149
      %v4321 = vmul.f32 %v4149, %v4320
      %v4322 = vsub.f32 1.0, %v4321
      %v4323 = vmul.f32 %v4320, %v4322
      %v4324 = vadd.f32 %v4320, %v4323
      %vm4325 = vweird.f32 %v4149
      %vm4326 = vweird.f32 %v4320
      %vm4327 = vmor %vm4325, %vm4326
      %v4328 = vsel %vm4327, %v4320, %v4324
      %v4329 = vand.u32 2147483647, %v4149
      %vm4330 = vcmp.eq.f32.partialorder %v4329, 8.507059e+37
      %v4331 = vand.u32 %v4149, 2147483648
      %v4332 = vor.u32 1.1754944e-38, %v4331
      %v4333 = vsel %vm4330, %v4332, %v4328
      %v4334 = vmul.f32 1.0, %v4333
      %v4335 = vrcp.pop %v4152
      %v4336 = vmul.f32 %v4152, %v4335
      %v4337 = vsub.f32 1.0, %v4336
      %v4338 = vmul.f32 %v4335, %v4337
      %v4339 = vadd.f32 %v4335, %v4338
      %vm4340 = vweird.f32 %v4152
      %vm4341 = vweird.f32 %v4335
      %vm4342 = vmor %vm4340, %vm4341
      %v4343 = vsel %vm4342, %v4335, %v4339
      %v4344 = vand.u32 2147483647, %v4152
      %vm4345 = vcmp.eq.f32.partialorder %v4344, 8.507059e+37
      %v4346 = vand.u32 %v4152, 2147483648
      %v4347 = vor.u32 1.1754944e-38, %v4346
      %v4348 = vsel %vm4345, %v4347, %v4343
      %v4349 = vmul.f32 1.0, %v4348
      %v4350 = vrcp.pop %v4155
      %v4351 = vmul.f32 %v4155, %v4350
      %v4352 = vsub.f32 1.0, %v4351
      %v4353 = vmul.f32 %v4350, %v4352
      %v4354 = vadd.f32 %v4350, %v4353
      %vm4355 = vweird.f32 %v4155
      %vm4356 = vweird.f32 %v4350
      %vm4357 = vmor %vm4355, %vm4356
      %v4358 = vsel %vm4357, %v4350, %v4354
      %v4359 = vand.u32 2147483647, %v4155
      %vm4360 = vcmp.eq.f32.partialorder %v4359, 8.507059e+37
      %v4361 = vand.u32 %v4155, 2147483648
      %v4362 = vor.u32 1.1754944e-38, %v4361
      %v4363 = vsel %vm4360, %v4362, %v4358
      %v4364 = vmul.f32 1.0, %v4363
      %v4365 = vmul.f32 %v4191, %v4229
      %v4366 = vmul.f32 %v4193, %v4244
      %v4367 = vmul.f32 %v4196, %v4259
      %v4368 = vmul.f32 %v4198, %v4274
      %v4369 = vmul.f32 %v4201, %v4289
      %v4370 = vmul.f32 %v4203, %v4304
      %v4371 = vmul.f32 %v4206, %v4319
      %v4372 = vmul.f32 %v4208, %v4334
      %v4373 = vmul.f32 %v4211, %v4349
      %v4374 = vmul.f32 %v4213, %v4364
      %s4375 = scalar_lea.vmem %s17, 8
      %v4376 = vld [vmem:[%s4375] sm:$0xf]
      %v4377 = vpack.c.bf16 %v4366, %v4365
      %v4378 = vpack.c.bf16 %v4368, %v4367
      %v4379 = vpack.c.bf16 %v4370, %v4369
      %v4380 = vpack.c.bf16 %v4372, %v4371
      %v4381 = vpack.c.bf16 %v4374, %v4373
      %v4383 = vsel %vm2740, %v4377, 0
      %v4386 = vsel %vm2740, %v4378, 0
      %v4389 = vsel %vm2740, %v4379, 0
      %v4392 = vsel %vm2740, %v4380, 0
      %v4395 = vsel %vm2740, %v4381, 0
      %v4398 = vsel %vm3724, %v4376, 0
      %4400 = vmatpush.bf16.msra.mxu0 0
      %4401 = vmatpush.bf16.msra.mxu0 0
      %4402 = vmatpush.bf16.msra.mxu0 0
      %4403 = vmatpush.bf16.msra.mxu0 0
      %4404 = vmatpush.bf16.msra.mxu0 0
      %4405 = vmatpush.bf16.msra.mxu0 0
      %4406 = vmatpush.bf16.msra.mxu0 0
      %4407 = vmatpush.bf16.msra.mxu0 %v4398
      %4408 = vmatmul.bf16.gmra.mxu0 %v4383
      %v4409 = vpop.f32.mrf.mxu0
      %v4410 = vadd.f32 0.0, %v4409
      %v4411 = vpop.f32.mrf.mxu0
      %v4412 = vadd.f32 0.0, %v4411
      %4413 = vmatmul.bf16.gmra.mxu0 %v4386
      %v4414 = vpop.f32.mrf.mxu0
      %v4415 = vadd.f32 0.0, %v4414
      %v4416 = vpop.f32.mrf.mxu0
      %v4417 = vadd.f32 0.0, %v4416
      %4418 = vmatmul.bf16.gmra.mxu0 %v4389
      %v4419 = vpop.f32.mrf.mxu0
      %v4420 = vadd.f32 0.0, %v4419
      %v4421 = vpop.f32.mrf.mxu0
      %v4422 = vadd.f32 0.0, %v4421
      %4423 = vmatmul.bf16.gmra.mxu0 %v4392
      %v4424 = vpop.f32.mrf.mxu0
      %v4425 = vadd.f32 0.0, %v4424
      %v4426 = vpop.f32.mrf.mxu0
      %v4427 = vadd.f32 0.0, %v4426
      %4428 = vmatmul.bf16.gmra.mxu0 %v4395
      %v4429 = vpop.f32.mrf.mxu0
      %v4430 = vadd.f32 0.0, %v4429
      %v4431 = vpop.f32.mrf.mxu0
      %v4432 = vadd.f32 0.0, %v4431
      %4433 = vdwg.mxu0
      %v4434 = vadd.f32 %v3790, %v4410
      %v4435 = vadd.f32 %v3792, %v4412
      %v4436 = vadd.f32 %v3795, %v4415
      %v4437 = vadd.f32 %v3797, %v4417
      %v4438 = vadd.f32 %v3800, %v4420
      %v4439 = vadd.f32 %v3802, %v4422
      %v4440 = vadd.f32 %v3805, %v4425
      %v4441 = vadd.f32 %v3807, %v4427
      %v4442 = vadd.f32 %v3810, %v4430
      %v4443 = vadd.f32 %v3812, %v4432
      %s4444 = scalar_lea.vmem %s13, 48
      %v4445 = vld [vmem:[%s4444] sm:$0xf]
      %v4446 = vld [vmem:[%s4444 + $0x4] sm:$0xf]
      %v4447 = vld [vmem:[%s4444 + $0x8] sm:$0xf]
      %v4448 = vld [vmem:[%s4444 + $0xc] sm:$0xf]
      %s4449 = scalar_lea.vmem %s16, 3
      %v4450 = vld [vmem:[%s4449] sm:$0x1]
      %v4452 = vperm.slane %v4450, 0
      %v4458 = vunpack.c.l.b16 %v4445
      %v4459 = vunpack.c.l.b16 %v4446
      %v4460 = vunpack.c.l.b16 %v4447
      %v4461 = vunpack.c.l.b16 %v4448
      %v4462 = vpack.c.b16 %v4459, %v4458
      %v4463 = vpack.c.b16 %v4461, %v4460
      %4466 = vmatpush.bf16.msra.mxu0 0
      %4467 = vmatpush.bf16.msra.mxu0 0
      %4468 = vmatpush.bf16.msra.mxu0 0
      %4469 = vmatpush.bf16.msra.mxu0 0
      %4470 = vmatpush.bf16.msra.mxu0 0
      %4471 = vmatpush.bf16.msra.mxu0 0
      %4472 = vmatpush.bf16.msra.mxu0 %v4463
      %4473 = vmatpush.bf16.msra.mxu0 %v4462
      %4474 = vmatmul.bf16.gmra.mxu0 %v2582
      %v4475 = vpop.f32.mrf.mxu0
      %v4476 = vadd.f32 %v4452, %v4475
      %v4477 = vpop.f32.mrf.mxu0
      %v4478 = vadd.f32 %v4452, %v4477
      %4479 = vmatmul.bf16.gmra.mxu0 %v2585
      %v4480 = vpop.f32.mrf.mxu0
      %v4481 = vadd.f32 %v4452, %v4480
      %v4482 = vpop.f32.mrf.mxu0
      %v4483 = vadd.f32 %v4452, %v4482
      %4484 = vmatmul.bf16.gmra.mxu0 %v2588
      %v4485 = vpop.f32.mrf.mxu0
      %v4486 = vadd.f32 %v4452, %v4485
      %v4487 = vpop.f32.mrf.mxu0
      %v4488 = vadd.f32 %v4452, %v4487
      %4489 = vmatmul.bf16.gmra.mxu0 %v2591
      %v4490 = vpop.f32.mrf.mxu0
      %v4491 = vadd.f32 %v4452, %v4490
      %v4492 = vpop.f32.mrf.mxu0
      %v4493 = vadd.f32 %v4452, %v4492
      %4494 = vmatmul.bf16.gmra.mxu0 %v2594
      %v4495 = vpop.f32.mrf.mxu0
      %v4496 = vadd.f32 %v4452, %v4495
      %v4497 = vpop.f32.mrf.mxu0
      %v4498 = vadd.f32 %v4452, %v4497
      %4499 = vdwg.mxu0
      %s4500 = scalar_lea.vmem %s14, 48
      %v4501 = vld [vmem:[%s4500] sm:$0xf]
      %v4502 = vld [vmem:[%s4500 + $0x4] sm:$0xf]
      %v4503 = vld [vmem:[%s4500 + $0x8] sm:$0xf]
      %v4504 = vld [vmem:[%s4500 + $0xc] sm:$0xf]
      %v4509 = vunpack.c.l.b16 %v4501
      %v4510 = vunpack.c.l.b16 %v4502
      %v4511 = vunpack.c.l.b16 %v4503
      %v4512 = vunpack.c.l.b16 %v4504
      %v4513 = vpack.c.b16 %v4510, %v4509
      %v4514 = vpack.c.b16 %v4512, %v4511
      %4517 = vmatpush.bf16.msra.mxu0 0
      %4518 = vmatpush.bf16.msra.mxu0 0
      %4519 = vmatpush.bf16.msra.mxu0 0
      %4520 = vmatpush.bf16.msra.mxu0 0
      %4521 = vmatpush.bf16.msra.mxu0 0
      %4522 = vmatpush.bf16.msra.mxu0 0
      %4523 = vmatpush.bf16.msra.mxu0 %v4514
      %4524 = vmatpush.bf16.msra.mxu0 %v4513
      %4525 = vmatmul.bf16.gmra.mxu0 %v2582
      %v4526 = vpop.f32.mrf.mxu0
      %v4527 = vadd.f32 0.0, %v4526
      %v4528 = vpop.f32.mrf.mxu0
      %v4529 = vadd.f32 0.0, %v4528
      %4530 = vmatmul.bf16.gmra.mxu0 %v2585
      %v4531 = vpop.f32.mrf.mxu0
      %v4532 = vadd.f32 0.0, %v4531
      %v4533 = vpop.f32.mrf.mxu0
      %v4534 = vadd.f32 0.0, %v4533
      %4535 = vmatmul.bf16.gmra.mxu0 %v2588
      %v4536 = vpop.f32.mrf.mxu0
      %v4537 = vadd.f32 0.0, %v4536
      %v4538 = vpop.f32.mrf.mxu0
      %v4539 = vadd.f32 0.0, %v4538
      %4540 = vmatmul.bf16.gmra.mxu0 %v2591
      %v4541 = vpop.f32.mrf.mxu0
      %v4542 = vadd.f32 0.0, %v4541
      %v4543 = vpop.f32.mrf.mxu0
      %v4544 = vadd.f32 0.0, %v4543
      %4545 = vmatmul.bf16.gmra.mxu0 %v2594
      %v4546 = vpop.f32.mrf.mxu0
      %v4547 = vadd.f32 0.0, %v4546
      %v4548 = vpop.f32.mrf.mxu0
      %v4549 = vadd.f32 0.0, %v4548
      %4550 = vdwg.mxu0
      %s4551 = scalar_lea.vmem %s15, 48
      %v4552 = vld [vmem:[%s4551] sm:$0xf]
      %v4553 = vld [vmem:[%s4551 + $0x4] sm:$0xf]
      %v4554 = vld [vmem:[%s4551 + $0x8] sm:$0xf]
      %v4555 = vld [vmem:[%s4551 + $0xc] sm:$0xf]
      %v4560 = vunpack.c.l.b16 %v4552
      %v4561 = vunpack.c.l.b16 %v4553
      %v4562 = vunpack.c.l.b16 %v4554
      %v4563 = vunpack.c.l.b16 %v4555
      %v4564 = vpack.c.b16 %v4561, %v4560
      %v4565 = vpack.c.b16 %v4563, %v4562
      %4568 = vmatpush.bf16.msra.mxu0 0
      %4569 = vmatpush.bf16.msra.mxu0 0
      %4570 = vmatpush.bf16.msra.mxu0 0
      %4571 = vmatpush.bf16.msra.mxu0 0
      %4572 = vmatpush.bf16.msra.mxu0 0
      %4573 = vmatpush.bf16.msra.mxu0 0
      %4574 = vmatpush.bf16.msra.mxu0 %v4565
      %4575 = vmatpush.bf16.msra.mxu0 %v4564
      %4576 = vmatmul.bf16.gmra.mxu0 %v2582
      %v4577 = vpop.f32.mrf.mxu0
      %v4578 = vadd.f32 0.0, %v4577
      %v4579 = vpop.f32.mrf.mxu0
      %v4580 = vadd.f32 0.0, %v4579
      %4581 = vmatmul.bf16.gmra.mxu0 %v2585
      %v4582 = vpop.f32.mrf.mxu0
      %v4583 = vadd.f32 0.0, %v4582
      %v4584 = vpop.f32.mrf.mxu0
      %v4585 = vadd.f32 0.0, %v4584
      %4586 = vmatmul.bf16.gmra.mxu0 %v2588
      %v4587 = vpop.f32.mrf.mxu0
      %v4588 = vadd.f32 0.0, %v4587
      %v4589 = vpop.f32.mrf.mxu0
      %v4590 = vadd.f32 0.0, %v4589
      %4591 = vmatmul.bf16.gmra.mxu0 %v2591
      %v4592 = vpop.f32.mrf.mxu0
      %v4593 = vadd.f32 0.0, %v4592
      %v4594 = vpop.f32.mrf.mxu0
      %v4595 = vadd.f32 0.0, %v4594
      %4596 = vmatmul.bf16.gmra.mxu0 %v2594
      %v4597 = vpop.f32.mrf.mxu0
      %v4598 = vadd.f32 0.0, %v4597
      %v4599 = vpop.f32.mrf.mxu0
      %v4600 = vadd.f32 0.0, %v4599
      %4601 = vdwg.mxu0
      %v4602 = vpack.c.bf16 %v4478, %v4476
      %v4603 = vpack.c.bf16 %v4483, %v4481
      %v4604 = vpack.c.bf16 %v4488, %v4486
      %v4605 = vpack.c.bf16 %v4493, %v4491
      %v4606 = vpack.c.bf16 %v4498, %v4496
      %v4607 = vpack.c.bf16 %v4529, %v4527
      %v4608 = vpack.c.bf16 %v4534, %v4532
      %v4609 = vpack.c.bf16 %v4539, %v4537
      %v4610 = vpack.c.bf16 %v4544, %v4542
      %v4611 = vpack.c.bf16 %v4549, %v4547
      %v4613 = vsel %vm2740, %v4602, 0
      %v4616 = vsel %vm2740, %v4603, 0
      %v4619 = vsel %vm2740, %v4604, 0
      %v4622 = vsel %vm2740, %v4605, 0
      %v4625 = vsel %vm2740, %v4606, 0
      %v4628 = vsel %vm2740, %v4607, 0
      %v4631 = vsel %vm2740, %v4608, 0
      %v4634 = vsel %vm2740, %v4609, 0
      %v4637 = vsel %vm2740, %v4610, 0
      %v4640 = vsel %vm2740, %v4611, 0
      %4642 = vmatpush.bf16.xpose.msra.mxu0 0
      %4643 = vmatpush.bf16.xpose.msra.mxu0 0
      %4644 = vmatpush.bf16.xpose.msra.mxu0 0
      %4645 = vmatpush.bf16.xpose.msra.mxu0 %v4640
      %4646 = vmatpush.bf16.xpose.msra.mxu0 %v4637
      %4647 = vmatpush.bf16.xpose.msra.mxu0 %v4634
      %4648 = vmatpush.bf16.xpose.msra.mxu0 %v4631
      %4649 = vmatpush.bf16.xpose.msra.mxu0 %v4628
      %4650 = vmatmul.bf16.gmra.mxu0 %v4613
      %v4651 = vpop.f32.mrf.mxu0
      %v4652 = vadd.f32 0.0, %v4651
      %v4653 = vpop.f32.mrf.mxu0
      %v4654 = vadd.f32 0.0, %v4653
      %4655 = vmatmul.bf16.gmra.mxu0 %v4616
      %v4656 = vpop.f32.mrf.mxu0
      %v4657 = vadd.f32 0.0, %v4656
      %v4658 = vpop.f32.mrf.mxu0
      %v4659 = vadd.f32 0.0, %v4658
      %4660 = vmatmul.bf16.gmra.mxu0 %v4619
      %v4661 = vpop.f32.mrf.mxu0
      %v4662 = vadd.f32 0.0, %v4661
      %v4663 = vpop.f32.mrf.mxu0
      %v4664 = vadd.f32 0.0, %v4663
      %4665 = vmatmul.bf16.gmra.mxu0 %v4622
      %v4666 = vpop.f32.mrf.mxu0
      %v4667 = vadd.f32 0.0, %v4666
      %v4668 = vpop.f32.mrf.mxu0
      %v4669 = vadd.f32 0.0, %v4668
      %4670 = vmatmul.bf16.gmra.mxu0 %v4625
      %v4671 = vpop.f32.mrf.mxu0
      %v4672 = vadd.f32 0.0, %v4671
      %v4673 = vpop.f32.mrf.mxu0
      %v4674 = vadd.f32 0.0, %v4673
      %4675 = vdwg.mxu0
      %v4676 = vmul.f32 %v4652, 0.35355338
      %v4677 = vmul.f32 %v4654, 0.35355338
      %v4678 = vmul.f32 %v4657, 0.35355338
      %v4679 = vmul.f32 %v4659, 0.35355338
      %v4680 = vmul.f32 %v4662, 0.35355338
      %v4681 = vmul.f32 %v4664, 0.35355338
      %v4682 = vmul.f32 %v4667, 0.35355338
      %v4683 = vmul.f32 %v4669, 0.35355338
      %v4684 = vmul.f32 %v4672, 0.35355338
      %v4685 = vmul.f32 %v4674, 0.35355338
      %v4686 = vsel %vm2555, %v4676, -1e+30
      %v4687 = vsel %vm2555, %v4677, -1e+30
      %v4688 = vsel %vm2555, %v4678, -1e+30
      %v4689 = vsel %vm2555, %v4679, -1e+30
      %v4690 = vsel %vm2555, %v4680, -1e+30
      %v4691 = vsel %vm2555, %v4681, -1e+30
      %v4692 = vsel %vm2555, %v4682, -1e+30
      %v4693 = vsel %vm2555, %v4683, -1e+30
      %v4694 = vsel %vm2555, %v4684, -1e+30
      %v4695 = vsel %vm2555, %v4685, -1e+30
      %v4696 = vsel %vm2825, %v4686, -inf
      %4697 = vmax.xlane.f32.xlu0 %v4696
      %v4698 = vpop.xlane.xlu0 %4697
      %v4699 = vsel %vm2825, %v4687, -inf
      %4700 = vmax.xlane.f32.xlu0 %v4699
      %v4701 = vpop.xlane.xlu0 %4700
      %v4702 = vsel %vm2825, %v4688, -inf
      %4703 = vmax.xlane.f32.xlu0 %v4702
      %v4704 = vpop.xlane.xlu0 %4703
      %v4705 = vsel %vm2825, %v4689, -inf
      %4706 = vmax.xlane.f32.xlu0 %v4705
      %v4707 = vpop.xlane.xlu0 %4706
      %v4708 = vsel %vm2825, %v4690, -inf
      %4709 = vmax.xlane.f32.xlu0 %v4708
      %v4710 = vpop.xlane.xlu0 %4709
      %v4711 = vsel %vm2825, %v4691, -inf
      %4712 = vmax.xlane.f32.xlu0 %v4711
      %v4713 = vpop.xlane.xlu0 %4712
      %v4714 = vsel %vm2825, %v4692, -inf
      %4715 = vmax.xlane.f32.xlu0 %v4714
      %v4716 = vpop.xlane.xlu0 %4715
      %v4717 = vsel %vm2825, %v4693, -inf
      %4718 = vmax.xlane.f32.xlu0 %v4717
      %v4719 = vpop.xlane.xlu0 %4718
      %v4720 = vsel %vm2825, %v4694, -inf
      %4721 = vmax.xlane.f32.xlu0 %v4720
      %v4722 = vpop.xlane.xlu0 %4721
      %v4723 = vsel %vm2825, %v4695, -inf
      %4724 = vmax.xlane.f32.xlu0 %v4723
      %v4725 = vpop.xlane.xlu0 %4724
      %v4726 = vsub.f32 %v4686, %v4698
      %v4727 = vsub.f32 %v4687, %v4701
      %v4728 = vsub.f32 %v4688, %v4704
      %v4729 = vsub.f32 %v4689, %v4707
      %v4730 = vsub.f32 %v4690, %v4710
      %v4731 = vsub.f32 %v4691, %v4713
      %v4732 = vsub.f32 %v4692, %v4716
      %v4733 = vsub.f32 %v4693, %v4719
      %v4734 = vsub.f32 %v4694, %v4722
      %v4735 = vsub.f32 %v4695, %v4725
      %v4736 = vmul.f32 %v4726, 1.442695
      %v4737 = vpow.pop %v4736
      %v4738 = vmul.f32 %v4727, 1.442695
      %v4739 = vpow.pop %v4738
      %v4740 = vmul.f32 %v4728, 1.442695
      %v4741 = vpow.pop %v4740
      %v4742 = vmul.f32 %v4729, 1.442695
      %v4743 = vpow.pop %v4742
      %v4744 = vmul.f32 %v4730, 1.442695
      %v4745 = vpow.pop %v4744
      %v4746 = vmul.f32 %v4731, 1.442695
      %v4747 = vpow.pop %v4746
      %v4748 = vmul.f32 %v4732, 1.442695
      %v4749 = vpow.pop %v4748
      %v4750 = vmul.f32 %v4733, 1.442695
      %v4751 = vpow.pop %v4750
      %v4752 = vmul.f32 %v4734, 1.442695
      %v4753 = vpow.pop %v4752
      %v4754 = vmul.f32 %v4735, 1.442695
      %v4755 = vpow.pop %v4754
      %v4756 = vsel %vm2825, %v4737, 0.0
      %4757 = vadd.xlane.f32.xlu0 %v4756
      %v4758 = vpop.xlane.xlu0 %4757
      %v4759 = vsel %vm2825, %v4739, 0.0
      %4760 = vadd.xlane.f32.xlu0 %v4759
      %v4761 = vpop.xlane.xlu0 %4760
      %v4762 = vsel %vm2825, %v4741, 0.0
      %4763 = vadd.xlane.f32.xlu0 %v4762
      %v4764 = vpop.xlane.xlu0 %4763
      %v4765 = vsel %vm2825, %v4743, 0.0
      %4766 = vadd.xlane.f32.xlu0 %v4765
      %v4767 = vpop.xlane.xlu0 %4766
      %v4768 = vsel %vm2825, %v4745, 0.0
      %4769 = vadd.xlane.f32.xlu0 %v4768
      %v4770 = vpop.xlane.xlu0 %4769
      %v4771 = vsel %vm2825, %v4747, 0.0
      %4772 = vadd.xlane.f32.xlu0 %v4771
      %v4773 = vpop.xlane.xlu0 %4772
      %v4774 = vsel %vm2825, %v4749, 0.0
      %4775 = vadd.xlane.f32.xlu0 %v4774
      %v4776 = vpop.xlane.xlu0 %4775
      %v4777 = vsel %vm2825, %v4751, 0.0
      %4778 = vadd.xlane.f32.xlu0 %v4777
      %v4779 = vpop.xlane.xlu0 %4778
      %v4780 = vsel %vm2825, %v4753, 0.0
      %4781 = vadd.xlane.f32.xlu0 %v4780
      %v4782 = vpop.xlane.xlu0 %4781
      %v4783 = vsel %vm2825, %v4755, 0.0
      %4784 = vadd.xlane.f32.xlu0 %v4783
      %v4785 = vpop.xlane.xlu0 %4784
      %v4786 = vpack.c.bf16 %v4580, %v4578
      %v4787 = vpack.c.bf16 %v4585, %v4583
      %v4788 = vpack.c.bf16 %v4590, %v4588
      %v4789 = vpack.c.bf16 %v4595, %v4593
      %v4790 = vpack.c.bf16 %v4600, %v4598
      %v4791 = vpack.c.bf16 %v4739, %v4737
      %v4792 = vpack.c.bf16 %v4743, %v4741
      %v4793 = vpack.c.bf16 %v4747, %v4745
      %v4794 = vpack.c.bf16 %v4751, %v4749
      %v4795 = vpack.c.bf16 %v4755, %v4753
      %v4797 = vsel %vm2825, %v4791, 0
      %v4800 = vsel %vm2825, %v4792, 0
      %v4803 = vsel %vm2825, %v4793, 0
      %v4806 = vsel %vm2825, %v4794, 0
      %v4809 = vsel %vm2825, %v4795, 0
      %4811 = vmatpush.bf16.msra.mxu0 0
      %4812 = vmatpush.bf16.msra.mxu0 0
      %4813 = vmatpush.bf16.msra.mxu0 0
      %4814 = vmatpush.bf16.msra.mxu0 %v4790
      %4815 = vmatpush.bf16.msra.mxu0 %v4789
      %4816 = vmatpush.bf16.msra.mxu0 %v4788
      %4817 = vmatpush.bf16.msra.mxu0 %v4787
      %4818 = vmatpush.bf16.msra.mxu0 %v4786
      %4819 = vmatmul.bf16.gmra.mxu0 %v4797
      %v4820 = vpop.f32.mrf.mxu0
      %v4821 = vadd.f32 0.0, %v4820
      %v4822 = vpop.f32.mrf.mxu0
      %v4823 = vadd.f32 0.0, %v4822
      %4824 = vmatmul.bf16.gmra.mxu0 %v4800
      %v4825 = vpop.f32.mrf.mxu0
      %v4826 = vadd.f32 0.0, %v4825
      %v4827 = vpop.f32.mrf.mxu0
      %v4828 = vadd.f32 0.0, %v4827
      %4829 = vmatmul.bf16.gmra.mxu0 %v4803
      %v4830 = vpop.f32.mrf.mxu0
      %v4831 = vadd.f32 0.0, %v4830
      %v4832 = vpop.f32.mrf.mxu0
      %v4833 = vadd.f32 0.0, %v4832
      %4834 = vmatmul.bf16.gmra.mxu0 %v4806
      %v4835 = vpop.f32.mrf.mxu0
      %v4836 = vadd.f32 0.0, %v4835
      %v4837 = vpop.f32.mrf.mxu0
      %v4838 = vadd.f32 0.0, %v4837
      %4839 = vmatmul.bf16.gmra.mxu0 %v4809
      %v4840 = vpop.f32.mrf.mxu0
      %v4841 = vadd.f32 0.0, %v4840
      %v4842 = vpop.f32.mrf.mxu0
      %v4843 = vadd.f32 0.0, %v4842
      %4844 = vdwg.mxu0
      %v4845 = vrcp.pop %v4758
      %v4846 = vmul.f32 %v4758, %v4845
      %v4847 = vsub.f32 1.0, %v4846
      %v4848 = vmul.f32 %v4845, %v4847
      %v4849 = vadd.f32 %v4845, %v4848
      %vm4850 = vweird.f32 %v4758
      %vm4851 = vweird.f32 %v4845
      %vm4852 = vmor %vm4850, %vm4851
      %v4853 = vsel %vm4852, %v4845, %v4849
      %v4854 = vand.u32 2147483647, %v4758
      %vm4855 = vcmp.eq.f32.partialorder %v4854, 8.507059e+37
      %v4856 = vand.u32 %v4758, 2147483648
      %v4857 = vor.u32 1.1754944e-38, %v4856
      %v4858 = vsel %vm4855, %v4857, %v4853
      %v4859 = vmul.f32 1.0, %v4858
      %v4860 = vrcp.pop %v4761
      %v4861 = vmul.f32 %v4761, %v4860
      %v4862 = vsub.f32 1.0, %v4861
      %v4863 = vmul.f32 %v4860, %v4862
      %v4864 = vadd.f32 %v4860, %v4863
      %vm4865 = vweird.f32 %v4761
      %vm4866 = vweird.f32 %v4860
      %vm4867 = vmor %vm4865, %vm4866
      %v4868 = vsel %vm4867, %v4860, %v4864
      %v4869 = vand.u32 2147483647, %v4761
      %vm4870 = vcmp.eq.f32.partialorder %v4869, 8.507059e+37
      %v4871 = vand.u32 %v4761, 2147483648
      %v4872 = vor.u32 1.1754944e-38, %v4871
      %v4873 = vsel %vm4870, %v4872, %v4868
      %v4874 = vmul.f32 1.0, %v4873
      %v4875 = vrcp.pop %v4764
      %v4876 = vmul.f32 %v4764, %v4875
      %v4877 = vsub.f32 1.0, %v4876
      %v4878 = vmul.f32 %v4875, %v4877
      %v4879 = vadd.f32 %v4875, %v4878
      %vm4880 = vweird.f32 %v4764
      %vm4881 = vweird.f32 %v4875
      %vm4882 = vmor %vm4880, %vm4881
      %v4883 = vsel %vm4882, %v4875, %v4879
      %v4884 = vand.u32 2147483647, %v4764
      %vm4885 = vcmp.eq.f32.partialorder %v4884, 8.507059e+37
      %v4886 = vand.u32 %v4764, 2147483648
      %v4887 = vor.u32 1.1754944e-38, %v4886
      %v4888 = vsel %vm4885, %v4887, %v4883
      %v4889 = vmul.f32 1.0, %v4888
      %v4890 = vrcp.pop %v4767
      %v4891 = vmul.f32 %v4767, %v4890
      %v4892 = vsub.f32 1.0, %v4891
      %v4893 = vmul.f32 %v4890, %v4892
      %v4894 = vadd.f32 %v4890, %v4893
      %vm4895 = vweird.f32 %v4767
      %vm4896 = vweird.f32 %v4890
      %vm4897 = vmor %vm4895, %vm4896
      %v4898 = vsel %vm4897, %v4890, %v4894
      %v4899 = vand.u32 2147483647, %v4767
      %vm4900 = vcmp.eq.f32.partialorder %v4899, 8.507059e+37
      %v4901 = vand.u32 %v4767, 2147483648
      %v4902 = vor.u32 1.1754944e-38, %v4901
      %v4903 = vsel %vm4900, %v4902, %v4898
      %v4904 = vmul.f32 1.0, %v4903
      %v4905 = vrcp.pop %v4770
      %v4906 = vmul.f32 %v4770, %v4905
      %v4907 = vsub.f32 1.0, %v4906
      %v4908 = vmul.f32 %v4905, %v4907
      %v4909 = vadd.f32 %v4905, %v4908
      %vm4910 = vweird.f32 %v4770
      %vm4911 = vweird.f32 %v4905
      %vm4912 = vmor %vm4910, %vm4911
      %v4913 = vsel %vm4912, %v4905, %v4909
      %v4914 = vand.u32 2147483647, %v4770
      %vm4915 = vcmp.eq.f32.partialorder %v4914, 8.507059e+37
      %v4916 = vand.u32 %v4770, 2147483648
      %v4917 = vor.u32 1.1754944e-38, %v4916
      %v4918 = vsel %vm4915, %v4917, %v4913
      %v4919 = vmul.f32 1.0, %v4918
      %v4920 = vrcp.pop %v4773
      %v4921 = vmul.f32 %v4773, %v4920
      %v4922 = vsub.f32 1.0, %v4921
      %v4923 = vmul.f32 %v4920, %v4922
      %v4924 = vadd.f32 %v4920, %v4923
      %vm4925 = vweird.f32 %v4773
      %vm4926 = vweird.f32 %v4920
      %vm4927 = vmor %vm4925, %vm4926
      %v4928 = vsel %vm4927, %v4920, %v4924
      %v4929 = vand.u32 2147483647, %v4773
      %vm4930 = vcmp.eq.f32.partialorder %v4929, 8.507059e+37
      %v4931 = vand.u32 %v4773, 2147483648
      %v4932 = vor.u32 1.1754944e-38, %v4931
      %v4933 = vsel %vm4930, %v4932, %v4928
      %v4934 = vmul.f32 1.0, %v4933
      %v4935 = vrcp.pop %v4776
      %v4936 = vmul.f32 %v4776, %v4935
      %v4937 = vsub.f32 1.0, %v4936
      %v4938 = vmul.f32 %v4935, %v4937
      %v4939 = vadd.f32 %v4935, %v4938
      %vm4940 = vweird.f32 %v4776
      %vm4941 = vweird.f32 %v4935
      %vm4942 = vmor %vm4940, %vm4941
      %v4943 = vsel %vm4942, %v4935, %v4939
      %v4944 = vand.u32 2147483647, %v4776
      %vm4945 = vcmp.eq.f32.partialorder %v4944, 8.507059e+37
      %v4946 = vand.u32 %v4776, 2147483648
      %v4947 = vor.u32 1.1754944e-38, %v4946
      %v4948 = vsel %vm4945, %v4947, %v4943
      %v4949 = vmul.f32 1.0, %v4948
      %v4950 = vrcp.pop %v4779
      %v4951 = vmul.f32 %v4779, %v4950
      %v4952 = vsub.f32 1.0, %v4951
      %v4953 = vmul.f32 %v4950, %v4952
      %v4954 = vadd.f32 %v4950, %v4953
      %vm4955 = vweird.f32 %v4779
      %vm4956 = vweird.f32 %v4950
      %vm4957 = vmor %vm4955, %vm4956
      %v4958 = vsel %vm4957, %v4950, %v4954
      %v4959 = vand.u32 2147483647, %v4779
      %vm4960 = vcmp.eq.f32.partialorder %v4959, 8.507059e+37
      %v4961 = vand.u32 %v4779, 2147483648
      %v4962 = vor.u32 1.1754944e-38, %v4961
      %v4963 = vsel %vm4960, %v4962, %v4958
      %v4964 = vmul.f32 1.0, %v4963
      %v4965 = vrcp.pop %v4782
      %v4966 = vmul.f32 %v4782, %v4965
      %v4967 = vsub.f32 1.0, %v4966
      %v4968 = vmul.f32 %v4965, %v4967
      %v4969 = vadd.f32 %v4965, %v4968
      %vm4970 = vweird.f32 %v4782
      %vm4971 = vweird.f32 %v4965
      %vm4972 = vmor %vm4970, %vm4971
      %v4973 = vsel %vm4972, %v4965, %v4969
      %v4974 = vand.u32 2147483647, %v4782
      %vm4975 = vcmp.eq.f32.partialorder %v4974, 8.507059e+37
      %v4976 = vand.u32 %v4782, 2147483648
      %v4977 = vor.u32 1.1754944e-38, %v4976
      %v4978 = vsel %vm4975, %v4977, %v4973
      %v4979 = vmul.f32 1.0, %v4978
      %v4980 = vrcp.pop %v4785
      %v4981 = vmul.f32 %v4785, %v4980
      %v4982 = vsub.f32 1.0, %v4981
      %v4983 = vmul.f32 %v4980, %v4982
      %v4984 = vadd.f32 %v4980, %v4983
      %vm4985 = vweird.f32 %v4785
      %vm4986 = vweird.f32 %v4980
      %vm4987 = vmor %vm4985, %vm4986
      %v4988 = vsel %vm4987, %v4980, %v4984
      %v4989 = vand.u32 2147483647, %v4785
      %vm4990 = vcmp.eq.f32.partialorder %v4989, 8.507059e+37
      %v4991 = vand.u32 %v4785, 2147483648
      %v4992 = vor.u32 1.1754944e-38, %v4991
      %v4993 = vsel %vm4990, %v4992, %v4988
      %v4994 = vmul.f32 1.0, %v4993
      %v4995 = vmul.f32 %v4821, %v4859
      %v4996 = vmul.f32 %v4823, %v4874
      %v4997 = vmul.f32 %v4826, %v4889
      %v4998 = vmul.f32 %v4828, %v4904
      %v4999 = vmul.f32 %v4831, %v4919
      %v5000 = vmul.f32 %v4833, %v4934
      %v5001 = vmul.f32 %v4836, %v4949
      %v5002 = vmul.f32 %v4838, %v4964
      %v5003 = vmul.f32 %v4841, %v4979
      %v5004 = vmul.f32 %v4843, %v4994
      %s5005 = scalar_lea.vmem %s17, 12
      %v5006 = vld [vmem:[%s5005] sm:$0xf]
      %v5007 = vpack.c.bf16 %v4996, %v4995
      %v5008 = vpack.c.bf16 %v4998, %v4997
      %v5009 = vpack.c.bf16 %v5000, %v4999
      %v5010 = vpack.c.bf16 %v5002, %v5001
      %v5011 = vpack.c.bf16 %v5004, %v5003
      %v5013 = vsel %vm2740, %v5007, 0
      %v5016 = vsel %vm2740, %v5008, 0
      %v5019 = vsel %vm2740, %v5009, 0
      %v5022 = vsel %vm2740, %v5010, 0
      %v5025 = vsel %vm2740, %v5011, 0
      %v5028 = vsel %vm3724, %v5006, 0
      %5030 = vmatpush.bf16.msra.mxu0 0
      %5031 = vmatpush.bf16.msra.mxu0 0
      %5032 = vmatpush.bf16.msra.mxu0 0
      %5033 = vmatpush.bf16.msra.mxu0 0
      %5034 = vmatpush.bf16.msra.mxu0 0
      %5035 = vmatpush.bf16.msra.mxu0 0
      %5036 = vmatpush.bf16.msra.mxu0 0
      %5037 = vmatpush.bf16.msra.mxu0 %v5028
      %5038 = vmatmul.bf16.gmra.mxu0 %v5013
      %v5039 = vpop.f32.mrf.mxu0
      %v5040 = vadd.f32 0.0, %v5039
      %v5041 = vpop.f32.mrf.mxu0
      %v5042 = vadd.f32 0.0, %v5041
      %5043 = vmatmul.bf16.gmra.mxu0 %v5016
      %v5044 = vpop.f32.mrf.mxu0
      %v5045 = vadd.f32 0.0, %v5044
      %v5046 = vpop.f32.mrf.mxu0
      %v5047 = vadd.f32 0.0, %v5046
      %5048 = vmatmul.bf16.gmra.mxu0 %v5019
      %v5049 = vpop.f32.mrf.mxu0
      %v5050 = vadd.f32 0.0, %v5049
      %v5051 = vpop.f32.mrf.mxu0
      %v5052 = vadd.f32 0.0, %v5051
      %5053 = vmatmul.bf16.gmra.mxu0 %v5022
      %v5054 = vpop.f32.mrf.mxu0
      %v5055 = vadd.f32 0.0, %v5054
      %v5056 = vpop.f32.mrf.mxu0
      %v5057 = vadd.f32 0.0, %v5056
      %5058 = vmatmul.bf16.gmra.mxu0 %v5025
      %v5059 = vpop.f32.mrf.mxu0
      %v5060 = vadd.f32 0.0, %v5059
      %v5061 = vpop.f32.mrf.mxu0
      %v5062 = vadd.f32 0.0, %v5061
      %5063 = vdwg.mxu0
      %v5064 = vadd.f32 %v4434, %v5040
      %v5065 = vadd.f32 %v4435, %v5042
      %v5066 = vadd.f32 %v4436, %v5045
      %v5067 = vadd.f32 %v4437, %v5047
      %v5068 = vadd.f32 %v4438, %v5050
      %v5069 = vadd.f32 %v4439, %v5052
      %v5070 = vadd.f32 %v4440, %v5055
      %v5071 = vadd.f32 %v4441, %v5057
      %v5072 = vadd.f32 %v4442, %v5060
      %v5073 = vadd.f32 %v4443, %v5062
      %v5074 = vld [vmem:[%s18] sm:$0x1]
      %v5076 = vperm.slane %v5074, 0
      %v5078 = vadd.f32 %v5064, %v5076
      %v5079 = vadd.f32 %v5065, %v5076
      %v5080 = vadd.f32 %v5066, %v5076
      %v5081 = vadd.f32 %v5067, %v5076
      %v5082 = vadd.f32 %v5068, %v5076
      %v5083 = vadd.f32 %v5069, %v5076
      %v5084 = vadd.f32 %v5070, %v5076
      %v5085 = vadd.f32 %v5071, %v5076
      %v5086 = vadd.f32 %v5072, %v5076
      %v5087 = vadd.f32 %v5073, %v5076
      %v5088 = vadd.f32 %v5078, %v2543
      %v5089 = vadd.f32 %v5079, %v2544
      %v5090 = vadd.f32 %v5080, %v2545
      %v5091 = vadd.f32 %v5081, %v2546
      %v5092 = vadd.f32 %v5082, %v2547
      %v5093 = vadd.f32 %v5083, %v2548
      %v5094 = vadd.f32 %v5084, %v2549
      %v5095 = vadd.f32 %v5085, %v2550
      %v5096 = vadd.f32 %v5086, %v2551
      %v5097 = vadd.f32 %v5087, %v2552
      %v5098 = vld [vmem:[%s19] sm:$0x1]
      %v5099 = vld [vmem:[%s20] sm:$0x1]
      %v5100 = vsel %vm1254, %v5088, 0.0
      %5101 = vadd.xlane.f32.xlu0 %v5100
      %v5102 = vpop.xlane.xlu0 %5101
      %v5103 = vsel %vm1254, %v5089, 0.0
      %5104 = vadd.xlane.f32.xlu0 %v5103
      %v5105 = vpop.xlane.xlu0 %5104
      %v5106 = vsel %vm1254, %v5090, 0.0
      %5107 = vadd.xlane.f32.xlu0 %v5106
      %v5108 = vpop.xlane.xlu0 %5107
      %v5109 = vsel %vm1254, %v5091, 0.0
      %5110 = vadd.xlane.f32.xlu0 %v5109
      %v5111 = vpop.xlane.xlu0 %5110
      %v5112 = vsel %vm1254, %v5092, 0.0
      %5113 = vadd.xlane.f32.xlu0 %v5112
      %v5114 = vpop.xlane.xlu0 %5113
      %v5115 = vsel %vm1254, %v5093, 0.0
      %5116 = vadd.xlane.f32.xlu0 %v5115
      %v5117 = vpop.xlane.xlu0 %5116
      %v5118 = vsel %vm1254, %v5094, 0.0
      %5119 = vadd.xlane.f32.xlu0 %v5118
      %v5120 = vpop.xlane.xlu0 %5119
      %v5121 = vsel %vm1254, %v5095, 0.0
      %5122 = vadd.xlane.f32.xlu0 %v5121
      %v5123 = vpop.xlane.xlu0 %5122
      %v5124 = vsel %vm1254, %v5096, 0.0
      %5125 = vadd.xlane.f32.xlu0 %v5124
      %v5126 = vpop.xlane.xlu0 %5125
      %v5127 = vsel %vm1254, %v5097, 0.0
      %5128 = vadd.xlane.f32.xlu0 %v5127
      %v5129 = vpop.xlane.xlu0 %5128
      %v5130 = vmul.f32 %v5102, %v1608
      %v5131 = vmul.f32 %v5105, %v1608
      %v5132 = vmul.f32 %v5108, %v1608
      %v5133 = vmul.f32 %v5111, %v1608
      %v5134 = vmul.f32 %v5114, %v1608
      %v5135 = vmul.f32 %v5117, %v1608
      %v5136 = vmul.f32 %v5120, %v1608
      %v5137 = vmul.f32 %v5123, %v1608
      %v5138 = vmul.f32 %v5126, %v1608
      %v5139 = vmul.f32 %v5129, %v1608
      %v5140 = vsub.f32 %v5088, %v5130
      %v5141 = vsub.f32 %v5089, %v5131
      %v5142 = vsub.f32 %v5090, %v5132
      %v5143 = vsub.f32 %v5091, %v5133
      %v5144 = vsub.f32 %v5092, %v5134
      %v5145 = vsub.f32 %v5093, %v5135
      %v5146 = vsub.f32 %v5094, %v5136
      %v5147 = vsub.f32 %v5095, %v5137
      %v5148 = vsub.f32 %v5096, %v5138
      %v5149 = vsub.f32 %v5097, %v5139
      %v5150 = vmul.f32 %v5140, %v5140
      %v5151 = vmul.f32 %v5141, %v5141
      %v5152 = vmul.f32 %v5142, %v5142
      %v5153 = vmul.f32 %v5143, %v5143
      %v5154 = vmul.f32 %v5144, %v5144
      %v5155 = vmul.f32 %v5145, %v5145
      %v5156 = vmul.f32 %v5146, %v5146
      %v5157 = vmul.f32 %v5147, %v5147
      %v5158 = vmul.f32 %v5148, %v5148
      %v5159 = vmul.f32 %v5149, %v5149
      %v5160 = vsel %vm1254, %v5150, 0.0
      %5161 = vadd.xlane.f32.xlu0 %v5160
      %v5162 = vpop.xlane.xlu0 %5161
      %v5163 = vsel %vm1254, %v5151, 0.0
      %5164 = vadd.xlane.f32.xlu0 %v5163
      %v5165 = vpop.xlane.xlu0 %5164
      %v5166 = vsel %vm1254, %v5152, 0.0
      %5167 = vadd.xlane.f32.xlu0 %v5166
      %v5168 = vpop.xlane.xlu0 %5167
      %v5169 = vsel %vm1254, %v5153, 0.0
      %5170 = vadd.xlane.f32.xlu0 %v5169
      %v5171 = vpop.xlane.xlu0 %5170
      %v5172 = vsel %vm1254, %v5154, 0.0
      %5173 = vadd.xlane.f32.xlu0 %v5172
      %v5174 = vpop.xlane.xlu0 %5173
      %v5175 = vsel %vm1254, %v5155, 0.0
      %5176 = vadd.xlane.f32.xlu0 %v5175
      %v5177 = vpop.xlane.xlu0 %5176
      %v5178 = vsel %vm1254, %v5156, 0.0
      %5179 = vadd.xlane.f32.xlu0 %v5178
      %v5180 = vpop.xlane.xlu0 %5179
      %v5181 = vsel %vm1254, %v5157, 0.0
      %5182 = vadd.xlane.f32.xlu0 %v5181
      %v5183 = vpop.xlane.xlu0 %5182
      %v5184 = vsel %vm1254, %v5158, 0.0
      %5185 = vadd.xlane.f32.xlu0 %v5184
      %v5186 = vpop.xlane.xlu0 %5185
      %v5187 = vsel %vm1254, %v5159, 0.0
      %5188 = vadd.xlane.f32.xlu0 %v5187
      %v5189 = vpop.xlane.xlu0 %5188
      %v5190 = vmul.f32 %v5162, %v1608
      %v5191 = vmul.f32 %v5165, %v1608
      %v5192 = vmul.f32 %v5168, %v1608
      %v5193 = vmul.f32 %v5171, %v1608
      %v5194 = vmul.f32 %v5174, %v1608
      %v5195 = vmul.f32 %v5177, %v1608
      %v5196 = vmul.f32 %v5180, %v1608
      %v5197 = vmul.f32 %v5183, %v1608
      %v5198 = vmul.f32 %v5186, %v1608
      %v5199 = vmul.f32 %v5189, %v1608
      %v5200 = vadd.f32 %v5190, 1e-05
      %v5201 = vadd.f32 %v5191, 1e-05
      %v5202 = vadd.f32 %v5192, 1e-05
      %v5203 = vadd.f32 %v5193, 1e-05
      %v5204 = vadd.f32 %v5194, 1e-05
      %v5205 = vadd.f32 %v5195, 1e-05
      %v5206 = vadd.f32 %v5196, 1e-05
      %v5207 = vadd.f32 %v5197, 1e-05
      %v5208 = vadd.f32 %v5198, 1e-05
      %v5209 = vadd.f32 %v5199, 1e-05
      %v5210 = vrsqrt.pop %v5200
      %v5211 = vmul.f32 %v5210, %v5200
      %v5212 = vmul.f32 %v5211, %v5210
      %v5213 = vmul.f32 0.5, %v5212
      %v5214 = vsub.f32 1.5, %v5213
      %v5215 = vmul.f32 %v5210, %v5214
      %vm5216 = vweird.f32 %v5200
      %vm5217 = vweird.f32 %v5210
      %vm5218 = vmor %vm5216, %vm5217
      %v5219 = vsel %vm5218, %v5210, %v5215
      %v5220 = vrsqrt.pop %v5201
      %v5221 = vmul.f32 %v5220, %v5201
      %v5222 = vmul.f32 %v5221, %v5220
      %v5223 = vmul.f32 0.5, %v5222
      %v5224 = vsub.f32 1.5, %v5223
      %v5225 = vmul.f32 %v5220, %v5224
      %vm5226 = vweird.f32 %v5201
      %vm5227 = vweird.f32 %v5220
      %vm5228 = vmor %vm5226, %vm5227
      %v5229 = vsel %vm5228, %v5220, %v5225
      %v5230 = vrsqrt.pop %v5202
      %v5231 = vmul.f32 %v5230, %v5202
      %v5232 = vmul.f32 %v5231, %v5230
      %v5233 = vmul.f32 0.5, %v5232
      %v5234 = vsub.f32 1.5, %v5233
      %v5235 = vmul.f32 %v5230, %v5234
      %vm5236 = vweird.f32 %v5202
      %vm5237 = vweird.f32 %v5230
      %vm5238 = vmor %vm5236, %vm5237
      %v5239 = vsel %vm5238, %v5230, %v5235
      %v5240 = vrsqrt.pop %v5203
      %v5241 = vmul.f32 %v5240, %v5203
      %v5242 = vmul.f32 %v5241, %v5240
      %v5243 = vmul.f32 0.5, %v5242
      %v5244 = vsub.f32 1.5, %v5243
      %v5245 = vmul.f32 %v5240, %v5244
      %vm5246 = vweird.f32 %v5203
      %vm5247 = vweird.f32 %v5240
      %vm5248 = vmor %vm5246, %vm5247
      %v5249 = vsel %vm5248, %v5240, %v5245
      %v5250 = vrsqrt.pop %v5204
      %v5251 = vmul.f32 %v5250, %v5204
      %v5252 = vmul.f32 %v5251, %v5250
      %v5253 = vmul.f32 0.5, %v5252
      %v5254 = vsub.f32 1.5, %v5253
      %v5255 = vmul.f32 %v5250, %v5254
      %vm5256 = vweird.f32 %v5204
      %vm5257 = vweird.f32 %v5250
      %vm5258 = vmor %vm5256, %vm5257
      %v5259 = vsel %vm5258, %v5250, %v5255
      %v5260 = vrsqrt.pop %v5205
      %v5261 = vmul.f32 %v5260, %v5205
      %v5262 = vmul.f32 %v5261, %v5260
      %v5263 = vmul.f32 0.5, %v5262
      %v5264 = vsub.f32 1.5, %v5263
      %v5265 = vmul.f32 %v5260, %v5264
      %vm5266 = vweird.f32 %v5205
      %vm5267 = vweird.f32 %v5260
      %vm5268 = vmor %vm5266, %vm5267
      %v5269 = vsel %vm5268, %v5260, %v5265
      %v5270 = vrsqrt.pop %v5206
      %v5271 = vmul.f32 %v5270, %v5206
      %v5272 = vmul.f32 %v5271, %v5270
      %v5273 = vmul.f32 0.5, %v5272
      %v5274 = vsub.f32 1.5, %v5273
      %v5275 = vmul.f32 %v5270, %v5274
      %vm5276 = vweird.f32 %v5206
      %vm5277 = vweird.f32 %v5270
      %vm5278 = vmor %vm5276, %vm5277
      %v5279 = vsel %vm5278, %v5270, %v5275
      %v5280 = vrsqrt.pop %v5207
      %v5281 = vmul.f32 %v5280, %v5207
      %v5282 = vmul.f32 %v5281, %v5280
      %v5283 = vmul.f32 0.5, %v5282
      %v5284 = vsub.f32 1.5, %v5283
      %v5285 = vmul.f32 %v5280, %v5284
      %vm5286 = vweird.f32 %v5207
      %vm5287 = vweird.f32 %v5280
      %vm5288 = vmor %vm5286, %vm5287
      %v5289 = vsel %vm5288, %v5280, %v5285
      %v5290 = vrsqrt.pop %v5208
      %v5291 = vmul.f32 %v5290, %v5208
      %v5292 = vmul.f32 %v5291, %v5290
      %v5293 = vmul.f32 0.5, %v5292
      %v5294 = vsub.f32 1.5, %v5293
      %v5295 = vmul.f32 %v5290, %v5294
      %vm5296 = vweird.f32 %v5208
      %vm5297 = vweird.f32 %v5290
      %vm5298 = vmor %vm5296, %vm5297
      %v5299 = vsel %vm5298, %v5290, %v5295
      %v5300 = vrsqrt.pop %v5209
      %v5301 = vmul.f32 %v5300, %v5209
      %v5302 = vmul.f32 %v5301, %v5300
      %v5303 = vmul.f32 0.5, %v5302
      %v5304 = vsub.f32 1.5, %v5303
      %v5305 = vmul.f32 %v5300, %v5304
      %vm5306 = vweird.f32 %v5209
      %vm5307 = vweird.f32 %v5300
      %vm5308 = vmor %vm5306, %vm5307
      %v5309 = vsel %vm5308, %v5300, %v5305
      %v5310 = vmul.f32 %v5140, %v5219
      %v5311 = vmul.f32 %v5141, %v5229
      %v5312 = vmul.f32 %v5142, %v5239
      %v5313 = vmul.f32 %v5143, %v5249
      %v5314 = vmul.f32 %v5144, %v5259
      %v5315 = vmul.f32 %v5145, %v5269
      %v5316 = vmul.f32 %v5146, %v5279
      %v5317 = vmul.f32 %v5147, %v5289
      %v5318 = vmul.f32 %v5148, %v5299
      %v5319 = vmul.f32 %v5149, %v5309
      %v5321 = vperm.slane %v5098, 0
      %v5323 = vmul.f32 %v5310, %v5321
      %v5324 = vmul.f32 %v5311, %v5321
      %v5325 = vmul.f32 %v5312, %v5321
      %v5326 = vmul.f32 %v5313, %v5321
      %v5327 = vmul.f32 %v5314, %v5321
      %v5328 = vmul.f32 %v5315, %v5321
      %v5329 = vmul.f32 %v5316, %v5321
      %v5330 = vmul.f32 %v5317, %v5321
      %v5331 = vmul.f32 %v5318, %v5321
      %v5332 = vmul.f32 %v5319, %v5321
      %v5334 = vperm.slane %v5099, 0
      %v5336 = vadd.f32 %v5323, %v5334
      %v5337 = vadd.f32 %v5324, %v5334
      %v5338 = vadd.f32 %v5325, %v5334
      %v5339 = vadd.f32 %v5326, %v5334
      %v5340 = vadd.f32 %v5327, %v5334
      %v5341 = vadd.f32 %v5328, %v5334
      %v5342 = vadd.f32 %v5329, %v5334
      %v5343 = vadd.f32 %v5330, %v5334
      %v5344 = vadd.f32 %v5331, %v5334
      %v5345 = vadd.f32 %v5332, %v5334
      %v5346 = vld [vmem:[%s21] sm:$0xf]
      %v5347 = vld [vmem:[%s21 + $0x4] sm:$0xf]
      %v5348 = vld [vmem:[%s21 + $0x8] sm:$0xf]
      %v5349 = vld [vmem:[%s21 + $0xc] sm:$0xf]
      %v5350 = vpack.c.bf16 %v5337, %v5336
      %v5351 = vpack.c.bf16 %v5339, %v5338
      %v5352 = vpack.c.bf16 %v5341, %v5340
      %v5353 = vpack.c.bf16 %v5343, %v5342
      %v5354 = vpack.c.bf16 %v5345, %v5344
      %v5355 = vld [vmem:[%s22] sm:$0x1]
      %v5357 = vperm.slane %v5355, 0
      %v5363 = vunpack.c.l.b16 %v5346
      %v5364 = vunpack.c.l.b16 %v5347
      %v5365 = vunpack.c.l.b16 %v5348
      %v5366 = vunpack.c.l.b16 %v5349
      %v5367 = vpack.c.b16 %v5364, %v5363
      %v5368 = vpack.c.b16 %v5366, %v5365
      %v5372 = vsel %vm1254, %v5350, 0
      %v5375 = vsel %vm1254, %v5351, 0
      %v5378 = vsel %vm1254, %v5352, 0
      %v5381 = vsel %vm1254, %v5353, 0
      %v5384 = vsel %vm1254, %v5354, 0
      %5386 = vmatpush.bf16.msra.mxu0 0
      %5387 = vmatpush.bf16.msra.mxu0 0
      %5388 = vmatpush.bf16.msra.mxu0 0
      %5389 = vmatpush.bf16.msra.mxu0 0
      %5390 = vmatpush.bf16.msra.mxu0 0
      %5391 = vmatpush.bf16.msra.mxu0 0
      %5392 = vmatpush.bf16.msra.mxu0 %v5368
      %5393 = vmatpush.bf16.msra.mxu0 %v5367
      %5394 = vmatmul.bf16.gmra.mxu0 %v5372
      %v5395 = vpop.f32.mrf.mxu0
      %v5396 = vadd.f32 %v5357, %v5395
      %v5397 = vpop.f32.mrf.mxu0
      %v5398 = vadd.f32 %v5357, %v5397
      %5399 = vmatmul.bf16.gmra.mxu0 %v5375
      %v5400 = vpop.f32.mrf.mxu0
      %v5401 = vadd.f32 %v5357, %v5400
      %v5402 = vpop.f32.mrf.mxu0
      %v5403 = vadd.f32 %v5357, %v5402
      %5404 = vmatmul.bf16.gmra.mxu0 %v5378
      %v5405 = vpop.f32.mrf.mxu0
      %v5406 = vadd.f32 %v5357, %v5405
      %v5407 = vpop.f32.mrf.mxu0
      %v5408 = vadd.f32 %v5357, %v5407
      %5409 = vmatmul.bf16.gmra.mxu0 %v5381
      %v5410 = vpop.f32.mrf.mxu0
      %v5411 = vadd.f32 %v5357, %v5410
      %v5412 = vpop.f32.mrf.mxu0
      %v5413 = vadd.f32 %v5357, %v5412
      %5414 = vmatmul.bf16.gmra.mxu0 %v5384
      %v5415 = vpop.f32.mrf.mxu0
      %v5416 = vadd.f32 %v5357, %v5415
      %v5417 = vpop.f32.mrf.mxu0
      %v5418 = vadd.f32 %v5357, %v5417
      %5419 = vdwg.mxu0
      %v5420 = vmul.f32 %v5396, %v5396
      %v5421 = vmul.f32 %v5398, %v5398
      %v5422 = vmul.f32 %v5401, %v5401
      %v5423 = vmul.f32 %v5403, %v5403
      %v5424 = vmul.f32 %v5406, %v5406
      %v5425 = vmul.f32 %v5408, %v5408
      %v5426 = vmul.f32 %v5411, %v5411
      %v5427 = vmul.f32 %v5413, %v5413
      %v5428 = vmul.f32 %v5416, %v5416
      %v5429 = vmul.f32 %v5418, %v5418
      %v5430 = vmul.f32 %v5396, %v5420
      %v5431 = vmul.f32 %v5398, %v5421
      %v5432 = vmul.f32 %v5401, %v5422
      %v5433 = vmul.f32 %v5403, %v5423
      %v5434 = vmul.f32 %v5406, %v5424
      %v5435 = vmul.f32 %v5408, %v5425
      %v5436 = vmul.f32 %v5411, %v5426
      %v5437 = vmul.f32 %v5413, %v5427
      %v5438 = vmul.f32 %v5416, %v5428
      %v5439 = vmul.f32 %v5418, %v5429
      %v5440 = vmul.f32 %v5430, 0.044715
      %v5441 = vmul.f32 %v5431, 0.044715
      %v5442 = vmul.f32 %v5432, 0.044715
      %v5443 = vmul.f32 %v5433, 0.044715
      %v5444 = vmul.f32 %v5434, 0.044715
      %v5445 = vmul.f32 %v5435, 0.044715
      %v5446 = vmul.f32 %v5436, 0.044715
      %v5447 = vmul.f32 %v5437, 0.044715
      %v5448 = vmul.f32 %v5438, 0.044715
      %v5449 = vmul.f32 %v5439, 0.044715
      %v5450 = vadd.f32 %v5396, %v5440
      %v5451 = vadd.f32 %v5398, %v5441
      %v5452 = vadd.f32 %v5401, %v5442
      %v5453 = vadd.f32 %v5403, %v5443
      %v5454 = vadd.f32 %v5406, %v5444
      %v5455 = vadd.f32 %v5408, %v5445
      %v5456 = vadd.f32 %v5411, %v5446
      %v5457 = vadd.f32 %v5413, %v5447
      %v5458 = vadd.f32 %v5416, %v5448
      %v5459 = vadd.f32 %v5418, %v5449
      %v5460 = vmul.f32 %v5450, 0.7978846
      %v5461 = vmul.f32 %v5451, 0.7978846
      %v5462 = vmul.f32 %v5452, 0.7978846
      %v5463 = vmul.f32 %v5453, 0.7978846
      %v5464 = vmul.f32 %v5454, 0.7978846
      %v5465 = vmul.f32 %v5455, 0.7978846
      %v5466 = vmul.f32 %v5456, 0.7978846
      %v5467 = vmul.f32 %v5457, 0.7978846
      %v5468 = vmul.f32 %v5458, 0.7978846
      %v5469 = vmul.f32 %v5459, 0.7978846
      %v5470 = vtanh.pop %v5460
      %v5471 = vtanh.pop %v5461
      %v5472 = vtanh.pop %v5462
      %v5473 = vtanh.pop %v5463
      %v5474 = vtanh.pop %v5464
      %v5475 = vtanh.pop %v5465
      %v5476 = vtanh.pop %v5466
      %v5477 = vtanh.pop %v5467
      %v5478 = vtanh.pop %v5468
      %v5479 = vtanh.pop %v5469
      %v5480 = vadd.f32 %v5470, 1.0
      %v5481 = vadd.f32 %v5471, 1.0
      %v5482 = vadd.f32 %v5472, 1.0
      %v5483 = vadd.f32 %v5473, 1.0
      %v5484 = vadd.f32 %v5474, 1.0
      %v5485 = vadd.f32 %v5475, 1.0
      %v5486 = vadd.f32 %v5476, 1.0
      %v5487 = vadd.f32 %v5477, 1.0
      %v5488 = vadd.f32 %v5478, 1.0
      %v5489 = vadd.f32 %v5479, 1.0
      %v5490 = vmul.f32 %v5480, 0.5
      %v5491 = vmul.f32 %v5481, 0.5
      %v5492 = vmul.f32 %v5482, 0.5
      %v5493 = vmul.f32 %v5483, 0.5
      %v5494 = vmul.f32 %v5484, 0.5
      %v5495 = vmul.f32 %v5485, 0.5
      %v5496 = vmul.f32 %v5486, 0.5
      %v5497 = vmul.f32 %v5487, 0.5
      %v5498 = vmul.f32 %v5488, 0.5
      %v5499 = vmul.f32 %v5489, 0.5
      %v5500 = vmul.f32 %v5396, %v5490
      %v5501 = vmul.f32 %v5398, %v5491
      %v5502 = vmul.f32 %v5401, %v5492
      %v5503 = vmul.f32 %v5403, %v5493
      %v5504 = vmul.f32 %v5406, %v5494
      %v5505 = vmul.f32 %v5408, %v5495
      %v5506 = vmul.f32 %v5411, %v5496
      %v5507 = vmul.f32 %v5413, %v5497
      %v5508 = vmul.f32 %v5416, %v5498
      %v5509 = vmul.f32 %v5418, %v5499
      %v5510 = vld [vmem:[%s23] sm:$0xf]
      %v5511 = vld [vmem:[%s23 + $0x4] sm:$0xf]
      %v5512 = vld [vmem:[%s23 + $0x8] sm:$0xf]
      %v5513 = vld [vmem:[%s23 + $0xc] sm:$0xf]
      %v5514 = vld [vmem:[%s23 + $0x10] sm:$0xf]
      %v5515 = vld [vmem:[%s23 + $0x14] sm:$0xf]
      %v5516 = vld [vmem:[%s23 + $0x18] sm:$0xf]
      %v5517 = vld [vmem:[%s23 + $0x1c] sm:$0xf]
      %v5518 = vpack.c.bf16 %v5501, %v5500
      %v5519 = vpack.c.bf16 %v5503, %v5502
      %v5520 = vpack.c.bf16 %v5505, %v5504
      %v5521 = vpack.c.bf16 %v5507, %v5506
      %v5522 = vpack.c.bf16 %v5509, %v5508
      %v5523 = vld [vmem:[%s24] sm:$0x1]
      %v5525 = vperm.slane %v5523, 0
      %v5535 = vunpack.c.l.b16 %v5510
      %v5536 = vunpack.c.l.b16 %v5511
      %v5537 = vunpack.c.l.b16 %v5512
      %v5538 = vunpack.c.l.b16 %v5513
      %v5539 = vunpack.c.l.b16 %v5514
      %v5540 = vunpack.c.l.b16 %v5515
      %v5541 = vunpack.c.l.b16 %v5516
      %v5542 = vunpack.c.l.b16 %v5517
      %v5543 = vpack.c.b16 %v5536, %v5535
      %v5544 = vpack.c.b16 %v5538, %v5537
      %v5545 = vpack.c.b16 %v5540, %v5539
      %v5546 = vpack.c.b16 %v5542, %v5541
      %vm5551 = vcmask 523264
      %v5553 = vsel %vm5551, %v5518, 0
      %v5556 = vsel %vm5551, %v5519, 0
      %v5559 = vsel %vm5551, %v5520, 0
      %v5562 = vsel %vm5551, %v5521, 0
      %v5565 = vsel %vm5551, %v5522, 0
      %5567 = vmatpush.bf16.msra.mxu0 0
      %5568 = vmatpush.bf16.msra.mxu0 0
      %5569 = vmatpush.bf16.msra.mxu0 0
      %5570 = vmatpush.bf16.msra.mxu0 0
      %5571 = vmatpush.bf16.msra.mxu0 %v5546
      %5572 = vmatpush.bf16.msra.mxu0 %v5545
      %5573 = vmatpush.bf16.msra.mxu0 %v5544
      %5574 = vmatpush.bf16.msra.mxu0 %v5543
      %5575 = vmatmul.bf16.gmra.mxu0 %v5553
      %v5576 = vpop.f32.mrf.mxu0
      %v5577 = vadd.f32 %v5525, %v5576
      %v5578 = vpop.f32.mrf.mxu0
      %v5579 = vadd.f32 %v5525, %v5578
      %5580 = vmatmul.bf16.gmra.mxu0 %v5556
      %v5581 = vpop.f32.mrf.mxu0
      %v5582 = vadd.f32 %v5525, %v5581
      %v5583 = vpop.f32.mrf.mxu0
      %v5584 = vadd.f32 %v5525, %v5583
      %5585 = vmatmul.bf16.gmra.mxu0 %v5559
      %v5586 = vpop.f32.mrf.mxu0
      %v5587 = vadd.f32 %v5525, %v5586
      %v5588 = vpop.f32.mrf.mxu0
      %v5589 = vadd.f32 %v5525, %v5588
      %5590 = vmatmul.bf16.gmra.mxu0 %v5562
      %v5591 = vpop.f32.mrf.mxu0
      %v5592 = vadd.f32 %v5525, %v5591
      %v5593 = vpop.f32.mrf.mxu0
      %v5594 = vadd.f32 %v5525, %v5593
      %5595 = vmatmul.bf16.gmra.mxu0 %v5565
      %v5596 = vpop.f32.mrf.mxu0
      %v5597 = vadd.f32 %v5525, %v5596
      %v5598 = vpop.f32.mrf.mxu0
      %v5599 = vadd.f32 %v5525, %v5598
      %5600 = vdwg.mxu0
      %v5601 = vadd.f32 %v5577, %v5336
      %v5602 = vadd.f32 %v5579, %v5337
      %v5603 = vadd.f32 %v5582, %v5338
      %v5604 = vadd.f32 %v5584, %v5339
      %v5605 = vadd.f32 %v5587, %v5340
      %v5606 = vadd.f32 %v5589, %v5341
      %v5607 = vadd.f32 %v5592, %v5342
      %v5608 = vadd.f32 %v5594, %v5343
      %v5609 = vadd.f32 %v5597, %v5344
      %v5610 = vadd.f32 %v5599, %v5345
      %v5611 = vld [vmem:[%s25] sm:$0x1]
      %v5612 = vld [vmem:[%s26] sm:$0x1]
      %v5613 = vsel %vm1254, %v5601, 0.0
      %5614 = vadd.xlane.f32.xlu0 %v5613
      %v5615 = vpop.xlane.xlu0 %5614
      %v5616 = vsel %vm1254, %v5602, 0.0
      %5617 = vadd.xlane.f32.xlu0 %v5616
      %v5618 = vpop.xlane.xlu0 %5617
      %v5619 = vsel %vm1254, %v5603, 0.0
      %5620 = vadd.xlane.f32.xlu0 %v5619
      %v5621 = vpop.xlane.xlu0 %5620
      %v5622 = vsel %vm1254, %v5604, 0.0
      %5623 = vadd.xlane.f32.xlu0 %v5622
      %v5624 = vpop.xlane.xlu0 %5623
      %v5625 = vsel %vm1254, %v5605, 0.0
      %5626 = vadd.xlane.f32.xlu0 %v5625
      %v5627 = vpop.xlane.xlu0 %5626
      %v5628 = vsel %vm1254, %v5606, 0.0
      %5629 = vadd.xlane.f32.xlu0 %v5628
      %v5630 = vpop.xlane.xlu0 %5629
      %v5631 = vsel %vm1254, %v5607, 0.0
      %5632 = vadd.xlane.f32.xlu0 %v5631
      %v5633 = vpop.xlane.xlu0 %5632
      %v5634 = vsel %vm1254, %v5608, 0.0
      %5635 = vadd.xlane.f32.xlu0 %v5634
      %v5636 = vpop.xlane.xlu0 %5635
      %v5637 = vsel %vm1254, %v5609, 0.0
      %5638 = vadd.xlane.f32.xlu0 %v5637
      %v5639 = vpop.xlane.xlu0 %5638
      %v5640 = vsel %vm1254, %v5610, 0.0
      %5641 = vadd.xlane.f32.xlu0 %v5640
      %v5642 = vpop.xlane.xlu0 %5641
      %v5643 = vmul.f32 %v5615, %v1608
      %v5644 = vmul.f32 %v5618, %v1608
      %v5645 = vmul.f32 %v5621, %v1608
      %v5646 = vmul.f32 %v5624, %v1608
      %v5647 = vmul.f32 %v5627, %v1608
      %v5648 = vmul.f32 %v5630, %v1608
      %v5649 = vmul.f32 %v5633, %v1608
      %v5650 = vmul.f32 %v5636, %v1608
      %v5651 = vmul.f32 %v5639, %v1608
      %v5652 = vmul.f32 %v5642, %v1608
      %v5653 = vsub.f32 %v5601, %v5643
      %v5654 = vsub.f32 %v5602, %v5644
      %v5655 = vsub.f32 %v5603, %v5645
      %v5656 = vsub.f32 %v5604, %v5646
      %v5657 = vsub.f32 %v5605, %v5647
      %v5658 = vsub.f32 %v5606, %v5648
      %v5659 = vsub.f32 %v5607, %v5649
      %v5660 = vsub.f32 %v5608, %v5650
      %v5661 = vsub.f32 %v5609, %v5651
      %v5662 = vsub.f32 %v5610, %v5652
      %v5663 = vmul.f32 %v5653, %v5653
      %v5664 = vmul.f32 %v5654, %v5654
      %v5665 = vmul.f32 %v5655, %v5655
      %v5666 = vmul.f32 %v5656, %v5656
      %v5667 = vmul.f32 %v5657, %v5657
      %v5668 = vmul.f32 %v5658, %v5658
      %v5669 = vmul.f32 %v5659, %v5659
      %v5670 = vmul.f32 %v5660, %v5660
      %v5671 = vmul.f32 %v5661, %v5661
      %v5672 = vmul.f32 %v5662, %v5662
      %v5673 = vsel %vm1254, %v5663, 0.0
      %5674 = vadd.xlane.f32.xlu0 %v5673
      %v5675 = vpop.xlane.xlu0 %5674
      %v5676 = vsel %vm1254, %v5664, 0.0
      %5677 = vadd.xlane.f32.xlu0 %v5676
      %v5678 = vpop.xlane.xlu0 %5677
      %v5679 = vsel %vm1254, %v5665, 0.0
      %5680 = vadd.xlane.f32.xlu0 %v5679
      %v5681 = vpop.xlane.xlu0 %5680
      %v5682 = vsel %vm1254, %v5666, 0.0
      %5683 = vadd.xlane.f32.xlu0 %v5682
      %v5684 = vpop.xlane.xlu0 %5683
      %v5685 = vsel %vm1254, %v5667, 0.0
      %5686 = vadd.xlane.f32.xlu0 %v5685
      %v5687 = vpop.xlane.xlu0 %5686
      %v5688 = vsel %vm1254, %v5668, 0.0
      %5689 = vadd.xlane.f32.xlu0 %v5688
      %v5690 = vpop.xlane.xlu0 %5689
      %v5691 = vsel %vm1254, %v5669, 0.0
      %5692 = vadd.xlane.f32.xlu0 %v5691
      %v5693 = vpop.xlane.xlu0 %5692
      %v5694 = vsel %vm1254, %v5670, 0.0
      %5695 = vadd.xlane.f32.xlu0 %v5694
      %v5696 = vpop.xlane.xlu0 %5695
      %v5697 = vsel %vm1254, %v5671, 0.0
      %5698 = vadd.xlane.f32.xlu0 %v5697
      %v5699 = vpop.xlane.xlu0 %5698
      %v5700 = vsel %vm1254, %v5672, 0.0
      %5701 = vadd.xlane.f32.xlu0 %v5700
      %v5702 = vpop.xlane.xlu0 %5701
      %v5703 = vmul.f32 %v5675, %v1608
      %v5704 = vmul.f32 %v5678, %v1608
      %v5705 = vmul.f32 %v5681, %v1608
      %v5706 = vmul.f32 %v5684, %v1608
      %v5707 = vmul.f32 %v5687, %v1608
      %v5708 = vmul.f32 %v5690, %v1608
      %v5709 = vmul.f32 %v5693, %v1608
      %v5710 = vmul.f32 %v5696, %v1608
      %v5711 = vmul.f32 %v5699, %v1608
      %v5712 = vmul.f32 %v5702, %v1608
      %v5713 = vadd.f32 %v5703, 1e-05
      %v5714 = vadd.f32 %v5704, 1e-05
      %v5715 = vadd.f32 %v5705, 1e-05
      %v5716 = vadd.f32 %v5706, 1e-05
      %v5717 = vadd.f32 %v5707, 1e-05
      %v5718 = vadd.f32 %v5708, 1e-05
      %v5719 = vadd.f32 %v5709, 1e-05
      %v5720 = vadd.f32 %v5710, 1e-05
      %v5721 = vadd.f32 %v5711, 1e-05
      %v5722 = vadd.f32 %v5712, 1e-05
      %v5723 = vrsqrt.pop %v5713
      %v5724 = vmul.f32 %v5723, %v5713
      %v5725 = vmul.f32 %v5724, %v5723
      %v5726 = vmul.f32 0.5, %v5725
      %v5727 = vsub.f32 1.5, %v5726
      %v5728 = vmul.f32 %v5723, %v5727
      %vm5729 = vweird.f32 %v5713
      %vm5730 = vweird.f32 %v5723
      %vm5731 = vmor %vm5729, %vm5730
      %v5732 = vsel %vm5731, %v5723, %v5728
      %v5733 = vrsqrt.pop %v5714
      %v5734 = vmul.f32 %v5733, %v5714
      %v5735 = vmul.f32 %v5734, %v5733
      %v5736 = vmul.f32 0.5, %v5735
      %v5737 = vsub.f32 1.5, %v5736
      %v5738 = vmul.f32 %v5733, %v5737
      %vm5739 = vweird.f32 %v5714
      %vm5740 = vweird.f32 %v5733
      %vm5741 = vmor %vm5739, %vm5740
      %v5742 = vsel %vm5741, %v5733, %v5738
      %v5743 = vrsqrt.pop %v5715
      %v5744 = vmul.f32 %v5743, %v5715
      %v5745 = vmul.f32 %v5744, %v5743
      %v5746 = vmul.f32 0.5, %v5745
      %v5747 = vsub.f32 1.5, %v5746
      %v5748 = vmul.f32 %v5743, %v5747
      %vm5749 = vweird.f32 %v5715
      %vm5750 = vweird.f32 %v5743
      %vm5751 = vmor %vm5749, %vm5750
      %v5752 = vsel %vm5751, %v5743, %v5748
      %v5753 = vrsqrt.pop %v5716
      %v5754 = vmul.f32 %v5753, %v5716
      %v5755 = vmul.f32 %v5754, %v5753
      %v5756 = vmul.f32 0.5, %v5755
      %v5757 = vsub.f32 1.5, %v5756
      %v5758 = vmul.f32 %v5753, %v5757
      %vm5759 = vweird.f32 %v5716
      %vm5760 = vweird.f32 %v5753
      %vm5761 = vmor %vm5759, %vm5760
      %v5762 = vsel %vm5761, %v5753, %v5758
      %v5763 = vrsqrt.pop %v5717
      %v5764 = vmul.f32 %v5763, %v5717
      %v5765 = vmul.f32 %v5764, %v5763
      %v5766 = vmul.f32 0.5, %v5765
      %v5767 = vsub.f32 1.5, %v5766
      %v5768 = vmul.f32 %v5763, %v5767
      %vm5769 = vweird.f32 %v5717
      %vm5770 = vweird.f32 %v5763
      %vm5771 = vmor %vm5769, %vm5770
      %v5772 = vsel %vm5771, %v5763, %v5768
      %v5773 = vrsqrt.pop %v5718
      %v5774 = vmul.f32 %v5773, %v5718
      %v5775 = vmul.f32 %v5774, %v5773
      %v5776 = vmul.f32 0.5, %v5775
      %v5777 = vsub.f32 1.5, %v5776
      %v5778 = vmul.f32 %v5773, %v5777
      %vm5779 = vweird.f32 %v5718
      %vm5780 = vweird.f32 %v5773
      %vm5781 = vmor %vm5779, %vm5780
      %v5782 = vsel %vm5781, %v5773, %v5778
      %v5783 = vrsqrt.pop %v5719
      %v5784 = vmul.f32 %v5783, %v5719
      %v5785 = vmul.f32 %v5784, %v5783
      %v5786 = vmul.f32 0.5, %v5785
      %v5787 = vsub.f32 1.5, %v5786
      %v5788 = vmul.f32 %v5783, %v5787
      %vm5789 = vweird.f32 %v5719
      %vm5790 = vweird.f32 %v5783
      %vm5791 = vmor %vm5789, %vm5790
      %v5792 = vsel %vm5791, %v5783, %v5788
      %v5793 = vrsqrt.pop %v5720
      %v5794 = vmul.f32 %v5793, %v5720
      %v5795 = vmul.f32 %v5794, %v5793
      %v5796 = vmul.f32 0.5, %v5795
      %v5797 = vsub.f32 1.5, %v5796
      %v5798 = vmul.f32 %v5793, %v5797
      %vm5799 = vweird.f32 %v5720
      %vm5800 = vweird.f32 %v5793
      %vm5801 = vmor %vm5799, %vm5800
      %v5802 = vsel %vm5801, %v5793, %v5798
      %v5803 = vrsqrt.pop %v5721
      %v5804 = vmul.f32 %v5803, %v5721
      %v5805 = vmul.f32 %v5804, %v5803
      %v5806 = vmul.f32 0.5, %v5805
      %v5807 = vsub.f32 1.5, %v5806
      %v5808 = vmul.f32 %v5803, %v5807
      %vm5809 = vweird.f32 %v5721
      %vm5810 = vweird.f32 %v5803
      %vm5811 = vmor %vm5809, %vm5810
      %v5812 = vsel %vm5811, %v5803, %v5808
      %v5813 = vrsqrt.pop %v5722
      %v5814 = vmul.f32 %v5813, %v5722
      %v5815 = vmul.f32 %v5814, %v5813
      %v5816 = vmul.f32 0.5, %v5815
      %v5817 = vsub.f32 1.5, %v5816
      %v5818 = vmul.f32 %v5813, %v5817
      %vm5819 = vweird.f32 %v5722
      %vm5820 = vweird.f32 %v5813
      %vm5821 = vmor %vm5819, %vm5820
      %v5822 = vsel %vm5821, %v5813, %v5818
      %v5823 = vmul.f32 %v5653, %v5732
      %v5824 = vmul.f32 %v5654, %v5742
      %v5825 = vmul.f32 %v5655, %v5752
      %v5826 = vmul.f32 %v5656, %v5762
      %v5827 = vmul.f32 %v5657, %v5772
      %v5828 = vmul.f32 %v5658, %v5782
      %v5829 = vmul.f32 %v5659, %v5792
      %v5830 = vmul.f32 %v5660, %v5802
      %v5831 = vmul.f32 %v5661, %v5812
      %v5832 = vmul.f32 %v5662, %v5822
      %v5834 = vperm.slane %v5611, 0
      %v5836 = vmul.f32 %v5823, %v5834
      %v5837 = vmul.f32 %v5824, %v5834
      %v5838 = vmul.f32 %v5825, %v5834
      %v5839 = vmul.f32 %v5826, %v5834
      %v5840 = vmul.f32 %v5827, %v5834
      %v5841 = vmul.f32 %v5828, %v5834
      %v5842 = vmul.f32 %v5829, %v5834
      %v5843 = vmul.f32 %v5830, %v5834
      %v5844 = vmul.f32 %v5831, %v5834
      %v5845 = vmul.f32 %v5832, %v5834
      %v5847 = vperm.slane %v5612, 0
      %v5849 = vadd.f32 %v5836, %v5847
      %v5850 = vadd.f32 %v5837, %v5847
      %v5851 = vadd.f32 %v5838, %v5847
      %v5852 = vadd.f32 %v5839, %v5847
      %v5853 = vadd.f32 %v5840, %v5847
      %v5854 = vadd.f32 %v5841, %v5847
      %v5855 = vadd.f32 %v5842, %v5847
      %v5856 = vadd.f32 %v5843, %v5847
      %v5857 = vadd.f32 %v5844, %v5847
      %v5858 = vadd.f32 %v5845, %v5847
      %v5859 = vpack.c.bf16 %v5850, %v5849
      %v5860 = vpack.c.bf16 %v5852, %v5851
      %v5861 = vpack.c.bf16 %v5854, %v5853
      %v5862 = vpack.c.bf16 %v5856, %v5855
      %v5863 = vpack.c.bf16 %v5858, %v5857
      %s5864 = scalar_lea.vmem %s13, 64
      %v5865 = vld [vmem:[%s5864] sm:$0xf]
      %v5866 = vld [vmem:[%s5864 + $0x4] sm:$0xf]
      %v5867 = vld [vmem:[%s5864 + $0x8] sm:$0xf]
      %v5868 = vld [vmem:[%s5864 + $0xc] sm:$0xf]
      %s5869 = scalar_lea.vmem %s16, 4
      %v5870 = vld [vmem:[%s5869] sm:$0x1]
      %v5872 = vperm.slane %v5870, 0
      %v5878 = vunpack.c.l.b16 %v5865
      %v5879 = vunpack.c.l.b16 %v5866
      %v5880 = vunpack.c.l.b16 %v5867
      %v5881 = vunpack.c.l.b16 %v5868
      %v5882 = vpack.c.b16 %v5879, %v5878
      %v5883 = vpack.c.b16 %v5881, %v5880
      %v5887 = vsel %vm1254, %v5859, 0
      %v5890 = vsel %vm1254, %v5860, 0
      %v5893 = vsel %vm1254, %v5861, 0
      %v5896 = vsel %vm1254, %v5862, 0
      %v5899 = vsel %vm1254, %v5863, 0
      %5901 = vmatpush.bf16.msra.mxu0 0
      %5902 = vmatpush.bf16.msra.mxu0 0
      %5903 = vmatpush.bf16.msra.mxu0 0
      %5904 = vmatpush.bf16.msra.mxu0 0
      %5905 = vmatpush.bf16.msra.mxu0 0
      %5906 = vmatpush.bf16.msra.mxu0 0
      %5907 = vmatpush.bf16.msra.mxu0 %v5883
      %5908 = vmatpush.bf16.msra.mxu0 %v5882
      %5909 = vmatmul.bf16.gmra.mxu0 %v5887
      %v5910 = vpop.f32.mrf.mxu0
      %v5911 = vadd.f32 %v5872, %v5910
      %v5912 = vpop.f32.mrf.mxu0
      %v5913 = vadd.f32 %v5872, %v5912
      %5914 = vmatmul.bf16.gmra.mxu0 %v5890
      %v5915 = vpop.f32.mrf.mxu0
      %v5916 = vadd.f32 %v5872, %v5915
      %v5917 = vpop.f32.mrf.mxu0
      %v5918 = vadd.f32 %v5872, %v5917
      %5919 = vmatmul.bf16.gmra.mxu0 %v5893
      %v5920 = vpop.f32.mrf.mxu0
      %v5921 = vadd.f32 %v5872, %v5920
      %v5922 = vpop.f32.mrf.mxu0
      %v5923 = vadd.f32 %v5872, %v5922
      %5924 = vmatmul.bf16.gmra.mxu0 %v5896
      %v5925 = vpop.f32.mrf.mxu0
      %v5926 = vadd.f32 %v5872, %v5925
      %v5927 = vpop.f32.mrf.mxu0
      %v5928 = vadd.f32 %v5872, %v5927
      %5929 = vmatmul.bf16.gmra.mxu0 %v5899
      %v5930 = vpop.f32.mrf.mxu0
      %v5931 = vadd.f32 %v5872, %v5930
      %v5932 = vpop.f32.mrf.mxu0
      %v5933 = vadd.f32 %v5872, %v5932
      %5934 = vdwg.mxu0
      %s5935 = scalar_lea.vmem %s14, 64
      %v5936 = vld [vmem:[%s5935] sm:$0xf]
      %v5937 = vld [vmem:[%s5935 + $0x4] sm:$0xf]
      %v5938 = vld [vmem:[%s5935 + $0x8] sm:$0xf]
      %v5939 = vld [vmem:[%s5935 + $0xc] sm:$0xf]
      %v5944 = vunpack.c.l.b16 %v5936
      %v5945 = vunpack.c.l.b16 %v5937
      %v5946 = vunpack.c.l.b16 %v5938
      %v5947 = vunpack.c.l.b16 %v5939
      %v5948 = vpack.c.b16 %v5945, %v5944
      %v5949 = vpack.c.b16 %v5947, %v5946
      %5952 = vmatpush.bf16.msra.mxu0 0
      %5953 = vmatpush.bf16.msra.mxu0 0
      %5954 = vmatpush.bf16.msra.mxu0 0
      %5955 = vmatpush.bf16.msra.mxu0 0
      %5956 = vmatpush.bf16.msra.mxu0 0
      %5957 = vmatpush.bf16.msra.mxu0 0
      %5958 = vmatpush.bf16.msra.mxu0 %v5949
      %5959 = vmatpush.bf16.msra.mxu0 %v5948
      %5960 = vmatmul.bf16.gmra.mxu0 %v5887
      %v5961 = vpop.f32.mrf.mxu0
      %v5962 = vadd.f32 0.0, %v5961
      %v5963 = vpop.f32.mrf.mxu0
      %v5964 = vadd.f32 0.0, %v5963
      %5965 = vmatmul.bf16.gmra.mxu0 %v5890
      %v5966 = vpop.f32.mrf.mxu0
      %v5967 = vadd.f32 0.0, %v5966
      %v5968 = vpop.f32.mrf.mxu0
      %v5969 = vadd.f32 0.0, %v5968
      %5970 = vmatmul.bf16.gmra.mxu0 %v5893
      %v5971 = vpop.f32.mrf.mxu0
      %v5972 = vadd.f32 0.0, %v5971
      %v5973 = vpop.f32.mrf.mxu0
      %v5974 = vadd.f32 0.0, %v5973
      %5975 = vmatmul.bf16.gmra.mxu0 %v5896
      %v5976 = vpop.f32.mrf.mxu0
      %v5977 = vadd.f32 0.0, %v5976
      %v5978 = vpop.f32.mrf.mxu0
      %v5979 = vadd.f32 0.0, %v5978
      %5980 = vmatmul.bf16.gmra.mxu0 %v5899
      %v5981 = vpop.f32.mrf.mxu0
      %v5982 = vadd.f32 0.0, %v5981
      %v5983 = vpop.f32.mrf.mxu0
      %v5984 = vadd.f32 0.0, %v5983
      %5985 = vdwg.mxu0
      %s5986 = scalar_lea.vmem %s15, 64
      %v5987 = vld [vmem:[%s5986] sm:$0xf]
      %v5988 = vld [vmem:[%s5986 + $0x4] sm:$0xf]
      %v5989 = vld [vmem:[%s5986 + $0x8] sm:$0xf]
      %v5990 = vld [vmem:[%s5986 + $0xc] sm:$0xf]
      %v5995 = vunpack.c.l.b16 %v5987
      %v5996 = vunpack.c.l.b16 %v5988
      %v5997 = vunpack.c.l.b16 %v5989
      %v5998 = vunpack.c.l.b16 %v5990
      %v5999 = vpack.c.b16 %v5996, %v5995
      %v6000 = vpack.c.b16 %v5998, %v5997
      %6003 = vmatpush.bf16.msra.mxu0 0
      %6004 = vmatpush.bf16.msra.mxu0 0
      %6005 = vmatpush.bf16.msra.mxu0 0
      %6006 = vmatpush.bf16.msra.mxu0 0
      %6007 = vmatpush.bf16.msra.mxu0 0
      %6008 = vmatpush.bf16.msra.mxu0 0
      %6009 = vmatpush.bf16.msra.mxu0 %v6000
      %6010 = vmatpush.bf16.msra.mxu0 %v5999
      %6011 = vmatmul.bf16.gmra.mxu0 %v5887
      %v6012 = vpop.f32.mrf.mxu0
      %v6013 = vadd.f32 0.0, %v6012
      %v6014 = vpop.f32.mrf.mxu0
      %v6015 = vadd.f32 0.0, %v6014
      %6016 = vmatmul.bf16.gmra.mxu0 %v5890
      %v6017 = vpop.f32.mrf.mxu0
      %v6018 = vadd.f32 0.0, %v6017
      %v6019 = vpop.f32.mrf.mxu0
      %v6020 = vadd.f32 0.0, %v6019
      %6021 = vmatmul.bf16.gmra.mxu0 %v5893
      %v6022 = vpop.f32.mrf.mxu0
      %v6023 = vadd.f32 0.0, %v6022
      %v6024 = vpop.f32.mrf.mxu0
      %v6025 = vadd.f32 0.0, %v6024
      %6026 = vmatmul.bf16.gmra.mxu0 %v5896
      %v6027 = vpop.f32.mrf.mxu0
      %v6028 = vadd.f32 0.0, %v6027
      %v6029 = vpop.f32.mrf.mxu0
      %v6030 = vadd.f32 0.0, %v6029
      %6031 = vmatmul.bf16.gmra.mxu0 %v5899
      %v6032 = vpop.f32.mrf.mxu0
      %v6033 = vadd.f32 0.0, %v6032
      %v6034 = vpop.f32.mrf.mxu0
      %v6035 = vadd.f32 0.0, %v6034
      %6036 = vdwg.mxu0
      %v6037 = vpack.c.bf16 %v5913, %v5911
      %v6038 = vpack.c.bf16 %v5918, %v5916
      %v6039 = vpack.c.bf16 %v5923, %v5921
      %v6040 = vpack.c.bf16 %v5928, %v5926
      %v6041 = vpack.c.bf16 %v5933, %v5931
      %v6042 = vpack.c.bf16 %v5964, %v5962
      %v6043 = vpack.c.bf16 %v5969, %v5967
      %v6044 = vpack.c.bf16 %v5974, %v5972
      %v6045 = vpack.c.bf16 %v5979, %v5977
      %v6046 = vpack.c.bf16 %v5984, %v5982
      %v6048 = vsel %vm2740, %v6037, 0
      %v6051 = vsel %vm2740, %v6038, 0
      %v6054 = vsel %vm2740, %v6039, 0
      %v6057 = vsel %vm2740, %v6040, 0
      %v6060 = vsel %vm2740, %v6041, 0
      %v6063 = vsel %vm2740, %v6042, 0
      %v6066 = vsel %vm2740, %v6043, 0
      %v6069 = vsel %vm2740, %v6044, 0
      %v6072 = vsel %vm2740, %v6045, 0
      %v6075 = vsel %vm2740, %v6046, 0
      %6077 = vmatpush.bf16.xpose.msra.mxu0 0
      %6078 = vmatpush.bf16.xpose.msra.mxu0 0
      %6079 = vmatpush.bf16.xpose.msra.mxu0 0
      %6080 = vmatpush.bf16.xpose.msra.mxu0 %v6075
      %6081 = vmatpush.bf16.xpose.msra.mxu0 %v6072
      %6082 = vmatpush.bf16.xpose.msra.mxu0 %v6069
      %6083 = vmatpush.bf16.xpose.msra.mxu0 %v6066
      %6084 = vmatpush.bf16.xpose.msra.mxu0 %v6063
      %6085 = vmatmul.bf16.gmra.mxu0 %v6048
      %v6086 = vpop.f32.mrf.mxu0
      %v6087 = vadd.f32 0.0, %v6086
      %v6088 = vpop.f32.mrf.mxu0
      %v6089 = vadd.f32 0.0, %v6088
      %6090 = vmatmul.bf16.gmra.mxu0 %v6051
      %v6091 = vpop.f32.mrf.mxu0
      %v6092 = vadd.f32 0.0, %v6091
      %v6093 = vpop.f32.mrf.mxu0
      %v6094 = vadd.f32 0.0, %v6093
      %6095 = vmatmul.bf16.gmra.mxu0 %v6054
      %v6096 = vpop.f32.mrf.mxu0
      %v6097 = vadd.f32 0.0, %v6096
      %v6098 = vpop.f32.mrf.mxu0
      %v6099 = vadd.f32 0.0, %v6098
      %6100 = vmatmul.bf16.gmra.mxu0 %v6057
      %v6101 = vpop.f32.mrf.mxu0
      %v6102 = vadd.f32 0.0, %v6101
      %v6103 = vpop.f32.mrf.mxu0
      %v6104 = vadd.f32 0.0, %v6103
      %6105 = vmatmul.bf16.gmra.mxu0 %v6060
      %v6106 = vpop.f32.mrf.mxu0
      %v6107 = vadd.f32 0.0, %v6106
      %v6108 = vpop.f32.mrf.mxu0
      %v6109 = vadd.f32 0.0, %v6108
      %6110 = vdwg.mxu0
      %v6111 = vmul.f32 %v6087, 0.35355338
      %v6112 = vmul.f32 %v6089, 0.35355338
      %v6113 = vmul.f32 %v6092, 0.35355338
      %v6114 = vmul.f32 %v6094, 0.35355338
      %v6115 = vmul.f32 %v6097, 0.35355338
      %v6116 = vmul.f32 %v6099, 0.35355338
      %v6117 = vmul.f32 %v6102, 0.35355338
      %v6118 = vmul.f32 %v6104, 0.35355338
      %v6119 = vmul.f32 %v6107, 0.35355338
      %v6120 = vmul.f32 %v6109, 0.35355338
      %v6121 = vsel %vm2555, %v6111, -1e+30
      %v6122 = vsel %vm2555, %v6112, -1e+30
      %v6123 = vsel %vm2555, %v6113, -1e+30
      %v6124 = vsel %vm2555, %v6114, -1e+30
      %v6125 = vsel %vm2555, %v6115, -1e+30
      %v6126 = vsel %vm2555, %v6116, -1e+30
      %v6127 = vsel %vm2555, %v6117, -1e+30
      %v6128 = vsel %vm2555, %v6118, -1e+30
      %v6129 = vsel %vm2555, %v6119, -1e+30
      %v6130 = vsel %vm2555, %v6120, -1e+30
      %v6131 = vsel %vm2825, %v6121, -inf
      %6132 = vmax.xlane.f32.xlu0 %v6131
      %v6133 = vpop.xlane.xlu0 %6132
      %v6134 = vsel %vm2825, %v6122, -inf
      %6135 = vmax.xlane.f32.xlu0 %v6134
      %v6136 = vpop.xlane.xlu0 %6135
      %v6137 = vsel %vm2825, %v6123, -inf
      %6138 = vmax.xlane.f32.xlu0 %v6137
      %v6139 = vpop.xlane.xlu0 %6138
      %v6140 = vsel %vm2825, %v6124, -inf
      %6141 = vmax.xlane.f32.xlu0 %v6140
      %v6142 = vpop.xlane.xlu0 %6141
      %v6143 = vsel %vm2825, %v6125, -inf
      %6144 = vmax.xlane.f32.xlu0 %v6143
      %v6145 = vpop.xlane.xlu0 %6144
      %v6146 = vsel %vm2825, %v6126, -inf
      %6147 = vmax.xlane.f32.xlu0 %v6146
      %v6148 = vpop.xlane.xlu0 %6147
      %v6149 = vsel %vm2825, %v6127, -inf
      %6150 = vmax.xlane.f32.xlu0 %v6149
      %v6151 = vpop.xlane.xlu0 %6150
      %v6152 = vsel %vm2825, %v6128, -inf
      %6153 = vmax.xlane.f32.xlu0 %v6152
      %v6154 = vpop.xlane.xlu0 %6153
      %v6155 = vsel %vm2825, %v6129, -inf
      %6156 = vmax.xlane.f32.xlu0 %v6155
      %v6157 = vpop.xlane.xlu0 %6156
      %v6158 = vsel %vm2825, %v6130, -inf
      %6159 = vmax.xlane.f32.xlu0 %v6158
      %v6160 = vpop.xlane.xlu0 %6159
      %v6161 = vsub.f32 %v6121, %v6133
      %v6162 = vsub.f32 %v6122, %v6136
      %v6163 = vsub.f32 %v6123, %v6139
      %v6164 = vsub.f32 %v6124, %v6142
      %v6165 = vsub.f32 %v6125, %v6145
      %v6166 = vsub.f32 %v6126, %v6148
      %v6167 = vsub.f32 %v6127, %v6151
      %v6168 = vsub.f32 %v6128, %v6154
      %v6169 = vsub.f32 %v6129, %v6157
      %v6170 = vsub.f32 %v6130, %v6160
      %v6171 = vmul.f32 %v6161, 1.442695
      %v6172 = vpow.pop %v6171
      %v6173 = vmul.f32 %v6162, 1.442695
      %v6174 = vpow.pop %v6173
      %v6175 = vmul.f32 %v6163, 1.442695
      %v6176 = vpow.pop %v6175
      %v6177 = vmul.f32 %v6164, 1.442695
      %v6178 = vpow.pop %v6177
      %v6179 = vmul.f32 %v6165, 1.442695
      %v6180 = vpow.pop %v6179
      %v6181 = vmul.f32 %v6166, 1.442695
      %v6182 = vpow.pop %v6181
      %v6183 = vmul.f32 %v6167, 1.442695
      %v6184 = vpow.pop %v6183
      %v6185 = vmul.f32 %v6168, 1.442695
      %v6186 = vpow.pop %v6185
      %v6187 = vmul.f32 %v6169, 1.442695
      %v6188 = vpow.pop %v6187
      %v6189 = vmul.f32 %v6170, 1.442695
      %v6190 = vpow.pop %v6189
      %v6191 = vsel %vm2825, %v6172, 0.0
      %6192 = vadd.xlane.f32.xlu0 %v6191
      %v6193 = vpop.xlane.xlu0 %6192
      %v6194 = vsel %vm2825, %v6174, 0.0
      %6195 = vadd.xlane.f32.xlu0 %v6194
      %v6196 = vpop.xlane.xlu0 %6195
      %v6197 = vsel %vm2825, %v6176, 0.0
      %6198 = vadd.xlane.f32.xlu0 %v6197
      %v6199 = vpop.xlane.xlu0 %6198
      %v6200 = vsel %vm2825, %v6178, 0.0
      %6201 = vadd.xlane.f32.xlu0 %v6200
      %v6202 = vpop.xlane.xlu0 %6201
      %v6203 = vsel %vm2825, %v6180, 0.0
      %6204 = vadd.xlane.f32.xlu0 %v6203
      %v6205 = vpop.xlane.xlu0 %6204
      %v6206 = vsel %vm2825, %v6182, 0.0
      %6207 = vadd.xlane.f32.xlu0 %v6206
      %v6208 = vpop.xlane.xlu0 %6207
      %v6209 = vsel %vm2825, %v6184, 0.0
      %6210 = vadd.xlane.f32.xlu0 %v6209
      %v6211 = vpop.xlane.xlu0 %6210
      %v6212 = vsel %vm2825, %v6186, 0.0
      %6213 = vadd.xlane.f32.xlu0 %v6212
      %v6214 = vpop.xlane.xlu0 %6213
      %v6215 = vsel %vm2825, %v6188, 0.0
      %6216 = vadd.xlane.f32.xlu0 %v6215
      %v6217 = vpop.xlane.xlu0 %6216
      %v6218 = vsel %vm2825, %v6190, 0.0
      %6219 = vadd.xlane.f32.xlu0 %v6218
      %v6220 = vpop.xlane.xlu0 %6219
      %v6221 = vpack.c.bf16 %v6015, %v6013
      %v6222 = vpack.c.bf16 %v6020, %v6018
      %v6223 = vpack.c.bf16 %v6025, %v6023
      %v6224 = vpack.c.bf16 %v6030, %v6028
      %v6225 = vpack.c.bf16 %v6035, %v6033
      %v6226 = vpack.c.bf16 %v6174, %v6172
      %v6227 = vpack.c.bf16 %v6178, %v6176
      %v6228 = vpack.c.bf16 %v6182, %v6180
      %v6229 = vpack.c.bf16 %v6186, %v6184
      %v6230 = vpack.c.bf16 %v6190, %v6188
      %v6232 = vsel %vm2825, %v6226, 0
      %v6235 = vsel %vm2825, %v6227, 0
      %v6238 = vsel %vm2825, %v6228, 0
      %v6241 = vsel %vm2825, %v6229, 0
      %v6244 = vsel %vm2825, %v6230, 0
      %6246 = vmatpush.bf16.msra.mxu0 0
      %6247 = vmatpush.bf16.msra.mxu0 0
      %6248 = vmatpush.bf16.msra.mxu0 0
      %6249 = vmatpush.bf16.msra.mxu0 %v6225
      %6250 = vmatpush.bf16.msra.mxu0 %v6224
      %6251 = vmatpush.bf16.msra.mxu0 %v6223
      %6252 = vmatpush.bf16.msra.mxu0 %v6222
      %6253 = vmatpush.bf16.msra.mxu0 %v6221
      %6254 = vmatmul.bf16.gmra.mxu0 %v6232
      %v6255 = vpop.f32.mrf.mxu0
      %v6256 = vadd.f32 0.0, %v6255
      %v6257 = vpop.f32.mrf.mxu0
      %v6258 = vadd.f32 0.0, %v6257
      %6259 = vmatmul.bf16.gmra.mxu0 %v6235
      %v6260 = vpop.f32.mrf.mxu0
      %v6261 = vadd.f32 0.0, %v6260
      %v6262 = vpop.f32.mrf.mxu0
      %v6263 = vadd.f32 0.0, %v6262
      %6264 = vmatmul.bf16.gmra.mxu0 %v6238
      %v6265 = vpop.f32.mrf.mxu0
      %v6266 = vadd.f32 0.0, %v6265
      %v6267 = vpop.f32.mrf.mxu0
      %v6268 = vadd.f32 0.0, %v6267
      %6269 = vmatmul.bf16.gmra.mxu0 %v6241
      %v6270 = vpop.f32.mrf.mxu0
      %v6271 = vadd.f32 0.0, %v6270
      %v6272 = vpop.f32.mrf.mxu0
      %v6273 = vadd.f32 0.0, %v6272
      %6274 = vmatmul.bf16.gmra.mxu0 %v6244
      %v6275 = vpop.f32.mrf.mxu0
      %v6276 = vadd.f32 0.0, %v6275
      %v6277 = vpop.f32.mrf.mxu0
      %v6278 = vadd.f32 0.0, %v6277
      %6279 = vdwg.mxu0
      %v6280 = vrcp.pop %v6193
      %v6281 = vmul.f32 %v6193, %v6280
      %v6282 = vsub.f32 1.0, %v6281
      %v6283 = vmul.f32 %v6280, %v6282
      %v6284 = vadd.f32 %v6280, %v6283
      %vm6285 = vweird.f32 %v6193
      %vm6286 = vweird.f32 %v6280
      %vm6287 = vmor %vm6285, %vm6286
      %v6288 = vsel %vm6287, %v6280, %v6284
      %v6289 = vand.u32 2147483647, %v6193
      %vm6290 = vcmp.eq.f32.partialorder %v6289, 8.507059e+37
      %v6291 = vand.u32 %v6193, 2147483648
      %v6292 = vor.u32 1.1754944e-38, %v6291
      %v6293 = vsel %vm6290, %v6292, %v6288
      %v6294 = vmul.f32 1.0, %v6293
      %v6295 = vrcp.pop %v6196
      %v6296 = vmul.f32 %v6196, %v6295
      %v6297 = vsub.f32 1.0, %v6296
      %v6298 = vmul.f32 %v6295, %v6297
      %v6299 = vadd.f32 %v6295, %v6298
      %vm6300 = vweird.f32 %v6196
      %vm6301 = vweird.f32 %v6295
      %vm6302 = vmor %vm6300, %vm6301
      %v6303 = vsel %vm6302, %v6295, %v6299
      %v6304 = vand.u32 2147483647, %v6196
      %vm6305 = vcmp.eq.f32.partialorder %v6304, 8.507059e+37
      %v6306 = vand.u32 %v6196, 2147483648
      %v6307 = vor.u32 1.1754944e-38, %v6306
      %v6308 = vsel %vm6305, %v6307, %v6303
      %v6309 = vmul.f32 1.0, %v6308
      %v6310 = vrcp.pop %v6199
      %v6311 = vmul.f32 %v6199, %v6310
      %v6312 = vsub.f32 1.0, %v6311
      %v6313 = vmul.f32 %v6310, %v6312
      %v6314 = vadd.f32 %v6310, %v6313
      %vm6315 = vweird.f32 %v6199
      %vm6316 = vweird.f32 %v6310
      %vm6317 = vmor %vm6315, %vm6316
      %v6318 = vsel %vm6317, %v6310, %v6314
      %v6319 = vand.u32 2147483647, %v6199
      %vm6320 = vcmp.eq.f32.partialorder %v6319, 8.507059e+37
      %v6321 = vand.u32 %v6199, 2147483648
      %v6322 = vor.u32 1.1754944e-38, %v6321
      %v6323 = vsel %vm6320, %v6322, %v6318
      %v6324 = vmul.f32 1.0, %v6323
      %v6325 = vrcp.pop %v6202
      %v6326 = vmul.f32 %v6202, %v6325
      %v6327 = vsub.f32 1.0, %v6326
      %v6328 = vmul.f32 %v6325, %v6327
      %v6329 = vadd.f32 %v6325, %v6328
      %vm6330 = vweird.f32 %v6202
      %vm6331 = vweird.f32 %v6325
      %vm6332 = vmor %vm6330, %vm6331
      %v6333 = vsel %vm6332, %v6325, %v6329
      %v6334 = vand.u32 2147483647, %v6202
      %vm6335 = vcmp.eq.f32.partialorder %v6334, 8.507059e+37
      %v6336 = vand.u32 %v6202, 2147483648
      %v6337 = vor.u32 1.1754944e-38, %v6336
      %v6338 = vsel %vm6335, %v6337, %v6333
      %v6339 = vmul.f32 1.0, %v6338
      %v6340 = vrcp.pop %v6205
      %v6341 = vmul.f32 %v6205, %v6340
      %v6342 = vsub.f32 1.0, %v6341
      %v6343 = vmul.f32 %v6340, %v6342
      %v6344 = vadd.f32 %v6340, %v6343
      %vm6345 = vweird.f32 %v6205
      %vm6346 = vweird.f32 %v6340
      %vm6347 = vmor %vm6345, %vm6346
      %v6348 = vsel %vm6347, %v6340, %v6344
      %v6349 = vand.u32 2147483647, %v6205
      %vm6350 = vcmp.eq.f32.partialorder %v6349, 8.507059e+37
      %v6351 = vand.u32 %v6205, 2147483648
      %v6352 = vor.u32 1.1754944e-38, %v6351
      %v6353 = vsel %vm6350, %v6352, %v6348
      %v6354 = vmul.f32 1.0, %v6353
      %v6355 = vrcp.pop %v6208
      %v6356 = vmul.f32 %v6208, %v6355
      %v6357 = vsub.f32 1.0, %v6356
      %v6358 = vmul.f32 %v6355, %v6357
      %v6359 = vadd.f32 %v6355, %v6358
      %vm6360 = vweird.f32 %v6208
      %vm6361 = vweird.f32 %v6355
      %vm6362 = vmor %vm6360, %vm6361
      %v6363 = vsel %vm6362, %v6355, %v6359
      %v6364 = vand.u32 2147483647, %v6208
      %vm6365 = vcmp.eq.f32.partialorder %v6364, 8.507059e+37
      %v6366 = vand.u32 %v6208, 2147483648
      %v6367 = vor.u32 1.1754944e-38, %v6366
      %v6368 = vsel %vm6365, %v6367, %v6363
      %v6369 = vmul.f32 1.0, %v6368
      %v6370 = vrcp.pop %v6211
      %v6371 = vmul.f32 %v6211, %v6370
      %v6372 = vsub.f32 1.0, %v6371
      %v6373 = vmul.f32 %v6370, %v6372
      %v6374 = vadd.f32 %v6370, %v6373
      %vm6375 = vweird.f32 %v6211
      %vm6376 = vweird.f32 %v6370
      %vm6377 = vmor %vm6375, %vm6376
      %v6378 = vsel %vm6377, %v6370, %v6374
      %v6379 = vand.u32 2147483647, %v6211
      %vm6380 = vcmp.eq.f32.partialorder %v6379, 8.507059e+37
      %v6381 = vand.u32 %v6211, 2147483648
      %v6382 = vor.u32 1.1754944e-38, %v6381
      %v6383 = vsel %vm6380, %v6382, %v6378
      %v6384 = vmul.f32 1.0, %v6383
      %v6385 = vrcp.pop %v6214
      %v6386 = vmul.f32 %v6214, %v6385
      %v6387 = vsub.f32 1.0, %v6386
      %v6388 = vmul.f32 %v6385, %v6387
      %v6389 = vadd.f32 %v6385, %v6388
      %vm6390 = vweird.f32 %v6214
      %vm6391 = vweird.f32 %v6385
      %vm6392 = vmor %vm6390, %vm6391
      %v6393 = vsel %vm6392, %v6385, %v6389
      %v6394 = vand.u32 2147483647, %v6214
      %vm6395 = vcmp.eq.f32.partialorder %v6394, 8.507059e+37
      %v6396 = vand.u32 %v6214, 2147483648
      %v6397 = vor.u32 1.1754944e-38, %v6396
      %v6398 = vsel %vm6395, %v6397, %v6393
      %v6399 = vmul.f32 1.0, %v6398
      %v6400 = vrcp.pop %v6217
      %v6401 = vmul.f32 %v6217, %v6400
      %v6402 = vsub.f32 1.0, %v6401
      %v6403 = vmul.f32 %v6400, %v6402
      %v6404 = vadd.f32 %v6400, %v6403
      %vm6405 = vweird.f32 %v6217
      %vm6406 = vweird.f32 %v6400
      %vm6407 = vmor %vm6405, %vm6406
      %v6408 = vsel %vm6407, %v6400, %v6404
      %v6409 = vand.u32 2147483647, %v6217
      %vm6410 = vcmp.eq.f32.partialorder %v6409, 8.507059e+37
      %v6411 = vand.u32 %v6217, 2147483648
      %v6412 = vor.u32 1.1754944e-38, %v6411
      %v6413 = vsel %vm6410, %v6412, %v6408
      %v6414 = vmul.f32 1.0, %v6413
      %v6415 = vrcp.pop %v6220
      %v6416 = vmul.f32 %v6220, %v6415
      %v6417 = vsub.f32 1.0, %v6416
      %v6418 = vmul.f32 %v6415, %v6417
      %v6419 = vadd.f32 %v6415, %v6418
      %vm6420 = vweird.f32 %v6220
      %vm6421 = vweird.f32 %v6415
      %vm6422 = vmor %vm6420, %vm6421
      %v6423 = vsel %vm6422, %v6415, %v6419
      %v6424 = vand.u32 2147483647, %v6220
      %vm6425 = vcmp.eq.f32.partialorder %v6424, 8.507059e+37
      %v6426 = vand.u32 %v6220, 2147483648
      %v6427 = vor.u32 1.1754944e-38, %v6426
      %v6428 = vsel %vm6425, %v6427, %v6423
      %v6429 = vmul.f32 1.0, %v6428
      %v6430 = vmul.f32 %v6256, %v6294
      %v6431 = vmul.f32 %v6258, %v6309
      %v6432 = vmul.f32 %v6261, %v6324
      %v6433 = vmul.f32 %v6263, %v6339
      %v6434 = vmul.f32 %v6266, %v6354
      %v6435 = vmul.f32 %v6268, %v6369
      %v6436 = vmul.f32 %v6271, %v6384
      %v6437 = vmul.f32 %v6273, %v6399
      %v6438 = vmul.f32 %v6276, %v6414
      %v6439 = vmul.f32 %v6278, %v6429
      %s6440 = scalar_lea.vmem %s17, 16
      %v6441 = vld [vmem:[%s6440] sm:$0xf]
      %v6442 = vpack.c.bf16 %v6431, %v6430
      %v6443 = vpack.c.bf16 %v6433, %v6432
      %v6444 = vpack.c.bf16 %v6435, %v6434
      %v6445 = vpack.c.bf16 %v6437, %v6436
      %v6446 = vpack.c.bf16 %v6439, %v6438
      %s6447 = scalar_lea.vmem %s13, 80
      %v6448 = vld [vmem:[%s6447] sm:$0xf]
      %v6449 = vld [vmem:[%s6447 + $0x4] sm:$0xf]
      %v6450 = vld [vmem:[%s6447 + $0x8] sm:$0xf]
      %v6451 = vld [vmem:[%s6447 + $0xc] sm:$0xf]
      %s6452 = scalar_lea.vmem %s16, 5
      %v6453 = vld [vmem:[%s6452] sm:$0x1]
      %v6455 = vperm.slane %v6453, 0
      %v6461 = vunpack.c.l.b16 %v6448
      %v6462 = vunpack.c.l.b16 %v6449
      %v6463 = vunpack.c.l.b16 %v6450
      %v6464 = vunpack.c.l.b16 %v6451
      %v6465 = vpack.c.b16 %v6462, %v6461
      %v6466 = vpack.c.b16 %v6464, %v6463
      %6469 = vmatpush.bf16.msra.mxu0 0
      %6470 = vmatpush.bf16.msra.mxu0 0
      %6471 = vmatpush.bf16.msra.mxu0 0
      %6472 = vmatpush.bf16.msra.mxu0 0
      %6473 = vmatpush.bf16.msra.mxu0 0
      %6474 = vmatpush.bf16.msra.mxu0 0
      %6475 = vmatpush.bf16.msra.mxu0 %v6466
      %6476 = vmatpush.bf16.msra.mxu0 %v6465
      %6477 = vmatmul.bf16.gmra.mxu0 %v5887
      %v6478 = vpop.f32.mrf.mxu0
      %v6479 = vadd.f32 %v6455, %v6478
      %v6480 = vpop.f32.mrf.mxu0
      %v6481 = vadd.f32 %v6455, %v6480
      %6482 = vmatmul.bf16.gmra.mxu0 %v5890
      %v6483 = vpop.f32.mrf.mxu0
      %v6484 = vadd.f32 %v6455, %v6483
      %v6485 = vpop.f32.mrf.mxu0
      %v6486 = vadd.f32 %v6455, %v6485
      %6487 = vmatmul.bf16.gmra.mxu0 %v5893
      %v6488 = vpop.f32.mrf.mxu0
      %v6489 = vadd.f32 %v6455, %v6488
      %v6490 = vpop.f32.mrf.mxu0
      %v6491 = vadd.f32 %v6455, %v6490
      %6492 = vmatmul.bf16.gmra.mxu0 %v5896
      %v6493 = vpop.f32.mrf.mxu0
      %v6494 = vadd.f32 %v6455, %v6493
      %v6495 = vpop.f32.mrf.mxu0
      %v6496 = vadd.f32 %v6455, %v6495
      %6497 = vmatmul.bf16.gmra.mxu0 %v5899
      %v6498 = vpop.f32.mrf.mxu0
      %v6499 = vadd.f32 %v6455, %v6498
      %v6500 = vpop.f32.mrf.mxu0
      %v6501 = vadd.f32 %v6455, %v6500
      %6502 = vdwg.mxu0
      %s6503 = scalar_lea.vmem %s14, 80
      %v6504 = vld [vmem:[%s6503] sm:$0xf]
      %v6505 = vld [vmem:[%s6503 + $0x4] sm:$0xf]
      %v6506 = vld [vmem:[%s6503 + $0x8] sm:$0xf]
      %v6507 = vld [vmem:[%s6503 + $0xc] sm:$0xf]
      %v6512 = vunpack.c.l.b16 %v6504
      %v6513 = vunpack.c.l.b16 %v6505
      %v6514 = vunpack.c.l.b16 %v6506
      %v6515 = vunpack.c.l.b16 %v6507
      %v6516 = vpack.c.b16 %v6513, %v6512
      %v6517 = vpack.c.b16 %v6515, %v6514
      %6520 = vmatpush.bf16.msra.mxu0 0
      %6521 = vmatpush.bf16.msra.mxu0 0
      %6522 = vmatpush.bf16.msra.mxu0 0
      %6523 = vmatpush.bf16.msra.mxu0 0
      %6524 = vmatpush.bf16.msra.mxu0 0
      %6525 = vmatpush.bf16.msra.mxu0 0
      %6526 = vmatpush.bf16.msra.mxu0 %v6517
      %6527 = vmatpush.bf16.msra.mxu0 %v6516
      %6528 = vmatmul.bf16.gmra.mxu0 %v5887
      %v6529 = vpop.f32.mrf.mxu0
      %v6530 = vadd.f32 0.0, %v6529
      %v6531 = vpop.f32.mrf.mxu0
      %v6532 = vadd.f32 0.0, %v6531
      %6533 = vmatmul.bf16.gmra.mxu0 %v5890
      %v6534 = vpop.f32.mrf.mxu0
      %v6535 = vadd.f32 0.0, %v6534
      %v6536 = vpop.f32.mrf.mxu0
      %v6537 = vadd.f32 0.0, %v6536
      %6538 = vmatmul.bf16.gmra.mxu0 %v5893
      %v6539 = vpop.f32.mrf.mxu0
      %v6540 = vadd.f32 0.0, %v6539
      %v6541 = vpop.f32.mrf.mxu0
      %v6542 = vadd.f32 0.0, %v6541
      %6543 = vmatmul.bf16.gmra.mxu0 %v5896
      %v6544 = vpop.f32.mrf.mxu0
      %v6545 = vadd.f32 0.0, %v6544
      %v6546 = vpop.f32.mrf.mxu0
      %v6547 = vadd.f32 0.0, %v6546
      %6548 = vmatmul.bf16.gmra.mxu0 %v5899
      %v6549 = vpop.f32.mrf.mxu0
      %v6550 = vadd.f32 0.0, %v6549
      %v6551 = vpop.f32.mrf.mxu0
      %v6552 = vadd.f32 0.0, %v6551
      %6553 = vdwg.mxu0
      %s6554 = scalar_lea.vmem %s15, 80
      %v6555 = vld [vmem:[%s6554] sm:$0xf]
      %v6556 = vld [vmem:[%s6554 + $0x4] sm:$0xf]
      %v6557 = vld [vmem:[%s6554 + $0x8] sm:$0xf]
      %v6558 = vld [vmem:[%s6554 + $0xc] sm:$0xf]
      %v6563 = vunpack.c.l.b16 %v6555
      %v6564 = vunpack.c.l.b16 %v6556
      %v6565 = vunpack.c.l.b16 %v6557
      %v6566 = vunpack.c.l.b16 %v6558
      %v6567 = vpack.c.b16 %v6564, %v6563
      %v6568 = vpack.c.b16 %v6566, %v6565
      %6571 = vmatpush.bf16.msra.mxu0 0
      %6572 = vmatpush.bf16.msra.mxu0 0
      %6573 = vmatpush.bf16.msra.mxu0 0
      %6574 = vmatpush.bf16.msra.mxu0 0
      %6575 = vmatpush.bf16.msra.mxu0 0
      %6576 = vmatpush.bf16.msra.mxu0 0
      %6577 = vmatpush.bf16.msra.mxu0 %v6568
      %6578 = vmatpush.bf16.msra.mxu0 %v6567
      %6579 = vmatmul.bf16.gmra.mxu0 %v5887
      %v6580 = vpop.f32.mrf.mxu0
      %v6581 = vadd.f32 0.0, %v6580
      %v6582 = vpop.f32.mrf.mxu0
      %v6583 = vadd.f32 0.0, %v6582
      %6584 = vmatmul.bf16.gmra.mxu0 %v5890
      %v6585 = vpop.f32.mrf.mxu0
      %v6586 = vadd.f32 0.0, %v6585
      %v6587 = vpop.f32.mrf.mxu0
      %v6588 = vadd.f32 0.0, %v6587
      %6589 = vmatmul.bf16.gmra.mxu0 %v5893
      %v6590 = vpop.f32.mrf.mxu0
      %v6591 = vadd.f32 0.0, %v6590
      %v6592 = vpop.f32.mrf.mxu0
      %v6593 = vadd.f32 0.0, %v6592
      %6594 = vmatmul.bf16.gmra.mxu0 %v5896
      %v6595 = vpop.f32.mrf.mxu0
      %v6596 = vadd.f32 0.0, %v6595
      %v6597 = vpop.f32.mrf.mxu0
      %v6598 = vadd.f32 0.0, %v6597
      %6599 = vmatmul.bf16.gmra.mxu0 %v5899
      %v6600 = vpop.f32.mrf.mxu0
      %v6601 = vadd.f32 0.0, %v6600
      %v6602 = vpop.f32.mrf.mxu0
      %v6603 = vadd.f32 0.0, %v6602
      %6604 = vdwg.mxu0
      %v6605 = vpack.c.bf16 %v6481, %v6479
      %v6606 = vpack.c.bf16 %v6486, %v6484
      %v6607 = vpack.c.bf16 %v6491, %v6489
      %v6608 = vpack.c.bf16 %v6496, %v6494
      %v6609 = vpack.c.bf16 %v6501, %v6499
      %v6610 = vpack.c.bf16 %v6532, %v6530
      %v6611 = vpack.c.bf16 %v6537, %v6535
      %v6612 = vpack.c.bf16 %v6542, %v6540
      %v6613 = vpack.c.bf16 %v6547, %v6545
      %v6614 = vpack.c.bf16 %v6552, %v6550
      %v6616 = vsel %vm2740, %v6605, 0
      %v6619 = vsel %vm2740, %v6606, 0
      %v6622 = vsel %vm2740, %v6607, 0
      %v6625 = vsel %vm2740, %v6608, 0
      %v6628 = vsel %vm2740, %v6609, 0
      %v6631 = vsel %vm2740, %v6610, 0
      %v6634 = vsel %vm2740, %v6611, 0
      %v6637 = vsel %vm2740, %v6612, 0
      %v6640 = vsel %vm2740, %v6613, 0
      %v6643 = vsel %vm2740, %v6614, 0
      %6645 = vmatpush.bf16.xpose.msra.mxu0 0
      %6646 = vmatpush.bf16.xpose.msra.mxu0 0
      %6647 = vmatpush.bf16.xpose.msra.mxu0 0
      %6648 = vmatpush.bf16.xpose.msra.mxu0 %v6643
      %6649 = vmatpush.bf16.xpose.msra.mxu0 %v6640
      %6650 = vmatpush.bf16.xpose.msra.mxu0 %v6637
      %6651 = vmatpush.bf16.xpose.msra.mxu0 %v6634
      %6652 = vmatpush.bf16.xpose.msra.mxu0 %v6631
      %6653 = vmatmul.bf16.gmra.mxu0 %v6616
      %v6654 = vpop.f32.mrf.mxu0
      %v6655 = vadd.f32 0.0, %v6654
      %v6656 = vpop.f32.mrf.mxu0
      %v6657 = vadd.f32 0.0, %v6656
      %6658 = vmatmul.bf16.gmra.mxu0 %v6619
      %v6659 = vpop.f32.mrf.mxu0
      %v6660 = vadd.f32 0.0, %v6659
      %v6661 = vpop.f32.mrf.mxu0
      %v6662 = vadd.f32 0.0, %v6661
      %6663 = vmatmul.bf16.gmra.mxu0 %v6622
      %v6664 = vpop.f32.mrf.mxu0
      %v6665 = vadd.f32 0.0, %v6664
      %v6666 = vpop.f32.mrf.mxu0
      %v6667 = vadd.f32 0.0, %v6666
      %6668 = vmatmul.bf16.gmra.mxu0 %v6625
      %v6669 = vpop.f32.mrf.mxu0
      %v6670 = vadd.f32 0.0, %v6669
      %v6671 = vpop.f32.mrf.mxu0
      %v6672 = vadd.f32 0.0, %v6671
      %6673 = vmatmul.bf16.gmra.mxu0 %v6628
      %v6674 = vpop.f32.mrf.mxu0
      %v6675 = vadd.f32 0.0, %v6674
      %v6676 = vpop.f32.mrf.mxu0
      %v6677 = vadd.f32 0.0, %v6676
      %6678 = vdwg.mxu0
      %v6679 = vmul.f32 %v6655, 0.35355338
      %v6680 = vmul.f32 %v6657, 0.35355338
      %v6681 = vmul.f32 %v6660, 0.35355338
      %v6682 = vmul.f32 %v6662, 0.35355338
      %v6683 = vmul.f32 %v6665, 0.35355338
      %v6684 = vmul.f32 %v6667, 0.35355338
      %v6685 = vmul.f32 %v6670, 0.35355338
      %v6686 = vmul.f32 %v6672, 0.35355338
      %v6687 = vmul.f32 %v6675, 0.35355338
      %v6688 = vmul.f32 %v6677, 0.35355338
      %v6689 = vsel %vm2555, %v6679, -1e+30
      %v6690 = vsel %vm2555, %v6680, -1e+30
      %v6691 = vsel %vm2555, %v6681, -1e+30
      %v6692 = vsel %vm2555, %v6682, -1e+30
      %v6693 = vsel %vm2555, %v6683, -1e+30
      %v6694 = vsel %vm2555, %v6684, -1e+30
      %v6695 = vsel %vm2555, %v6685, -1e+30
      %v6696 = vsel %vm2555, %v6686, -1e+30
      %v6697 = vsel %vm2555, %v6687, -1e+30
      %v6698 = vsel %vm2555, %v6688, -1e+30
      %v6699 = vsel %vm2825, %v6689, -inf
      %6700 = vmax.xlane.f32.xlu0 %v6699
      %v6701 = vpop.xlane.xlu0 %6700
      %v6702 = vsel %vm2825, %v6690, -inf
      %6703 = vmax.xlane.f32.xlu0 %v6702
      %v6704 = vpop.xlane.xlu0 %6703
      %v6705 = vsel %vm2825, %v6691, -inf
      %6706 = vmax.xlane.f32.xlu0 %v6705
      %v6707 = vpop.xlane.xlu0 %6706
      %v6708 = vsel %vm2825, %v6692, -inf
      %6709 = vmax.xlane.f32.xlu0 %v6708
      %v6710 = vpop.xlane.xlu0 %6709
      %v6711 = vsel %vm2825, %v6693, -inf
      %6712 = vmax.xlane.f32.xlu0 %v6711
      %v6713 = vpop.xlane.xlu0 %6712
      %v6714 = vsel %vm2825, %v6694, -inf
      %6715 = vmax.xlane.f32.xlu0 %v6714
      %v6716 = vpop.xlane.xlu0 %6715
      %v6717 = vsel %vm2825, %v6695, -inf
      %6718 = vmax.xlane.f32.xlu0 %v6717
      %v6719 = vpop.xlane.xlu0 %6718
      %v6720 = vsel %vm2825, %v6696, -inf
      %6721 = vmax.xlane.f32.xlu0 %v6720
      %v6722 = vpop.xlane.xlu0 %6721
      %v6723 = vsel %vm2825, %v6697, -inf
      %6724 = vmax.xlane.f32.xlu0 %v6723
      %v6725 = vpop.xlane.xlu0 %6724
      %v6726 = vsel %vm2825, %v6698, -inf
      %6727 = vmax.xlane.f32.xlu0 %v6726
      %v6728 = vpop.xlane.xlu0 %6727
      %v6729 = vsub.f32 %v6689, %v6701
      %v6730 = vsub.f32 %v6690, %v6704
      %v6731 = vsub.f32 %v6691, %v6707
      %v6732 = vsub.f32 %v6692, %v6710
      %v6733 = vsub.f32 %v6693, %v6713
      %v6734 = vsub.f32 %v6694, %v6716
      %v6735 = vsub.f32 %v6695, %v6719
      %v6736 = vsub.f32 %v6696, %v6722
      %v6737 = vsub.f32 %v6697, %v6725
      %v6738 = vsub.f32 %v6698, %v6728
      %v6739 = vmul.f32 %v6729, 1.442695
      %v6740 = vpow.pop %v6739
      %v6741 = vmul.f32 %v6730, 1.442695
      %v6742 = vpow.pop %v6741
      %v6743 = vmul.f32 %v6731, 1.442695
      %v6744 = vpow.pop %v6743
      %v6745 = vmul.f32 %v6732, 1.442695
      %v6746 = vpow.pop %v6745
      %v6747 = vmul.f32 %v6733, 1.442695
      %v6748 = vpow.pop %v6747
      %v6749 = vmul.f32 %v6734, 1.442695
      %v6750 = vpow.pop %v6749
      %v6751 = vmul.f32 %v6735, 1.442695
      %v6752 = vpow.pop %v6751
      %v6753 = vmul.f32 %v6736, 1.442695
      %v6754 = vpow.pop %v6753
      %v6755 = vmul.f32 %v6737, 1.442695
      %v6756 = vpow.pop %v6755
      %v6757 = vmul.f32 %v6738, 1.442695
      %v6758 = vpow.pop %v6757
      %v6759 = vsel %vm2825, %v6740, 0.0
      %6760 = vadd.xlane.f32.xlu0 %v6759
      %v6761 = vpop.xlane.xlu0 %6760
      %v6762 = vsel %vm2825, %v6742, 0.0
      %6763 = vadd.xlane.f32.xlu0 %v6762
      %v6764 = vpop.xlane.xlu0 %6763
      %v6765 = vsel %vm2825, %v6744, 0.0
      %6766 = vadd.xlane.f32.xlu0 %v6765
      %v6767 = vpop.xlane.xlu0 %6766
      %v6768 = vsel %vm2825, %v6746, 0.0
      %6769 = vadd.xlane.f32.xlu0 %v6768
      %v6770 = vpop.xlane.xlu0 %6769
      %v6771 = vsel %vm2825, %v6748, 0.0
      %6772 = vadd.xlane.f32.xlu0 %v6771
      %v6773 = vpop.xlane.xlu0 %6772
      %v6774 = vsel %vm2825, %v6750, 0.0
      %6775 = vadd.xlane.f32.xlu0 %v6774
      %v6776 = vpop.xlane.xlu0 %6775
      %v6777 = vsel %vm2825, %v6752, 0.0
      %6778 = vadd.xlane.f32.xlu0 %v6777
      %v6779 = vpop.xlane.xlu0 %6778
      %v6780 = vsel %vm2825, %v6754, 0.0
      %6781 = vadd.xlane.f32.xlu0 %v6780
      %v6782 = vpop.xlane.xlu0 %6781
      %v6783 = vsel %vm2825, %v6756, 0.0
      %6784 = vadd.xlane.f32.xlu0 %v6783
      %v6785 = vpop.xlane.xlu0 %6784
      %v6786 = vsel %vm2825, %v6758, 0.0
      %6787 = vadd.xlane.f32.xlu0 %v6786
      %v6788 = vpop.xlane.xlu0 %6787
      %v6789 = vpack.c.bf16 %v6583, %v6581
      %v6790 = vpack.c.bf16 %v6588, %v6586
      %v6791 = vpack.c.bf16 %v6593, %v6591
      %v6792 = vpack.c.bf16 %v6598, %v6596
      %v6793 = vpack.c.bf16 %v6603, %v6601
      %v6794 = vpack.c.bf16 %v6742, %v6740
      %v6795 = vpack.c.bf16 %v6746, %v6744
      %v6796 = vpack.c.bf16 %v6750, %v6748
      %v6797 = vpack.c.bf16 %v6754, %v6752
      %v6798 = vpack.c.bf16 %v6758, %v6756
      %v6800 = vsel %vm2825, %v6794, 0
      %v6803 = vsel %vm2825, %v6795, 0
      %v6806 = vsel %vm2825, %v6796, 0
      %v6809 = vsel %vm2825, %v6797, 0
      %v6812 = vsel %vm2825, %v6798, 0
      %6814 = vmatpush.bf16.msra.mxu0 0
      %6815 = vmatpush.bf16.msra.mxu0 0
      %6816 = vmatpush.bf16.msra.mxu0 0
      %6817 = vmatpush.bf16.msra.mxu0 %v6793
      %6818 = vmatpush.bf16.msra.mxu0 %v6792
      %6819 = vmatpush.bf16.msra.mxu0 %v6791
      %6820 = vmatpush.bf16.msra.mxu0 %v6790
      %6821 = vmatpush.bf16.msra.mxu0 %v6789
      %6822 = vmatmul.bf16.gmra.mxu0 %v6800
      %v6823 = vpop.f32.mrf.mxu0
      %v6824 = vadd.f32 0.0, %v6823
      %v6825 = vpop.f32.mrf.mxu0
      %v6826 = vadd.f32 0.0, %v6825
      %6827 = vmatmul.bf16.gmra.mxu0 %v6803
      %v6828 = vpop.f32.mrf.mxu0
      %v6829 = vadd.f32 0.0, %v6828
      %v6830 = vpop.f32.mrf.mxu0
      %v6831 = vadd.f32 0.0, %v6830
      %6832 = vmatmul.bf16.gmra.mxu0 %v6806
      %v6833 = vpop.f32.mrf.mxu0
      %v6834 = vadd.f32 0.0, %v6833
      %v6835 = vpop.f32.mrf.mxu0
      %v6836 = vadd.f32 0.0, %v6835
      %6837 = vmatmul.bf16.gmra.mxu0 %v6809
      %v6838 = vpop.f32.mrf.mxu0
      %v6839 = vadd.f32 0.0, %v6838
      %v6840 = vpop.f32.mrf.mxu0
      %v6841 = vadd.f32 0.0, %v6840
      %6842 = vmatmul.bf16.gmra.mxu0 %v6812
      %v6843 = vpop.f32.mrf.mxu0
      %v6844 = vadd.f32 0.0, %v6843
      %v6845 = vpop.f32.mrf.mxu0
      %v6846 = vadd.f32 0.0, %v6845
      %6847 = vdwg.mxu0
      %v6848 = vrcp.pop %v6761
      %v6849 = vmul.f32 %v6761, %v6848
      %v6850 = vsub.f32 1.0, %v6849
      %v6851 = vmul.f32 %v6848, %v6850
      %v6852 = vadd.f32 %v6848, %v6851
      %vm6853 = vweird.f32 %v6761
      %vm6854 = vweird.f32 %v6848
      %vm6855 = vmor %vm6853, %vm6854
      %v6856 = vsel %vm6855, %v6848, %v6852
      %v6857 = vand.u32 2147483647, %v6761
      %vm6858 = vcmp.eq.f32.partialorder %v6857, 8.507059e+37
      %v6859 = vand.u32 %v6761, 2147483648
      %v6860 = vor.u32 1.1754944e-38, %v6859
      %v6861 = vsel %vm6858, %v6860, %v6856
      %v6862 = vmul.f32 1.0, %v6861
      %v6863 = vrcp.pop %v6764
      %v6864 = vmul.f32 %v6764, %v6863
      %v6865 = vsub.f32 1.0, %v6864
      %v6866 = vmul.f32 %v6863, %v6865
      %v6867 = vadd.f32 %v6863, %v6866
      %vm6868 = vweird.f32 %v6764
      %vm6869 = vweird.f32 %v6863
      %vm6870 = vmor %vm6868, %vm6869
      %v6871 = vsel %vm6870, %v6863, %v6867
      %v6872 = vand.u32 2147483647, %v6764
      %vm6873 = vcmp.eq.f32.partialorder %v6872, 8.507059e+37
      %v6874 = vand.u32 %v6764, 2147483648
      %v6875 = vor.u32 1.1754944e-38, %v6874
      %v6876 = vsel %vm6873, %v6875, %v6871
      %v6877 = vmul.f32 1.0, %v6876
      %v6878 = vrcp.pop %v6767
      %v6879 = vmul.f32 %v6767, %v6878
      %v6880 = vsub.f32 1.0, %v6879
      %v6881 = vmul.f32 %v6878, %v6880
      %v6882 = vadd.f32 %v6878, %v6881
      %vm6883 = vweird.f32 %v6767
      %vm6884 = vweird.f32 %v6878
      %vm6885 = vmor %vm6883, %vm6884
      %v6886 = vsel %vm6885, %v6878, %v6882
      %v6887 = vand.u32 2147483647, %v6767
      %vm6888 = vcmp.eq.f32.partialorder %v6887, 8.507059e+37
      %v6889 = vand.u32 %v6767, 2147483648
      %v6890 = vor.u32 1.1754944e-38, %v6889
      %v6891 = vsel %vm6888, %v6890, %v6886
      %v6892 = vmul.f32 1.0, %v6891
      %v6893 = vrcp.pop %v6770
      %v6894 = vmul.f32 %v6770, %v6893
      %v6895 = vsub.f32 1.0, %v6894
      %v6896 = vmul.f32 %v6893, %v6895
      %v6897 = vadd.f32 %v6893, %v6896
      %vm6898 = vweird.f32 %v6770
      %vm6899 = vweird.f32 %v6893
      %vm6900 = vmor %vm6898, %vm6899
      %v6901 = vsel %vm6900, %v6893, %v6897
      %v6902 = vand.u32 2147483647, %v6770
      %vm6903 = vcmp.eq.f32.partialorder %v6902, 8.507059e+37
      %v6904 = vand.u32 %v6770, 2147483648
      %v6905 = vor.u32 1.1754944e-38, %v6904
      %v6906 = vsel %vm6903, %v6905, %v6901
      %v6907 = vmul.f32 1.0, %v6906
      %v6908 = vrcp.pop %v6773
      %v6909 = vmul.f32 %v6773, %v6908
      %v6910 = vsub.f32 1.0, %v6909
      %v6911 = vmul.f32 %v6908, %v6910
      %v6912 = vadd.f32 %v6908, %v6911
      %vm6913 = vweird.f32 %v6773
      %vm6914 = vweird.f32 %v6908
      %vm6915 = vmor %vm6913, %vm6914
      %v6916 = vsel %vm6915, %v6908, %v6912
      %v6917 = vand.u32 2147483647, %v6773
      %vm6918 = vcmp.eq.f32.partialorder %v6917, 8.507059e+37
      %v6919 = vand.u32 %v6773, 2147483648
      %v6920 = vor.u32 1.1754944e-38, %v6919
      %v6921 = vsel %vm6918, %v6920, %v6916
      %v6922 = vmul.f32 1.0, %v6921
      %v6923 = vrcp.pop %v6776
      %v6924 = vmul.f32 %v6776, %v6923
      %v6925 = vsub.f32 1.0, %v6924
      %v6926 = vmul.f32 %v6923, %v6925
      %v6927 = vadd.f32 %v6923, %v6926
      %vm6928 = vweird.f32 %v6776
      %vm6929 = vweird.f32 %v6923
      %vm6930 = vmor %vm6928, %vm6929
      %v6931 = vsel %vm6930, %v6923, %v6927
      %v6932 = vand.u32 2147483647, %v6776
      %vm6933 = vcmp.eq.f32.partialorder %v6932, 8.507059e+37
      %v6934 = vand.u32 %v6776, 2147483648
      %v6935 = vor.u32 1.1754944e-38, %v6934
      %v6936 = vsel %vm6933, %v6935, %v6931
      %v6937 = vmul.f32 1.0, %v6936
      %v6938 = vrcp.pop %v6779
      %v6939 = vmul.f32 %v6779, %v6938
      %v6940 = vsub.f32 1.0, %v6939
      %v6941 = vmul.f32 %v6938, %v6940
      %v6942 = vadd.f32 %v6938, %v6941
      %vm6943 = vweird.f32 %v6779
      %vm6944 = vweird.f32 %v6938
      %vm6945 = vmor %vm6943, %vm6944
      %v6946 = vsel %vm6945, %v6938, %v6942
      %v6947 = vand.u32 2147483647, %v6779
      %vm6948 = vcmp.eq.f32.partialorder %v6947, 8.507059e+37
      %v6949 = vand.u32 %v6779, 2147483648
      %v6950 = vor.u32 1.1754944e-38, %v6949
      %v6951 = vsel %vm6948, %v6950, %v6946
      %v6952 = vmul.f32 1.0, %v6951
      %v6953 = vrcp.pop %v6782
      %v6954 = vmul.f32 %v6782, %v6953
      %v6955 = vsub.f32 1.0, %v6954
      %v6956 = vmul.f32 %v6953, %v6955
      %v6957 = vadd.f32 %v6953, %v6956
      %vm6958 = vweird.f32 %v6782
      %vm6959 = vweird.f32 %v6953
      %vm6960 = vmor %vm6958, %vm6959
      %v6961 = vsel %vm6960, %v6953, %v6957
      %v6962 = vand.u32 2147483647, %v6782
      %vm6963 = vcmp.eq.f32.partialorder %v6962, 8.507059e+37
      %v6964 = vand.u32 %v6782, 2147483648
      %v6965 = vor.u32 1.1754944e-38, %v6964
      %v6966 = vsel %vm6963, %v6965, %v6961
      %v6967 = vmul.f32 1.0, %v6966
      %v6968 = vrcp.pop %v6785
      %v6969 = vmul.f32 %v6785, %v6968
      %v6970 = vsub.f32 1.0, %v6969
      %v6971 = vmul.f32 %v6968, %v6970
      %v6972 = vadd.f32 %v6968, %v6971
      %vm6973 = vweird.f32 %v6785
      %vm6974 = vweird.f32 %v6968
      %vm6975 = vmor %vm6973, %vm6974
      %v6976 = vsel %vm6975, %v6968, %v6972
      %v6977 = vand.u32 2147483647, %v6785
      %vm6978 = vcmp.eq.f32.partialorder %v6977, 8.507059e+37
      %v6979 = vand.u32 %v6785, 2147483648
      %v6980 = vor.u32 1.1754944e-38, %v6979
      %v6981 = vsel %vm6978, %v6980, %v6976
      %v6982 = vmul.f32 1.0, %v6981
      %v6983 = vrcp.pop %v6788
      %v6984 = vmul.f32 %v6788, %v6983
      %v6985 = vsub.f32 1.0, %v6984
      %v6986 = vmul.f32 %v6983, %v6985
      %v6987 = vadd.f32 %v6983, %v6986
      %vm6988 = vweird.f32 %v6788
      %vm6989 = vweird.f32 %v6983
      %vm6990 = vmor %vm6988, %vm6989
      %v6991 = vsel %vm6990, %v6983, %v6987
      %v6992 = vand.u32 2147483647, %v6788
      %vm6993 = vcmp.eq.f32.partialorder %v6992, 8.507059e+37
      %v6994 = vand.u32 %v6788, 2147483648
      %v6995 = vor.u32 1.1754944e-38, %v6994
      %v6996 = vsel %vm6993, %v6995, %v6991
      %v6997 = vmul.f32 1.0, %v6996
      %v6998 = vmul.f32 %v6824, %v6862
      %v6999 = vmul.f32 %v6826, %v6877
      %v7000 = vmul.f32 %v6829, %v6892
      %v7001 = vmul.f32 %v6831, %v6907
      %v7002 = vmul.f32 %v6834, %v6922
      %v7003 = vmul.f32 %v6836, %v6937
      %v7004 = vmul.f32 %v6839, %v6952
      %v7005 = vmul.f32 %v6841, %v6967
      %v7006 = vmul.f32 %v6844, %v6982
      %v7007 = vmul.f32 %v6846, %v6997
      %s7008 = scalar_lea.vmem %s17, 20
      %v7009 = vld [vmem:[%s7008] sm:$0xf]
      %v7010 = vpack.c.bf16 %v6999, %v6998
      %v7011 = vpack.c.bf16 %v7001, %v7000
      %v7012 = vpack.c.bf16 %v7003, %v7002
      %v7013 = vpack.c.bf16 %v7005, %v7004
      %v7014 = vpack.c.bf16 %v7007, %v7006
      %v7016 = vsel %vm2740, %v7010, 0
      %v7019 = vsel %vm2740, %v7011, 0
      %v7022 = vsel %vm2740, %v7012, 0
      %v7025 = vsel %vm2740, %v7013, 0
      %v7028 = vsel %vm2740, %v7014, 0
      %v7031 = vsel %vm3724, %v7009, 0
      %7033 = vmatpush.bf16.msra.mxu0 0
      %7034 = vmatpush.bf16.msra.mxu0 0
      %7035 = vmatpush.bf16.msra.mxu0 0
      %7036 = vmatpush.bf16.msra.mxu0 0
      %7037 = vmatpush.bf16.msra.mxu0 0
      %7038 = vmatpush.bf16.msra.mxu0 0
      %7039 = vmatpush.bf16.msra.mxu0 0
      %7040 = vmatpush.bf16.msra.mxu0 %v7031
      %7041 = vmatmul.bf16.gmra.mxu0 %v7016
      %v7042 = vpop.f32.mrf.mxu0
      %v7043 = vadd.f32 0.0, %v7042
      %v7044 = vpop.f32.mrf.mxu0
      %v7045 = vadd.f32 0.0, %v7044
      %7046 = vmatmul.bf16.gmra.mxu0 %v7019
      %v7047 = vpop.f32.mrf.mxu0
      %v7048 = vadd.f32 0.0, %v7047
      %v7049 = vpop.f32.mrf.mxu0
      %v7050 = vadd.f32 0.0, %v7049
      %7051 = vmatmul.bf16.gmra.mxu0 %v7022
      %v7052 = vpop.f32.mrf.mxu0
      %v7053 = vadd.f32 0.0, %v7052
      %v7054 = vpop.f32.mrf.mxu0
      %v7055 = vadd.f32 0.0, %v7054
      %7056 = vmatmul.bf16.gmra.mxu0 %v7025
      %v7057 = vpop.f32.mrf.mxu0
      %v7058 = vadd.f32 0.0, %v7057
      %v7059 = vpop.f32.mrf.mxu0
      %v7060 = vadd.f32 0.0, %v7059
      %7061 = vmatmul.bf16.gmra.mxu0 %v7028
      %v7062 = vpop.f32.mrf.mxu0
      %v7063 = vadd.f32 0.0, %v7062
      %v7064 = vpop.f32.mrf.mxu0
      %v7065 = vadd.f32 0.0, %v7064
      %7066 = vdwg.mxu0
      %v7068 = vsel %vm2740, %v6442, 0
      %v7071 = vsel %vm2740, %v6443, 0
      %v7074 = vsel %vm2740, %v6444, 0
      %v7077 = vsel %vm2740, %v6445, 0
      %v7080 = vsel %vm2740, %v6446, 0
      %v7083 = vsel %vm3724, %v6441, 0
      %7085 = vmatpush.bf16.msra.mxu0 0
      %7086 = vmatpush.bf16.msra.mxu0 0
      %7087 = vmatpush.bf16.msra.mxu0 0
      %7088 = vmatpush.bf16.msra.mxu0 0
      %7089 = vmatpush.bf16.msra.mxu0 0
      %7090 = vmatpush.bf16.msra.mxu0 0
      %7091 = vmatpush.bf16.msra.mxu0 0
      %7092 = vmatpush.bf16.msra.mxu0 %v7083
      %7093 = vmatmul.bf16.gmra.mxu0 %v7068
      %v7094 = vpop.f32.mrf.mxu0
      %v7095 = vadd.f32 %v7043, %v7094
      %v7096 = vpop.f32.mrf.mxu0
      %v7097 = vadd.f32 %v7045, %v7096
      %7098 = vmatmul.bf16.gmra.mxu0 %v7071
      %v7099 = vpop.f32.mrf.mxu0
      %v7100 = vadd.f32 %v7048, %v7099
      %v7101 = vpop.f32.mrf.mxu0
      %v7102 = vadd.f32 %v7050, %v7101
      %7103 = vmatmul.bf16.gmra.mxu0 %v7074
      %v7104 = vpop.f32.mrf.mxu0
      %v7105 = vadd.f32 %v7053, %v7104
      %v7106 = vpop.f32.mrf.mxu0
      %v7107 = vadd.f32 %v7055, %v7106
      %7108 = vmatmul.bf16.gmra.mxu0 %v7077
      %v7109 = vpop.f32.mrf.mxu0
      %v7110 = vadd.f32 %v7058, %v7109
      %v7111 = vpop.f32.mrf.mxu0
      %v7112 = vadd.f32 %v7060, %v7111
      %7113 = vmatmul.bf16.gmra.mxu0 %v7080
      %v7114 = vpop.f32.mrf.mxu0
      %v7115 = vadd.f32 %v7063, %v7114
      %v7116 = vpop.f32.mrf.mxu0
      %v7117 = vadd.f32 %v7065, %v7116
      %7118 = vdwg.mxu0
      %s7119 = scalar_lea.vmem %s13, 96
      %v7120 = vld [vmem:[%s7119] sm:$0xf]
      %v7121 = vld [vmem:[%s7119 + $0x4] sm:$0xf]
      %v7122 = vld [vmem:[%s7119 + $0x8] sm:$0xf]
      %v7123 = vld [vmem:[%s7119 + $0xc] sm:$0xf]
      %s7124 = scalar_lea.vmem %s16, 6
      %v7125 = vld [vmem:[%s7124] sm:$0x1]
      %v7127 = vperm.slane %v7125, 0
      %v7133 = vunpack.c.l.b16 %v7120
      %v7134 = vunpack.c.l.b16 %v7121
      %v7135 = vunpack.c.l.b16 %v7122
      %v7136 = vunpack.c.l.b16 %v7123
      %v7137 = vpack.c.b16 %v7134, %v7133
      %v7138 = vpack.c.b16 %v7136, %v7135
      %7141 = vmatpush.bf16.msra.mxu0 0
      %7142 = vmatpush.bf16.msra.mxu0 0
      %7143 = vmatpush.bf16.msra.mxu0 0
      %7144 = vmatpush.bf16.msra.mxu0 0
      %7145 = vmatpush.bf16.msra.mxu0 0
      %7146 = vmatpush.bf16.msra.mxu0 0
      %7147 = vmatpush.bf16.msra.mxu0 %v7138
      %7148 = vmatpush.bf16.msra.mxu0 %v7137
      %7149 = vmatmul.bf16.gmra.mxu0 %v5887
      %v7150 = vpop.f32.mrf.mxu0
      %v7151 = vadd.f32 %v7127, %v7150
      %v7152 = vpop.f32.mrf.mxu0
      %v7153 = vadd.f32 %v7127, %v7152
      %7154 = vmatmul.bf16.gmra.mxu0 %v5890
      %v7155 = vpop.f32.mrf.mxu0
      %v7156 = vadd.f32 %v7127, %v7155
      %v7157 = vpop.f32.mrf.mxu0
      %v7158 = vadd.f32 %v7127, %v7157
      %7159 = vmatmul.bf16.gmra.mxu0 %v5893
      %v7160 = vpop.f32.mrf.mxu0
      %v7161 = vadd.f32 %v7127, %v7160
      %v7162 = vpop.f32.mrf.mxu0
      %v7163 = vadd.f32 %v7127, %v7162
      %7164 = vmatmul.bf16.gmra.mxu0 %v5896
      %v7165 = vpop.f32.mrf.mxu0
      %v7166 = vadd.f32 %v7127, %v7165
      %v7167 = vpop.f32.mrf.mxu0
      %v7168 = vadd.f32 %v7127, %v7167
      %7169 = vmatmul.bf16.gmra.mxu0 %v5899
      %v7170 = vpop.f32.mrf.mxu0
      %v7171 = vadd.f32 %v7127, %v7170
      %v7172 = vpop.f32.mrf.mxu0
      %v7173 = vadd.f32 %v7127, %v7172
      %7174 = vdwg.mxu0
      %s7175 = scalar_lea.vmem %s14, 96
      %v7176 = vld [vmem:[%s7175] sm:$0xf]
      %v7177 = vld [vmem:[%s7175 + $0x4] sm:$0xf]
      %v7178 = vld [vmem:[%s7175 + $0x8] sm:$0xf]
      %v7179 = vld [vmem:[%s7175 + $0xc] sm:$0xf]
      %v7184 = vunpack.c.l.b16 %v7176
      %v7185 = vunpack.c.l.b16 %v7177
      %v7186 = vunpack.c.l.b16 %v7178
      %v7187 = vunpack.c.l.b16 %v7179
      %v7188 = vpack.c.b16 %v7185, %v7184
      %v7189 = vpack.c.b16 %v7187, %v7186
      %7192 = vmatpush.bf16.msra.mxu0 0
      %7193 = vmatpush.bf16.msra.mxu0 0
      %7194 = vmatpush.bf16.msra.mxu0 0
      %7195 = vmatpush.bf16.msra.mxu0 0
      %7196 = vmatpush.bf16.msra.mxu0 0
      %7197 = vmatpush.bf16.msra.mxu0 0
      %7198 = vmatpush.bf16.msra.mxu0 %v7189
      %7199 = vmatpush.bf16.msra.mxu0 %v7188
      %7200 = vmatmul.bf16.gmra.mxu0 %v5887
      %v7201 = vpop.f32.mrf.mxu0
      %v7202 = vadd.f32 0.0, %v7201
      %v7203 = vpop.f32.mrf.mxu0
      %v7204 = vadd.f32 0.0, %v7203
      %7205 = vmatmul.bf16.gmra.mxu0 %v5890
      %v7206 = vpop.f32.mrf.mxu0
      %v7207 = vadd.f32 0.0, %v7206
      %v7208 = vpop.f32.mrf.mxu0
      %v7209 = vadd.f32 0.0, %v7208
      %7210 = vmatmul.bf16.gmra.mxu0 %v5893
      %v7211 = vpop.f32.mrf.mxu0
      %v7212 = vadd.f32 0.0, %v7211
      %v7213 = vpop.f32.mrf.mxu0
      %v7214 = vadd.f32 0.0, %v7213
      %7215 = vmatmul.bf16.gmra.mxu0 %v5896
      %v7216 = vpop.f32.mrf.mxu0
      %v7217 = vadd.f32 0.0, %v7216
      %v7218 = vpop.f32.mrf.mxu0
      %v7219 = vadd.f32 0.0, %v7218
      %7220 = vmatmul.bf16.gmra.mxu0 %v5899
      %v7221 = vpop.f32.mrf.mxu0
      %v7222 = vadd.f32 0.0, %v7221
      %v7223 = vpop.f32.mrf.mxu0
      %v7224 = vadd.f32 0.0, %v7223
      %7225 = vdwg.mxu0
      %s7226 = scalar_lea.vmem %s15, 96
      %v7227 = vld [vmem:[%s7226] sm:$0xf]
      %v7228 = vld [vmem:[%s7226 + $0x4] sm:$0xf]
      %v7229 = vld [vmem:[%s7226 + $0x8] sm:$0xf]
      %v7230 = vld [vmem:[%s7226 + $0xc] sm:$0xf]
      %v7235 = vunpack.c.l.b16 %v7227
      %v7236 = vunpack.c.l.b16 %v7228
      %v7237 = vunpack.c.l.b16 %v7229
      %v7238 = vunpack.c.l.b16 %v7230
      %v7239 = vpack.c.b16 %v7236, %v7235
      %v7240 = vpack.c.b16 %v7238, %v7237
      %7243 = vmatpush.bf16.msra.mxu0 0
      %7244 = vmatpush.bf16.msra.mxu0 0
      %7245 = vmatpush.bf16.msra.mxu0 0
      %7246 = vmatpush.bf16.msra.mxu0 0
      %7247 = vmatpush.bf16.msra.mxu0 0
      %7248 = vmatpush.bf16.msra.mxu0 0
      %7249 = vmatpush.bf16.msra.mxu0 %v7240
      %7250 = vmatpush.bf16.msra.mxu0 %v7239
      %7251 = vmatmul.bf16.gmra.mxu0 %v5887
      %v7252 = vpop.f32.mrf.mxu0
      %v7253 = vadd.f32 0.0, %v7252
      %v7254 = vpop.f32.mrf.mxu0
      %v7255 = vadd.f32 0.0, %v7254
      %7256 = vmatmul.bf16.gmra.mxu0 %v5890
      %v7257 = vpop.f32.mrf.mxu0
      %v7258 = vadd.f32 0.0, %v7257
      %v7259 = vpop.f32.mrf.mxu0
      %v7260 = vadd.f32 0.0, %v7259
      %7261 = vmatmul.bf16.gmra.mxu0 %v5893
      %v7262 = vpop.f32.mrf.mxu0
      %v7263 = vadd.f32 0.0, %v7262
      %v7264 = vpop.f32.mrf.mxu0
      %v7265 = vadd.f32 0.0, %v7264
      %7266 = vmatmul.bf16.gmra.mxu0 %v5896
      %v7267 = vpop.f32.mrf.mxu0
      %v7268 = vadd.f32 0.0, %v7267
      %v7269 = vpop.f32.mrf.mxu0
      %v7270 = vadd.f32 0.0, %v7269
      %7271 = vmatmul.bf16.gmra.mxu0 %v5899
      %v7272 = vpop.f32.mrf.mxu0
      %v7273 = vadd.f32 0.0, %v7272
      %v7274 = vpop.f32.mrf.mxu0
      %v7275 = vadd.f32 0.0, %v7274
      %7276 = vdwg.mxu0
      %v7277 = vpack.c.bf16 %v7153, %v7151
      %v7278 = vpack.c.bf16 %v7158, %v7156
      %v7279 = vpack.c.bf16 %v7163, %v7161
      %v7280 = vpack.c.bf16 %v7168, %v7166
      %v7281 = vpack.c.bf16 %v7173, %v7171
      %v7282 = vpack.c.bf16 %v7204, %v7202
      %v7283 = vpack.c.bf16 %v7209, %v7207
      %v7284 = vpack.c.bf16 %v7214, %v7212
      %v7285 = vpack.c.bf16 %v7219, %v7217
      %v7286 = vpack.c.bf16 %v7224, %v7222
      %v7288 = vsel %vm2740, %v7277, 0
      %v7291 = vsel %vm2740, %v7278, 0
      %v7294 = vsel %vm2740, %v7279, 0
      %v7297 = vsel %vm2740, %v7280, 0
      %v7300 = vsel %vm2740, %v7281, 0
      %v7303 = vsel %vm2740, %v7282, 0
      %v7306 = vsel %vm2740, %v7283, 0
      %v7309 = vsel %vm2740, %v7284, 0
      %v7312 = vsel %vm2740, %v7285, 0
      %v7315 = vsel %vm2740, %v7286, 0
      %7317 = vmatpush.bf16.xpose.msra.mxu0 0
      %7318 = vmatpush.bf16.xpose.msra.mxu0 0
      %7319 = vmatpush.bf16.xpose.msra.mxu0 0
      %7320 = vmatpush.bf16.xpose.msra.mxu0 %v7315
      %7321 = vmatpush.bf16.xpose.msra.mxu0 %v7312
      %7322 = vmatpush.bf16.xpose.msra.mxu0 %v7309
      %7323 = vmatpush.bf16.xpose.msra.mxu0 %v7306
      %7324 = vmatpush.bf16.xpose.msra.mxu0 %v7303
      %7325 = vmatmul.bf16.gmra.mxu0 %v7288
      %v7326 = vpop.f32.mrf.mxu0
      %v7327 = vadd.f32 0.0, %v7326
      %v7328 = vpop.f32.mrf.mxu0
      %v7329 = vadd.f32 0.0, %v7328
      %7330 = vmatmul.bf16.gmra.mxu0 %v7291
      %v7331 = vpop.f32.mrf.mxu0
      %v7332 = vadd.f32 0.0, %v7331
      %v7333 = vpop.f32.mrf.mxu0
      %v7334 = vadd.f32 0.0, %v7333
      %7335 = vmatmul.bf16.gmra.mxu0 %v7294
      %v7336 = vpop.f32.mrf.mxu0
      %v7337 = vadd.f32 0.0, %v7336
      %v7338 = vpop.f32.mrf.mxu0
      %v7339 = vadd.f32 0.0, %v7338
      %7340 = vmatmul.bf16.gmra.mxu0 %v7297
      %v7341 = vpop.f32.mrf.mxu0
      %v7342 = vadd.f32 0.0, %v7341
      %v7343 = vpop.f32.mrf.mxu0
      %v7344 = vadd.f32 0.0, %v7343
      %7345 = vmatmul.bf16.gmra.mxu0 %v7300
      %v7346 = vpop.f32.mrf.mxu0
      %v7347 = vadd.f32 0.0, %v7346
      %v7348 = vpop.f32.mrf.mxu0
      %v7349 = vadd.f32 0.0, %v7348
      %7350 = vdwg.mxu0
      %v7351 = vmul.f32 %v7327, 0.35355338
      %v7352 = vmul.f32 %v7329, 0.35355338
      %v7353 = vmul.f32 %v7332, 0.35355338
      %v7354 = vmul.f32 %v7334, 0.35355338
      %v7355 = vmul.f32 %v7337, 0.35355338
      %v7356 = vmul.f32 %v7339, 0.35355338
      %v7357 = vmul.f32 %v7342, 0.35355338
      %v7358 = vmul.f32 %v7344, 0.35355338
      %v7359 = vmul.f32 %v7347, 0.35355338
      %v7360 = vmul.f32 %v7349, 0.35355338
      %v7361 = vsel %vm2555, %v7351, -1e+30
      %v7362 = vsel %vm2555, %v7352, -1e+30
      %v7363 = vsel %vm2555, %v7353, -1e+30
      %v7364 = vsel %vm2555, %v7354, -1e+30
      %v7365 = vsel %vm2555, %v7355, -1e+30
      %v7366 = vsel %vm2555, %v7356, -1e+30
      %v7367 = vsel %vm2555, %v7357, -1e+30
      %v7368 = vsel %vm2555, %v7358, -1e+30
      %v7369 = vsel %vm2555, %v7359, -1e+30
      %v7370 = vsel %vm2555, %v7360, -1e+30
      %v7371 = vsel %vm2825, %v7361, -inf
      %7372 = vmax.xlane.f32.xlu0 %v7371
      %v7373 = vpop.xlane.xlu0 %7372
      %v7374 = vsel %vm2825, %v7362, -inf
      %7375 = vmax.xlane.f32.xlu0 %v7374
      %v7376 = vpop.xlane.xlu0 %7375
      %v7377 = vsel %vm2825, %v7363, -inf
      %7378 = vmax.xlane.f32.xlu0 %v7377
      %v7379 = vpop.xlane.xlu0 %7378
      %v7380 = vsel %vm2825, %v7364, -inf
      %7381 = vmax.xlane.f32.xlu0 %v7380
      %v7382 = vpop.xlane.xlu0 %7381
      %v7383 = vsel %vm2825, %v7365, -inf
      %7384 = vmax.xlane.f32.xlu0 %v7383
      %v7385 = vpop.xlane.xlu0 %7384
      %v7386 = vsel %vm2825, %v7366, -inf
      %7387 = vmax.xlane.f32.xlu0 %v7386
      %v7388 = vpop.xlane.xlu0 %7387
      %v7389 = vsel %vm2825, %v7367, -inf
      %7390 = vmax.xlane.f32.xlu0 %v7389
      %v7391 = vpop.xlane.xlu0 %7390
      %v7392 = vsel %vm2825, %v7368, -inf
      %7393 = vmax.xlane.f32.xlu0 %v7392
      %v7394 = vpop.xlane.xlu0 %7393
      %v7395 = vsel %vm2825, %v7369, -inf
      %7396 = vmax.xlane.f32.xlu0 %v7395
      %v7397 = vpop.xlane.xlu0 %7396
      %v7398 = vsel %vm2825, %v7370, -inf
      %7399 = vmax.xlane.f32.xlu0 %v7398
      %v7400 = vpop.xlane.xlu0 %7399
      %v7401 = vsub.f32 %v7361, %v7373
      %v7402 = vsub.f32 %v7362, %v7376
      %v7403 = vsub.f32 %v7363, %v7379
      %v7404 = vsub.f32 %v7364, %v7382
      %v7405 = vsub.f32 %v7365, %v7385
      %v7406 = vsub.f32 %v7366, %v7388
      %v7407 = vsub.f32 %v7367, %v7391
      %v7408 = vsub.f32 %v7368, %v7394
      %v7409 = vsub.f32 %v7369, %v7397
      %v7410 = vsub.f32 %v7370, %v7400
      %v7411 = vmul.f32 %v7401, 1.442695
      %v7412 = vpow.pop %v7411
      %v7413 = vmul.f32 %v7402, 1.442695
      %v7414 = vpow.pop %v7413
      %v7415 = vmul.f32 %v7403, 1.442695
      %v7416 = vpow.pop %v7415
      %v7417 = vmul.f32 %v7404, 1.442695
      %v7418 = vpow.pop %v7417
      %v7419 = vmul.f32 %v7405, 1.442695
      %v7420 = vpow.pop %v7419
      %v7421 = vmul.f32 %v7406, 1.442695
      %v7422 = vpow.pop %v7421
      %v7423 = vmul.f32 %v7407, 1.442695
      %v7424 = vpow.pop %v7423
      %v7425 = vmul.f32 %v7408, 1.442695
      %v7426 = vpow.pop %v7425
      %v7427 = vmul.f32 %v7409, 1.442695
      %v7428 = vpow.pop %v7427
      %v7429 = vmul.f32 %v7410, 1.442695
      %v7430 = vpow.pop %v7429
      %v7431 = vsel %vm2825, %v7412, 0.0
      %7432 = vadd.xlane.f32.xlu0 %v7431
      %v7433 = vpop.xlane.xlu0 %7432
      %v7434 = vsel %vm2825, %v7414, 0.0
      %7435 = vadd.xlane.f32.xlu0 %v7434
      %v7436 = vpop.xlane.xlu0 %7435
      %v7437 = vsel %vm2825, %v7416, 0.0
      %7438 = vadd.xlane.f32.xlu0 %v7437
      %v7439 = vpop.xlane.xlu0 %7438
      %v7440 = vsel %vm2825, %v7418, 0.0
      %7441 = vadd.xlane.f32.xlu0 %v7440
      %v7442 = vpop.xlane.xlu0 %7441
      %v7443 = vsel %vm2825, %v7420, 0.0
      %7444 = vadd.xlane.f32.xlu0 %v7443
      %v7445 = vpop.xlane.xlu0 %7444
      %v7446 = vsel %vm2825, %v7422, 0.0
      %7447 = vadd.xlane.f32.xlu0 %v7446
      %v7448 = vpop.xlane.xlu0 %7447
      %v7449 = vsel %vm2825, %v7424, 0.0
      %7450 = vadd.xlane.f32.xlu0 %v7449
      %v7451 = vpop.xlane.xlu0 %7450
      %v7452 = vsel %vm2825, %v7426, 0.0
      %7453 = vadd.xlane.f32.xlu0 %v7452
      %v7454 = vpop.xlane.xlu0 %7453
      %v7455 = vsel %vm2825, %v7428, 0.0
      %7456 = vadd.xlane.f32.xlu0 %v7455
      %v7457 = vpop.xlane.xlu0 %7456
      %v7458 = vsel %vm2825, %v7430, 0.0
      %7459 = vadd.xlane.f32.xlu0 %v7458
      %v7460 = vpop.xlane.xlu0 %7459
      %v7461 = vpack.c.bf16 %v7255, %v7253
      %v7462 = vpack.c.bf16 %v7260, %v7258
      %v7463 = vpack.c.bf16 %v7265, %v7263
      %v7464 = vpack.c.bf16 %v7270, %v7268
      %v7465 = vpack.c.bf16 %v7275, %v7273
      %v7466 = vpack.c.bf16 %v7414, %v7412
      %v7467 = vpack.c.bf16 %v7418, %v7416
      %v7468 = vpack.c.bf16 %v7422, %v7420
      %v7469 = vpack.c.bf16 %v7426, %v7424
      %v7470 = vpack.c.bf16 %v7430, %v7428
      %v7472 = vsel %vm2825, %v7466, 0
      %v7475 = vsel %vm2825, %v7467, 0
      %v7478 = vsel %vm2825, %v7468, 0
      %v7481 = vsel %vm2825, %v7469, 0
      %v7484 = vsel %vm2825, %v7470, 0
      %7486 = vmatpush.bf16.msra.mxu0 0
      %7487 = vmatpush.bf16.msra.mxu0 0
      %7488 = vmatpush.bf16.msra.mxu0 0
      %7489 = vmatpush.bf16.msra.mxu0 %v7465
      %7490 = vmatpush.bf16.msra.mxu0 %v7464
      %7491 = vmatpush.bf16.msra.mxu0 %v7463
      %7492 = vmatpush.bf16.msra.mxu0 %v7462
      %7493 = vmatpush.bf16.msra.mxu0 %v7461
      %7494 = vmatmul.bf16.gmra.mxu0 %v7472
      %v7495 = vpop.f32.mrf.mxu0
      %v7496 = vadd.f32 0.0, %v7495
      %v7497 = vpop.f32.mrf.mxu0
      %v7498 = vadd.f32 0.0, %v7497
      %7499 = vmatmul.bf16.gmra.mxu0 %v7475
      %v7500 = vpop.f32.mrf.mxu0
      %v7501 = vadd.f32 0.0, %v7500
      %v7502 = vpop.f32.mrf.mxu0
      %v7503 = vadd.f32 0.0, %v7502
      %7504 = vmatmul.bf16.gmra.mxu0 %v7478
      %v7505 = vpop.f32.mrf.mxu0
      %v7506 = vadd.f32 0.0, %v7505
      %v7507 = vpop.f32.mrf.mxu0
      %v7508 = vadd.f32 0.0, %v7507
      %7509 = vmatmul.bf16.gmra.mxu0 %v7481
      %v7510 = vpop.f32.mrf.mxu0
      %v7511 = vadd.f32 0.0, %v7510
      %v7512 = vpop.f32.mrf.mxu0
      %v7513 = vadd.f32 0.0, %v7512
      %7514 = vmatmul.bf16.gmra.mxu0 %v7484
      %v7515 = vpop.f32.mrf.mxu0
      %v7516 = vadd.f32 0.0, %v7515
      %v7517 = vpop.f32.mrf.mxu0
      %v7518 = vadd.f32 0.0, %v7517
      %7519 = vdwg.mxu0
      %v7520 = vrcp.pop %v7433
      %v7521 = vmul.f32 %v7433, %v7520
      %v7522 = vsub.f32 1.0, %v7521
      %v7523 = vmul.f32 %v7520, %v7522
      %v7524 = vadd.f32 %v7520, %v7523
      %vm7525 = vweird.f32 %v7433
      %vm7526 = vweird.f32 %v7520
      %vm7527 = vmor %vm7525, %vm7526
      %v7528 = vsel %vm7527, %v7520, %v7524
      %v7529 = vand.u32 2147483647, %v7433
      %vm7530 = vcmp.eq.f32.partialorder %v7529, 8.507059e+37
      %v7531 = vand.u32 %v7433, 2147483648
      %v7532 = vor.u32 1.1754944e-38, %v7531
      %v7533 = vsel %vm7530, %v7532, %v7528
      %v7534 = vmul.f32 1.0, %v7533
      %v7535 = vrcp.pop %v7436
      %v7536 = vmul.f32 %v7436, %v7535
      %v7537 = vsub.f32 1.0, %v7536
      %v7538 = vmul.f32 %v7535, %v7537
      %v7539 = vadd.f32 %v7535, %v7538
      %vm7540 = vweird.f32 %v7436
      %vm7541 = vweird.f32 %v7535
      %vm7542 = vmor %vm7540, %vm7541
      %v7543 = vsel %vm7542, %v7535, %v7539
      %v7544 = vand.u32 2147483647, %v7436
      %vm7545 = vcmp.eq.f32.partialorder %v7544, 8.507059e+37
      %v7546 = vand.u32 %v7436, 2147483648
      %v7547 = vor.u32 1.1754944e-38, %v7546
      %v7548 = vsel %vm7545, %v7547, %v7543
      %v7549 = vmul.f32 1.0, %v7548
      %v7550 = vrcp.pop %v7439
      %v7551 = vmul.f32 %v7439, %v7550
      %v7552 = vsub.f32 1.0, %v7551
      %v7553 = vmul.f32 %v7550, %v7552
      %v7554 = vadd.f32 %v7550, %v7553
      %vm7555 = vweird.f32 %v7439
      %vm7556 = vweird.f32 %v7550
      %vm7557 = vmor %vm7555, %vm7556
      %v7558 = vsel %vm7557, %v7550, %v7554
      %v7559 = vand.u32 2147483647, %v7439
      %vm7560 = vcmp.eq.f32.partialorder %v7559, 8.507059e+37
      %v7561 = vand.u32 %v7439, 2147483648
      %v7562 = vor.u32 1.1754944e-38, %v7561
      %v7563 = vsel %vm7560, %v7562, %v7558
      %v7564 = vmul.f32 1.0, %v7563
      %v7565 = vrcp.pop %v7442
      %v7566 = vmul.f32 %v7442, %v7565
      %v7567 = vsub.f32 1.0, %v7566
      %v7568 = vmul.f32 %v7565, %v7567
      %v7569 = vadd.f32 %v7565, %v7568
      %vm7570 = vweird.f32 %v7442
      %vm7571 = vweird.f32 %v7565
      %vm7572 = vmor %vm7570, %vm7571
      %v7573 = vsel %vm7572, %v7565, %v7569
      %v7574 = vand.u32 2147483647, %v7442
      %vm7575 = vcmp.eq.f32.partialorder %v7574, 8.507059e+37
      %v7576 = vand.u32 %v7442, 2147483648
      %v7577 = vor.u32 1.1754944e-38, %v7576
      %v7578 = vsel %vm7575, %v7577, %v7573
      %v7579 = vmul.f32 1.0, %v7578
      %v7580 = vrcp.pop %v7445
      %v7581 = vmul.f32 %v7445, %v7580
      %v7582 = vsub.f32 1.0, %v7581
      %v7583 = vmul.f32 %v7580, %v7582
      %v7584 = vadd.f32 %v7580, %v7583
      %vm7585 = vweird.f32 %v7445
      %vm7586 = vweird.f32 %v7580
      %vm7587 = vmor %vm7585, %vm7586
      %v7588 = vsel %vm7587, %v7580, %v7584
      %v7589 = vand.u32 2147483647, %v7445
      %vm7590 = vcmp.eq.f32.partialorder %v7589, 8.507059e+37
      %v7591 = vand.u32 %v7445, 2147483648
      %v7592 = vor.u32 1.1754944e-38, %v7591
      %v7593 = vsel %vm7590, %v7592, %v7588
      %v7594 = vmul.f32 1.0, %v7593
      %v7595 = vrcp.pop %v7448
      %v7596 = vmul.f32 %v7448, %v7595
      %v7597 = vsub.f32 1.0, %v7596
      %v7598 = vmul.f32 %v7595, %v7597
      %v7599 = vadd.f32 %v7595, %v7598
      %vm7600 = vweird.f32 %v7448
      %vm7601 = vweird.f32 %v7595
      %vm7602 = vmor %vm7600, %vm7601
      %v7603 = vsel %vm7602, %v7595, %v7599
      %v7604 = vand.u32 2147483647, %v7448
      %vm7605 = vcmp.eq.f32.partialorder %v7604, 8.507059e+37
      %v7606 = vand.u32 %v7448, 2147483648
      %v7607 = vor.u32 1.1754944e-38, %v7606
      %v7608 = vsel %vm7605, %v7607, %v7603
      %v7609 = vmul.f32 1.0, %v7608
      %v7610 = vrcp.pop %v7451
      %v7611 = vmul.f32 %v7451, %v7610
      %v7612 = vsub.f32 1.0, %v7611
      %v7613 = vmul.f32 %v7610, %v7612
      %v7614 = vadd.f32 %v7610, %v7613
      %vm7615 = vweird.f32 %v7451
      %vm7616 = vweird.f32 %v7610
      %vm7617 = vmor %vm7615, %vm7616
      %v7618 = vsel %vm7617, %v7610, %v7614
      %v7619 = vand.u32 2147483647, %v7451
      %vm7620 = vcmp.eq.f32.partialorder %v7619, 8.507059e+37
      %v7621 = vand.u32 %v7451, 2147483648
      %v7622 = vor.u32 1.1754944e-38, %v7621
      %v7623 = vsel %vm7620, %v7622, %v7618
      %v7624 = vmul.f32 1.0, %v7623
      %v7625 = vrcp.pop %v7454
      %v7626 = vmul.f32 %v7454, %v7625
      %v7627 = vsub.f32 1.0, %v7626
      %v7628 = vmul.f32 %v7625, %v7627
      %v7629 = vadd.f32 %v7625, %v7628
      %vm7630 = vweird.f32 %v7454
      %vm7631 = vweird.f32 %v7625
      %vm7632 = vmor %vm7630, %vm7631
      %v7633 = vsel %vm7632, %v7625, %v7629
      %v7634 = vand.u32 2147483647, %v7454
      %vm7635 = vcmp.eq.f32.partialorder %v7634, 8.507059e+37
      %v7636 = vand.u32 %v7454, 2147483648
      %v7637 = vor.u32 1.1754944e-38, %v7636
      %v7638 = vsel %vm7635, %v7637, %v7633
      %v7639 = vmul.f32 1.0, %v7638
      %v7640 = vrcp.pop %v7457
      %v7641 = vmul.f32 %v7457, %v7640
      %v7642 = vsub.f32 1.0, %v7641
      %v7643 = vmul.f32 %v7640, %v7642
      %v7644 = vadd.f32 %v7640, %v7643
      %vm7645 = vweird.f32 %v7457
      %vm7646 = vweird.f32 %v7640
      %vm7647 = vmor %vm7645, %vm7646
      %v7648 = vsel %vm7647, %v7640, %v7644
      %v7649 = vand.u32 2147483647, %v7457
      %vm7650 = vcmp.eq.f32.partialorder %v7649, 8.507059e+37
      %v7651 = vand.u32 %v7457, 2147483648
      %v7652 = vor.u32 1.1754944e-38, %v7651
      %v7653 = vsel %vm7650, %v7652, %v7648
      %v7654 = vmul.f32 1.0, %v7653
      %v7655 = vrcp.pop %v7460
      %v7656 = vmul.f32 %v7460, %v7655
      %v7657 = vsub.f32 1.0, %v7656
      %v7658 = vmul.f32 %v7655, %v7657
      %v7659 = vadd.f32 %v7655, %v7658
      %vm7660 = vweird.f32 %v7460
      %vm7661 = vweird.f32 %v7655
      %vm7662 = vmor %vm7660, %vm7661
      %v7663 = vsel %vm7662, %v7655, %v7659
      %v7664 = vand.u32 2147483647, %v7460
      %vm7665 = vcmp.eq.f32.partialorder %v7664, 8.507059e+37
      %v7666 = vand.u32 %v7460, 2147483648
      %v7667 = vor.u32 1.1754944e-38, %v7666
      %v7668 = vsel %vm7665, %v7667, %v7663
      %v7669 = vmul.f32 1.0, %v7668
      %v7670 = vmul.f32 %v7496, %v7534
      %v7671 = vmul.f32 %v7498, %v7549
      %v7672 = vmul.f32 %v7501, %v7564
      %v7673 = vmul.f32 %v7503, %v7579
      %v7674 = vmul.f32 %v7506, %v7594
      %v7675 = vmul.f32 %v7508, %v7609
      %v7676 = vmul.f32 %v7511, %v7624
      %v7677 = vmul.f32 %v7513, %v7639
      %v7678 = vmul.f32 %v7516, %v7654
      %v7679 = vmul.f32 %v7518, %v7669
      %s7680 = scalar_lea.vmem %s17, 24
      %v7681 = vld [vmem:[%s7680] sm:$0xf]
      %v7682 = vpack.c.bf16 %v7671, %v7670
      %v7683 = vpack.c.bf16 %v7673, %v7672
      %v7684 = vpack.c.bf16 %v7675, %v7674
      %v7685 = vpack.c.bf16 %v7677, %v7676
      %v7686 = vpack.c.bf16 %v7679, %v7678
      %v7688 = vsel %vm2740, %v7682, 0
      %v7691 = vsel %vm2740, %v7683, 0
      %v7694 = vsel %vm2740, %v7684, 0
      %v7697 = vsel %vm2740, %v7685, 0
      %v7700 = vsel %vm2740, %v7686, 0
      %v7703 = vsel %vm3724, %v7681, 0
      %7705 = vmatpush.bf16.msra.mxu0 0
      %7706 = vmatpush.bf16.msra.mxu0 0
      %7707 = vmatpush.bf16.msra.mxu0 0
      %7708 = vmatpush.bf16.msra.mxu0 0
      %7709 = vmatpush.bf16.msra.mxu0 0
      %7710 = vmatpush.bf16.msra.mxu0 0
      %7711 = vmatpush.bf16.msra.mxu0 0
      %7712 = vmatpush.bf16.msra.mxu0 %v7703
      %7713 = vmatmul.bf16.gmra.mxu0 %v7688
      %v7714 = vpop.f32.mrf.mxu0
      %v7715 = vadd.f32 0.0, %v7714
      %v7716 = vpop.f32.mrf.mxu0
      %v7717 = vadd.f32 0.0, %v7716
      %7718 = vmatmul.bf16.gmra.mxu0 %v7691
      %v7719 = vpop.f32.mrf.mxu0
      %v7720 = vadd.f32 0.0, %v7719
      %v7721 = vpop.f32.mrf.mxu0
      %v7722 = vadd.f32 0.0, %v7721
      %7723 = vmatmul.bf16.gmra.mxu0 %v7694
      %v7724 = vpop.f32.mrf.mxu0
      %v7725 = vadd.f32 0.0, %v7724
      %v7726 = vpop.f32.mrf.mxu0
      %v7727 = vadd.f32 0.0, %v7726
      %7728 = vmatmul.bf16.gmra.mxu0 %v7697
      %v7729 = vpop.f32.mrf.mxu0
      %v7730 = vadd.f32 0.0, %v7729
      %v7731 = vpop.f32.mrf.mxu0
      %v7732 = vadd.f32 0.0, %v7731
      %7733 = vmatmul.bf16.gmra.mxu0 %v7700
      %v7734 = vpop.f32.mrf.mxu0
      %v7735 = vadd.f32 0.0, %v7734
      %v7736 = vpop.f32.mrf.mxu0
      %v7737 = vadd.f32 0.0, %v7736
      %7738 = vdwg.mxu0
      %v7739 = vadd.f32 %v7095, %v7715
      %v7740 = vadd.f32 %v7097, %v7717
      %v7741 = vadd.f32 %v7100, %v7720
      %v7742 = vadd.f32 %v7102, %v7722
      %v7743 = vadd.f32 %v7105, %v7725
      %v7744 = vadd.f32 %v7107, %v7727
      %v7745 = vadd.f32 %v7110, %v7730
      %v7746 = vadd.f32 %v7112, %v7732
      %v7747 = vadd.f32 %v7115, %v7735
      %v7748 = vadd.f32 %v7117, %v7737
      %s7749 = scalar_lea.vmem %s13, 112
      %v7750 = vld [vmem:[%s7749] sm:$0xf]
      %v7751 = vld [vmem:[%s7749 + $0x4] sm:$0xf]
      %v7752 = vld [vmem:[%s7749 + $0x8] sm:$0xf]
      %v7753 = vld [vmem:[%s7749 + $0xc] sm:$0xf]
      %s7754 = scalar_lea.vmem %s16, 7
      %v7755 = vld [vmem:[%s7754] sm:$0x1]
      %v7757 = vperm.slane %v7755, 0
      %v7763 = vunpack.c.l.b16 %v7750
      %v7764 = vunpack.c.l.b16 %v7751
      %v7765 = vunpack.c.l.b16 %v7752
      %v7766 = vunpack.c.l.b16 %v7753
      %v7767 = vpack.c.b16 %v7764, %v7763
      %v7768 = vpack.c.b16 %v7766, %v7765
      %7771 = vmatpush.bf16.msra.mxu0 0
      %7772 = vmatpush.bf16.msra.mxu0 0
      %7773 = vmatpush.bf16.msra.mxu0 0
      %7774 = vmatpush.bf16.msra.mxu0 0
      %7775 = vmatpush.bf16.msra.mxu0 0
      %7776 = vmatpush.bf16.msra.mxu0 0
      %7777 = vmatpush.bf16.msra.mxu0 %v7768
      %7778 = vmatpush.bf16.msra.mxu0 %v7767
      %7779 = vmatmul.bf16.gmra.mxu0 %v5887
      %v7780 = vpop.f32.mrf.mxu0
      %v7781 = vadd.f32 %v7757, %v7780
      %v7782 = vpop.f32.mrf.mxu0
      %v7783 = vadd.f32 %v7757, %v7782
      %7784 = vmatmul.bf16.gmra.mxu0 %v5890
      %v7785 = vpop.f32.mrf.mxu0
      %v7786 = vadd.f32 %v7757, %v7785
      %v7787 = vpop.f32.mrf.mxu0
      %v7788 = vadd.f32 %v7757, %v7787
      %7789 = vmatmul.bf16.gmra.mxu0 %v5893
      %v7790 = vpop.f32.mrf.mxu0
      %v7791 = vadd.f32 %v7757, %v7790
      %v7792 = vpop.f32.mrf.mxu0
      %v7793 = vadd.f32 %v7757, %v7792
      %7794 = vmatmul.bf16.gmra.mxu0 %v5896
      %v7795 = vpop.f32.mrf.mxu0
      %v7796 = vadd.f32 %v7757, %v7795
      %v7797 = vpop.f32.mrf.mxu0
      %v7798 = vadd.f32 %v7757, %v7797
      %7799 = vmatmul.bf16.gmra.mxu0 %v5899
      %v7800 = vpop.f32.mrf.mxu0
      %v7801 = vadd.f32 %v7757, %v7800
      %v7802 = vpop.f32.mrf.mxu0
      %v7803 = vadd.f32 %v7757, %v7802
      %7804 = vdwg.mxu0
      %s7805 = scalar_lea.vmem %s14, 112
      %v7806 = vld [vmem:[%s7805] sm:$0xf]
      %v7807 = vld [vmem:[%s7805 + $0x4] sm:$0xf]
      %v7808 = vld [vmem:[%s7805 + $0x8] sm:$0xf]
      %v7809 = vld [vmem:[%s7805 + $0xc] sm:$0xf]
      %v7814 = vunpack.c.l.b16 %v7806
      %v7815 = vunpack.c.l.b16 %v7807
      %v7816 = vunpack.c.l.b16 %v7808
      %v7817 = vunpack.c.l.b16 %v7809
      %v7818 = vpack.c.b16 %v7815, %v7814
      %v7819 = vpack.c.b16 %v7817, %v7816
      %7822 = vmatpush.bf16.msra.mxu0 0
      %7823 = vmatpush.bf16.msra.mxu0 0
      %7824 = vmatpush.bf16.msra.mxu0 0
      %7825 = vmatpush.bf16.msra.mxu0 0
      %7826 = vmatpush.bf16.msra.mxu0 0
      %7827 = vmatpush.bf16.msra.mxu0 0
      %7828 = vmatpush.bf16.msra.mxu0 %v7819
      %7829 = vmatpush.bf16.msra.mxu0 %v7818
      %7830 = vmatmul.bf16.gmra.mxu0 %v5887
      %v7831 = vpop.f32.mrf.mxu0
      %v7832 = vadd.f32 0.0, %v7831
      %v7833 = vpop.f32.mrf.mxu0
      %v7834 = vadd.f32 0.0, %v7833
      %7835 = vmatmul.bf16.gmra.mxu0 %v5890
      %v7836 = vpop.f32.mrf.mxu0
      %v7837 = vadd.f32 0.0, %v7836
      %v7838 = vpop.f32.mrf.mxu0
      %v7839 = vadd.f32 0.0, %v7838
      %7840 = vmatmul.bf16.gmra.mxu0 %v5893
      %v7841 = vpop.f32.mrf.mxu0
      %v7842 = vadd.f32 0.0, %v7841
      %v7843 = vpop.f32.mrf.mxu0
      %v7844 = vadd.f32 0.0, %v7843
      %7845 = vmatmul.bf16.gmra.mxu0 %v5896
      %v7846 = vpop.f32.mrf.mxu0
      %v7847 = vadd.f32 0.0, %v7846
      %v7848 = vpop.f32.mrf.mxu0
      %v7849 = vadd.f32 0.0, %v7848
      %7850 = vmatmul.bf16.gmra.mxu0 %v5899
      %v7851 = vpop.f32.mrf.mxu0
      %v7852 = vadd.f32 0.0, %v7851
      %v7853 = vpop.f32.mrf.mxu0
      %v7854 = vadd.f32 0.0, %v7853
      %7855 = vdwg.mxu0
      %s7856 = scalar_lea.vmem %s15, 112
      %v7857 = vld [vmem:[%s7856] sm:$0xf]
      %v7858 = vld [vmem:[%s7856 + $0x4] sm:$0xf]
      %v7859 = vld [vmem:[%s7856 + $0x8] sm:$0xf]
      %v7860 = vld [vmem:[%s7856 + $0xc] sm:$0xf]
      %v7865 = vunpack.c.l.b16 %v7857
      %v7866 = vunpack.c.l.b16 %v7858
      %v7867 = vunpack.c.l.b16 %v7859
      %v7868 = vunpack.c.l.b16 %v7860
      %v7869 = vpack.c.b16 %v7866, %v7865
      %v7870 = vpack.c.b16 %v7868, %v7867
      %7873 = vmatpush.bf16.msra.mxu0 0
      %7874 = vmatpush.bf16.msra.mxu0 0
      %7875 = vmatpush.bf16.msra.mxu0 0
      %7876 = vmatpush.bf16.msra.mxu0 0
      %7877 = vmatpush.bf16.msra.mxu0 0
      %7878 = vmatpush.bf16.msra.mxu0 0
      %7879 = vmatpush.bf16.msra.mxu0 %v7870
      %7880 = vmatpush.bf16.msra.mxu0 %v7869
      %7881 = vmatmul.bf16.gmra.mxu0 %v5887
      %v7882 = vpop.f32.mrf.mxu0
      %v7883 = vadd.f32 0.0, %v7882
      %v7884 = vpop.f32.mrf.mxu0
      %v7885 = vadd.f32 0.0, %v7884
      %7886 = vmatmul.bf16.gmra.mxu0 %v5890
      %v7887 = vpop.f32.mrf.mxu0
      %v7888 = vadd.f32 0.0, %v7887
      %v7889 = vpop.f32.mrf.mxu0
      %v7890 = vadd.f32 0.0, %v7889
      %7891 = vmatmul.bf16.gmra.mxu0 %v5893
      %v7892 = vpop.f32.mrf.mxu0
      %v7893 = vadd.f32 0.0, %v7892
      %v7894 = vpop.f32.mrf.mxu0
      %v7895 = vadd.f32 0.0, %v7894
      %7896 = vmatmul.bf16.gmra.mxu0 %v5896
      %v7897 = vpop.f32.mrf.mxu0
      %v7898 = vadd.f32 0.0, %v7897
      %v7899 = vpop.f32.mrf.mxu0
      %v7900 = vadd.f32 0.0, %v7899
      %7901 = vmatmul.bf16.gmra.mxu0 %v5899
      %v7902 = vpop.f32.mrf.mxu0
      %v7903 = vadd.f32 0.0, %v7902
      %v7904 = vpop.f32.mrf.mxu0
      %v7905 = vadd.f32 0.0, %v7904
      %7906 = vdwg.mxu0
      %v7907 = vpack.c.bf16 %v7783, %v7781
      %v7908 = vpack.c.bf16 %v7788, %v7786
      %v7909 = vpack.c.bf16 %v7793, %v7791
      %v7910 = vpack.c.bf16 %v7798, %v7796
      %v7911 = vpack.c.bf16 %v7803, %v7801
      %v7912 = vpack.c.bf16 %v7834, %v7832
      %v7913 = vpack.c.bf16 %v7839, %v7837
      %v7914 = vpack.c.bf16 %v7844, %v7842
      %v7915 = vpack.c.bf16 %v7849, %v7847
      %v7916 = vpack.c.bf16 %v7854, %v7852
      %v7918 = vsel %vm2740, %v7907, 0
      %v7921 = vsel %vm2740, %v7908, 0
      %v7924 = vsel %vm2740, %v7909, 0
      %v7927 = vsel %vm2740, %v7910, 0
      %v7930 = vsel %vm2740, %v7911, 0
      %v7933 = vsel %vm2740, %v7912, 0
      %v7936 = vsel %vm2740, %v7913, 0
      %v7939 = vsel %vm2740, %v7914, 0
      %v7942 = vsel %vm2740, %v7915, 0
      %v7945 = vsel %vm2740, %v7916, 0
      %7947 = vmatpush.bf16.xpose.msra.mxu0 0
      %7948 = vmatpush.bf16.xpose.msra.mxu0 0
      %7949 = vmatpush.bf16.xpose.msra.mxu0 0
      %7950 = vmatpush.bf16.xpose.msra.mxu0 %v7945
      %7951 = vmatpush.bf16.xpose.msra.mxu0 %v7942
      %7952 = vmatpush.bf16.xpose.msra.mxu0 %v7939
      %7953 = vmatpush.bf16.xpose.msra.mxu0 %v7936
      %7954 = vmatpush.bf16.xpose.msra.mxu0 %v7933
      %7955 = vmatmul.bf16.gmra.mxu0 %v7918
      %v7956 = vpop.f32.mrf.mxu0
      %v7957 = vadd.f32 0.0, %v7956
      %v7958 = vpop.f32.mrf.mxu0
      %v7959 = vadd.f32 0.0, %v7958
      %7960 = vmatmul.bf16.gmra.mxu0 %v7921
      %v7961 = vpop.f32.mrf.mxu0
      %v7962 = vadd.f32 0.0, %v7961
      %v7963 = vpop.f32.mrf.mxu0
      %v7964 = vadd.f32 0.0, %v7963
      %7965 = vmatmul.bf16.gmra.mxu0 %v7924
      %v7966 = vpop.f32.mrf.mxu0
      %v7967 = vadd.f32 0.0, %v7966
      %v7968 = vpop.f32.mrf.mxu0
      %v7969 = vadd.f32 0.0, %v7968
      %7970 = vmatmul.bf16.gmra.mxu0 %v7927
      %v7971 = vpop.f32.mrf.mxu0
      %v7972 = vadd.f32 0.0, %v7971
      %v7973 = vpop.f32.mrf.mxu0
      %v7974 = vadd.f32 0.0, %v7973
      %7975 = vmatmul.bf16.gmra.mxu0 %v7930
      %v7976 = vpop.f32.mrf.mxu0
      %v7977 = vadd.f32 0.0, %v7976
      %v7978 = vpop.f32.mrf.mxu0
      %v7979 = vadd.f32 0.0, %v7978
      %7980 = vdwg.mxu0
      %v7981 = vmul.f32 %v7957, 0.35355338
      %v7982 = vmul.f32 %v7959, 0.35355338
      %v7983 = vmul.f32 %v7962, 0.35355338
      %v7984 = vmul.f32 %v7964, 0.35355338
      %v7985 = vmul.f32 %v7967, 0.35355338
      %v7986 = vmul.f32 %v7969, 0.35355338
      %v7987 = vmul.f32 %v7972, 0.35355338
      %v7988 = vmul.f32 %v7974, 0.35355338
      %v7989 = vmul.f32 %v7977, 0.35355338
      %v7990 = vmul.f32 %v7979, 0.35355338
      %v7991 = vsel %vm2555, %v7981, -1e+30
      %v7992 = vsel %vm2555, %v7982, -1e+30
      %v7993 = vsel %vm2555, %v7983, -1e+30
      %v7994 = vsel %vm2555, %v7984, -1e+30
      %v7995 = vsel %vm2555, %v7985, -1e+30
      %v7996 = vsel %vm2555, %v7986, -1e+30
      %v7997 = vsel %vm2555, %v7987, -1e+30
      %v7998 = vsel %vm2555, %v7988, -1e+30
      %v7999 = vsel %vm2555, %v7989, -1e+30
      %v8000 = vsel %vm2555, %v7990, -1e+30
      %v8001 = vsel %vm2825, %v7991, -inf
      %8002 = vmax.xlane.f32.xlu0 %v8001
      %v8003 = vpop.xlane.xlu0 %8002
      %v8004 = vsel %vm2825, %v7992, -inf
      %8005 = vmax.xlane.f32.xlu0 %v8004
      %v8006 = vpop.xlane.xlu0 %8005
      %v8007 = vsel %vm2825, %v7993, -inf
      %8008 = vmax.xlane.f32.xlu0 %v8007
      %v8009 = vpop.xlane.xlu0 %8008
      %v8010 = vsel %vm2825, %v7994, -inf
      %8011 = vmax.xlane.f32.xlu0 %v8010
      %v8012 = vpop.xlane.xlu0 %8011
      %v8013 = vsel %vm2825, %v7995, -inf
      %8014 = vmax.xlane.f32.xlu0 %v8013
      %v8015 = vpop.xlane.xlu0 %8014
      %v8016 = vsel %vm2825, %v7996, -inf
      %8017 = vmax.xlane.f32.xlu0 %v8016
      %v8018 = vpop.xlane.xlu0 %8017
      %v8019 = vsel %vm2825, %v7997, -inf
      %8020 = vmax.xlane.f32.xlu0 %v8019
      %v8021 = vpop.xlane.xlu0 %8020
      %v8022 = vsel %vm2825, %v7998, -inf
      %8023 = vmax.xlane.f32.xlu0 %v8022
      %v8024 = vpop.xlane.xlu0 %8023
      %v8025 = vsel %vm2825, %v7999, -inf
      %8026 = vmax.xlane.f32.xlu0 %v8025
      %v8027 = vpop.xlane.xlu0 %8026
      %v8028 = vsel %vm2825, %v8000, -inf
      %8029 = vmax.xlane.f32.xlu0 %v8028
      %v8030 = vpop.xlane.xlu0 %8029
      %v8031 = vsub.f32 %v7991, %v8003
      %v8032 = vsub.f32 %v7992, %v8006
      %v8033 = vsub.f32 %v7993, %v8009
      %v8034 = vsub.f32 %v7994, %v8012
      %v8035 = vsub.f32 %v7995, %v8015
      %v8036 = vsub.f32 %v7996, %v8018
      %v8037 = vsub.f32 %v7997, %v8021
      %v8038 = vsub.f32 %v7998, %v8024
      %v8039 = vsub.f32 %v7999, %v8027
      %v8040 = vsub.f32 %v8000, %v8030
      %v8041 = vmul.f32 %v8031, 1.442695
      %v8042 = vpow.pop %v8041
      %v8043 = vmul.f32 %v8032, 1.442695
      %v8044 = vpow.pop %v8043
      %v8045 = vmul.f32 %v8033, 1.442695
      %v8046 = vpow.pop %v8045
      %v8047 = vmul.f32 %v8034, 1.442695
      %v8048 = vpow.pop %v8047
      %v8049 = vmul.f32 %v8035, 1.442695
      %v8050 = vpow.pop %v8049
      %v8051 = vmul.f32 %v8036, 1.442695
      %v8052 = vpow.pop %v8051
      %v8053 = vmul.f32 %v8037, 1.442695
      %v8054 = vpow.pop %v8053
      %v8055 = vmul.f32 %v8038, 1.442695
      %v8056 = vpow.pop %v8055
      %v8057 = vmul.f32 %v8039, 1.442695
      %v8058 = vpow.pop %v8057
      %v8059 = vmul.f32 %v8040, 1.442695
      %v8060 = vpow.pop %v8059
      %v8061 = vsel %vm2825, %v8042, 0.0
      %8062 = vadd.xlane.f32.xlu0 %v8061
      %v8063 = vpop.xlane.xlu0 %8062
      %v8064 = vsel %vm2825, %v8044, 0.0
      %8065 = vadd.xlane.f32.xlu0 %v8064
      %v8066 = vpop.xlane.xlu0 %8065
      %v8067 = vsel %vm2825, %v8046, 0.0
      %8068 = vadd.xlane.f32.xlu0 %v8067
      %v8069 = vpop.xlane.xlu0 %8068
      %v8070 = vsel %vm2825, %v8048, 0.0
      %8071 = vadd.xlane.f32.xlu0 %v8070
      %v8072 = vpop.xlane.xlu0 %8071
      %v8073 = vsel %vm2825, %v8050, 0.0
      %8074 = vadd.xlane.f32.xlu0 %v8073
      %v8075 = vpop.xlane.xlu0 %8074
      %v8076 = vsel %vm2825, %v8052, 0.0
      %8077 = vadd.xlane.f32.xlu0 %v8076
      %v8078 = vpop.xlane.xlu0 %8077
      %v8079 = vsel %vm2825, %v8054, 0.0
      %8080 = vadd.xlane.f32.xlu0 %v8079
      %v8081 = vpop.xlane.xlu0 %8080
      %v8082 = vsel %vm2825, %v8056, 0.0
      %8083 = vadd.xlane.f32.xlu0 %v8082
      %v8084 = vpop.xlane.xlu0 %8083
      %v8085 = vsel %vm2825, %v8058, 0.0
      %8086 = vadd.xlane.f32.xlu0 %v8085
      %v8087 = vpop.xlane.xlu0 %8086
      %v8088 = vsel %vm2825, %v8060, 0.0
      %8089 = vadd.xlane.f32.xlu0 %v8088
      %v8090 = vpop.xlane.xlu0 %8089
      %v8091 = vpack.c.bf16 %v7885, %v7883
      %v8092 = vpack.c.bf16 %v7890, %v7888
      %v8093 = vpack.c.bf16 %v7895, %v7893
      %v8094 = vpack.c.bf16 %v7900, %v7898
      %v8095 = vpack.c.bf16 %v7905, %v7903
      %v8096 = vpack.c.bf16 %v8044, %v8042
      %v8097 = vpack.c.bf16 %v8048, %v8046
      %v8098 = vpack.c.bf16 %v8052, %v8050
      %v8099 = vpack.c.bf16 %v8056, %v8054
      %v8100 = vpack.c.bf16 %v8060, %v8058
      %v8102 = vsel %vm2825, %v8096, 0
      %v8105 = vsel %vm2825, %v8097, 0
      %v8108 = vsel %vm2825, %v8098, 0
      %v8111 = vsel %vm2825, %v8099, 0
      %v8114 = vsel %vm2825, %v8100, 0
      %8116 = vmatpush.bf16.msra.mxu0 0
      %8117 = vmatpush.bf16.msra.mxu0 0
      %8118 = vmatpush.bf16.msra.mxu0 0
      %8119 = vmatpush.bf16.msra.mxu0 %v8095
      %8120 = vmatpush.bf16.msra.mxu0 %v8094
      %8121 = vmatpush.bf16.msra.mxu0 %v8093
      %8122 = vmatpush.bf16.msra.mxu0 %v8092
      %8123 = vmatpush.bf16.msra.mxu0 %v8091
      %8124 = vmatmul.bf16.gmra.mxu0 %v8102
      %v8125 = vpop.f32.mrf.mxu0
      %v8126 = vadd.f32 0.0, %v8125
      %v8127 = vpop.f32.mrf.mxu0
      %v8128 = vadd.f32 0.0, %v8127
      %8129 = vmatmul.bf16.gmra.mxu0 %v8105
      %v8130 = vpop.f32.mrf.mxu0
      %v8131 = vadd.f32 0.0, %v8130
      %v8132 = vpop.f32.mrf.mxu0
      %v8133 = vadd.f32 0.0, %v8132
      %8134 = vmatmul.bf16.gmra.mxu0 %v8108
      %v8135 = vpop.f32.mrf.mxu0
      %v8136 = vadd.f32 0.0, %v8135
      %v8137 = vpop.f32.mrf.mxu0
      %v8138 = vadd.f32 0.0, %v8137
      %8139 = vmatmul.bf16.gmra.mxu0 %v8111
      %v8140 = vpop.f32.mrf.mxu0
      %v8141 = vadd.f32 0.0, %v8140
      %v8142 = vpop.f32.mrf.mxu0
      %v8143 = vadd.f32 0.0, %v8142
      %8144 = vmatmul.bf16.gmra.mxu0 %v8114
      %v8145 = vpop.f32.mrf.mxu0
      %v8146 = vadd.f32 0.0, %v8145
      %v8147 = vpop.f32.mrf.mxu0
      %v8148 = vadd.f32 0.0, %v8147
      %8149 = vdwg.mxu0
      %v8150 = vrcp.pop %v8063
      %v8151 = vmul.f32 %v8063, %v8150
      %v8152 = vsub.f32 1.0, %v8151
      %v8153 = vmul.f32 %v8150, %v8152
      %v8154 = vadd.f32 %v8150, %v8153
      %vm8155 = vweird.f32 %v8063
      %vm8156 = vweird.f32 %v8150
      %vm8157 = vmor %vm8155, %vm8156
      %v8158 = vsel %vm8157, %v8150, %v8154
      %v8159 = vand.u32 2147483647, %v8063
      %vm8160 = vcmp.eq.f32.partialorder %v8159, 8.507059e+37
      %v8161 = vand.u32 %v8063, 2147483648
      %v8162 = vor.u32 1.1754944e-38, %v8161
      %v8163 = vsel %vm8160, %v8162, %v8158
      %v8164 = vmul.f32 1.0, %v8163
      %v8165 = vrcp.pop %v8066
      %v8166 = vmul.f32 %v8066, %v8165
      %v8167 = vsub.f32 1.0, %v8166
      %v8168 = vmul.f32 %v8165, %v8167
      %v8169 = vadd.f32 %v8165, %v8168
      %vm8170 = vweird.f32 %v8066
      %vm8171 = vweird.f32 %v8165
      %vm8172 = vmor %vm8170, %vm8171
      %v8173 = vsel %vm8172, %v8165, %v8169
      %v8174 = vand.u32 2147483647, %v8066
      %vm8175 = vcmp.eq.f32.partialorder %v8174, 8.507059e+37
      %v8176 = vand.u32 %v8066, 2147483648
      %v8177 = vor.u32 1.1754944e-38, %v8176
      %v8178 = vsel %vm8175, %v8177, %v8173
      %v8179 = vmul.f32 1.0, %v8178
      %v8180 = vrcp.pop %v8069
      %v8181 = vmul.f32 %v8069, %v8180
      %v8182 = vsub.f32 1.0, %v8181
      %v8183 = vmul.f32 %v8180, %v8182
      %v8184 = vadd.f32 %v8180, %v8183
      %vm8185 = vweird.f32 %v8069
      %vm8186 = vweird.f32 %v8180
      %vm8187 = vmor %vm8185, %vm8186
      %v8188 = vsel %vm8187, %v8180, %v8184
      %v8189 = vand.u32 2147483647, %v8069
      %vm8190 = vcmp.eq.f32.partialorder %v8189, 8.507059e+37
      %v8191 = vand.u32 %v8069, 2147483648
      %v8192 = vor.u32 1.1754944e-38, %v8191
      %v8193 = vsel %vm8190, %v8192, %v8188
      %v8194 = vmul.f32 1.0, %v8193
      %v8195 = vrcp.pop %v8072
      %v8196 = vmul.f32 %v8072, %v8195
      %v8197 = vsub.f32 1.0, %v8196
      %v8198 = vmul.f32 %v8195, %v8197
      %v8199 = vadd.f32 %v8195, %v8198
      %vm8200 = vweird.f32 %v8072
      %vm8201 = vweird.f32 %v8195
      %vm8202 = vmor %vm8200, %vm8201
      %v8203 = vsel %vm8202, %v8195, %v8199
      %v8204 = vand.u32 2147483647, %v8072
      %vm8205 = vcmp.eq.f32.partialorder %v8204, 8.507059e+37
      %v8206 = vand.u32 %v8072, 2147483648
      %v8207 = vor.u32 1.1754944e-38, %v8206
      %v8208 = vsel %vm8205, %v8207, %v8203
      %v8209 = vmul.f32 1.0, %v8208
      %v8210 = vrcp.pop %v8075
      %v8211 = vmul.f32 %v8075, %v8210
      %v8212 = vsub.f32 1.0, %v8211
      %v8213 = vmul.f32 %v8210, %v8212
      %v8214 = vadd.f32 %v8210, %v8213
      %vm8215 = vweird.f32 %v8075
      %vm8216 = vweird.f32 %v8210
      %vm8217 = vmor %vm8215, %vm8216
      %v8218 = vsel %vm8217, %v8210, %v8214
      %v8219 = vand.u32 2147483647, %v8075
      %vm8220 = vcmp.eq.f32.partialorder %v8219, 8.507059e+37
      %v8221 = vand.u32 %v8075, 2147483648
      %v8222 = vor.u32 1.1754944e-38, %v8221
      %v8223 = vsel %vm8220, %v8222, %v8218
      %v8224 = vmul.f32 1.0, %v8223
      %v8225 = vrcp.pop %v8078
      %v8226 = vmul.f32 %v8078, %v8225
      %v8227 = vsub.f32 1.0, %v8226
      %v8228 = vmul.f32 %v8225, %v8227
      %v8229 = vadd.f32 %v8225, %v8228
      %vm8230 = vweird.f32 %v8078
      %vm8231 = vweird.f32 %v8225
      %vm8232 = vmor %vm8230, %vm8231
      %v8233 = vsel %vm8232, %v8225, %v8229
      %v8234 = vand.u32 2147483647, %v8078
      %vm8235 = vcmp.eq.f32.partialorder %v8234, 8.507059e+37
      %v8236 = vand.u32 %v8078, 2147483648
      %v8237 = vor.u32 1.1754944e-38, %v8236
      %v8238 = vsel %vm8235, %v8237, %v8233
      %v8239 = vmul.f32 1.0, %v8238
      %v8240 = vrcp.pop %v8081
      %v8241 = vmul.f32 %v8081, %v8240
      %v8242 = vsub.f32 1.0, %v8241
      %v8243 = vmul.f32 %v8240, %v8242
      %v8244 = vadd.f32 %v8240, %v8243
      %vm8245 = vweird.f32 %v8081
      %vm8246 = vweird.f32 %v8240
      %vm8247 = vmor %vm8245, %vm8246
      %v8248 = vsel %vm8247, %v8240, %v8244
      %v8249 = vand.u32 2147483647, %v8081
      %vm8250 = vcmp.eq.f32.partialorder %v8249, 8.507059e+37
      %v8251 = vand.u32 %v8081, 2147483648
      %v8252 = vor.u32 1.1754944e-38, %v8251
      %v8253 = vsel %vm8250, %v8252, %v8248
      %v8254 = vmul.f32 1.0, %v8253
      %v8255 = vrcp.pop %v8084
      %v8256 = vmul.f32 %v8084, %v8255
      %v8257 = vsub.f32 1.0, %v8256
      %v8258 = vmul.f32 %v8255, %v8257
      %v8259 = vadd.f32 %v8255, %v8258
      %vm8260 = vweird.f32 %v8084
      %vm8261 = vweird.f32 %v8255
      %vm8262 = vmor %vm8260, %vm8261
      %v8263 = vsel %vm8262, %v8255, %v8259
      %v8264 = vand.u32 2147483647, %v8084
      %vm8265 = vcmp.eq.f32.partialorder %v8264, 8.507059e+37
      %v8266 = vand.u32 %v8084, 2147483648
      %v8267 = vor.u32 1.1754944e-38, %v8266
      %v8268 = vsel %vm8265, %v8267, %v8263
      %v8269 = vmul.f32 1.0, %v8268
      %v8270 = vrcp.pop %v8087
      %v8271 = vmul.f32 %v8087, %v8270
      %v8272 = vsub.f32 1.0, %v8271
      %v8273 = vmul.f32 %v8270, %v8272
      %v8274 = vadd.f32 %v8270, %v8273
      %vm8275 = vweird.f32 %v8087
      %vm8276 = vweird.f32 %v8270
      %vm8277 = vmor %vm8275, %vm8276
      %v8278 = vsel %vm8277, %v8270, %v8274
      %v8279 = vand.u32 2147483647, %v8087
      %vm8280 = vcmp.eq.f32.partialorder %v8279, 8.507059e+37
      %v8281 = vand.u32 %v8087, 2147483648
      %v8282 = vor.u32 1.1754944e-38, %v8281
      %v8283 = vsel %vm8280, %v8282, %v8278
      %v8284 = vmul.f32 1.0, %v8283
      %v8285 = vrcp.pop %v8090
      %v8286 = vmul.f32 %v8090, %v8285
      %v8287 = vsub.f32 1.0, %v8286
      %v8288 = vmul.f32 %v8285, %v8287
      %v8289 = vadd.f32 %v8285, %v8288
      %vm8290 = vweird.f32 %v8090
      %vm8291 = vweird.f32 %v8285
      %vm8292 = vmor %vm8290, %vm8291
      %v8293 = vsel %vm8292, %v8285, %v8289
      %v8294 = vand.u32 2147483647, %v8090
      %vm8295 = vcmp.eq.f32.partialorder %v8294, 8.507059e+37
      %v8296 = vand.u32 %v8090, 2147483648
      %v8297 = vor.u32 1.1754944e-38, %v8296
      %v8298 = vsel %vm8295, %v8297, %v8293
      %v8299 = vmul.f32 1.0, %v8298
      %v8300 = vmul.f32 %v8126, %v8164
      %v8301 = vmul.f32 %v8128, %v8179
      %v8302 = vmul.f32 %v8131, %v8194
      %v8303 = vmul.f32 %v8133, %v8209
      %v8304 = vmul.f32 %v8136, %v8224
      %v8305 = vmul.f32 %v8138, %v8239
      %v8306 = vmul.f32 %v8141, %v8254
      %v8307 = vmul.f32 %v8143, %v8269
      %v8308 = vmul.f32 %v8146, %v8284
      %v8309 = vmul.f32 %v8148, %v8299
      %s8310 = scalar_lea.vmem %s17, 28
      %v8311 = vld [vmem:[%s8310] sm:$0xf]
      %v8312 = vpack.c.bf16 %v8301, %v8300
      %v8313 = vpack.c.bf16 %v8303, %v8302
      %v8314 = vpack.c.bf16 %v8305, %v8304
      %v8315 = vpack.c.bf16 %v8307, %v8306
      %v8316 = vpack.c.bf16 %v8309, %v8308
      %v8318 = vsel %vm2740, %v8312, 0
      %v8321 = vsel %vm2740, %v8313, 0
      %v8324 = vsel %vm2740, %v8314, 0
      %v8327 = vsel %vm2740, %v8315, 0
      %v8330 = vsel %vm2740, %v8316, 0
      %v8333 = vsel %vm3724, %v8311, 0
      %8335 = vmatpush.bf16.msra.mxu0 0
      %8336 = vmatpush.bf16.msra.mxu0 0
      %8337 = vmatpush.bf16.msra.mxu0 0
      %8338 = vmatpush.bf16.msra.mxu0 0
      %8339 = vmatpush.bf16.msra.mxu0 0
      %8340 = vmatpush.bf16.msra.mxu0 0
      %8341 = vmatpush.bf16.msra.mxu0 0
      %8342 = vmatpush.bf16.msra.mxu0 %v8333
      %8343 = vmatmul.bf16.gmra.mxu0 %v8318
      %v8344 = vpop.f32.mrf.mxu0
      %v8345 = vadd.f32 0.0, %v8344
      %v8346 = vpop.f32.mrf.mxu0
      %v8347 = vadd.f32 0.0, %v8346
      %8348 = vmatmul.bf16.gmra.mxu0 %v8321
      %v8349 = vpop.f32.mrf.mxu0
      %v8350 = vadd.f32 0.0, %v8349
      %v8351 = vpop.f32.mrf.mxu0
      %v8352 = vadd.f32 0.0, %v8351
      %8353 = vmatmul.bf16.gmra.mxu0 %v8324
      %v8354 = vpop.f32.mrf.mxu0
      %v8355 = vadd.f32 0.0, %v8354
      %v8356 = vpop.f32.mrf.mxu0
      %v8357 = vadd.f32 0.0, %v8356
      %8358 = vmatmul.bf16.gmra.mxu0 %v8327
      %v8359 = vpop.f32.mrf.mxu0
      %v8360 = vadd.f32 0.0, %v8359
      %v8361 = vpop.f32.mrf.mxu0
      %v8362 = vadd.f32 0.0, %v8361
      %8363 = vmatmul.bf16.gmra.mxu0 %v8330
      %v8364 = vpop.f32.mrf.mxu0
      %v8365 = vadd.f32 0.0, %v8364
      %v8366 = vpop.f32.mrf.mxu0
      %v8367 = vadd.f32 0.0, %v8366
      %8368 = vdwg.mxu0
      %v8369 = vadd.f32 %v7739, %v8345
      %v8370 = vadd.f32 %v7740, %v8347
      %v8371 = vadd.f32 %v7741, %v8350
      %v8372 = vadd.f32 %v7742, %v8352
      %v8373 = vadd.f32 %v7743, %v8355
      %v8374 = vadd.f32 %v7744, %v8357
      %v8375 = vadd.f32 %v7745, %v8360
      %v8376 = vadd.f32 %v7746, %v8362
      %v8377 = vadd.f32 %v7747, %v8365
      %v8378 = vadd.f32 %v7748, %v8367
      %s8379 = scalar_lea.vmem %s18, 1
      %v8380 = vld [vmem:[%s8379] sm:$0x1]
      %v8382 = vperm.slane %v8380, 0
      %v8384 = vadd.f32 %v8369, %v8382
      %v8385 = vadd.f32 %v8370, %v8382
      %v8386 = vadd.f32 %v8371, %v8382
      %v8387 = vadd.f32 %v8372, %v8382
      %v8388 = vadd.f32 %v8373, %v8382
      %v8389 = vadd.f32 %v8374, %v8382
      %v8390 = vadd.f32 %v8375, %v8382
      %v8391 = vadd.f32 %v8376, %v8382
      %v8392 = vadd.f32 %v8377, %v8382
      %v8393 = vadd.f32 %v8378, %v8382
      %v8394 = vadd.f32 %v8384, %v5849
      %v8395 = vadd.f32 %v8385, %v5850
      %v8396 = vadd.f32 %v8386, %v5851
      %v8397 = vadd.f32 %v8387, %v5852
      %v8398 = vadd.f32 %v8388, %v5853
      %v8399 = vadd.f32 %v8389, %v5854
      %v8400 = vadd.f32 %v8390, %v5855
      %v8401 = vadd.f32 %v8391, %v5856
      %v8402 = vadd.f32 %v8392, %v5857
      %v8403 = vadd.f32 %v8393, %v5858
      %s8404 = scalar_lea.vmem %s19, 1
      %v8405 = vld [vmem:[%s8404] sm:$0x1]
      %s8406 = scalar_lea.vmem %s20, 1
      %v8407 = vld [vmem:[%s8406] sm:$0x1]
      %v8408 = vsel %vm1254, %v8394, 0.0
      %8409 = vadd.xlane.f32.xlu0 %v8408
      %v8410 = vpop.xlane.xlu0 %8409
      %v8411 = vsel %vm1254, %v8395, 0.0
      %8412 = vadd.xlane.f32.xlu0 %v8411
      %v8413 = vpop.xlane.xlu0 %8412
      %v8414 = vsel %vm1254, %v8396, 0.0
      %8415 = vadd.xlane.f32.xlu0 %v8414
      %v8416 = vpop.xlane.xlu0 %8415
      %v8417 = vsel %vm1254, %v8397, 0.0
      %8418 = vadd.xlane.f32.xlu0 %v8417
      %v8419 = vpop.xlane.xlu0 %8418
      %v8420 = vsel %vm1254, %v8398, 0.0
      %8421 = vadd.xlane.f32.xlu0 %v8420
      %v8422 = vpop.xlane.xlu0 %8421
      %v8423 = vsel %vm1254, %v8399, 0.0
      %8424 = vadd.xlane.f32.xlu0 %v8423
      %v8425 = vpop.xlane.xlu0 %8424
      %v8426 = vsel %vm1254, %v8400, 0.0
      %8427 = vadd.xlane.f32.xlu0 %v8426
      %v8428 = vpop.xlane.xlu0 %8427
      %v8429 = vsel %vm1254, %v8401, 0.0
      %8430 = vadd.xlane.f32.xlu0 %v8429
      %v8431 = vpop.xlane.xlu0 %8430
      %v8432 = vsel %vm1254, %v8402, 0.0
      %8433 = vadd.xlane.f32.xlu0 %v8432
      %v8434 = vpop.xlane.xlu0 %8433
      %v8435 = vsel %vm1254, %v8403, 0.0
      %8436 = vadd.xlane.f32.xlu0 %v8435
      %v8437 = vpop.xlane.xlu0 %8436
      %v8438 = vmul.f32 %v8410, %v1608
      %v8439 = vmul.f32 %v8413, %v1608
      %v8440 = vmul.f32 %v8416, %v1608
      %v8441 = vmul.f32 %v8419, %v1608
      %v8442 = vmul.f32 %v8422, %v1608
      %v8443 = vmul.f32 %v8425, %v1608
      %v8444 = vmul.f32 %v8428, %v1608
      %v8445 = vmul.f32 %v8431, %v1608
      %v8446 = vmul.f32 %v8434, %v1608
      %v8447 = vmul.f32 %v8437, %v1608
      %v8448 = vsub.f32 %v8394, %v8438
      %v8449 = vsub.f32 %v8395, %v8439
      %v8450 = vsub.f32 %v8396, %v8440
      %v8451 = vsub.f32 %v8397, %v8441
      %v8452 = vsub.f32 %v8398, %v8442
      %v8453 = vsub.f32 %v8399, %v8443
      %v8454 = vsub.f32 %v8400, %v8444
      %v8455 = vsub.f32 %v8401, %v8445
      %v8456 = vsub.f32 %v8402, %v8446
      %v8457 = vsub.f32 %v8403, %v8447
      %v8458 = vmul.f32 %v8448, %v8448
      %v8459 = vmul.f32 %v8449, %v8449
      %v8460 = vmul.f32 %v8450, %v8450
      %v8461 = vmul.f32 %v8451, %v8451
      %v8462 = vmul.f32 %v8452, %v8452
      %v8463 = vmul.f32 %v8453, %v8453
      %v8464 = vmul.f32 %v8454, %v8454
      %v8465 = vmul.f32 %v8455, %v8455
      %v8466 = vmul.f32 %v8456, %v8456
      %v8467 = vmul.f32 %v8457, %v8457
      %v8468 = vsel %vm1254, %v8458, 0.0
      %8469 = vadd.xlane.f32.xlu0 %v8468
      %v8470 = vpop.xlane.xlu0 %8469
      %v8471 = vsel %vm1254, %v8459, 0.0
      %8472 = vadd.xlane.f32.xlu0 %v8471
      %v8473 = vpop.xlane.xlu0 %8472
      %v8474 = vsel %vm1254, %v8460, 0.0
      %8475 = vadd.xlane.f32.xlu0 %v8474
      %v8476 = vpop.xlane.xlu0 %8475
      %v8477 = vsel %vm1254, %v8461, 0.0
      %8478 = vadd.xlane.f32.xlu0 %v8477
      %v8479 = vpop.xlane.xlu0 %8478
      %v8480 = vsel %vm1254, %v8462, 0.0
      %8481 = vadd.xlane.f32.xlu0 %v8480
      %v8482 = vpop.xlane.xlu0 %8481
      %v8483 = vsel %vm1254, %v8463, 0.0
      %8484 = vadd.xlane.f32.xlu0 %v8483
      %v8485 = vpop.xlane.xlu0 %8484
      %v8486 = vsel %vm1254, %v8464, 0.0
      %8487 = vadd.xlane.f32.xlu0 %v8486
      %v8488 = vpop.xlane.xlu0 %8487
      %v8489 = vsel %vm1254, %v8465, 0.0
      %8490 = vadd.xlane.f32.xlu0 %v8489
      %v8491 = vpop.xlane.xlu0 %8490
      %v8492 = vsel %vm1254, %v8466, 0.0
      %8493 = vadd.xlane.f32.xlu0 %v8492
      %v8494 = vpop.xlane.xlu0 %8493
      %v8495 = vsel %vm1254, %v8467, 0.0
      %8496 = vadd.xlane.f32.xlu0 %v8495
      %v8497 = vpop.xlane.xlu0 %8496
      %v8498 = vmul.f32 %v8470, %v1608
      %v8499 = vmul.f32 %v8473, %v1608
      %v8500 = vmul.f32 %v8476, %v1608
      %v8501 = vmul.f32 %v8479, %v1608
      %v8502 = vmul.f32 %v8482, %v1608
      %v8503 = vmul.f32 %v8485, %v1608
      %v8504 = vmul.f32 %v8488, %v1608
      %v8505 = vmul.f32 %v8491, %v1608
      %v8506 = vmul.f32 %v8494, %v1608
      %v8507 = vmul.f32 %v8497, %v1608
      %v8508 = vadd.f32 %v8498, 1e-05
      %v8509 = vadd.f32 %v8499, 1e-05
      %v8510 = vadd.f32 %v8500, 1e-05
      %v8511 = vadd.f32 %v8501, 1e-05
      %v8512 = vadd.f32 %v8502, 1e-05
      %v8513 = vadd.f32 %v8503, 1e-05
      %v8514 = vadd.f32 %v8504, 1e-05
      %v8515 = vadd.f32 %v8505, 1e-05
      %v8516 = vadd.f32 %v8506, 1e-05
      %v8517 = vadd.f32 %v8507, 1e-05
      %v8518 = vrsqrt.pop %v8508
      %v8519 = vmul.f32 %v8518, %v8508
      %v8520 = vmul.f32 %v8519, %v8518
      %v8521 = vmul.f32 0.5, %v8520
      %v8522 = vsub.f32 1.5, %v8521
      %v8523 = vmul.f32 %v8518, %v8522
      %vm8524 = vweird.f32 %v8508
      %vm8525 = vweird.f32 %v8518
      %vm8526 = vmor %vm8524, %vm8525
      %v8527 = vsel %vm8526, %v8518, %v8523
      %v8528 = vrsqrt.pop %v8509
      %v8529 = vmul.f32 %v8528, %v8509
      %v8530 = vmul.f32 %v8529, %v8528
      %v8531 = vmul.f32 0.5, %v8530
      %v8532 = vsub.f32 1.5, %v8531
      %v8533 = vmul.f32 %v8528, %v8532
      %vm8534 = vweird.f32 %v8509
      %vm8535 = vweird.f32 %v8528
      %vm8536 = vmor %vm8534, %vm8535
      %v8537 = vsel %vm8536, %v8528, %v8533
      %v8538 = vrsqrt.pop %v8510
      %v8539 = vmul.f32 %v8538, %v8510
      %v8540 = vmul.f32 %v8539, %v8538
      %v8541 = vmul.f32 0.5, %v8540
      %v8542 = vsub.f32 1.5, %v8541
      %v8543 = vmul.f32 %v8538, %v8542
      %vm8544 = vweird.f32 %v8510
      %vm8545 = vweird.f32 %v8538
      %vm8546 = vmor %vm8544, %vm8545
      %v8547 = vsel %vm8546, %v8538, %v8543
      %v8548 = vrsqrt.pop %v8511
      %v8549 = vmul.f32 %v8548, %v8511
      %v8550 = vmul.f32 %v8549, %v8548
      %v8551 = vmul.f32 0.5, %v8550
      %v8552 = vsub.f32 1.5, %v8551
      %v8553 = vmul.f32 %v8548, %v8552
      %vm8554 = vweird.f32 %v8511
      %vm8555 = vweird.f32 %v8548
      %vm8556 = vmor %vm8554, %vm8555
      %v8557 = vsel %vm8556, %v8548, %v8553
      %v8558 = vrsqrt.pop %v8512
      %v8559 = vmul.f32 %v8558, %v8512
      %v8560 = vmul.f32 %v8559, %v8558
      %v8561 = vmul.f32 0.5, %v8560
      %v8562 = vsub.f32 1.5, %v8561
      %v8563 = vmul.f32 %v8558, %v8562
      %vm8564 = vweird.f32 %v8512
      %vm8565 = vweird.f32 %v8558
      %vm8566 = vmor %vm8564, %vm8565
      %v8567 = vsel %vm8566, %v8558, %v8563
      %v8568 = vrsqrt.pop %v8513
      %v8569 = vmul.f32 %v8568, %v8513
      %v8570 = vmul.f32 %v8569, %v8568
      %v8571 = vmul.f32 0.5, %v8570
      %v8572 = vsub.f32 1.5, %v8571
      %v8573 = vmul.f32 %v8568, %v8572
      %vm8574 = vweird.f32 %v8513
      %vm8575 = vweird.f32 %v8568
      %vm8576 = vmor %vm8574, %vm8575
      %v8577 = vsel %vm8576, %v8568, %v8573
      %v8578 = vrsqrt.pop %v8514
      %v8579 = vmul.f32 %v8578, %v8514
      %v8580 = vmul.f32 %v8579, %v8578
      %v8581 = vmul.f32 0.5, %v8580
      %v8582 = vsub.f32 1.5, %v8581
      %v8583 = vmul.f32 %v8578, %v8582
      %vm8584 = vweird.f32 %v8514
      %vm8585 = vweird.f32 %v8578
      %vm8586 = vmor %vm8584, %vm8585
      %v8587 = vsel %vm8586, %v8578, %v8583
      %v8588 = vrsqrt.pop %v8515
      %v8589 = vmul.f32 %v8588, %v8515
      %v8590 = vmul.f32 %v8589, %v8588
      %v8591 = vmul.f32 0.5, %v8590
      %v8592 = vsub.f32 1.5, %v8591
      %v8593 = vmul.f32 %v8588, %v8592
      %vm8594 = vweird.f32 %v8515
      %vm8595 = vweird.f32 %v8588
      %vm8596 = vmor %vm8594, %vm8595
      %v8597 = vsel %vm8596, %v8588, %v8593
      %v8598 = vrsqrt.pop %v8516
      %v8599 = vmul.f32 %v8598, %v8516
      %v8600 = vmul.f32 %v8599, %v8598
      %v8601 = vmul.f32 0.5, %v8600
      %v8602 = vsub.f32 1.5, %v8601
      %v8603 = vmul.f32 %v8598, %v8602
      %vm8604 = vweird.f32 %v8516
      %vm8605 = vweird.f32 %v8598
      %vm8606 = vmor %vm8604, %vm8605
      %v8607 = vsel %vm8606, %v8598, %v8603
      %v8608 = vrsqrt.pop %v8517
      %v8609 = vmul.f32 %v8608, %v8517
      %v8610 = vmul.f32 %v8609, %v8608
      %v8611 = vmul.f32 0.5, %v8610
      %v8612 = vsub.f32 1.5, %v8611
      %v8613 = vmul.f32 %v8608, %v8612
      %vm8614 = vweird.f32 %v8517
      %vm8615 = vweird.f32 %v8608
      %vm8616 = vmor %vm8614, %vm8615
      %v8617 = vsel %vm8616, %v8608, %v8613
      %v8618 = vmul.f32 %v8448, %v8527
      %v8619 = vmul.f32 %v8449, %v8537
      %v8620 = vmul.f32 %v8450, %v8547
      %v8621 = vmul.f32 %v8451, %v8557
      %v8622 = vmul.f32 %v8452, %v8567
      %v8623 = vmul.f32 %v8453, %v8577
      %v8624 = vmul.f32 %v8454, %v8587
      %v8625 = vmul.f32 %v8455, %v8597
      %v8626 = vmul.f32 %v8456, %v8607
      %v8627 = vmul.f32 %v8457, %v8617
      %v8629 = vperm.slane %v8405, 0
      %v8631 = vmul.f32 %v8618, %v8629
      %v8632 = vmul.f32 %v8619, %v8629
      %v8633 = vmul.f32 %v8620, %v8629
      %v8634 = vmul.f32 %v8621, %v8629
      %v8635 = vmul.f32 %v8622, %v8629
      %v8636 = vmul.f32 %v8623, %v8629
      %v8637 = vmul.f32 %v8624, %v8629
      %v8638 = vmul.f32 %v8625, %v8629
      %v8639 = vmul.f32 %v8626, %v8629
      %v8640 = vmul.f32 %v8627, %v8629
      %v8642 = vperm.slane %v8407, 0
      %v8644 = vadd.f32 %v8631, %v8642
      %v8645 = vadd.f32 %v8632, %v8642
      %v8646 = vadd.f32 %v8633, %v8642
      %v8647 = vadd.f32 %v8634, %v8642
      %v8648 = vadd.f32 %v8635, %v8642
      %v8649 = vadd.f32 %v8636, %v8642
      %v8650 = vadd.f32 %v8637, %v8642
      %v8651 = vadd.f32 %v8638, %v8642
      %v8652 = vadd.f32 %v8639, %v8642
      %v8653 = vadd.f32 %v8640, %v8642
      %s8654 = scalar_lea.vmem %s21, 16
      %v8655 = vld [vmem:[%s8654] sm:$0xf]
      %v8656 = vld [vmem:[%s8654 + $0x4] sm:$0xf]
      %v8657 = vld [vmem:[%s8654 + $0x8] sm:$0xf]
      %v8658 = vld [vmem:[%s8654 + $0xc] sm:$0xf]
      %v8659 = vpack.c.bf16 %v8645, %v8644
      %v8660 = vpack.c.bf16 %v8647, %v8646
      %v8661 = vpack.c.bf16 %v8649, %v8648
      %v8662 = vpack.c.bf16 %v8651, %v8650
      %v8663 = vpack.c.bf16 %v8653, %v8652
      %s8664 = scalar_lea.vmem %s22, 1
      %v8665 = vld [vmem:[%s8664] sm:$0x1]
      %v8667 = vperm.slane %v8665, 0
      %v8673 = vunpack.c.l.b16 %v8655
      %v8674 = vunpack.c.l.b16 %v8656
      %v8675 = vunpack.c.l.b16 %v8657
      %v8676 = vunpack.c.l.b16 %v8658
      %v8677 = vpack.c.b16 %v8674, %v8673
      %v8678 = vpack.c.b16 %v8676, %v8675
      %v8682 = vsel %vm1254, %v8659, 0
      %v8685 = vsel %vm1254, %v8660, 0
      %v8688 = vsel %vm1254, %v8661, 0
      %v8691 = vsel %vm1254, %v8662, 0
      %v8694 = vsel %vm1254, %v8663, 0
      %8696 = vmatpush.bf16.msra.mxu0 0
      %8697 = vmatpush.bf16.msra.mxu0 0
      %8698 = vmatpush.bf16.msra.mxu0 0
      %8699 = vmatpush.bf16.msra.mxu0 0
      %8700 = vmatpush.bf16.msra.mxu0 0
      %8701 = vmatpush.bf16.msra.mxu0 0
      %8702 = vmatpush.bf16.msra.mxu0 %v8678
      %8703 = vmatpush.bf16.msra.mxu0 %v8677
      %8704 = vmatmul.bf16.gmra.mxu0 %v8682
      %v8705 = vpop.f32.mrf.mxu0
      %v8706 = vadd.f32 %v8667, %v8705
      %v8707 = vpop.f32.mrf.mxu0
      %v8708 = vadd.f32 %v8667, %v8707
      %8709 = vmatmul.bf16.gmra.mxu0 %v8685
      %v8710 = vpop.f32.mrf.mxu0
      %v8711 = vadd.f32 %v8667, %v8710
      %v8712 = vpop.f32.mrf.mxu0
      %v8713 = vadd.f32 %v8667, %v8712
      %8714 = vmatmul.bf16.gmra.mxu0 %v8688
      %v8715 = vpop.f32.mrf.mxu0
      %v8716 = vadd.f32 %v8667, %v8715
      %v8717 = vpop.f32.mrf.mxu0
      %v8718 = vadd.f32 %v8667, %v8717
      %8719 = vmatmul.bf16.gmra.mxu0 %v8691
      %v8720 = vpop.f32.mrf.mxu0
      %v8721 = vadd.f32 %v8667, %v8720
      %v8722 = vpop.f32.mrf.mxu0
      %v8723 = vadd.f32 %v8667, %v8722
      %8724 = vmatmul.bf16.gmra.mxu0 %v8694
      %v8725 = vpop.f32.mrf.mxu0
      %v8726 = vadd.f32 %v8667, %v8725
      %v8727 = vpop.f32.mrf.mxu0
      %v8728 = vadd.f32 %v8667, %v8727
      %8729 = vdwg.mxu0
      %v8730 = vmul.f32 %v8706, %v8706
      %v8731 = vmul.f32 %v8708, %v8708
      %v8732 = vmul.f32 %v8711, %v8711
      %v8733 = vmul.f32 %v8713, %v8713
      %v8734 = vmul.f32 %v8716, %v8716
      %v8735 = vmul.f32 %v8718, %v8718
      %v8736 = vmul.f32 %v8721, %v8721
      %v8737 = vmul.f32 %v8723, %v8723
      %v8738 = vmul.f32 %v8726, %v8726
      %v8739 = vmul.f32 %v8728, %v8728
      %v8740 = vmul.f32 %v8706, %v8730
      %v8741 = vmul.f32 %v8708, %v8731
      %v8742 = vmul.f32 %v8711, %v8732
      %v8743 = vmul.f32 %v8713, %v8733
      %v8744 = vmul.f32 %v8716, %v8734
      %v8745 = vmul.f32 %v8718, %v8735
      %v8746 = vmul.f32 %v8721, %v8736
      %v8747 = vmul.f32 %v8723, %v8737
      %v8748 = vmul.f32 %v8726, %v8738
      %v8749 = vmul.f32 %v8728, %v8739
      %v8750 = vmul.f32 %v8740, 0.044715
      %v8751 = vmul.f32 %v8741, 0.044715
      %v8752 = vmul.f32 %v8742, 0.044715
      %v8753 = vmul.f32 %v8743, 0.044715
      %v8754 = vmul.f32 %v8744, 0.044715
      %v8755 = vmul.f32 %v8745, 0.044715
      %v8756 = vmul.f32 %v8746, 0.044715
      %v8757 = vmul.f32 %v8747, 0.044715
      %v8758 = vmul.f32 %v8748, 0.044715
      %v8759 = vmul.f32 %v8749, 0.044715
      %v8760 = vadd.f32 %v8706, %v8750
      %v8761 = vadd.f32 %v8708, %v8751
      %v8762 = vadd.f32 %v8711, %v8752
      %v8763 = vadd.f32 %v8713, %v8753
      %v8764 = vadd.f32 %v8716, %v8754
      %v8765 = vadd.f32 %v8718, %v8755
      %v8766 = vadd.f32 %v8721, %v8756
      %v8767 = vadd.f32 %v8723, %v8757
      %v8768 = vadd.f32 %v8726, %v8758
      %v8769 = vadd.f32 %v8728, %v8759
      %v8770 = vmul.f32 %v8760, 0.7978846
      %v8771 = vmul.f32 %v8761, 0.7978846
      %v8772 = vmul.f32 %v8762, 0.7978846
      %v8773 = vmul.f32 %v8763, 0.7978846
      %v8774 = vmul.f32 %v8764, 0.7978846
      %v8775 = vmul.f32 %v8765, 0.7978846
      %v8776 = vmul.f32 %v8766, 0.7978846
      %v8777 = vmul.f32 %v8767, 0.7978846
      %v8778 = vmul.f32 %v8768, 0.7978846
      %v8779 = vmul.f32 %v8769, 0.7978846
      %v8780 = vtanh.pop %v8770
      %v8781 = vtanh.pop %v8771
      %v8782 = vtanh.pop %v8772
      %v8783 = vtanh.pop %v8773
      %v8784 = vtanh.pop %v8774
      %v8785 = vtanh.pop %v8775
      %v8786 = vtanh.pop %v8776
      %v8787 = vtanh.pop %v8777
      %v8788 = vtanh.pop %v8778
      %v8789 = vtanh.pop %v8779
      %v8790 = vadd.f32 %v8780, 1.0
      %v8791 = vadd.f32 %v8781, 1.0
      %v8792 = vadd.f32 %v8782, 1.0
      %v8793 = vadd.f32 %v8783, 1.0
      %v8794 = vadd.f32 %v8784, 1.0
      %v8795 = vadd.f32 %v8785, 1.0
      %v8796 = vadd.f32 %v8786, 1.0
      %v8797 = vadd.f32 %v8787, 1.0
      %v8798 = vadd.f32 %v8788, 1.0
      %v8799 = vadd.f32 %v8789, 1.0
      %v8800 = vmul.f32 %v8790, 0.5
      %v8801 = vmul.f32 %v8791, 0.5
      %v8802 = vmul.f32 %v8792, 0.5
      %v8803 = vmul.f32 %v8793, 0.5
      %v8804 = vmul.f32 %v8794, 0.5
      %v8805 = vmul.f32 %v8795, 0.5
      %v8806 = vmul.f32 %v8796, 0.5
      %v8807 = vmul.f32 %v8797, 0.5
      %v8808 = vmul.f32 %v8798, 0.5
      %v8809 = vmul.f32 %v8799, 0.5
      %v8810 = vmul.f32 %v8706, %v8800
      %v8811 = vmul.f32 %v8708, %v8801
      %v8812 = vmul.f32 %v8711, %v8802
      %v8813 = vmul.f32 %v8713, %v8803
      %v8814 = vmul.f32 %v8716, %v8804
      %v8815 = vmul.f32 %v8718, %v8805
      %v8816 = vmul.f32 %v8721, %v8806
      %v8817 = vmul.f32 %v8723, %v8807
      %v8818 = vmul.f32 %v8726, %v8808
      %v8819 = vmul.f32 %v8728, %v8809
      %s8820 = scalar_lea.vmem %s23, 32
      %v8821 = vld [vmem:[%s8820] sm:$0xf]
      %v8822 = vld [vmem:[%s8820 + $0x4] sm:$0xf]
      %v8823 = vld [vmem:[%s8820 + $0x8] sm:$0xf]
      %v8824 = vld [vmem:[%s8820 + $0xc] sm:$0xf]
      %v8825 = vld [vmem:[%s8820 + $0x10] sm:$0xf]
      %v8826 = vld [vmem:[%s8820 + $0x14] sm:$0xf]
      %v8827 = vld [vmem:[%s8820 + $0x18] sm:$0xf]
      %v8828 = vld [vmem:[%s8820 + $0x1c] sm:$0xf]
      %v8829 = vpack.c.bf16 %v8811, %v8810
      %v8830 = vpack.c.bf16 %v8813, %v8812
      %v8831 = vpack.c.bf16 %v8815, %v8814
      %v8832 = vpack.c.bf16 %v8817, %v8816
      %v8833 = vpack.c.bf16 %v8819, %v8818
      %s8834 = scalar_lea.vmem %s24, 1
      %v8835 = vld [vmem:[%s8834] sm:$0x1]
      %v8837 = vperm.slane %v8835, 0
      %v8847 = vunpack.c.l.b16 %v8821
      %v8848 = vunpack.c.l.b16 %v8822
      %v8849 = vunpack.c.l.b16 %v8823
      %v8850 = vunpack.c.l.b16 %v8824
      %v8851 = vunpack.c.l.b16 %v8825
      %v8852 = vunpack.c.l.b16 %v8826
      %v8853 = vunpack.c.l.b16 %v8827
      %v8854 = vunpack.c.l.b16 %v8828
      %v8855 = vpack.c.b16 %v8848, %v8847
      %v8856 = vpack.c.b16 %v8850, %v8849
      %v8857 = vpack.c.b16 %v8852, %v8851
      %v8858 = vpack.c.b16 %v8854, %v8853
      %v8864 = vsel %vm5551, %v8829, 0
      %v8867 = vsel %vm5551, %v8830, 0
      %v8870 = vsel %vm5551, %v8831, 0
      %v8873 = vsel %vm5551, %v8832, 0
      %v8876 = vsel %vm5551, %v8833, 0
      %8878 = vmatpush.bf16.msra.mxu0 0
      %8879 = vmatpush.bf16.msra.mxu0 0
      %8880 = vmatpush.bf16.msra.mxu0 0
      %8881 = vmatpush.bf16.msra.mxu0 0
      %8882 = vmatpush.bf16.msra.mxu0 %v8858
      %8883 = vmatpush.bf16.msra.mxu0 %v8857
      %8884 = vmatpush.bf16.msra.mxu0 %v8856
      %8885 = vmatpush.bf16.msra.mxu0 %v8855
      %8886 = vmatmul.bf16.gmra.mxu0 %v8864
      %v8887 = vpop.f32.mrf.mxu0
      %v8888 = vadd.f32 %v8837, %v8887
      %v8889 = vpop.f32.mrf.mxu0
      %v8890 = vadd.f32 %v8837, %v8889
      %8891 = vmatmul.bf16.gmra.mxu0 %v8867
      %v8892 = vpop.f32.mrf.mxu0
      %v8893 = vadd.f32 %v8837, %v8892
      %v8894 = vpop.f32.mrf.mxu0
      %v8895 = vadd.f32 %v8837, %v8894
      %8896 = vmatmul.bf16.gmra.mxu0 %v8870
      %v8897 = vpop.f32.mrf.mxu0
      %v8898 = vadd.f32 %v8837, %v8897
      %v8899 = vpop.f32.mrf.mxu0
      %v8900 = vadd.f32 %v8837, %v8899
      %8901 = vmatmul.bf16.gmra.mxu0 %v8873
      %v8902 = vpop.f32.mrf.mxu0
      %v8903 = vadd.f32 %v8837, %v8902
      %v8904 = vpop.f32.mrf.mxu0
      %v8905 = vadd.f32 %v8837, %v8904
      %8906 = vmatmul.bf16.gmra.mxu0 %v8876
      %v8907 = vpop.f32.mrf.mxu0
      %v8908 = vadd.f32 %v8837, %v8907
      %v8909 = vpop.f32.mrf.mxu0
      %v8910 = vadd.f32 %v8837, %v8909
      %8911 = vdwg.mxu0
      %v8912 = vadd.f32 %v8888, %v8644
      %v8913 = vadd.f32 %v8890, %v8645
      %v8914 = vadd.f32 %v8893, %v8646
      %v8915 = vadd.f32 %v8895, %v8647
      %v8916 = vadd.f32 %v8898, %v8648
      %v8917 = vadd.f32 %v8900, %v8649
      %v8918 = vadd.f32 %v8903, %v8650
      %v8919 = vadd.f32 %v8905, %v8651
      %v8920 = vadd.f32 %v8908, %v8652
      %v8921 = vadd.f32 %v8910, %v8653
      %s8922 = scalar_lea.vmem %s25, 1
      %v8923 = vld [vmem:[%s8922] sm:$0x1]
      %s8924 = scalar_lea.vmem %s26, 1
      %v8925 = vld [vmem:[%s8924] sm:$0x1]
      %v8926 = vsel %vm1254, %v8912, 0.0
      %8927 = vadd.xlane.f32.xlu0 %v8926
      %v8928 = vpop.xlane.xlu0 %8927
      %v8929 = vsel %vm1254, %v8913, 0.0
      %8930 = vadd.xlane.f32.xlu0 %v8929
      %v8931 = vpop.xlane.xlu0 %8930
      %v8932 = vsel %vm1254, %v8914, 0.0
      %8933 = vadd.xlane.f32.xlu0 %v8932
      %v8934 = vpop.xlane.xlu0 %8933
      %v8935 = vsel %vm1254, %v8915, 0.0
      %8936 = vadd.xlane.f32.xlu0 %v8935
      %v8937 = vpop.xlane.xlu0 %8936
      %v8938 = vsel %vm1254, %v8916, 0.0
      %8939 = vadd.xlane.f32.xlu0 %v8938
      %v8940 = vpop.xlane.xlu0 %8939
      %v8941 = vsel %vm1254, %v8917, 0.0
      %8942 = vadd.xlane.f32.xlu0 %v8941
      %v8943 = vpop.xlane.xlu0 %8942
      %v8944 = vsel %vm1254, %v8918, 0.0
      %8945 = vadd.xlane.f32.xlu0 %v8944
      %v8946 = vpop.xlane.xlu0 %8945
      %v8947 = vsel %vm1254, %v8919, 0.0
      %8948 = vadd.xlane.f32.xlu0 %v8947
      %v8949 = vpop.xlane.xlu0 %8948
      %v8950 = vsel %vm1254, %v8920, 0.0
      %8951 = vadd.xlane.f32.xlu0 %v8950
      %v8952 = vpop.xlane.xlu0 %8951
      %v8953 = vsel %vm1254, %v8921, 0.0
      %8954 = vadd.xlane.f32.xlu0 %v8953
      %v8955 = vpop.xlane.xlu0 %8954
      %v8956 = vmul.f32 %v8928, %v1608
      %v8957 = vmul.f32 %v8931, %v1608
      %v8958 = vmul.f32 %v8934, %v1608
      %v8959 = vmul.f32 %v8937, %v1608
      %v8960 = vmul.f32 %v8940, %v1608
      %v8961 = vmul.f32 %v8943, %v1608
      %v8962 = vmul.f32 %v8946, %v1608
      %v8963 = vmul.f32 %v8949, %v1608
      %v8964 = vmul.f32 %v8952, %v1608
      %v8965 = vmul.f32 %v8955, %v1608
      %v8966 = vsub.f32 %v8912, %v8956
      %v8967 = vsub.f32 %v8913, %v8957
      %v8968 = vsub.f32 %v8914, %v8958
      %v8969 = vsub.f32 %v8915, %v8959
      %v8970 = vsub.f32 %v8916, %v8960
      %v8971 = vsub.f32 %v8917, %v8961
      %v8972 = vsub.f32 %v8918, %v8962
      %v8973 = vsub.f32 %v8919, %v8963
      %v8974 = vsub.f32 %v8920, %v8964
      %v8975 = vsub.f32 %v8921, %v8965
      %v8976 = vmul.f32 %v8966, %v8966
      %v8977 = vmul.f32 %v8967, %v8967
      %v8978 = vmul.f32 %v8968, %v8968
      %v8979 = vmul.f32 %v8969, %v8969
      %v8980 = vmul.f32 %v8970, %v8970
      %v8981 = vmul.f32 %v8971, %v8971
      %v8982 = vmul.f32 %v8972, %v8972
      %v8983 = vmul.f32 %v8973, %v8973
      %v8984 = vmul.f32 %v8974, %v8974
      %v8985 = vmul.f32 %v8975, %v8975
      %v8986 = vsel %vm1254, %v8976, 0.0
      %8987 = vadd.xlane.f32.xlu0 %v8986
      %v8988 = vpop.xlane.xlu0 %8987
      %v8989 = vsel %vm1254, %v8977, 0.0
      %8990 = vadd.xlane.f32.xlu0 %v8989
      %v8991 = vpop.xlane.xlu0 %8990
      %v8992 = vsel %vm1254, %v8978, 0.0
      %8993 = vadd.xlane.f32.xlu0 %v8992
      %v8994 = vpop.xlane.xlu0 %8993
      %v8995 = vsel %vm1254, %v8979, 0.0
      %8996 = vadd.xlane.f32.xlu0 %v8995
      %v8997 = vpop.xlane.xlu0 %8996
      %v8998 = vsel %vm1254, %v8980, 0.0
      %8999 = vadd.xlane.f32.xlu0 %v8998
      %v9000 = vpop.xlane.xlu0 %8999
      %v9001 = vsel %vm1254, %v8981, 0.0
      %9002 = vadd.xlane.f32.xlu0 %v9001
      %v9003 = vpop.xlane.xlu0 %9002
      %v9004 = vsel %vm1254, %v8982, 0.0
      %9005 = vadd.xlane.f32.xlu0 %v9004
      %v9006 = vpop.xlane.xlu0 %9005
      %v9007 = vsel %vm1254, %v8983, 0.0
      %9008 = vadd.xlane.f32.xlu0 %v9007
      %v9009 = vpop.xlane.xlu0 %9008
      %v9010 = vsel %vm1254, %v8984, 0.0
      %9011 = vadd.xlane.f32.xlu0 %v9010
      %v9012 = vpop.xlane.xlu0 %9011
      %v9013 = vsel %vm1254, %v8985, 0.0
      %9014 = vadd.xlane.f32.xlu0 %v9013
      %v9015 = vpop.xlane.xlu0 %9014
      %v9016 = vmul.f32 %v8988, %v1608
      %v9017 = vmul.f32 %v8991, %v1608
      %v9018 = vmul.f32 %v8994, %v1608
      %v9019 = vmul.f32 %v8997, %v1608
      %v9020 = vmul.f32 %v9000, %v1608
      %v9021 = vmul.f32 %v9003, %v1608
      %v9022 = vmul.f32 %v9006, %v1608
      %v9023 = vmul.f32 %v9009, %v1608
      %v9024 = vmul.f32 %v9012, %v1608
      %v9025 = vmul.f32 %v9015, %v1608
      %v9026 = vadd.f32 %v9016, 1e-05
      %v9027 = vadd.f32 %v9017, 1e-05
      %v9028 = vadd.f32 %v9018, 1e-05
      %v9029 = vadd.f32 %v9019, 1e-05
      %v9030 = vadd.f32 %v9020, 1e-05
      %v9031 = vadd.f32 %v9021, 1e-05
      %v9032 = vadd.f32 %v9022, 1e-05
      %v9033 = vadd.f32 %v9023, 1e-05
      %v9034 = vadd.f32 %v9024, 1e-05
      %v9035 = vadd.f32 %v9025, 1e-05
      %v9036 = vrsqrt.pop %v9026
      %v9037 = vmul.f32 %v9036, %v9026
      %v9038 = vmul.f32 %v9037, %v9036
      %v9039 = vmul.f32 0.5, %v9038
      %v9040 = vsub.f32 1.5, %v9039
      %v9041 = vmul.f32 %v9036, %v9040
      %vm9042 = vweird.f32 %v9026
      %vm9043 = vweird.f32 %v9036
      %vm9044 = vmor %vm9042, %vm9043
      %v9045 = vsel %vm9044, %v9036, %v9041
      %v9046 = vrsqrt.pop %v9027
      %v9047 = vmul.f32 %v9046, %v9027
      %v9048 = vmul.f32 %v9047, %v9046
      %v9049 = vmul.f32 0.5, %v9048
      %v9050 = vsub.f32 1.5, %v9049
      %v9051 = vmul.f32 %v9046, %v9050
      %vm9052 = vweird.f32 %v9027
      %vm9053 = vweird.f32 %v9046
      %vm9054 = vmor %vm9052, %vm9053
      %v9055 = vsel %vm9054, %v9046, %v9051
      %v9056 = vrsqrt.pop %v9028
      %v9057 = vmul.f32 %v9056, %v9028
      %v9058 = vmul.f32 %v9057, %v9056
      %v9059 = vmul.f32 0.5, %v9058
      %v9060 = vsub.f32 1.5, %v9059
      %v9061 = vmul.f32 %v9056, %v9060
      %vm9062 = vweird.f32 %v9028
      %vm9063 = vweird.f32 %v9056
      %vm9064 = vmor %vm9062, %vm9063
      %v9065 = vsel %vm9064, %v9056, %v9061
      %v9066 = vrsqrt.pop %v9029
      %v9067 = vmul.f32 %v9066, %v9029
      %v9068 = vmul.f32 %v9067, %v9066
      %v9069 = vmul.f32 0.5, %v9068
      %v9070 = vsub.f32 1.5, %v9069
      %v9071 = vmul.f32 %v9066, %v9070
      %vm9072 = vweird.f32 %v9029
      %vm9073 = vweird.f32 %v9066
      %vm9074 = vmor %vm9072, %vm9073
      %v9075 = vsel %vm9074, %v9066, %v9071
      %v9076 = vrsqrt.pop %v9030
      %v9077 = vmul.f32 %v9076, %v9030
      %v9078 = vmul.f32 %v9077, %v9076
      %v9079 = vmul.f32 0.5, %v9078
      %v9080 = vsub.f32 1.5, %v9079
      %v9081 = vmul.f32 %v9076, %v9080
      %vm9082 = vweird.f32 %v9030
      %vm9083 = vweird.f32 %v9076
      %vm9084 = vmor %vm9082, %vm9083
      %v9085 = vsel %vm9084, %v9076, %v9081
      %v9086 = vrsqrt.pop %v9031
      %v9087 = vmul.f32 %v9086, %v9031
      %v9088 = vmul.f32 %v9087, %v9086
      %v9089 = vmul.f32 0.5, %v9088
      %v9090 = vsub.f32 1.5, %v9089
      %v9091 = vmul.f32 %v9086, %v9090
      %vm9092 = vweird.f32 %v9031
      %vm9093 = vweird.f32 %v9086
      %vm9094 = vmor %vm9092, %vm9093
      %v9095 = vsel %vm9094, %v9086, %v9091
      %v9096 = vrsqrt.pop %v9032
      %v9097 = vmul.f32 %v9096, %v9032
      %v9098 = vmul.f32 %v9097, %v9096
      %v9099 = vmul.f32 0.5, %v9098
      %v9100 = vsub.f32 1.5, %v9099
      %v9101 = vmul.f32 %v9096, %v9100
      %vm9102 = vweird.f32 %v9032
      %vm9103 = vweird.f32 %v9096
      %vm9104 = vmor %vm9102, %vm9103
      %v9105 = vsel %vm9104, %v9096, %v9101
      %v9106 = vrsqrt.pop %v9033
      %v9107 = vmul.f32 %v9106, %v9033
      %v9108 = vmul.f32 %v9107, %v9106
      %v9109 = vmul.f32 0.5, %v9108
      %v9110 = vsub.f32 1.5, %v9109
      %v9111 = vmul.f32 %v9106, %v9110
      %vm9112 = vweird.f32 %v9033
      %vm9113 = vweird.f32 %v9106
      %vm9114 = vmor %vm9112, %vm9113
      %v9115 = vsel %vm9114, %v9106, %v9111
      %v9116 = vrsqrt.pop %v9034
      %v9117 = vmul.f32 %v9116, %v9034
      %v9118 = vmul.f32 %v9117, %v9116
      %v9119 = vmul.f32 0.5, %v9118
      %v9120 = vsub.f32 1.5, %v9119
      %v9121 = vmul.f32 %v9116, %v9120
      %vm9122 = vweird.f32 %v9034
      %vm9123 = vweird.f32 %v9116
      %vm9124 = vmor %vm9122, %vm9123
      %v9125 = vsel %vm9124, %v9116, %v9121
      %v9126 = vrsqrt.pop %v9035
      %v9127 = vmul.f32 %v9126, %v9035
      %v9128 = vmul.f32 %v9127, %v9126
      %v9129 = vmul.f32 0.5, %v9128
      %v9130 = vsub.f32 1.5, %v9129
      %v9131 = vmul.f32 %v9126, %v9130
      %vm9132 = vweird.f32 %v9035
      %vm9133 = vweird.f32 %v9126
      %vm9134 = vmor %vm9132, %vm9133
      %v9135 = vsel %vm9134, %v9126, %v9131
      %v9136 = vmul.f32 %v8966, %v9045
      %v9137 = vmul.f32 %v8967, %v9055
      %v9138 = vmul.f32 %v8968, %v9065
      %v9139 = vmul.f32 %v8969, %v9075
      %v9140 = vmul.f32 %v8970, %v9085
      %v9141 = vmul.f32 %v8971, %v9095
      %v9142 = vmul.f32 %v8972, %v9105
      %v9143 = vmul.f32 %v8973, %v9115
      %v9144 = vmul.f32 %v8974, %v9125
      %v9145 = vmul.f32 %v8975, %v9135
      %v9147 = vperm.slane %v8923, 0
      %v9149 = vmul.f32 %v9136, %v9147
      %v9150 = vmul.f32 %v9137, %v9147
      %v9151 = vmul.f32 %v9138, %v9147
      %v9152 = vmul.f32 %v9139, %v9147
      %v9153 = vmul.f32 %v9140, %v9147
      %v9154 = vmul.f32 %v9141, %v9147
      %v9155 = vmul.f32 %v9142, %v9147
      %v9156 = vmul.f32 %v9143, %v9147
      %v9157 = vmul.f32 %v9144, %v9147
      %v9158 = vmul.f32 %v9145, %v9147
      %v9160 = vperm.slane %v8925, 0
      %v9162 = vadd.f32 %v9149, %v9160
      %v9163 = vadd.f32 %v9150, %v9160
      %v9164 = vadd.f32 %v9151, %v9160
      %v9165 = vadd.f32 %v9152, %v9160
      %v9166 = vadd.f32 %v9153, %v9160
      %v9167 = vadd.f32 %v9154, %v9160
      %v9168 = vadd.f32 %v9155, %v9160
      %v9169 = vadd.f32 %v9156, %v9160
      %v9170 = vadd.f32 %v9157, %v9160
      %v9171 = vadd.f32 %v9158, %v9160
      %9172 = vst.msk [vmem:[%s818] sm:$0xff] %vm1254, %v9162
      %9173 = vst.msk [vmem:[%s818 + $0x8] sm:$0xff] %vm1254, %v9163
      %9174 = vst.msk [vmem:[%s818 + $0x10] sm:$0xff] %vm1254, %v9164
      %9175 = vst.msk [vmem:[%s818 + $0x18] sm:$0xff] %vm1254, %v9165
      %9176 = vst.msk [vmem:[%s818 + $0x20] sm:$0xff] %vm1254, %v9166
      %9177 = vst.msk [vmem:[%s818 + $0x28] sm:$0xff] %vm1254, %v9167
      %9178 = vst.msk [vmem:[%s818 + $0x30] sm:$0xff] %vm1254, %v9168
      %9179 = vst.msk [vmem:[%s818 + $0x38] sm:$0xff] %vm1254, %v9169
      %9180 = vst.msk [vmem:[%s818 + $0x40] sm:$0xff] %vm1254, %v9170
      %9181 = vst.msk [vmem:[%s818 + $0x48] sm:$0xff] %vm1254, %v9171
      %p9182 = scmp.lt.s32.totalorder %s38, 1
      %s9183 = scalar_select %p9182, %s38, 1
      %s9184 = smul.addr %s9183, 10
      %s9185 = smul.addr %s9184, 8
      %s9186 = scalar_lea.vmem %s27, %s9185
      // Predicated region
      $region129: #{wav2vec2_forward.1} parent=127 // pred_check
        %p9187 = pneg %p628
      $region130: #{wav2vec2_forward.1} parent=127 // pred_check_branch
        %9189 = sbr.rel (%p9187) target = $region132
      $region131: #{wav2vec2_forward.1} parent=127 // pred_region
        _
      $region132: #{wav2vec2_forward.1} parent=127 // pred_fallthru
        _
    $region128: #{wav2vec2_forward.1} parent=5 // pred_fallthru
      _
    %p9190 = scmp.le.s32.totalorder 2, %s33
    // Predicated region
    $region133: #{wav2vec2_forward.1} parent=5 // pred_check
      %p9191 = pneg %p9190
    $region134: #{wav2vec2_forward.1} parent=5 // pred_check_branch
      %9193 = sbr.rel (%p9191) target = $region136
    $region135: #{wav2vec2_forward.1} parent=5 // pred_region
      %s9194 = ssub.s32 %s33, 2
      // Predicated region
      $region137: #{wav2vec2_forward.1} parent=135 // pred_check
        %p9195 = pneg %p634
      $region138: #{wav2vec2_forward.1} parent=135 // pred_check_branch
        %9197 = sbr.rel (%p9195) target = $region140
      $region139: #{wav2vec2_forward.1} parent=135 // pred_region
        %p9198 = scmp.lt.s32.totalorder %s39, 1
        %s9199 = scalar_select %p9198, %s39, 1
        %s9200 = smul.addr %s9199, 10
        %s9201 = smul.addr %s9200, 8
        %s9202 = scalar_lea.vmem %s27, %s9201
      $region140: #{wav2vec2_forward.1} parent=135 // pred_fallthru
        _
    $region136: #{wav2vec2_forward.1} parent=5 // pred_fallthru
      _
  $region6: #{wav2vec2_forward.1} parent=0 // loop_footer
    %s37 = sadd.s32 1, %s33
  $region7: #{wav2vec2_forward.1} parent=0 // loop_footer_branch
    %32 = sbr.rel target = $region3
  $region8: #{wav2vec2_forward.1} parent=0 // loop_exit
    _

</llo_original>
